<compile_context>
chip_gen: v5e
topology: v5e:2x2
jax: 0.10.0
libtpu: 0.0.40
codegen_flags: <defaults>
</compile_context>

<pallas_src>
import functools
import math

import numpy as np
import jax
import jax.numpy as jnp
from jax.experimental import pallas as pl
from jax.experimental.pallas import tpu as pltpu


# ----------------------------------------------------------------------------
# The single fused kernel
# ----------------------------------------------------------------------------

def _spectral_fused_kernel(
        x_ref, c1_ref, b1t_ref, c2_ref, b2t_ref,
        emb_w_ref, pe_bias_ref, mask_ref, pool_ref,
        wqkv_ref, bqkv_ref, wo_ref, bo_ref, ln1g_ref, ln1b_ref,
        wf1_ref, bf1_ref, wf2_ref, bf2_ref, ln2g_ref, ln2b_ref,
        fc1_w_ref, fc1_b_ref, fc2_w_ref, fc2_b_ref,
        out_ref,
        *, B, L, S, H, D, hd, n_layers):
    f32 = jnp.float32
    bf16 = jnp.bfloat16
    T = B * S              # token rows, seq-major: row r = s*B + b
    L2 = L // 2
    n1 = L2 * 32           # conv1 pooled cols (position-major, channel-minor)
    n2 = S * 64            # conv2 pooled cols

    # ---- conv1 + folded BN1 + ReLU + MaxPool(2): one matmul + one max ------
    xin = x_ref[...]                                               # (B, L) f32
    y1 = jnp.dot(xin, c1_ref[...], preferred_element_type=f32)     # (B, 2*n1)
    h1 = jnp.maximum(jnp.maximum(y1[:, :n1], y1[:, n1:]) + b1t_ref[...], 0.0)

    # ---- conv2 + folded BN2 + ReLU + MaxPool(2) -----------------------------
    y2 = jnp.dot(h1, c2_ref[...], preferred_element_type=f32)      # (B, 2*n2)
    h2 = jnp.maximum(jnp.maximum(y2[:, :n2], y2[:, n2:]) + b2t_ref[...], 0.0)

    # ---- (B, S*64) -> token rows (T, 64), seq-major row order ---------------
    tokens = jnp.concatenate([h2[:, s * 64:(s + 1) * 64] for s in range(S)],
                             axis=0)                                # (T, 64)

    # ---- embedding + positional encoding (emb bias + pe pre-folded) ---------
    z = jnp.dot(tokens.astype(bf16), emb_w_ref[...],
                preferred_element_type=f32) + pe_bias_ref[...]      # (T, D) f32

    mask = mask_ref[...]                                            # (H*T, H*T)

    def lnorm(y, g, b):
        mu = jnp.mean(y, axis=-1, keepdims=True)
        var = jnp.mean((y - mu) * (y - mu), axis=-1, keepdims=True)
        return (y - mu) * jax.lax.rsqrt(var + 1e-5) * g + b

    def to_heads(y):    # (T, D) -> (H*T, hd); row h*T + r = head h of token r
        return jnp.concatenate([y[:, h * hd:(h + 1) * hd] for h in range(H)],
                               axis=0)

    def from_heads(y):  # (H*T, hd) -> (T, D)
        return jnp.concatenate([y[h * T:(h + 1) * T, :] for h in range(H)],
                               axis=1)

    for l in range(n_layers):
        # ---- multi-head self-attention as ONE block-diag masked matmul -----
        qkv = jnp.dot(z.astype(bf16), wqkv_ref[l],
                      preferred_element_type=f32) + bqkv_ref[l]     # (T, 3D)
        qh = to_heads(qkv[:, 0 * D:1 * D])   # 1/sqrt(hd) folded into wqkv/bqkv
        kh = to_heads(qkv[:, 1 * D:2 * D])
        vh = to_heads(qkv[:, 2 * D:3 * D])

        sc = jax.lax.dot_general(qh, kh, (((1,), (1,)), ((), ())),
                                 preferred_element_type=f32)        # (HT, HT)
        sc = sc + mask                       # -1e9 off the (head,batch) blocks
        sc = sc - jnp.max(sc, axis=-1, keepdims=True)
        pr = jnp.exp(sc)
        pr = pr * pl.reciprocal(jnp.sum(pr, axis=-1, keepdims=True),
                                approx=True)
        attn = from_heads(jnp.dot(pr, vh, preferred_element_type=f32))  # (T,D)
        attn = jnp.dot(attn.astype(bf16), wo_ref[l],
                       preferred_element_type=f32) + bo_ref[l]

        # residual + LayerNorm1 (post-norm)
        z = lnorm(z + attn, ln1g_ref[l], ln1b_ref[l])

        # ---- feed-forward ----
        ff = jnp.dot(z.astype(bf16), wf1_ref[l],
                     preferred_element_type=f32) + bf1_ref[l]
        ff = jnp.maximum(ff, 0.0)
        ff = jnp.dot(ff.astype(bf16), wf2_ref[l],
                     preferred_element_type=f32) + bf2_ref[l]

        # residual + LayerNorm2
        z = lnorm(z + ff, ln2g_ref[l], ln2b_ref[l])

    # ---- head: seq-mean as a matmul, fc1 + ReLU, (dropout=id), fc2 ----------
    pooled = jnp.dot(pool_ref[...], z, preferred_element_type=f32)  # (B, D)
    hid = jnp.maximum(
        jnp.dot(pooled, fc1_w_ref[...], preferred_element_type=f32)
        + fc1_b_ref[...], 0.0)
    out_ref[...] = (jnp.dot(hid, fc2_w_ref[...],
                            preferred_element_type=f32) + fc2_b_ref[...])


# ----------------------------------------------------------------------------
# Pallas wrapper (single pallas_call, no grid, whole-array VMEM operands)
# ----------------------------------------------------------------------------

def spectral_classifier_forward(x, params, nhead=8):
    """x: (B, 1, L) (PyTorch NCL) -> logits (B, num_classes)."""
    B, C, L = x.shape
    assert C == 1 and L % 4 == 0
    assert params['c1'].shape[0] == L, "params were built for a different L"
    S = L // 4
    D = params['emb_w'].shape[1]
    n_layers = params['wqkv'].shape[0]
    n_classes = params['fc2_w'].shape[1]

    args = [
        x.reshape(B, L).astype(jnp.float32),
        params['c1'], params['b1t'], params['c2'], params['b2t'],
        params['emb_w'], params['pe_bias'], params['attn_mask'], params['pool'],
        params['wqkv'], params['bqkv'], params['wo'], params['bo'],
        params['ln1_g'], params['ln1_b'],
        params['wf1'], params['bf1'], params['wf2'], params['bf2'],
        params['ln2_g'], params['ln2_b'],
        params['fc1_w'], params['fc1_b'], params['fc2_w'], params['fc2_b'],
    ]

    kern = functools.partial(_spectral_fused_kernel, B=B, L=L, S=S, H=nhead,
                             D=D, hd=D // nhead, n_layers=int(n_layers))
    vmem = pl.BlockSpec(memory_space=pltpu.MemorySpace.VMEM)
    return pl.pallas_call(
        kern,
        out_shape=jax.ShapeDtypeStruct((B, n_classes), jnp.float32),
        in_specs=[vmem] * len(args),
        out_specs=vmem,
    )(*args)


# ----------------------------------------------------------------------------
# Parameter / constant construction (host-side, once)
# ----------------------------------------------------------------------------

def _positional_encoding(max_len, d_model):
    position = np.arange(max_len, dtype=np.float32)[:, None]
    div_term = np.exp(np.arange(0, d_model, 2, dtype=np.float32)
                      * (-np.log(10000.0) / d_model))
    pe = np.zeros((max_len, d_model), dtype=np.float32)
    pe[:, 0::2] = np.sin(position * div_term)
    pe[:, 1::2] = np.cos(position * div_term)
    return pe                                           # (max_len, d_model)


def _conv_pool_matrix(w, k, pad, c_in, c_out, l_in):
    """Conv1d(stride=1, same pad) followed by MaxPool1d(2) as ONE matmul matrix.

    Input  columns: position*c_in + channel (position-major).
    Output columns: first l_out*c_out = even conv positions, second half = odd;
    the pool is then an elementwise max of the two halves.
    """
    l_out = l_in // 2
    m = np.zeros((l_in * c_in, 2 * l_out * c_out), dtype=np.float32)
    for p in range(l_out):
        for half, t in ((0, 2 * p), (1, 2 * p + 1)):
            col = half * l_out * c_out + p * c_out
            for j in range(k):
                q = t + j - pad
                if 0 <= q < l_in:
                    m[q * c_in:(q + 1) * c_in, col:col + c_out] += w[:, :, j].T
    return m


def init_params(key, *, num_classes=3, d_model=128, nhead=8, d_ff=2048,
                n_layers=3, batch=2, length=16, max_len=16):
    assert length % 4 == 0 and batch <= max_len
    L, B = length, batch
    L2, S = L // 2, L // 4
    T = B * S
    hd = d_model // nhead
    keys = iter(jax.random.split(key, 64))

    def nrm(shape, std=0.05):
        return (std * jax.random.normal(next(keys), shape)).astype(jnp.float32)

    eps = 1e-5
    p = {}

    # ---- conv stages as matmul matrices (BN folded, eval running stats) -----
    w1 = np.asarray(nrm((32, 1, 5)));  b1 = np.asarray(nrm((32,), 0.02))
    w2 = np.asarray(nrm((64, 32, 3))); b2 = np.asarray(nrm((64,), 0.02))
    bn1_s = np.ones(32, np.float32) / np.sqrt(1.0 + eps)
    bn2_s = np.ones(64, np.float32) / np.sqrt(1.0 + eps)
    bn1_b = np.zeros(32, np.float32); bn2_b = np.zeros(64, np.float32)

    p['c1'] = jnp.asarray(_conv_pool_matrix(w1 * bn1_s[:, None, None],
                                            5, 2, 1, 32, L))        # (L, 2*L2*32)
    p['b1t'] = jnp.asarray(np.tile(b1 * bn1_s + bn1_b, L2)[None, :])
    p['c2'] = jnp.asarray(_conv_pool_matrix(w2 * bn2_s[:, None, None],
                                            3, 1, 32, 64, L2))      # (L2*32, 2*S*64)
    p['b2t'] = jnp.asarray(np.tile(b2 * bn2_s + bn2_b, S)[None, :])

    # ---- embedding + positional encoding (+ emb bias) -----------------------
    emb_w = nrm((d_model, 64))                         # PyTorch (out, in)
    emb_b = nrm((d_model,), 0.02)
    p['emb_w'] = emb_w.T.astype(jnp.bfloat16)          # (64, D)
    pe = _positional_encoding(max_len, d_model)
    pe_tok = np.zeros((T, d_model), np.float32)
    for s in range(S):
        for b in range(B):
            pe_tok[s * B + b] = pe[b]                  # reference quirk: pe[batch]
    p['pe_bias'] = jnp.asarray(pe_tok) + emb_b[None, :]             # (T, D) f32

    # ---- block-diagonal attention mask & mean-pool matrix -------------------
    mask = np.full((nhead * T, nhead * T), -1e9, np.float32)
    for h in range(nhead):
        for i in range(T):
            for j in range(T):
                if i % B == j % B:                     # same batch (seq-major rows)
                    mask[h * T + i, h * T + j] = 0.0
    p['attn_mask'] = jnp.asarray(mask)                               # (HT, HT)
    pool = np.zeros((B, T), np.float32)
    for b in range(B):
        for s in range(S):
            pool[b, s * B + b] = 1.0 / S
    p['pool'] = jnp.asarray(pool)                                    # (B, T)

    # ---- transformer layers (stacked along a leading layer axis) ------------
    scale = 1.0 / math.sqrt(hd)
    stacks = {k_: [] for k_ in ('wqkv', 'bqkv', 'wo', 'bo', 'ln1_g', 'ln1_b',
                                'wf1', 'bf1', 'wf2', 'bf2', 'ln2_g', 'ln2_b')}
    for _ in range(n_layers):
        wqkv = nrm((3 * d_model, d_model)).T                         # (D, 3D)
        wqkv = wqkv.at[:, :d_model].multiply(scale)                  # fold 1/sqrt(hd)
        bqkv = nrm((3 * d_model,), 0.02).at[:d_model].multiply(scale)
        stacks['wqkv'].append(wqkv.astype(jnp.bfloat16))
        stacks['bqkv'].append(bqkv.reshape(1, 3 * d_model))
        stacks['wo'].append(nrm((d_model, d_model)).T.astype(jnp.bfloat16))
        stacks['bo'].append(nrm((d_model,), 0.02).reshape(1, d_model))
        stacks['ln1_g'].append(jnp.ones((1, d_model), jnp.float32))
        stacks['ln1_b'].append(jnp.zeros((1, d_model), jnp.float32))
        stacks['wf1'].append(nrm((d_ff, d_model)).T.astype(jnp.bfloat16))
        stacks['bf1'].append(nrm((d_ff,), 0.02).reshape(1, d_ff))
        stacks['wf2'].append(nrm((d_model, d_ff)).T.astype(jnp.bfloat16))
        stacks['bf2'].append(nrm((d_model,), 0.02).reshape(1, d_model))
        stacks['ln2_g'].append(jnp.ones((1, d_model), jnp.float32))
        stacks['ln2_b'].append(jnp.zeros((1, d_model), jnp.float32))
    for k_, v_ in stacks.items():
        p[k_] = jnp.stack(v_)                          # (n_layers, ...) each

    # ---- classification head ------------------------------------------------
    p['fc1_w'] = nrm((64, d_model)).T                  # (D, 64)
    p['fc1_b'] = nrm((64,), 0.02).reshape(1, 64)
    p['fc2_w'] = nrm((num_classes, 64)).T              # (64, C)
    p['fc2_b'] = nrm((num_classes,), 0.02).reshape(1, num_classes)
    return p


# ----------------------------------------------------------------------------
# Demo
# ----------------------------------------------------------------------------

if __name__ == "__main__":
    key = jax.random.PRNGKey(0)
    pkey, xkey = jax.random.split(key)

    # small shapes: batch=2, channels=1, length=16 (length divisible by 4)
    B, L = 2, 16
    params = init_params(pkey, num_classes=3, batch=B, length=L)
    x = jax.random.normal(xkey, (B, 1, L), dtype=jnp.float32)

    fwd = jax.jit(spectral_classifier_forward)
    out = jax.block_until_ready(fwd(x, params))

    assert out.shape == (2, 3), out.shape
    assert bool(jnp.all(jnp.isfinite(out)))
    print("KERNEL_OK")
</pallas_src>

<mosaic_0001>
module attributes {stable_mosaic.version = 11 : i64} {
  func.func @_spectral_fused_kernel(%arg0: memref<2x16xf32, #tpu.memory_space<vmem>>, %arg1: memref<16x512xf32, #tpu.memory_space<vmem>>, %arg2: memref<1x256xf32, #tpu.memory_space<vmem>>, %arg3: memref<256x512xf32, #tpu.memory_space<vmem>>, %arg4: memref<1x256xf32, #tpu.memory_space<vmem>>, %arg5: memref<64x128xbf16, #tpu.memory_space<vmem>>, %arg6: memref<8x128xf32, #tpu.memory_space<vmem>>, %arg7: memref<64x64xf32, #tpu.memory_space<vmem>>, %arg8: memref<2x8xf32, #tpu.memory_space<vmem>>, %arg9: memref<3x128x384xbf16, #tpu.memory_space<vmem>>, %arg10: memref<3x1x384xf32, #tpu.memory_space<vmem>>, %arg11: memref<3x128x128xbf16, #tpu.memory_space<vmem>>, %arg12: memref<3x1x128xf32, #tpu.memory_space<vmem>>, %arg13: memref<3x1x128xf32, #tpu.memory_space<vmem>>, %arg14: memref<3x1x128xf32, #tpu.memory_space<vmem>>, %arg15: memref<3x128x2048xbf16, #tpu.memory_space<vmem>>, %arg16: memref<3x1x2048xf32, #tpu.memory_space<vmem>>, %arg17: memref<3x2048x128xbf16, #tpu.memory_space<vmem>>, %arg18: memref<3x1x128xf32, #tpu.memory_space<vmem>>, %arg19: memref<3x1x128xf32, #tpu.memory_space<vmem>>, %arg20: memref<3x1x128xf32, #tpu.memory_space<vmem>>, %arg21: memref<128x64xf32, #tpu.memory_space<vmem>>, %arg22: memref<1x64xf32, #tpu.memory_space<vmem>>, %arg23: memref<64x3xf32, #tpu.memory_space<vmem>>, %arg24: memref<1x3xf32, #tpu.memory_space<vmem>>, %arg25: memref<2x3xf32, #tpu.memory_space<vmem>>) attributes {dimension_semantics = [], scalar_prefetch = 0 : i64, scratch_operands = 0 : i64, tpu.core_type = #tpu.core_type<tc>} {
    %c0 = arith.constant 0 : index
    %c0_0 = arith.constant 0 : index
    %0 = vector.load %arg0[%c0, %c0_0] : memref<2x16xf32, #tpu.memory_space<vmem>>, vector<2x16xf32>
    %c0_1 = arith.constant 0 : index
    %c0_2 = arith.constant 0 : index
    %1 = vector.load %arg1[%c0_1, %c0_2] : memref<16x512xf32, #tpu.memory_space<vmem>>, vector<16x512xf32>
    %cst = arith.constant dense<0.000000e+00> : vector<2x512xf32>
    %2 = tpu.matmul %0, %1, %cst {dimension_numbers = #tpu.dot_dimension_numbers<[1], [0], [0], [1], [0, 0, 1, 1], [], []>} : vector<2x16xf32>, vector<16x512xf32>, vector<2x512xf32> -> vector<2x512xf32>
    %3 = vector.extract_strided_slice %2 {offsets = [0, 0], sizes = [2, 256], strides = [1, 1]} : vector<2x512xf32> to vector<2x256xf32>
    %4 = vector.extract_strided_slice %2 {offsets = [0, 256], sizes = [2, 256], strides = [1, 1]} : vector<2x512xf32> to vector<2x256xf32>
    %5 = arith.maximumf %3, %4 : vector<2x256xf32>
    %c0_3 = arith.constant 0 : index
    %c0_4 = arith.constant 0 : index
    %6 = vector.load %arg2[%c0_3, %c0_4] : memref<1x256xf32, #tpu.memory_space<vmem>>, vector<1x256xf32>
    %7 = vector.broadcast %6 : vector<1x256xf32> to vector<2x256xf32>
    %8 = arith.addf %5, %7 : vector<2x256xf32>
    %cst_5 = arith.constant 0.000000e+00 : f32
    %9 = vector.broadcast %cst_5 : f32 to vector<2x256xf32>
    %10 = arith.maximumf %8, %9 : vector<2x256xf32>
    %c0_6 = arith.constant 0 : index
    %c0_7 = arith.constant 0 : index
    %11 = vector.load %arg3[%c0_6, %c0_7] : memref<256x512xf32, #tpu.memory_space<vmem>>, vector<256x512xf32>
    %cst_8 = arith.constant dense<0.000000e+00> : vector<2x512xf32>
    %12 = tpu.matmul %10, %11, %cst_8 {dimension_numbers = #tpu.dot_dimension_numbers<[1], [0], [0], [1], [0, 0, 1, 1], [], []>} : vector<2x256xf32>, vector<256x512xf32>, vector<2x512xf32> -> vector<2x512xf32>
    %13 = vector.extract_strided_slice %12 {offsets = [0, 0], sizes = [2, 256], strides = [1, 1]} : vector<2x512xf32> to vector<2x256xf32>
    %14 = vector.extract_strided_slice %12 {offsets = [0, 256], sizes = [2, 256], strides = [1, 1]} : vector<2x512xf32> to vector<2x256xf32>
    %15 = arith.maximumf %13, %14 : vector<2x256xf32>
    %c0_9 = arith.constant 0 : index
    %c0_10 = arith.constant 0 : index
    %16 = vector.load %arg4[%c0_9, %c0_10] : memref<1x256xf32, #tpu.memory_space<vmem>>, vector<1x256xf32>
    %17 = vector.broadcast %16 : vector<1x256xf32> to vector<2x256xf32>
    %18 = arith.addf %15, %17 : vector<2x256xf32>
    %cst_11 = arith.constant 0.000000e+00 : f32
    %19 = vector.broadcast %cst_11 : f32 to vector<2x256xf32>
    %20 = arith.maximumf %18, %19 : vector<2x256xf32>
    %21 = vector.extract_strided_slice %20 {offsets = [0, 0], sizes = [2, 64], strides = [1, 1]} : vector<2x256xf32> to vector<2x64xf32>
    %22 = vector.extract_strided_slice %20 {offsets = [0, 64], sizes = [2, 64], strides = [1, 1]} : vector<2x256xf32> to vector<2x64xf32>
    %23 = vector.extract_strided_slice %20 {offsets = [0, 128], sizes = [2, 64], strides = [1, 1]} : vector<2x256xf32> to vector<2x64xf32>
    %24 = vector.extract_strided_slice %20 {offsets = [0, 192], sizes = [2, 64], strides = [1, 1]} : vector<2x256xf32> to vector<2x64xf32>
    %25 = tpu.concatenate %21, %22, %23, %24 in 0 : vector<2x64xf32>, vector<2x64xf32>, vector<2x64xf32>, vector<2x64xf32> -> vector<8x64xf32>
    %26 = arith.truncf %25 : vector<8x64xf32> to vector<8x64xbf16>
    %c0_12 = arith.constant 0 : index
    %c0_13 = arith.constant 0 : index
    %27 = vector.load %arg5[%c0_12, %c0_13] : memref<64x128xbf16, #tpu.memory_space<vmem>>, vector<64x128xbf16>
    %cst_14 = arith.constant dense<0.000000e+00> : vector<8x128xf32>
    %28 = tpu.matmul %26, %27, %cst_14 {dimension_numbers = #tpu.dot_dimension_numbers<[1], [0], [0], [1], [0, 0, 1, 1], [], []>} : vector<8x64xbf16>, vector<64x128xbf16>, vector<8x128xf32> -> vector<8x128xf32>
    %c0_15 = arith.constant 0 : index
    %c0_16 = arith.constant 0 : index
    %29 = vector.load %arg6[%c0_15, %c0_16] : memref<8x128xf32, #tpu.memory_space<vmem>>, vector<8x128xf32>
    %30 = arith.addf %28, %29 : vector<8x128xf32>
    %c0_17 = arith.constant 0 : index
    %c0_18 = arith.constant 0 : index
    %31 = vector.load %arg7[%c0_17, %c0_18] : memref<64x64xf32, #tpu.memory_space<vmem>>, vector<64x64xf32>
    %32 = arith.truncf %30 : vector<8x128xf32> to vector<8x128xbf16>
    %c0_19 = arith.constant 0 : index
    %c0_20 = arith.constant 0 : index
    %c0_21 = arith.constant 0 : index
    %33 = vector.load %arg9[%c0_19, %c0_20, %c0_21] : memref<3x128x384xbf16, #tpu.memory_space<vmem>>, vector<1x128x384xbf16>
    %34 = vector.shape_cast %33 : vector<1x128x384xbf16> to vector<128x384xbf16>
    %cst_22 = arith.constant dense<0.000000e+00> : vector<8x384xf32>
    %35 = tpu.matmul %32, %34, %cst_22 {dimension_numbers = #tpu.dot_dimension_numbers<[1], [0], [0], [1], [0, 0, 1, 1], [], []>} : vector<8x128xbf16>, vector<128x384xbf16>, vector<8x384xf32> -> vector<8x384xf32>
    %c0_23 = arith.constant 0 : index
    %c0_24 = arith.constant 0 : index
    %c0_25 = arith.constant 0 : index
    %36 = vector.load %arg10[%c0_23, %c0_24, %c0_25] : memref<3x1x384xf32, #tpu.memory_space<vmem>>, vector<1x1x384xf32>
    %37 = vector.shape_cast %36 : vector<1x1x384xf32> to vector<1x384xf32>
    %38 = vector.broadcast %37 : vector<1x384xf32> to vector<8x384xf32>
    %39 = arith.addf %35, %38 : vector<8x384xf32>
    %40 = vector.extract_strided_slice %39 {offsets = [0, 0], sizes = [8, 128], strides = [1, 1]} : vector<8x384xf32> to vector<8x128xf32>
    %41 = vector.extract_strided_slice %40 {offsets = [0, 0], sizes = [8, 16], strides = [1, 1]} : vector<8x128xf32> to vector<8x16xf32>
    %42 = vector.extract_strided_slice %40 {offsets = [0, 16], sizes = [8, 16], strides = [1, 1]} : vector<8x128xf32> to vector<8x16xf32>
    %43 = vector.extract_strided_slice %40 {offsets = [0, 32], sizes = [8, 16], strides = [1, 1]} : vector<8x128xf32> to vector<8x16xf32>
    %44 = vector.extract_strided_slice %40 {offsets = [0, 48], sizes = [8, 16], strides = [1, 1]} : vector<8x128xf32> to vector<8x16xf32>
    %45 = vector.extract_strided_slice %40 {offsets = [0, 64], sizes = [8, 16], strides = [1, 1]} : vector<8x128xf32> to vector<8x16xf32>
    %46 = vector.extract_strided_slice %40 {offsets = [0, 80], sizes = [8, 16], strides = [1, 1]} : vector<8x128xf32> to vector<8x16xf32>
    %47 = vector.extract_strided_slice %40 {offsets = [0, 96], sizes = [8, 16], strides = [1, 1]} : vector<8x128xf32> to vector<8x16xf32>
    %48 = vector.extract_strided_slice %40 {offsets = [0, 112], sizes = [8, 16], strides = [1, 1]} : vector<8x128xf32> to vector<8x16xf32>
    %49 = tpu.concatenate %41, %42, %43, %44, %45, %46, %47, %48 in 0 : vector<8x16xf32>, vector<8x16xf32>, vector<8x16xf32>, vector<8x16xf32>, vector<8x16xf32>, vector<8x16xf32>, vector<8x16xf32>, vector<8x16xf32> -> vector<64x16xf32>
    %50 = vector.extract_strided_slice %39 {offsets = [0, 128], sizes = [8, 128], strides = [1, 1]} : vector<8x384xf32> to vector<8x128xf32>
    %51 = vector.extract_strided_slice %50 {offsets = [0, 0], sizes = [8, 16], strides = [1, 1]} : vector<8x128xf32> to vector<8x16xf32>
    %52 = vector.extract_strided_slice %50 {offsets = [0, 16], sizes = [8, 16], strides = [1, 1]} : vector<8x128xf32> to vector<8x16xf32>
    %53 = vector.extract_strided_slice %50 {offsets = [0, 32], sizes = [8, 16], strides = [1, 1]} : vector<8x128xf32> to vector<8x16xf32>
    %54 = vector.extract_strided_slice %50 {offsets = [0, 48], sizes = [8, 16], strides = [1, 1]} : vector<8x128xf32> to vector<8x16xf32>
    %55 = vector.extract_strided_slice %50 {offsets = [0, 64], sizes = [8, 16], strides = [1, 1]} : vector<8x128xf32> to vector<8x16xf32>
    %56 = vector.extract_strided_slice %50 {offsets = [0, 80], sizes = [8, 16], strides = [1, 1]} : vector<8x128xf32> to vector<8x16xf32>
    %57 = vector.extract_strided_slice %50 {offsets = [0, 96], sizes = [8, 16], strides = [1, 1]} : vector<8x128xf32> to vector<8x16xf32>
    %58 = vector.extract_strided_slice %50 {offsets = [0, 112], sizes = [8, 16], strides = [1, 1]} : vector<8x128xf32> to vector<8x16xf32>
    %59 = tpu.concatenate %51, %52, %53, %54, %55, %56, %57, %58 in 0 : vector<8x16xf32>, vector<8x16xf32>, vector<8x16xf32>, vector<8x16xf32>, vector<8x16xf32>, vector<8x16xf32>, vector<8x16xf32>, vector<8x16xf32> -> vector<64x16xf32>
    %60 = vector.extract_strided_slice %39 {offsets = [0, 256], sizes = [8, 128], strides = [1, 1]} : vector<8x384xf32> to vector<8x128xf32>
    %61 = vector.extract_strided_slice %60 {offsets = [0, 0], sizes = [8, 16], strides = [1, 1]} : vector<8x128xf32> to vector<8x16xf32>
    %62 = vector.extract_strided_slice %60 {offsets = [0, 16], sizes = [8, 16], strides = [1, 1]} : vector<8x128xf32> to vector<8x16xf32>
    %63 = vector.extract_strided_slice %60 {offsets = [0, 32], sizes = [8, 16], strides = [1, 1]} : vector<8x128xf32> to vector<8x16xf32>
    %64 = vector.extract_strided_slice %60 {offsets = [0, 48], sizes = [8, 16], strides = [1, 1]} : vector<8x128xf32> to vector<8x16xf32>
    %65 = vector.extract_strided_slice %60 {offsets = [0, 64], sizes = [8, 16], strides = [1, 1]} : vector<8x128xf32> to vector<8x16xf32>
    %66 = vector.extract_strided_slice %60 {offsets = [0, 80], sizes = [8, 16], strides = [1, 1]} : vector<8x128xf32> to vector<8x16xf32>
    %67 = vector.extract_strided_slice %60 {offsets = [0, 96], sizes = [8, 16], strides = [1, 1]} : vector<8x128xf32> to vector<8x16xf32>
    %68 = vector.extract_strided_slice %60 {offsets = [0, 112], sizes = [8, 16], strides = [1, 1]} : vector<8x128xf32> to vector<8x16xf32>
    %69 = tpu.concatenate %61, %62, %63, %64, %65, %66, %67, %68 in 0 : vector<8x16xf32>, vector<8x16xf32>, vector<8x16xf32>, vector<8x16xf32>, vector<8x16xf32>, vector<8x16xf32>, vector<8x16xf32>, vector<8x16xf32> -> vector<64x16xf32>
    %cst_26 = arith.constant dense<0.000000e+00> : vector<64x64xf32>
    %70 = tpu.matmul %49, %59, %cst_26 {dimension_numbers = #tpu.dot_dimension_numbers<[1], [1], [0], [0], [0, 0, 1, 0], [], []>} : vector<64x16xf32>, vector<64x16xf32>, vector<64x64xf32> -> vector<64x64xf32>
    %71 = arith.addf %70, %31 : vector<64x64xf32>
    %cst_27 = arith.constant dense<0xFF800000> : vector<64xf32>
    %72 = vector.multi_reduction <maximumf>, %71, %cst_27 [1] : vector<64x64xf32> to vector<64xf32>
    %73 = vector.shape_cast %72 : vector<64xf32> to vector<64x1xf32>
    %74 = vector.broadcast %73 : vector<64x1xf32> to vector<64x64xf32>
    %75 = arith.subf %71, %74 : vector<64x64xf32>
    %76 = math.exp %75 : vector<64x64xf32>
    %cst_28 = arith.constant dense<0.000000e+00> : vector<64xf32>
    %77 = vector.multi_reduction <add>, %76, %cst_28 [1] : vector<64x64xf32> to vector<64xf32>
    %78 = vector.shape_cast %77 : vector<64xf32> to vector<64x1xf32>
    %79 = tpu.reciprocal %78 {approx = true} : vector<64x1xf32> -> vector<64x1xf32>
    %80 = vector.broadcast %79 : vector<64x1xf32> to vector<64x64xf32>
    %81 = arith.mulf %76, %80 : vector<64x64xf32>
    %cst_29 = arith.constant dense<0.000000e+00> : vector<64x16xf32>
    %82 = tpu.matmul %81, %69, %cst_29 {dimension_numbers = #tpu.dot_dimension_numbers<[1], [0], [0], [1], [0, 0, 1, 1], [], []>} : vector<64x64xf32>, vector<64x16xf32>, vector<64x16xf32> -> vector<64x16xf32>
    %83 = vector.extract_strided_slice %82 {offsets = [0, 0], sizes = [8, 16], strides = [1, 1]} : vector<64x16xf32> to vector<8x16xf32>
    %84 = vector.extract_strided_slice %82 {offsets = [8, 0], sizes = [8, 16], strides = [1, 1]} : vector<64x16xf32> to vector<8x16xf32>
    %85 = vector.extract_strided_slice %82 {offsets = [16, 0], sizes = [8, 16], strides = [1, 1]} : vector<64x16xf32> to vector<8x16xf32>
    %86 = vector.extract_strided_slice %82 {offsets = [24, 0], sizes = [8, 16], strides = [1, 1]} : vector<64x16xf32> to vector<8x16xf32>
    %87 = vector.extract_strided_slice %82 {offsets = [32, 0], sizes = [8, 16], strides = [1, 1]} : vector<64x16xf32> to vector<8x16xf32>
    %88 = vector.extract_strided_slice %82 {offsets = [40, 0], sizes = [8, 16], strides = [1, 1]} : vector<64x16xf32> to vector<8x16xf32>
    %89 = vector.extract_strided_slice %82 {offsets = [48, 0], sizes = [8, 16], strides = [1, 1]} : vector<64x16xf32> to vector<8x16xf32>
    %90 = vector.extract_strided_slice %82 {offsets = [56, 0], sizes = [8, 16], strides = [1, 1]} : vector<64x16xf32> to vector<8x16xf32>
    %91 = tpu.concatenate %83, %84, %85, %86, %87, %88, %89, %90 in 1 : vector<8x16xf32>, vector<8x16xf32>, vector<8x16xf32>, vector<8x16xf32>, vector<8x16xf32>, vector<8x16xf32>, vector<8x16xf32>, vector<8x16xf32> -> vector<8x128xf32>
    %92 = arith.truncf %91 : vector<8x128xf32> to vector<8x128xbf16>
    %c0_30 = arith.constant 0 : index
    %c0_31 = arith.constant 0 : index
    %c0_32 = arith.constant 0 : index
    %93 = vector.load %arg11[%c0_30, %c0_31, %c0_32] : memref<3x128x128xbf16, #tpu.memory_space<vmem>>, vector<1x128x128xbf16>
    %94 = vector.shape_cast %93 : vector<1x128x128xbf16> to vector<128x128xbf16>
    %cst_33 = arith.constant dense<0.000000e+00> : vector<8x128xf32>
    %95 = tpu.matmul %92, %94, %cst_33 {dimension_numbers = #tpu.dot_dimension_numbers<[1], [0], [0], [1], [0, 0, 1, 1], [], []>} : vector<8x128xbf16>, vector<128x128xbf16>, vector<8x128xf32> -> vector<8x128xf32>
    %c0_34 = arith.constant 0 : index
    %c0_35 = arith.constant 0 : index
    %c0_36 = arith.constant 0 : index
    %96 = vector.load %arg12[%c0_34, %c0_35, %c0_36] : memref<3x1x128xf32, #tpu.memory_space<vmem>>, vector<1x1x128xf32>
    %97 = vector.shape_cast %96 : vector<1x1x128xf32> to vector<1x128xf32>
    %98 = vector.broadcast %97 : vector<1x128xf32> to vector<8x128xf32>
    %99 = arith.addf %95, %98 : vector<8x128xf32>
    %100 = arith.addf %30, %99 : vector<8x128xf32>
    %c0_37 = arith.constant 0 : index
    %c0_38 = arith.constant 0 : index
    %c0_39 = arith.constant 0 : index
    %101 = vector.load %arg13[%c0_37, %c0_38, %c0_39] : memref<3x1x128xf32, #tpu.memory_space<vmem>>, vector<1x1x128xf32>
    %102 = vector.shape_cast %101 : vector<1x1x128xf32> to vector<1x128xf32>
    %c0_40 = arith.constant 0 : index
    %c0_41 = arith.constant 0 : index
    %c0_42 = arith.constant 0 : index
    %103 = vector.load %arg14[%c0_40, %c0_41, %c0_42] : memref<3x1x128xf32, #tpu.memory_space<vmem>>, vector<1x1x128xf32>
    %104 = vector.shape_cast %103 : vector<1x1x128xf32> to vector<1x128xf32>
    %cst_43 = arith.constant dense<0.000000e+00> : vector<8xf32>
    %105 = vector.multi_reduction <add>, %100, %cst_43 [1] : vector<8x128xf32> to vector<8xf32>
    %106 = vector.shape_cast %105 : vector<8xf32> to vector<8x1xf32>
    %cst_44 = arith.constant 1.280000e+02 : f32
    %107 = vector.broadcast %cst_44 : f32 to vector<8x1xf32>
    %108 = arith.divf %106, %107 : vector<8x1xf32>
    %109 = vector.broadcast %108 : vector<8x1xf32> to vector<8x128xf32>
    %110 = arith.subf %100, %109 : vector<8x128xf32>
    %111 = vector.broadcast %108 : vector<8x1xf32> to vector<8x128xf32>
    %112 = arith.subf %100, %111 : vector<8x128xf32>
    %113 = arith.mulf %110, %112 : vector<8x128xf32>
    %cst_45 = arith.constant dense<0.000000e+00> : vector<8xf32>
    %114 = vector.multi_reduction <add>, %113, %cst_45 [1] : vector<8x128xf32> to vector<8xf32>
    %115 = vector.shape_cast %114 : vector<8xf32> to vector<8x1xf32>
    %cst_46 = arith.constant 1.280000e+02 : f32
    %116 = vector.broadcast %cst_46 : f32 to vector<8x1xf32>
    %117 = arith.divf %115, %116 : vector<8x1xf32>
    %118 = vector.broadcast %108 : vector<8x1xf32> to vector<8x128xf32>
    %119 = arith.subf %100, %118 : vector<8x128xf32>
    %cst_47 = arith.constant 9.99999974E-6 : f32
    %120 = vector.broadcast %cst_47 : f32 to vector<8x1xf32>
    %121 = arith.addf %117, %120 : vector<8x1xf32>
    %122 = math.rsqrt %121 : vector<8x1xf32>
    %123 = vector.broadcast %122 : vector<8x1xf32> to vector<8x128xf32>
    %124 = arith.mulf %119, %123 : vector<8x128xf32>
    %125 = vector.broadcast %102 : vector<1x128xf32> to vector<8x128xf32>
    %126 = arith.mulf %124, %125 : vector<8x128xf32>
    %127 = vector.broadcast %104 : vector<1x128xf32> to vector<8x128xf32>
    %128 = arith.addf %126, %127 : vector<8x128xf32>
    %129 = arith.truncf %128 : vector<8x128xf32> to vector<8x128xbf16>
    %c0_48 = arith.constant 0 : index
    %c0_49 = arith.constant 0 : index
    %c0_50 = arith.constant 0 : index
    %130 = vector.load %arg15[%c0_48, %c0_49, %c0_50] : memref<3x128x2048xbf16, #tpu.memory_space<vmem>>, vector<1x128x2048xbf16>
    %131 = vector.shape_cast %130 : vector<1x128x2048xbf16> to vector<128x2048xbf16>
    %cst_51 = arith.constant dense<0.000000e+00> : vector<8x2048xf32>
    %132 = tpu.matmul %129, %131, %cst_51 {dimension_numbers = #tpu.dot_dimension_numbers<[1], [0], [0], [1], [0, 0, 1, 1], [], []>} : vector<8x128xbf16>, vector<128x2048xbf16>, vector<8x2048xf32> -> vector<8x2048xf32>
    %c0_52 = arith.constant 0 : index
    %c0_53 = arith.constant 0 : index
    %c0_54 = arith.constant 0 : index
    %133 = vector.load %arg16[%c0_52, %c0_53, %c0_54] : memref<3x1x2048xf32, #tpu.memory_space<vmem>>, vector<1x1x2048xf32>
    %134 = vector.shape_cast %133 : vector<1x1x2048xf32> to vector<1x2048xf32>
    %135 = vector.broadcast %134 : vector<1x2048xf32> to vector<8x2048xf32>
    %136 = arith.addf %132, %135 : vector<8x2048xf32>
    %cst_55 = arith.constant 0.000000e+00 : f32
    %137 = vector.broadcast %cst_55 : f32 to vector<8x2048xf32>
    %138 = arith.maximumf %136, %137 : vector<8x2048xf32>
    %139 = arith.truncf %138 : vector<8x2048xf32> to vector<8x2048xbf16>
    %c0_56 = arith.constant 0 : index
    %c0_57 = arith.constant 0 : index
    %c0_58 = arith.constant 0 : index
    %140 = vector.load %arg17[%c0_56, %c0_57, %c0_58] : memref<3x2048x128xbf16, #tpu.memory_space<vmem>>, vector<1x2048x128xbf16>
    %141 = vector.shape_cast %140 : vector<1x2048x128xbf16> to vector<2048x128xbf16>
    %cst_59 = arith.constant dense<0.000000e+00> : vector<8x128xf32>
    %142 = tpu.matmul %139, %141, %cst_59 {dimension_numbers = #tpu.dot_dimension_numbers<[1], [0], [0], [1], [0, 0, 1, 1], [], []>} : vector<8x2048xbf16>, vector<2048x128xbf16>, vector<8x128xf32> -> vector<8x128xf32>
    %c0_60 = arith.constant 0 : index
    %c0_61 = arith.constant 0 : index
    %c0_62 = arith.constant 0 : index
    %143 = vector.load %arg18[%c0_60, %c0_61, %c0_62] : memref<3x1x128xf32, #tpu.memory_space<vmem>>, vector<1x1x128xf32>
    %144 = vector.shape_cast %143 : vector<1x1x128xf32> to vector<1x128xf32>
    %145 = vector.broadcast %144 : vector<1x128xf32> to vector<8x128xf32>
    %146 = arith.addf %142, %145 : vector<8x128xf32>
    %147 = arith.addf %128, %146 : vector<8x128xf32>
    %c0_63 = arith.constant 0 : index
    %c0_64 = arith.constant 0 : index
    %c0_65 = arith.constant 0 : index
    %148 = vector.load %arg19[%c0_63, %c0_64, %c0_65] : memref<3x1x128xf32, #tpu.memory_space<vmem>>, vector<1x1x128xf32>
    %149 = vector.shape_cast %148 : vector<1x1x128xf32> to vector<1x128xf32>
    %c0_66 = arith.constant 0 : index
    %c0_67 = arith.constant 0 : index
    %c0_68 = arith.constant 0 : index
    %150 = vector.load %arg20[%c0_66, %c0_67, %c0_68] : memref<3x1x128xf32, #tpu.memory_space<vmem>>, vector<1x1x128xf32>
    %151 = vector.shape_cast %150 : vector<1x1x128xf32> to vector<1x128xf32>
    %cst_69 = arith.constant dense<0.000000e+00> : vector<8xf32>
    %152 = vector.multi_reduction <add>, %147, %cst_69 [1] : vector<8x128xf32> to vector<8xf32>
    %153 = vector.shape_cast %152 : vector<8xf32> to vector<8x1xf32>
    %cst_70 = arith.constant 1.280000e+02 : f32
    %154 = vector.broadcast %cst_70 : f32 to vector<8x1xf32>
    %155 = arith.divf %153, %154 : vector<8x1xf32>
    %156 = vector.broadcast %155 : vector<8x1xf32> to vector<8x128xf32>
    %157 = arith.subf %147, %156 : vector<8x128xf32>
    %158 = vector.broadcast %155 : vector<8x1xf32> to vector<8x128xf32>
    %159 = arith.subf %147, %158 : vector<8x128xf32>
    %160 = arith.mulf %157, %159 : vector<8x128xf32>
    %cst_71 = arith.constant dense<0.000000e+00> : vector<8xf32>
    %161 = vector.multi_reduction <add>, %160, %cst_71 [1] : vector<8x128xf32> to vector<8xf32>
    %162 = vector.shape_cast %161 : vector<8xf32> to vector<8x1xf32>
    %cst_72 = arith.constant 1.280000e+02 : f32
    %163 = vector.broadcast %cst_72 : f32 to vector<8x1xf32>
    %164 = arith.divf %162, %163 : vector<8x1xf32>
    %165 = vector.broadcast %155 : vector<8x1xf32> to vector<8x128xf32>
    %166 = arith.subf %147, %165 : vector<8x128xf32>
    %cst_73 = arith.constant 9.99999974E-6 : f32
    %167 = vector.broadcast %cst_73 : f32 to vector<8x1xf32>
    %168 = arith.addf %164, %167 : vector<8x1xf32>
    %169 = math.rsqrt %168 : vector<8x1xf32>
    %170 = vector.broadcast %169 : vector<8x1xf32> to vector<8x128xf32>
    %171 = arith.mulf %166, %170 : vector<8x128xf32>
    %172 = vector.broadcast %149 : vector<1x128xf32> to vector<8x128xf32>
    %173 = arith.mulf %171, %172 : vector<8x128xf32>
    %174 = vector.broadcast %151 : vector<1x128xf32> to vector<8x128xf32>
    %175 = arith.addf %173, %174 : vector<8x128xf32>
    %176 = arith.truncf %175 : vector<8x128xf32> to vector<8x128xbf16>
    %c1 = arith.constant 1 : index
    %c0_74 = arith.constant 0 : index
    %c0_75 = arith.constant 0 : index
    %177 = vector.load %arg9[%c1, %c0_74, %c0_75] : memref<3x128x384xbf16, #tpu.memory_space<vmem>>, vector<1x128x384xbf16>
    %178 = vector.shape_cast %177 : vector<1x128x384xbf16> to vector<128x384xbf16>
    %cst_76 = arith.constant dense<0.000000e+00> : vector<8x384xf32>
    %179 = tpu.matmul %176, %178, %cst_76 {dimension_numbers = #tpu.dot_dimension_numbers<[1], [0], [0], [1], [0, 0, 1, 1], [], []>} : vector<8x128xbf16>, vector<128x384xbf16>, vector<8x384xf32> -> vector<8x384xf32>
    %c1_77 = arith.constant 1 : index
    %c0_78 = arith.constant 0 : index
    %c0_79 = arith.constant 0 : index
    %180 = vector.load %arg10[%c1_77, %c0_78, %c0_79] : memref<3x1x384xf32, #tpu.memory_space<vmem>>, vector<1x1x384xf32>
    %181 = vector.shape_cast %180 : vector<1x1x384xf32> to vector<1x384xf32>
    %182 = vector.broadcast %181 : vector<1x384xf32> to vector<8x384xf32>
    %183 = arith.addf %179, %182 : vector<8x384xf32>
    %184 = vector.extract_strided_slice %183 {offsets = [0, 0], sizes = [8, 128], strides = [1, 1]} : vector<8x384xf32> to vector<8x128xf32>
    %185 = vector.extract_strided_slice %184 {offsets = [0, 0], sizes = [8, 16], strides = [1, 1]} : vector<8x128xf32> to vector<8x16xf32>
    %186 = vector.extract_strided_slice %184 {offsets = [0, 16], sizes = [8, 16], strides = [1, 1]} : vector<8x128xf32> to vector<8x16xf32>
    %187 = vector.extract_strided_slice %184 {offsets = [0, 32], sizes = [8, 16], strides = [1, 1]} : vector<8x128xf32> to vector<8x16xf32>
    %188 = vector.extract_strided_slice %184 {offsets = [0, 48], sizes = [8, 16], strides = [1, 1]} : vector<8x128xf32> to vector<8x16xf32>
    %189 = vector.extract_strided_slice %184 {offsets = [0, 64], sizes = [8, 16], strides = [1, 1]} : vector<8x128xf32> to vector<8x16xf32>
    %190 = vector.extract_strided_slice %184 {offsets = [0, 80], sizes = [8, 16], strides = [1, 1]} : vector<8x128xf32> to vector<8x16xf32>
    %191 = vector.extract_strided_slice %184 {offsets = [0, 96], sizes = [8, 16], strides = [1, 1]} : vector<8x128xf32> to vector<8x16xf32>
    %192 = vector.extract_strided_slice %184 {offsets = [0, 112], sizes = [8, 16], strides = [1, 1]} : vector<8x128xf32> to vector<8x16xf32>
    %193 = tpu.concatenate %185, %186, %187, %188, %189, %190, %191, %192 in 0 : vector<8x16xf32>, vector<8x16xf32>, vector<8x16xf32>, vector<8x16xf32>, vector<8x16xf32>, vector<8x16xf32>, vector<8x16xf32>, vector<8x16xf32> -> vector<64x16xf32>
    %194 = vector.extract_strided_slice %183 {offsets = [0, 128], sizes = [8, 128], strides = [1, 1]} : vector<8x384xf32> to vector<8x128xf32>
    %195 = vector.extract_strided_slice %194 {offsets = [0, 0], sizes = [8, 16], strides = [1, 1]} : vector<8x128xf32> to vector<8x16xf32>
    %196 = vector.extract_strided_slice %194 {offsets = [0, 16], sizes = [8, 16], strides = [1, 1]} : vector<8x128xf32> to vector<8x16xf32>
    %197 = vector.extract_strided_slice %194 {offsets = [0, 32], sizes = [8, 16], strides = [1, 1]} : vector<8x128xf32> to vector<8x16xf32>
    %198 = vector.extract_strided_slice %194 {offsets = [0, 48], sizes = [8, 16], strides = [1, 1]} : vector<8x128xf32> to vector<8x16xf32>
    %199 = vector.extract_strided_slice %194 {offsets = [0, 64], sizes = [8, 16], strides = [1, 1]} : vector<8x128xf32> to vector<8x16xf32>
    %200 = vector.extract_strided_slice %194 {offsets = [0, 80], sizes = [8, 16], strides = [1, 1]} : vector<8x128xf32> to vector<8x16xf32>
    %201 = vector.extract_strided_slice %194 {offsets = [0, 96], sizes = [8, 16], strides = [1, 1]} : vector<8x128xf32> to vector<8x16xf32>
    %202 = vector.extract_strided_slice %194 {offsets = [0, 112], sizes = [8, 16], strides = [1, 1]} : vector<8x128xf32> to vector<8x16xf32>
    %203 = tpu.concatenate %195, %196, %197, %198, %199, %200, %201, %202 in 0 : vector<8x16xf32>, vector<8x16xf32>, vector<8x16xf32>, vector<8x16xf32>, vector<8x16xf32>, vector<8x16xf32>, vector<8x16xf32>, vector<8x16xf32> -> vector<64x16xf32>
    %204 = vector.extract_strided_slice %183 {offsets = [0, 256], sizes = [8, 128], strides = [1, 1]} : vector<8x384xf32> to vector<8x128xf32>
    %205 = vector.extract_strided_slice %204 {offsets = [0, 0], sizes = [8, 16], strides = [1, 1]} : vector<8x128xf32> to vector<8x16xf32>
    %206 = vector.extract_strided_slice %204 {offsets = [0, 16], sizes = [8, 16], strides = [1, 1]} : vector<8x128xf32> to vector<8x16xf32>
    %207 = vector.extract_strided_slice %204 {offsets = [0, 32], sizes = [8, 16], strides = [1, 1]} : vector<8x128xf32> to vector<8x16xf32>
    %208 = vector.extract_strided_slice %204 {offsets = [0, 48], sizes = [8, 16], strides = [1, 1]} : vector<8x128xf32> to vector<8x16xf32>
    %209 = vector.extract_strided_slice %204 {offsets = [0, 64], sizes = [8, 16], strides = [1, 1]} : vector<8x128xf32> to vector<8x16xf32>
    %210 = vector.extract_strided_slice %204 {offsets = [0, 80], sizes = [8, 16], strides = [1, 1]} : vector<8x128xf32> to vector<8x16xf32>
    %211 = vector.extract_strided_slice %204 {offsets = [0, 96], sizes = [8, 16], strides = [1, 1]} : vector<8x128xf32> to vector<8x16xf32>
    %212 = vector.extract_strided_slice %204 {offsets = [0, 112], sizes = [8, 16], strides = [1, 1]} : vector<8x128xf32> to vector<8x16xf32>
    %213 = tpu.concatenate %205, %206, %207, %208, %209, %210, %211, %212 in 0 : vector<8x16xf32>, vector<8x16xf32>, vector<8x16xf32>, vector<8x16xf32>, vector<8x16xf32>, vector<8x16xf32>, vector<8x16xf32>, vector<8x16xf32> -> vector<64x16xf32>
    %cst_80 = arith.constant dense<0.000000e+00> : vector<64x64xf32>
    %214 = tpu.matmul %193, %203, %cst_80 {dimension_numbers = #tpu.dot_dimension_numbers<[1], [1], [0], [0], [0, 0, 1, 0], [], []>} : vector<64x16xf32>, vector<64x16xf32>, vector<64x64xf32> -> vector<64x64xf32>
    %215 = arith.addf %214, %31 : vector<64x64xf32>
    %cst_81 = arith.constant dense<0xFF800000> : vector<64xf32>
    %216 = vector.multi_reduction <maximumf>, %215, %cst_81 [1] : vector<64x64xf32> to vector<64xf32>
    %217 = vector.shape_cast %216 : vector<64xf32> to vector<64x1xf32>
    %218 = vector.broadcast %217 : vector<64x1xf32> to vector<64x64xf32>
    %219 = arith.subf %215, %218 : vector<64x64xf32>
    %220 = math.exp %219 : vector<64x64xf32>
    %cst_82 = arith.constant dense<0.000000e+00> : vector<64xf32>
    %221 = vector.multi_reduction <add>, %220, %cst_82 [1] : vector<64x64xf32> to vector<64xf32>
    %222 = vector.shape_cast %221 : vector<64xf32> to vector<64x1xf32>
    %223 = tpu.reciprocal %222 {approx = true} : vector<64x1xf32> -> vector<64x1xf32>
    %224 = vector.broadcast %223 : vector<64x1xf32> to vector<64x64xf32>
    %225 = arith.mulf %220, %224 : vector<64x64xf32>
    %cst_83 = arith.constant dense<0.000000e+00> : vector<64x16xf32>
    %226 = tpu.matmul %225, %213, %cst_83 {dimension_numbers = #tpu.dot_dimension_numbers<[1], [0], [0], [1], [0, 0, 1, 1], [], []>} : vector<64x64xf32>, vector<64x16xf32>, vector<64x16xf32> -> vector<64x16xf32>
    %227 = vector.extract_strided_slice %226 {offsets = [0, 0], sizes = [8, 16], strides = [1, 1]} : vector<64x16xf32> to vector<8x16xf32>
    %228 = vector.extract_strided_slice %226 {offsets = [8, 0], sizes = [8, 16], strides = [1, 1]} : vector<64x16xf32> to vector<8x16xf32>
    %229 = vector.extract_strided_slice %226 {offsets = [16, 0], sizes = [8, 16], strides = [1, 1]} : vector<64x16xf32> to vector<8x16xf32>
    %230 = vector.extract_strided_slice %226 {offsets = [24, 0], sizes = [8, 16], strides = [1, 1]} : vector<64x16xf32> to vector<8x16xf32>
    %231 = vector.extract_strided_slice %226 {offsets = [32, 0], sizes = [8, 16], strides = [1, 1]} : vector<64x16xf32> to vector<8x16xf32>
    %232 = vector.extract_strided_slice %226 {offsets = [40, 0], sizes = [8, 16], strides = [1, 1]} : vector<64x16xf32> to vector<8x16xf32>
    %233 = vector.extract_strided_slice %226 {offsets = [48, 0], sizes = [8, 16], strides = [1, 1]} : vector<64x16xf32> to vector<8x16xf32>
    %234 = vector.extract_strided_slice %226 {offsets = [56, 0], sizes = [8, 16], strides = [1, 1]} : vector<64x16xf32> to vector<8x16xf32>
    %235 = tpu.concatenate %227, %228, %229, %230, %231, %232, %233, %234 in 1 : vector<8x16xf32>, vector<8x16xf32>, vector<8x16xf32>, vector<8x16xf32>, vector<8x16xf32>, vector<8x16xf32>, vector<8x16xf32>, vector<8x16xf32> -> vector<8x128xf32>
    %236 = arith.truncf %235 : vector<8x128xf32> to vector<8x128xbf16>
    %c1_84 = arith.constant 1 : index
    %c0_85 = arith.constant 0 : index
    %c0_86 = arith.constant 0 : index
    %237 = vector.load %arg11[%c1_84, %c0_85, %c0_86] : memref<3x128x128xbf16, #tpu.memory_space<vmem>>, vector<1x128x128xbf16>
    %238 = vector.shape_cast %237 : vector<1x128x128xbf16> to vector<128x128xbf16>
    %cst_87 = arith.constant dense<0.000000e+00> : vector<8x128xf32>
    %239 = tpu.matmul %236, %238, %cst_87 {dimension_numbers = #tpu.dot_dimension_numbers<[1], [0], [0], [1], [0, 0, 1, 1], [], []>} : vector<8x128xbf16>, vector<128x128xbf16>, vector<8x128xf32> -> vector<8x128xf32>
    %c1_88 = arith.constant 1 : index
    %c0_89 = arith.constant 0 : index
    %c0_90 = arith.constant 0 : index
    %240 = vector.load %arg12[%c1_88, %c0_89, %c0_90] : memref<3x1x128xf32, #tpu.memory_space<vmem>>, vector<1x1x128xf32>
    %241 = vector.shape_cast %240 : vector<1x1x128xf32> to vector<1x128xf32>
    %242 = vector.broadcast %241 : vector<1x128xf32> to vector<8x128xf32>
    %243 = arith.addf %239, %242 : vector<8x128xf32>
    %244 = arith.addf %175, %243 : vector<8x128xf32>
    %c1_91 = arith.constant 1 : index
    %c0_92 = arith.constant 0 : index
    %c0_93 = arith.constant 0 : index
    %245 = vector.load %arg13[%c1_91, %c0_92, %c0_93] : memref<3x1x128xf32, #tpu.memory_space<vmem>>, vector<1x1x128xf32>
    %246 = vector.shape_cast %245 : vector<1x1x128xf32> to vector<1x128xf32>
    %c1_94 = arith.constant 1 : index
    %c0_95 = arith.constant 0 : index
    %c0_96 = arith.constant 0 : index
    %247 = vector.load %arg14[%c1_94, %c0_95, %c0_96] : memref<3x1x128xf32, #tpu.memory_space<vmem>>, vector<1x1x128xf32>
    %248 = vector.shape_cast %247 : vector<1x1x128xf32> to vector<1x128xf32>
    %cst_97 = arith.constant dense<0.000000e+00> : vector<8xf32>
    %249 = vector.multi_reduction <add>, %244, %cst_97 [1] : vector<8x128xf32> to vector<8xf32>
    %250 = vector.shape_cast %249 : vector<8xf32> to vector<8x1xf32>
    %cst_98 = arith.constant 1.280000e+02 : f32
    %251 = vector.broadcast %cst_98 : f32 to vector<8x1xf32>
    %252 = arith.divf %250, %251 : vector<8x1xf32>
    %253 = vector.broadcast %252 : vector<8x1xf32> to vector<8x128xf32>
    %254 = arith.subf %244, %253 : vector<8x128xf32>
    %255 = vector.broadcast %252 : vector<8x1xf32> to vector<8x128xf32>
    %256 = arith.subf %244, %255 : vector<8x128xf32>
    %257 = arith.mulf %254, %256 : vector<8x128xf32>
    %cst_99 = arith.constant dense<0.000000e+00> : vector<8xf32>
    %258 = vector.multi_reduction <add>, %257, %cst_99 [1] : vector<8x128xf32> to vector<8xf32>
    %259 = vector.shape_cast %258 : vector<8xf32> to vector<8x1xf32>
    %cst_100 = arith.constant 1.280000e+02 : f32
    %260 = vector.broadcast %cst_100 : f32 to vector<8x1xf32>
    %261 = arith.divf %259, %260 : vector<8x1xf32>
    %262 = vector.broadcast %252 : vector<8x1xf32> to vector<8x128xf32>
    %263 = arith.subf %244, %262 : vector<8x128xf32>
    %cst_101 = arith.constant 9.99999974E-6 : f32
    %264 = vector.broadcast %cst_101 : f32 to vector<8x1xf32>
    %265 = arith.addf %261, %264 : vector<8x1xf32>
    %266 = math.rsqrt %265 : vector<8x1xf32>
    %267 = vector.broadcast %266 : vector<8x1xf32> to vector<8x128xf32>
    %268 = arith.mulf %263, %267 : vector<8x128xf32>
    %269 = vector.broadcast %246 : vector<1x128xf32> to vector<8x128xf32>
    %270 = arith.mulf %268, %269 : vector<8x128xf32>
    %271 = vector.broadcast %248 : vector<1x128xf32> to vector<8x128xf32>
    %272 = arith.addf %270, %271 : vector<8x128xf32>
    %273 = arith.truncf %272 : vector<8x128xf32> to vector<8x128xbf16>
    %c1_102 = arith.constant 1 : index
    %c0_103 = arith.constant 0 : index
    %c0_104 = arith.constant 0 : index
    %274 = vector.load %arg15[%c1_102, %c0_103, %c0_104] : memref<3x128x2048xbf16, #tpu.memory_space<vmem>>, vector<1x128x2048xbf16>
    %275 = vector.shape_cast %274 : vector<1x128x2048xbf16> to vector<128x2048xbf16>
    %cst_105 = arith.constant dense<0.000000e+00> : vector<8x2048xf32>
    %276 = tpu.matmul %273, %275, %cst_105 {dimension_numbers = #tpu.dot_dimension_numbers<[1], [0], [0], [1], [0, 0, 1, 1], [], []>} : vector<8x128xbf16>, vector<128x2048xbf16>, vector<8x2048xf32> -> vector<8x2048xf32>
    %c1_106 = arith.constant 1 : index
    %c0_107 = arith.constant 0 : index
    %c0_108 = arith.constant 0 : index
    %277 = vector.load %arg16[%c1_106, %c0_107, %c0_108] : memref<3x1x2048xf32, #tpu.memory_space<vmem>>, vector<1x1x2048xf32>
    %278 = vector.shape_cast %277 : vector<1x1x2048xf32> to vector<1x2048xf32>
    %279 = vector.broadcast %278 : vector<1x2048xf32> to vector<8x2048xf32>
    %280 = arith.addf %276, %279 : vector<8x2048xf32>
    %cst_109 = arith.constant 0.000000e+00 : f32
    %281 = vector.broadcast %cst_109 : f32 to vector<8x2048xf32>
    %282 = arith.maximumf %280, %281 : vector<8x2048xf32>
    %283 = arith.truncf %282 : vector<8x2048xf32> to vector<8x2048xbf16>
    %c1_110 = arith.constant 1 : index
    %c0_111 = arith.constant 0 : index
    %c0_112 = arith.constant 0 : index
    %284 = vector.load %arg17[%c1_110, %c0_111, %c0_112] : memref<3x2048x128xbf16, #tpu.memory_space<vmem>>, vector<1x2048x128xbf16>
    %285 = vector.shape_cast %284 : vector<1x2048x128xbf16> to vector<2048x128xbf16>
    %cst_113 = arith.constant dense<0.000000e+00> : vector<8x128xf32>
    %286 = tpu.matmul %283, %285, %cst_113 {dimension_numbers = #tpu.dot_dimension_numbers<[1], [0], [0], [1], [0, 0, 1, 1], [], []>} : vector<8x2048xbf16>, vector<2048x128xbf16>, vector<8x128xf32> -> vector<8x128xf32>
    %c1_114 = arith.constant 1 : index
    %c0_115 = arith.constant 0 : index
    %c0_116 = arith.constant 0 : index
    %287 = vector.load %arg18[%c1_114, %c0_115, %c0_116] : memref<3x1x128xf32, #tpu.memory_space<vmem>>, vector<1x1x128xf32>
    %288 = vector.shape_cast %287 : vector<1x1x128xf32> to vector<1x128xf32>
    %289 = vector.broadcast %288 : vector<1x128xf32> to vector<8x128xf32>
    %290 = arith.addf %286, %289 : vector<8x128xf32>
    %291 = arith.addf %272, %290 : vector<8x128xf32>
    %c1_117 = arith.constant 1 : index
    %c0_118 = arith.constant 0 : index
    %c0_119 = arith.constant 0 : index
    %292 = vector.load %arg19[%c1_117, %c0_118, %c0_119] : memref<3x1x128xf32, #tpu.memory_space<vmem>>, vector<1x1x128xf32>
    %293 = vector.shape_cast %292 : vector<1x1x128xf32> to vector<1x128xf32>
    %c1_120 = arith.constant 1 : index
    %c0_121 = arith.constant 0 : index
    %c0_122 = arith.constant 0 : index
    %294 = vector.load %arg20[%c1_120, %c0_121, %c0_122] : memref<3x1x128xf32, #tpu.memory_space<vmem>>, vector<1x1x128xf32>
    %295 = vector.shape_cast %294 : vector<1x1x128xf32> to vector<1x128xf32>
    %cst_123 = arith.constant dense<0.000000e+00> : vector<8xf32>
    %296 = vector.multi_reduction <add>, %291, %cst_123 [1] : vector<8x128xf32> to vector<8xf32>
    %297 = vector.shape_cast %296 : vector<8xf32> to vector<8x1xf32>
    %cst_124 = arith.constant 1.280000e+02 : f32
    %298 = vector.broadcast %cst_124 : f32 to vector<8x1xf32>
    %299 = arith.divf %297, %298 : vector<8x1xf32>
    %300 = vector.broadcast %299 : vector<8x1xf32> to vector<8x128xf32>
    %301 = arith.subf %291, %300 : vector<8x128xf32>
    %302 = vector.broadcast %299 : vector<8x1xf32> to vector<8x128xf32>
    %303 = arith.subf %291, %302 : vector<8x128xf32>
    %304 = arith.mulf %301, %303 : vector<8x128xf32>
    %cst_125 = arith.constant dense<0.000000e+00> : vector<8xf32>
    %305 = vector.multi_reduction <add>, %304, %cst_125 [1] : vector<8x128xf32> to vector<8xf32>
    %306 = vector.shape_cast %305 : vector<8xf32> to vector<8x1xf32>
    %cst_126 = arith.constant 1.280000e+02 : f32
    %307 = vector.broadcast %cst_126 : f32 to vector<8x1xf32>
    %308 = arith.divf %306, %307 : vector<8x1xf32>
    %309 = vector.broadcast %299 : vector<8x1xf32> to vector<8x128xf32>
    %310 = arith.subf %291, %309 : vector<8x128xf32>
    %cst_127 = arith.constant 9.99999974E-6 : f32
    %311 = vector.broadcast %cst_127 : f32 to vector<8x1xf32>
    %312 = arith.addf %308, %311 : vector<8x1xf32>
    %313 = math.rsqrt %312 : vector<8x1xf32>
    %314 = vector.broadcast %313 : vector<8x1xf32> to vector<8x128xf32>
    %315 = arith.mulf %310, %314 : vector<8x128xf32>
    %316 = vector.broadcast %293 : vector<1x128xf32> to vector<8x128xf32>
    %317 = arith.mulf %315, %316 : vector<8x128xf32>
    %318 = vector.broadcast %295 : vector<1x128xf32> to vector<8x128xf32>
    %319 = arith.addf %317, %318 : vector<8x128xf32>
    %320 = arith.truncf %319 : vector<8x128xf32> to vector<8x128xbf16>
    %c2 = arith.constant 2 : index
    %c0_128 = arith.constant 0 : index
    %c0_129 = arith.constant 0 : index
    %321 = vector.load %arg9[%c2, %c0_128, %c0_129] : memref<3x128x384xbf16, #tpu.memory_space<vmem>>, vector<1x128x384xbf16>
    %322 = vector.shape_cast %321 : vector<1x128x384xbf16> to vector<128x384xbf16>
    %cst_130 = arith.constant dense<0.000000e+00> : vector<8x384xf32>
    %323 = tpu.matmul %320, %322, %cst_130 {dimension_numbers = #tpu.dot_dimension_numbers<[1], [0], [0], [1], [0, 0, 1, 1], [], []>} : vector<8x128xbf16>, vector<128x384xbf16>, vector<8x384xf32> -> vector<8x384xf32>
    %c2_131 = arith.constant 2 : index
    %c0_132 = arith.constant 0 : index
    %c0_133 = arith.constant 0 : index
    %324 = vector.load %arg10[%c2_131, %c0_132, %c0_133] : memref<3x1x384xf32, #tpu.memory_space<vmem>>, vector<1x1x384xf32>
    %325 = vector.shape_cast %324 : vector<1x1x384xf32> to vector<1x384xf32>
    %326 = vector.broadcast %325 : vector<1x384xf32> to vector<8x384xf32>
    %327 = arith.addf %323, %326 : vector<8x384xf32>
    %328 = vector.extract_strided_slice %327 {offsets = [0, 0], sizes = [8, 128], strides = [1, 1]} : vector<8x384xf32> to vector<8x128xf32>
    %329 = vector.extract_strided_slice %328 {offsets = [0, 0], sizes = [8, 16], strides = [1, 1]} : vector<8x128xf32> to vector<8x16xf32>
    %330 = vector.extract_strided_slice %328 {offsets = [0, 16], sizes = [8, 16], strides = [1, 1]} : vector<8x128xf32> to vector<8x16xf32>
    %331 = vector.extract_strided_slice %328 {offsets = [0, 32], sizes = [8, 16], strides = [1, 1]} : vector<8x128xf32> to vector<8x16xf32>
    %332 = vector.extract_strided_slice %328 {offsets = [0, 48], sizes = [8, 16], strides = [1, 1]} : vector<8x128xf32> to vector<8x16xf32>
    %333 = vector.extract_strided_slice %328 {offsets = [0, 64], sizes = [8, 16], strides = [1, 1]} : vector<8x128xf32> to vector<8x16xf32>
    %334 = vector.extract_strided_slice %328 {offsets = [0, 80], sizes = [8, 16], strides = [1, 1]} : vector<8x128xf32> to vector<8x16xf32>
    %335 = vector.extract_strided_slice %328 {offsets = [0, 96], sizes = [8, 16], strides = [1, 1]} : vector<8x128xf32> to vector<8x16xf32>
    %336 = vector.extract_strided_slice %328 {offsets = [0, 112], sizes = [8, 16], strides = [1, 1]} : vector<8x128xf32> to vector<8x16xf32>
    %337 = tpu.concatenate %329, %330, %331, %332, %333, %334, %335, %336 in 0 : vector<8x16xf32>, vector<8x16xf32>, vector<8x16xf32>, vector<8x16xf32>, vector<8x16xf32>, vector<8x16xf32>, vector<8x16xf32>, vector<8x16xf32> -> vector<64x16xf32>
    %338 = vector.extract_strided_slice %327 {offsets = [0, 128], sizes = [8, 128], strides = [1, 1]} : vector<8x384xf32> to vector<8x128xf32>
    %339 = vector.extract_strided_slice %338 {offsets = [0, 0], sizes = [8, 16], strides = [1, 1]} : vector<8x128xf32> to vector<8x16xf32>
    %340 = vector.extract_strided_slice %338 {offsets = [0, 16], sizes = [8, 16], strides = [1, 1]} : vector<8x128xf32> to vector<8x16xf32>
    %341 = vector.extract_strided_slice %338 {offsets = [0, 32], sizes = [8, 16], strides = [1, 1]} : vector<8x128xf32> to vector<8x16xf32>
    %342 = vector.extract_strided_slice %338 {offsets = [0, 48], sizes = [8, 16], strides = [1, 1]} : vector<8x128xf32> to vector<8x16xf32>
    %343 = vector.extract_strided_slice %338 {offsets = [0, 64], sizes = [8, 16], strides = [1, 1]} : vector<8x128xf32> to vector<8x16xf32>
    %344 = vector.extract_strided_slice %338 {offsets = [0, 80], sizes = [8, 16], strides = [1, 1]} : vector<8x128xf32> to vector<8x16xf32>
    %345 = vector.extract_strided_slice %338 {offsets = [0, 96], sizes = [8, 16], strides = [1, 1]} : vector<8x128xf32> to vector<8x16xf32>
    %346 = vector.extract_strided_slice %338 {offsets = [0, 112], sizes = [8, 16], strides = [1, 1]} : vector<8x128xf32> to vector<8x16xf32>
    %347 = tpu.concatenate %339, %340, %341, %342, %343, %344, %345, %346 in 0 : vector<8x16xf32>, vector<8x16xf32>, vector<8x16xf32>, vector<8x16xf32>, vector<8x16xf32>, vector<8x16xf32>, vector<8x16xf32>, vector<8x16xf32> -> vector<64x16xf32>
    %348 = vector.extract_strided_slice %327 {offsets = [0, 256], sizes = [8, 128], strides = [1, 1]} : vector<8x384xf32> to vector<8x128xf32>
    %349 = vector.extract_strided_slice %348 {offsets = [0, 0], sizes = [8, 16], strides = [1, 1]} : vector<8x128xf32> to vector<8x16xf32>
    %350 = vector.extract_strided_slice %348 {offsets = [0, 16], sizes = [8, 16], strides = [1, 1]} : vector<8x128xf32> to vector<8x16xf32>
    %351 = vector.extract_strided_slice %348 {offsets = [0, 32], sizes = [8, 16], strides = [1, 1]} : vector<8x128xf32> to vector<8x16xf32>
    %352 = vector.extract_strided_slice %348 {offsets = [0, 48], sizes = [8, 16], strides = [1, 1]} : vector<8x128xf32> to vector<8x16xf32>
    %353 = vector.extract_strided_slice %348 {offsets = [0, 64], sizes = [8, 16], strides = [1, 1]} : vector<8x128xf32> to vector<8x16xf32>
    %354 = vector.extract_strided_slice %348 {offsets = [0, 80], sizes = [8, 16], strides = [1, 1]} : vector<8x128xf32> to vector<8x16xf32>
    %355 = vector.extract_strided_slice %348 {offsets = [0, 96], sizes = [8, 16], strides = [1, 1]} : vector<8x128xf32> to vector<8x16xf32>
    %356 = vector.extract_strided_slice %348 {offsets = [0, 112], sizes = [8, 16], strides = [1, 1]} : vector<8x128xf32> to vector<8x16xf32>
    %357 = tpu.concatenate %349, %350, %351, %352, %353, %354, %355, %356 in 0 : vector<8x16xf32>, vector<8x16xf32>, vector<8x16xf32>, vector<8x16xf32>, vector<8x16xf32>, vector<8x16xf32>, vector<8x16xf32>, vector<8x16xf32> -> vector<64x16xf32>
    %cst_134 = arith.constant dense<0.000000e+00> : vector<64x64xf32>
    %358 = tpu.matmul %337, %347, %cst_134 {dimension_numbers = #tpu.dot_dimension_numbers<[1], [1], [0], [0], [0, 0, 1, 0], [], []>} : vector<64x16xf32>, vector<64x16xf32>, vector<64x64xf32> -> vector<64x64xf32>
    %359 = arith.addf %358, %31 : vector<64x64xf32>
    %cst_135 = arith.constant dense<0xFF800000> : vector<64xf32>
    %360 = vector.multi_reduction <maximumf>, %359, %cst_135 [1] : vector<64x64xf32> to vector<64xf32>
    %361 = vector.shape_cast %360 : vector<64xf32> to vector<64x1xf32>
    %362 = vector.broadcast %361 : vector<64x1xf32> to vector<64x64xf32>
    %363 = arith.subf %359, %362 : vector<64x64xf32>
    %364 = math.exp %363 : vector<64x64xf32>
    %cst_136 = arith.constant dense<0.000000e+00> : vector<64xf32>
    %365 = vector.multi_reduction <add>, %364, %cst_136 [1] : vector<64x64xf32> to vector<64xf32>
    %366 = vector.shape_cast %365 : vector<64xf32> to vector<64x1xf32>
    %367 = tpu.reciprocal %366 {approx = true} : vector<64x1xf32> -> vector<64x1xf32>
    %368 = vector.broadcast %367 : vector<64x1xf32> to vector<64x64xf32>
    %369 = arith.mulf %364, %368 : vector<64x64xf32>
    %cst_137 = arith.constant dense<0.000000e+00> : vector<64x16xf32>
    %370 = tpu.matmul %369, %357, %cst_137 {dimension_numbers = #tpu.dot_dimension_numbers<[1], [0], [0], [1], [0, 0, 1, 1], [], []>} : vector<64x64xf32>, vector<64x16xf32>, vector<64x16xf32> -> vector<64x16xf32>
    %371 = vector.extract_strided_slice %370 {offsets = [0, 0], sizes = [8, 16], strides = [1, 1]} : vector<64x16xf32> to vector<8x16xf32>
    %372 = vector.extract_strided_slice %370 {offsets = [8, 0], sizes = [8, 16], strides = [1, 1]} : vector<64x16xf32> to vector<8x16xf32>
    %373 = vector.extract_strided_slice %370 {offsets = [16, 0], sizes = [8, 16], strides = [1, 1]} : vector<64x16xf32> to vector<8x16xf32>
    %374 = vector.extract_strided_slice %370 {offsets = [24, 0], sizes = [8, 16], strides = [1, 1]} : vector<64x16xf32> to vector<8x16xf32>
    %375 = vector.extract_strided_slice %370 {offsets = [32, 0], sizes = [8, 16], strides = [1, 1]} : vector<64x16xf32> to vector<8x16xf32>
    %376 = vector.extract_strided_slice %370 {offsets = [40, 0], sizes = [8, 16], strides = [1, 1]} : vector<64x16xf32> to vector<8x16xf32>
    %377 = vector.extract_strided_slice %370 {offsets = [48, 0], sizes = [8, 16], strides = [1, 1]} : vector<64x16xf32> to vector<8x16xf32>
    %378 = vector.extract_strided_slice %370 {offsets = [56, 0], sizes = [8, 16], strides = [1, 1]} : vector<64x16xf32> to vector<8x16xf32>
    %379 = tpu.concatenate %371, %372, %373, %374, %375, %376, %377, %378 in 1 : vector<8x16xf32>, vector<8x16xf32>, vector<8x16xf32>, vector<8x16xf32>, vector<8x16xf32>, vector<8x16xf32>, vector<8x16xf32>, vector<8x16xf32> -> vector<8x128xf32>
    %380 = arith.truncf %379 : vector<8x128xf32> to vector<8x128xbf16>
    %c2_138 = arith.constant 2 : index
    %c0_139 = arith.constant 0 : index
    %c0_140 = arith.constant 0 : index
    %381 = vector.load %arg11[%c2_138, %c0_139, %c0_140] : memref<3x128x128xbf16, #tpu.memory_space<vmem>>, vector<1x128x128xbf16>
    %382 = vector.shape_cast %381 : vector<1x128x128xbf16> to vector<128x128xbf16>
    %cst_141 = arith.constant dense<0.000000e+00> : vector<8x128xf32>
    %383 = tpu.matmul %380, %382, %cst_141 {dimension_numbers = #tpu.dot_dimension_numbers<[1], [0], [0], [1], [0, 0, 1, 1], [], []>} : vector<8x128xbf16>, vector<128x128xbf16>, vector<8x128xf32> -> vector<8x128xf32>
    %c2_142 = arith.constant 2 : index
    %c0_143 = arith.constant 0 : index
    %c0_144 = arith.constant 0 : index
    %384 = vector.load %arg12[%c2_142, %c0_143, %c0_144] : memref<3x1x128xf32, #tpu.memory_space<vmem>>, vector<1x1x128xf32>
    %385 = vector.shape_cast %384 : vector<1x1x128xf32> to vector<1x128xf32>
    %386 = vector.broadcast %385 : vector<1x128xf32> to vector<8x128xf32>
    %387 = arith.addf %383, %386 : vector<8x128xf32>
    %388 = arith.addf %319, %387 : vector<8x128xf32>
    %c2_145 = arith.constant 2 : index
    %c0_146 = arith.constant 0 : index
    %c0_147 = arith.constant 0 : index
    %389 = vector.load %arg13[%c2_145, %c0_146, %c0_147] : memref<3x1x128xf32, #tpu.memory_space<vmem>>, vector<1x1x128xf32>
    %390 = vector.shape_cast %389 : vector<1x1x128xf32> to vector<1x128xf32>
    %c2_148 = arith.constant 2 : index
    %c0_149 = arith.constant 0 : index
    %c0_150 = arith.constant 0 : index
    %391 = vector.load %arg14[%c2_148, %c0_149, %c0_150] : memref<3x1x128xf32, #tpu.memory_space<vmem>>, vector<1x1x128xf32>
    %392 = vector.shape_cast %391 : vector<1x1x128xf32> to vector<1x128xf32>
    %cst_151 = arith.constant dense<0.000000e+00> : vector<8xf32>
    %393 = vector.multi_reduction <add>, %388, %cst_151 [1] : vector<8x128xf32> to vector<8xf32>
    %394 = vector.shape_cast %393 : vector<8xf32> to vector<8x1xf32>
    %cst_152 = arith.constant 1.280000e+02 : f32
    %395 = vector.broadcast %cst_152 : f32 to vector<8x1xf32>
    %396 = arith.divf %394, %395 : vector<8x1xf32>
    %397 = vector.broadcast %396 : vector<8x1xf32> to vector<8x128xf32>
    %398 = arith.subf %388, %397 : vector<8x128xf32>
    %399 = vector.broadcast %396 : vector<8x1xf32> to vector<8x128xf32>
    %400 = arith.subf %388, %399 : vector<8x128xf32>
    %401 = arith.mulf %398, %400 : vector<8x128xf32>
    %cst_153 = arith.constant dense<0.000000e+00> : vector<8xf32>
    %402 = vector.multi_reduction <add>, %401, %cst_153 [1] : vector<8x128xf32> to vector<8xf32>
    %403 = vector.shape_cast %402 : vector<8xf32> to vector<8x1xf32>
    %cst_154 = arith.constant 1.280000e+02 : f32
    %404 = vector.broadcast %cst_154 : f32 to vector<8x1xf32>
    %405 = arith.divf %403, %404 : vector<8x1xf32>
    %406 = vector.broadcast %396 : vector<8x1xf32> to vector<8x128xf32>
    %407 = arith.subf %388, %406 : vector<8x128xf32>
    %cst_155 = arith.constant 9.99999974E-6 : f32
    %408 = vector.broadcast %cst_155 : f32 to vector<8x1xf32>
    %409 = arith.addf %405, %408 : vector<8x1xf32>
    %410 = math.rsqrt %409 : vector<8x1xf32>
    %411 = vector.broadcast %410 : vector<8x1xf32> to vector<8x128xf32>
    %412 = arith.mulf %407, %411 : vector<8x128xf32>
    %413 = vector.broadcast %390 : vector<1x128xf32> to vector<8x128xf32>
    %414 = arith.mulf %412, %413 : vector<8x128xf32>
    %415 = vector.broadcast %392 : vector<1x128xf32> to vector<8x128xf32>
    %416 = arith.addf %414, %415 : vector<8x128xf32>
    %417 = arith.truncf %416 : vector<8x128xf32> to vector<8x128xbf16>
    %c2_156 = arith.constant 2 : index
    %c0_157 = arith.constant 0 : index
    %c0_158 = arith.constant 0 : index
    %418 = vector.load %arg15[%c2_156, %c0_157, %c0_158] : memref<3x128x2048xbf16, #tpu.memory_space<vmem>>, vector<1x128x2048xbf16>
    %419 = vector.shape_cast %418 : vector<1x128x2048xbf16> to vector<128x2048xbf16>
    %cst_159 = arith.constant dense<0.000000e+00> : vector<8x2048xf32>
    %420 = tpu.matmul %417, %419, %cst_159 {dimension_numbers = #tpu.dot_dimension_numbers<[1], [0], [0], [1], [0, 0, 1, 1], [], []>} : vector<8x128xbf16>, vector<128x2048xbf16>, vector<8x2048xf32> -> vector<8x2048xf32>
    %c2_160 = arith.constant 2 : index
    %c0_161 = arith.constant 0 : index
    %c0_162 = arith.constant 0 : index
    %421 = vector.load %arg16[%c2_160, %c0_161, %c0_162] : memref<3x1x2048xf32, #tpu.memory_space<vmem>>, vector<1x1x2048xf32>
    %422 = vector.shape_cast %421 : vector<1x1x2048xf32> to vector<1x2048xf32>
    %423 = vector.broadcast %422 : vector<1x2048xf32> to vector<8x2048xf32>
    %424 = arith.addf %420, %423 : vector<8x2048xf32>
    %cst_163 = arith.constant 0.000000e+00 : f32
    %425 = vector.broadcast %cst_163 : f32 to vector<8x2048xf32>
    %426 = arith.maximumf %424, %425 : vector<8x2048xf32>
    %427 = arith.truncf %426 : vector<8x2048xf32> to vector<8x2048xbf16>
    %c2_164 = arith.constant 2 : index
    %c0_165 = arith.constant 0 : index
    %c0_166 = arith.constant 0 : index
    %428 = vector.load %arg17[%c2_164, %c0_165, %c0_166] : memref<3x2048x128xbf16, #tpu.memory_space<vmem>>, vector<1x2048x128xbf16>
    %429 = vector.shape_cast %428 : vector<1x2048x128xbf16> to vector<2048x128xbf16>
    %cst_167 = arith.constant dense<0.000000e+00> : vector<8x128xf32>
    %430 = tpu.matmul %427, %429, %cst_167 {dimension_numbers = #tpu.dot_dimension_numbers<[1], [0], [0], [1], [0, 0, 1, 1], [], []>} : vector<8x2048xbf16>, vector<2048x128xbf16>, vector<8x128xf32> -> vector<8x128xf32>
    %c2_168 = arith.constant 2 : index
    %c0_169 = arith.constant 0 : index
    %c0_170 = arith.constant 0 : index
    %431 = vector.load %arg18[%c2_168, %c0_169, %c0_170] : memref<3x1x128xf32, #tpu.memory_space<vmem>>, vector<1x1x128xf32>
    %432 = vector.shape_cast %431 : vector<1x1x128xf32> to vector<1x128xf32>
    %433 = vector.broadcast %432 : vector<1x128xf32> to vector<8x128xf32>
    %434 = arith.addf %430, %433 : vector<8x128xf32>
    %435 = arith.addf %416, %434 : vector<8x128xf32>
    %c2_171 = arith.constant 2 : index
    %c0_172 = arith.constant 0 : index
    %c0_173 = arith.constant 0 : index
    %436 = vector.load %arg19[%c2_171, %c0_172, %c0_173] : memref<3x1x128xf32, #tpu.memory_space<vmem>>, vector<1x1x128xf32>
    %437 = vector.shape_cast %436 : vector<1x1x128xf32> to vector<1x128xf32>
    %c2_174 = arith.constant 2 : index
    %c0_175 = arith.constant 0 : index
    %c0_176 = arith.constant 0 : index
    %438 = vector.load %arg20[%c2_174, %c0_175, %c0_176] : memref<3x1x128xf32, #tpu.memory_space<vmem>>, vector<1x1x128xf32>
    %439 = vector.shape_cast %438 : vector<1x1x128xf32> to vector<1x128xf32>
    %cst_177 = arith.constant dense<0.000000e+00> : vector<8xf32>
    %440 = vector.multi_reduction <add>, %435, %cst_177 [1] : vector<8x128xf32> to vector<8xf32>
    %441 = vector.shape_cast %440 : vector<8xf32> to vector<8x1xf32>
    %cst_178 = arith.constant 1.280000e+02 : f32
    %442 = vector.broadcast %cst_178 : f32 to vector<8x1xf32>
    %443 = arith.divf %441, %442 : vector<8x1xf32>
    %444 = vector.broadcast %443 : vector<8x1xf32> to vector<8x128xf32>
    %445 = arith.subf %435, %444 : vector<8x128xf32>
    %446 = vector.broadcast %443 : vector<8x1xf32> to vector<8x128xf32>
    %447 = arith.subf %435, %446 : vector<8x128xf32>
    %448 = arith.mulf %445, %447 : vector<8x128xf32>
    %cst_179 = arith.constant dense<0.000000e+00> : vector<8xf32>
    %449 = vector.multi_reduction <add>, %448, %cst_179 [1] : vector<8x128xf32> to vector<8xf32>
    %450 = vector.shape_cast %449 : vector<8xf32> to vector<8x1xf32>
    %cst_180 = arith.constant 1.280000e+02 : f32
    %451 = vector.broadcast %cst_180 : f32 to vector<8x1xf32>
    %452 = arith.divf %450, %451 : vector<8x1xf32>
    %453 = vector.broadcast %443 : vector<8x1xf32> to vector<8x128xf32>
    %454 = arith.subf %435, %453 : vector<8x128xf32>
    %cst_181 = arith.constant 9.99999974E-6 : f32
    %455 = vector.broadcast %cst_181 : f32 to vector<8x1xf32>
    %456 = arith.addf %452, %455 : vector<8x1xf32>
    %457 = math.rsqrt %456 : vector<8x1xf32>
    %458 = vector.broadcast %457 : vector<8x1xf32> to vector<8x128xf32>
    %459 = arith.mulf %454, %458 : vector<8x128xf32>
    %460 = vector.broadcast %437 : vector<1x128xf32> to vector<8x128xf32>
    %461 = arith.mulf %459, %460 : vector<8x128xf32>
    %462 = vector.broadcast %439 : vector<1x128xf32> to vector<8x128xf32>
    %463 = arith.addf %461, %462 : vector<8x128xf32>
    %c0_182 = arith.constant 0 : index
    %c0_183 = arith.constant 0 : index
    %464 = vector.load %arg8[%c0_182, %c0_183] : memref<2x8xf32, #tpu.memory_space<vmem>>, vector<2x8xf32>
    %cst_184 = arith.constant dense<0.000000e+00> : vector<2x128xf32>
    %465 = tpu.matmul %464, %463, %cst_184 {dimension_numbers = #tpu.dot_dimension_numbers<[1], [0], [0], [1], [0, 0, 1, 1], [], []>} : vector<2x8xf32>, vector<8x128xf32>, vector<2x128xf32> -> vector<2x128xf32>
    %c0_185 = arith.constant 0 : index
    %c0_186 = arith.constant 0 : index
    %466 = vector.load %arg21[%c0_185, %c0_186] : memref<128x64xf32, #tpu.memory_space<vmem>>, vector<128x64xf32>
    %cst_187 = arith.constant dense<0.000000e+00> : vector<2x64xf32>
    %467 = tpu.matmul %465, %466, %cst_187 {dimension_numbers = #tpu.dot_dimension_numbers<[1], [0], [0], [1], [0, 0, 1, 1], [], []>} : vector<2x128xf32>, vector<128x64xf32>, vector<2x64xf32> -> vector<2x64xf32>
    %c0_188 = arith.constant 0 : index
    %c0_189 = arith.constant 0 : index
    %468 = vector.load %arg22[%c0_188, %c0_189] : memref<1x64xf32, #tpu.memory_space<vmem>>, vector<1x64xf32>
    %469 = vector.broadcast %468 : vector<1x64xf32> to vector<2x64xf32>
    %470 = arith.addf %467, %469 : vector<2x64xf32>
    %cst_190 = arith.constant 0.000000e+00 : f32
    %471 = vector.broadcast %cst_190 : f32 to vector<2x64xf32>
    %472 = arith.maximumf %470, %471 : vector<2x64xf32>
    %c0_191 = arith.constant 0 : index
    %c0_192 = arith.constant 0 : index
    %473 = vector.load %arg23[%c0_191, %c0_192] : memref<64x3xf32, #tpu.memory_space<vmem>>, vector<64x3xf32>
    %cst_193 = arith.constant dense<0.000000e+00> : vector<2x3xf32>
    %474 = tpu.matmul %472, %473, %cst_193 {dimension_numbers = #tpu.dot_dimension_numbers<[1], [0], [0], [1], [0, 0, 1, 1], [], []>} : vector<2x64xf32>, vector<64x3xf32>, vector<2x3xf32> -> vector<2x3xf32>
    %c0_194 = arith.constant 0 : index
    %c0_195 = arith.constant 0 : index
    %475 = vector.load %arg24[%c0_194, %c0_195] : memref<1x3xf32, #tpu.memory_space<vmem>>, vector<1x3xf32>
    %476 = vector.broadcast %475 : vector<1x3xf32> to vector<2x3xf32>
    %477 = arith.addf %474, %476 : vector<2x3xf32>
    %c0_196 = arith.constant 0 : index
    %c0_197 = arith.constant 0 : index
    %478 = vector.load %arg25[%c0_196, %c0_197] : memref<2x3xf32, #tpu.memory_space<vmem>>, vector<2x3xf32>
    tpu.vector_store %arg25[%c0_196, %c0_197], %477 {strides = array<i32>} : memref<2x3xf32, #tpu.memory_space<vmem>>, vector<2x3xf32>,
    return
  }
}

</mosaic_0001>

<llo_original>
// kernel: spectral_classifier_forward.1
$region0: #{spectral_classifier_forward.1}
  #allocation0 [shape = 'u32[]', space=smem, size = 0x4, offset = 0x4, fixed_abs, tag = 'smem constant byte address 0x4 - core index']
  #allocation1 [shape = 'u32[72,128]{1,0:T(1,128)}', space=vmem, size = 0x9000, scoped, tag = 'internal scratch']
  %s0 = inlined_call_operand.hbm [shape: f32[2,16], index: 0, kind: input, shape index: {}]
  %s1 = inlined_call_operand.hbm [shape: f32[16,512], index: 1, kind: input, shape index: {}]
  %s2 = inlined_call_operand.hbm [shape: f32[1,256], index: 2, kind: input, shape index: {}]
  %s3 = inlined_call_operand.hbm [shape: f32[256,512], index: 3, kind: input, shape index: {}]
  %s4 = inlined_call_operand.hbm [shape: f32[1,256], index: 4, kind: input, shape index: {}]
  %s5 = inlined_call_operand.hbm [shape: bf16[64,128], index: 5, kind: input, shape index: {}]
  %s6 = inlined_call_operand.hbm [shape: f32[8,128], index: 6, kind: input, shape index: {}]
  %s7 = inlined_call_operand.hbm [shape: f32[64,64], index: 7, kind: input, shape index: {}]
  %s8 = inlined_call_operand.hbm [shape: f32[2,8], index: 8, kind: input, shape index: {}]
  %s9 = inlined_call_operand.hbm [shape: bf16[3,128,384], index: 9, kind: input, shape index: {}]
  %s10 = inlined_call_operand.hbm [shape: f32[3,1,384], index: 10, kind: input, shape index: {}]
  %s11 = inlined_call_operand.hbm [shape: bf16[3,128,128], index: 11, kind: input, shape index: {}]
  %s12 = inlined_call_operand.hbm [shape: f32[3,1,128], index: 12, kind: input, shape index: {}]
  %s13 = inlined_call_operand.hbm [shape: f32[3,1,128], index: 13, kind: input, shape index: {}]
  %s14 = inlined_call_operand.hbm [shape: f32[3,1,128], index: 14, kind: input, shape index: {}]
  %s15 = inlined_call_operand.hbm [shape: bf16[3,128,2048], index: 15, kind: input, shape index: {}]
  %s16 = inlined_call_operand.hbm [shape: f32[3,1,2048], index: 16, kind: input, shape index: {}]
  %s17 = inlined_call_operand.hbm [shape: bf16[3,2048,128], index: 17, kind: input, shape index: {}]
  %s18 = inlined_call_operand.hbm [shape: f32[3,1,128], index: 18, kind: input, shape index: {}]
  %s19 = inlined_call_operand.hbm [shape: f32[3,1,128], index: 19, kind: input, shape index: {}]
  %s20 = inlined_call_operand.hbm [shape: f32[3,1,128], index: 20, kind: input, shape index: {}]
  %s21 = inlined_call_operand.vmem [shape: f32[128,64], index: 21, kind: input, shape index: {}]
  %s22 = inlined_call_operand.hbm [shape: f32[1,64], index: 22, kind: input, shape index: {}]
  %s23 = inlined_call_operand.vmem [shape: f32[64,3], index: 23, kind: input, shape index: {}]
  %s24 = inlined_call_operand.hbm [shape: f32[1,3], index: 24, kind: input, shape index: {}]
  %s25 = inlined_call_operand.hbm [shape: f32[2,3], index: 25, kind: output, shape index: {}]
  %s26 = sld [smem:[#allocation0]]
  $region202: #{spectral_classifier_forward.1} parent=0
    _
  %s28 = ssub.s32 1, %s26
  %s29 = scalar_select 0, %s28, %s26
  $region1: #{spectral_classifier_forward.1} parent=0
    #allocation2 [shape = 'u8[1024]{0}', space=vmem, size = 0x400, scoped, tag = 'input window, operand 0, single buffered']
    #allocation3 [shape = 's32[1]{0}', space=sflag, size = 0x4, scoped, tag = 'scoped memory for spectral_classifier_forward.1']
    #allocation4 [shape = 's32[1]{0}', space=sflag, size = 0x4, scoped, tag = 'scoped memory for spectral_classifier_forward.1']
    #allocation5 [shape = 'u8[32768]{0}', space=vmem, size = 0x8000, scoped, tag = 'input window, operand 1, single buffered']
    #allocation6 [shape = 's32[1]{0}', space=sflag, size = 0x4, scoped, tag = 'scoped memory for spectral_classifier_forward.1']
    #allocation7 [shape = 'u8[1024]{0}', space=vmem, size = 0x400, scoped, tag = 'input window, operand 2, single buffered']
    #allocation8 [shape = 'u8[524288]{0}', space=vmem, size = 0x80000, scoped, tag = 'input window, operand 3, single buffered']
    #allocation9 [shape = 's32[1]{0}', space=sflag, size = 0x4, scoped, tag = 'scoped memory for spectral_classifier_forward.1']
    #allocation10 [shape = 'u8[1024]{0}', space=vmem, size = 0x400, scoped, tag = 'input window, operand 4, single buffered']
    #allocation11 [shape = 'u8[16384]{0}', space=vmem, size = 0x4000, scoped, tag = 'input window, operand 5, single buffered']
    #allocation12 [shape = 's32[1]{0}', space=sflag, size = 0x4, scoped, tag = 'scoped memory for spectral_classifier_forward.1']
    #allocation13 [shape = 'u8[4096]{0}', space=vmem, size = 0x1000, scoped, tag = 'input window, operand 6, single buffered']
    #allocation14 [shape = 'u8[32768]{0}', space=vmem, size = 0x8000, scoped, tag = 'input window, operand 7, single buffered']
    #allocation15 [shape = 's32[1]{0}', space=sflag, size = 0x4, scoped, tag = 'scoped memory for spectral_classifier_forward.1']
    #allocation16 [shape = 'u8[1024]{0}', space=vmem, size = 0x400, scoped, tag = 'input window, operand 8, single buffered']
    #allocation17 [shape = 'u8[294912]{0}', space=vmem, size = 0x48000, scoped, tag = 'input window, operand 9, single buffered']
    #allocation18 [shape = 's32[1]{0}', space=sflag, size = 0x4, scoped, tag = 'scoped memory for spectral_classifier_forward.1']
    #allocation19 [shape = 'u8[4608]{0}', space=vmem, size = 0x1400, scoped, tag = 'input window, operand 10, single buffered']
    #allocation20 [shape = 'u8[98304]{0}', space=vmem, size = 0x18000, scoped, tag = 'input window, operand 11, single buffered']
    #allocation21 [shape = 's32[1]{0}', space=sflag, size = 0x4, scoped, tag = 'scoped memory for spectral_classifier_forward.1']
    #allocation22 [shape = 'u8[1536]{0}', space=vmem, size = 0x800, scoped, tag = 'input window, operand 12, single buffered']
    #allocation23 [shape = 'u8[1536]{0}', space=vmem, size = 0x800, scoped, tag = 'input window, operand 13, single buffered']
    #allocation24 [shape = 's32[1]{0}', space=sflag, size = 0x4, scoped, tag = 'scoped memory for spectral_classifier_forward.1']
    #allocation25 [shape = 'u8[1536]{0}', space=vmem, size = 0x800, scoped, tag = 'input window, operand 14, single buffered']
    #allocation26 [shape = 'u8[1572864]{0}', space=vmem, size = 0x180000, scoped, tag = 'input window, operand 15, single buffered']
    #allocation27 [shape = 's32[1]{0}', space=sflag, size = 0x4, scoped, tag = 'scoped memory for spectral_classifier_forward.1']
    #allocation28 [shape = 'u8[24576]{0}', space=vmem, size = 0x6000, scoped, tag = 'input window, operand 16, single buffered']
    #allocation29 [shape = 'u8[1572864]{0}', space=vmem, size = 0x180000, scoped, tag = 'input window, operand 17, single buffered']
    #allocation30 [shape = 's32[1]{0}', space=sflag, size = 0x4, scoped, tag = 'scoped memory for spectral_classifier_forward.1']
    #allocation31 [shape = 'u8[1536]{0}', space=vmem, size = 0x800, scoped, tag = 'input window, operand 18, single buffered']
    #allocation32 [shape = 'u8[1536]{0}', space=vmem, size = 0x800, scoped, tag = 'input window, operand 19, single buffered']
    #allocation33 [shape = 's32[1]{0}', space=sflag, size = 0x4, scoped, tag = 'scoped memory for spectral_classifier_forward.1']
    #allocation34 [shape = 'u8[1536]{0}', space=vmem, size = 0x800, scoped, tag = 'input window, operand 20, single buffered']
    #allocation35 [shape = 'u8[512]{0}', space=vmem, size = 0x400, scoped, tag = 'input window, operand 22, single buffered']
    #allocation36 [shape = 's32[1]{0}', space=sflag, size = 0x4, scoped, tag = 'scoped memory for spectral_classifier_forward.1']
    #allocation37 [shape = 'u8[512]{0}', space=vmem, size = 0x400, scoped, tag = 'input window, operand 24, single buffered']
    #allocation38 [shape = 'u8[1024]{0}', space=vmem, size = 0x400, scoped, tag = 'output window, operand 0, single buffered']
    %30 = vsyncpa [#allocation3], 0
    %31 = vsyncpa [#allocation6], 0
    %32 = vsyncpa [#allocation9], 0
    %33 = vsyncpa [#allocation12], 0
    %34 = vsyncpa [#allocation15], 0
    %35 = vsyncpa [#allocation18], 0
    %36 = vsyncpa [#allocation21], 0
    %37 = vsyncpa [#allocation24], 0
    %38 = vsyncpa [#allocation27], 0
    %39 = vsyncpa [#allocation30], 0
    %40 = vsyncpa [#allocation33], 0
    %41 = vsyncpa [#allocation36], 0
    %42 = vsyncpa [#allocation4], 0
    // Predicated region
    $region2: #{spectral_classifier_forward.1} parent=1 // pred_check
      _
    $region3: #{spectral_classifier_forward.1} parent=1 // pred_check_branch
      %44 = sbr.rel (0) target = $region5
    $region4: #{spectral_classifier_forward.1} parent=1 // pred_region
      %46 = vsyncadd [#allocation3], 0
      %s48 = sshll.u32 %s0, 4
      %s49 = int_to_ptr.hbm [resolvable:$true] %s48
      %s50 = sshll.u32 [#allocation2], 4
      %s51 = int_to_ptr.vmem [resolvable:$true] %s50
      %53 = dma.hbm_to_vmem [thread:$0]  %s49, 32, %s51, [#allocation3]
    $region5: #{spectral_classifier_forward.1} parent=1 // pred_fallthru
      _
    // Predicated region
    $region6: #{spectral_classifier_forward.1} parent=1 // pred_check
      _
    $region7: #{spectral_classifier_forward.1} parent=1 // pred_check_branch
      %55 = sbr.rel (0) target = $region9
    $region8: #{spectral_classifier_forward.1} parent=1 // pred_region
      %57 = vsyncadd [#allocation6], 0
      %s58 = sshll.u32 %s1, 4
      %s59 = int_to_ptr.hbm [resolvable:$true] %s58
      %s60 = sshll.u32 [#allocation5], 4
      %s61 = int_to_ptr.vmem [resolvable:$true] %s60
      %66 = dma.hbm_to_vmem [thread:$0]  %s59, 1024, %s61, [#allocation6], 512, 512, 32
    $region9: #{spectral_classifier_forward.1} parent=1 // pred_fallthru
      _
    // Predicated region
    $region10: #{spectral_classifier_forward.1} parent=1 // pred_check
      _
    $region11: #{spectral_classifier_forward.1} parent=1 // pred_check_branch
      %68 = sbr.rel (0) target = $region13
    $region12: #{spectral_classifier_forward.1} parent=1 // pred_region
      %70 = vsyncadd [#allocation6], 0
      %s72 = sshll.u32 %s2, 4
      %s73 = int_to_ptr.hbm [resolvable:$true] %s72
      %s74 = sshll.u32 [#allocation7], 4
      %s75 = int_to_ptr.vmem [resolvable:$true] %s74
      %77 = dma.hbm_to_vmem [thread:$0]  %s73, 32, %s75, [#allocation6]
    $region13: #{spectral_classifier_forward.1} parent=1 // pred_fallthru
      _
    // Predicated region
    $region14: #{spectral_classifier_forward.1} parent=1 // pred_check
      _
    $region15: #{spectral_classifier_forward.1} parent=1 // pred_check_branch
      %79 = sbr.rel (0) target = $region17
    $region16: #{spectral_classifier_forward.1} parent=1 // pred_region
      %81 = vsyncadd [#allocation9], 0
      %s82 = sshll.u32 %s3, 4
      %s83 = int_to_ptr.hbm [resolvable:$true] %s82
      %s84 = sshll.u32 [#allocation8], 4
      %s85 = int_to_ptr.vmem [resolvable:$true] %s84
      %90 = dma.hbm_to_vmem [thread:$0]  %s83, 16384, %s85, [#allocation9], 512, 512, 32
    $region17: #{spectral_classifier_forward.1} parent=1 // pred_fallthru
      _
    // Predicated region
    $region18: #{spectral_classifier_forward.1} parent=1 // pred_check
      _
    $region19: #{spectral_classifier_forward.1} parent=1 // pred_check_branch
      %92 = sbr.rel (0) target = $region21
    $region20: #{spectral_classifier_forward.1} parent=1 // pred_region
      %94 = vsyncadd [#allocation9], 0
      %s96 = sshll.u32 %s4, 4
      %s97 = int_to_ptr.hbm [resolvable:$true] %s96
      %s98 = sshll.u32 [#allocation10], 4
      %s99 = int_to_ptr.vmem [resolvable:$true] %s98
      %101 = dma.hbm_to_vmem [thread:$0]  %s97, 32, %s99, [#allocation9]
    $region21: #{spectral_classifier_forward.1} parent=1 // pred_fallthru
      _
    // Predicated region
    $region22: #{spectral_classifier_forward.1} parent=1 // pred_check
      _
    $region23: #{spectral_classifier_forward.1} parent=1 // pred_check_branch
      %103 = sbr.rel (0) target = $region25
    $region24: #{spectral_classifier_forward.1} parent=1 // pred_region
      %105 = vsyncadd [#allocation12], 0
      %s106 = sshll.u32 %s5, 4
      %s107 = int_to_ptr.hbm [resolvable:$true] %s106
      %s108 = sshll.u32 [#allocation11], 4
      %s109 = int_to_ptr.vmem [resolvable:$true] %s108
      %114 = dma.hbm_to_vmem [thread:$0]  %s107, 512, %s109, [#allocation12], 64, 64, 4
    $region25: #{spectral_classifier_forward.1} parent=1 // pred_fallthru
      _
    // Predicated region
    $region26: #{spectral_classifier_forward.1} parent=1 // pred_check
      _
    $region27: #{spectral_classifier_forward.1} parent=1 // pred_check_branch
      %116 = sbr.rel (0) target = $region29
    $region28: #{spectral_classifier_forward.1} parent=1 // pred_region
      %118 = vsyncadd [#allocation12], 0
      %s120 = sshll.u32 %s6, 4
      %s121 = int_to_ptr.hbm [resolvable:$true] %s120
      %s122 = sshll.u32 [#allocation13], 4
      %s123 = int_to_ptr.vmem [resolvable:$true] %s122
      %125 = dma.hbm_to_vmem [thread:$0]  %s121, 128, %s123, [#allocation12]
    $region29: #{spectral_classifier_forward.1} parent=1 // pred_fallthru
      _
    // Predicated region
    $region30: #{spectral_classifier_forward.1} parent=1 // pred_check
      _
    $region31: #{spectral_classifier_forward.1} parent=1 // pred_check_branch
      %127 = sbr.rel (0) target = $region33
    $region32: #{spectral_classifier_forward.1} parent=1 // pred_region
      %129 = vsyncadd [#allocation15], 0
      %s130 = sshll.u32 %s7, 4
      %s131 = int_to_ptr.hbm [resolvable:$true] %s130
      %s132 = sshll.u32 [#allocation14], 4
      %s133 = int_to_ptr.vmem [resolvable:$true] %s132
      %138 = dma.hbm_to_vmem [thread:$0]  %s131, 1024, %s133, [#allocation15], 128, 128, 8
    $region33: #{spectral_classifier_forward.1} parent=1 // pred_fallthru
      _
    // Predicated region
    $region34: #{spectral_classifier_forward.1} parent=1 // pred_check
      _
    $region35: #{spectral_classifier_forward.1} parent=1 // pred_check_branch
      %140 = sbr.rel (0) target = $region37
    $region36: #{spectral_classifier_forward.1} parent=1 // pred_region
      %142 = vsyncadd [#allocation15], 0
      %s144 = sshll.u32 %s8, 4
      %s145 = int_to_ptr.hbm [resolvable:$true] %s144
      %s146 = sshll.u32 [#allocation16], 4
      %s147 = int_to_ptr.vmem [resolvable:$true] %s146
      %149 = dma.hbm_to_vmem [thread:$0]  %s145, 32, %s147, [#allocation15]
    $region37: #{spectral_classifier_forward.1} parent=1 // pred_fallthru
      _
    // Predicated region
    $region38: #{spectral_classifier_forward.1} parent=1 // pred_check
      _
    $region39: #{spectral_classifier_forward.1} parent=1 // pred_check_branch
      %151 = sbr.rel (0) target = $region41
    $region40: #{spectral_classifier_forward.1} parent=1 // pred_region
      %153 = vsyncadd [#allocation18], 0
      %s154 = sshll.u32 %s9, 4
      %s155 = int_to_ptr.hbm [resolvable:$true] %s154
      %s156 = sshll.u32 [#allocation17], 4
      %s157 = int_to_ptr.vmem [resolvable:$true] %s156
      %162 = dma.hbm_to_vmem [thread:$0]  %s155, 9216, %s157, [#allocation18], 192, 192, 12
    $region41: #{spectral_classifier_forward.1} parent=1 // pred_fallthru
      _
    // Predicated region
    $region42: #{spectral_classifier_forward.1} parent=1 // pred_check
      _
    $region43: #{spectral_classifier_forward.1} parent=1 // pred_check_branch
      %164 = sbr.rel (0) target = $region45
    $region44: #{spectral_classifier_forward.1} parent=1 // pred_region
      %166 = vsyncadd [#allocation18], 0
      %s167 = sshll.u32 %s10, 4
      %s168 = int_to_ptr.hbm [resolvable:$true] %s167
      %s169 = sshll.u32 [#allocation19], 4
      %s170 = int_to_ptr.vmem [resolvable:$true] %s169
      %175 = dma.hbm_to_vmem [thread:$0]  %s168, 144, %s170, [#allocation18], 48, 48, 3
    $region45: #{spectral_classifier_forward.1} parent=1 // pred_fallthru
      _
    // Predicated region
    $region46: #{spectral_classifier_forward.1} parent=1 // pred_check
      _
    $region47: #{spectral_classifier_forward.1} parent=1 // pred_check_branch
      %177 = sbr.rel (0) target = $region49
    $region48: #{spectral_classifier_forward.1} parent=1 // pred_region
      %179 = vsyncadd [#allocation21], 0
      %s180 = sshll.u32 %s11, 4
      %s181 = int_to_ptr.hbm [resolvable:$true] %s180
      %s182 = sshll.u32 [#allocation20], 4
      %s183 = int_to_ptr.vmem [resolvable:$true] %s182
      %188 = dma.hbm_to_vmem [thread:$0]  %s181, 3072, %s183, [#allocation21], 64, 64, 4
    $region49: #{spectral_classifier_forward.1} parent=1 // pred_fallthru
      _
    // Predicated region
    $region50: #{spectral_classifier_forward.1} parent=1 // pred_check
      _
    $region51: #{spectral_classifier_forward.1} parent=1 // pred_check_branch
      %190 = sbr.rel (0) target = $region53
    $region52: #{spectral_classifier_forward.1} parent=1 // pred_region
      %192 = vsyncadd [#allocation21], 0
      %s193 = sshll.u32 %s12, 4
      %s194 = int_to_ptr.hbm [resolvable:$true] %s193
      %s195 = sshll.u32 [#allocation22], 4
      %s196 = int_to_ptr.vmem [resolvable:$true] %s195
      %201 = dma.hbm_to_vmem [thread:$0]  %s194, 48, %s196, [#allocation21], 16, 16, 1
    $region53: #{spectral_classifier_forward.1} parent=1 // pred_fallthru
      _
    // Predicated region
    $region54: #{spectral_classifier_forward.1} parent=1 // pred_check
      _
    $region55: #{spectral_classifier_forward.1} parent=1 // pred_check_branch
      %203 = sbr.rel (0) target = $region57
    $region56: #{spectral_classifier_forward.1} parent=1 // pred_region
      %205 = vsyncadd [#allocation24], 0
      %s206 = sshll.u32 %s13, 4
      %s207 = int_to_ptr.hbm [resolvable:$true] %s206
      %s208 = sshll.u32 [#allocation23], 4
      %s209 = int_to_ptr.vmem [resolvable:$true] %s208
      %214 = dma.hbm_to_vmem [thread:$0]  %s207, 48, %s209, [#allocation24], 16, 16, 1
    $region57: #{spectral_classifier_forward.1} parent=1 // pred_fallthru
      _
    // Predicated region
    $region58: #{spectral_classifier_forward.1} parent=1 // pred_check
      _
    $region59: #{spectral_classifier_forward.1} parent=1 // pred_check_branch
      %216 = sbr.rel (0) target = $region61
    $region60: #{spectral_classifier_forward.1} parent=1 // pred_region
      %218 = vsyncadd [#allocation24], 0
      %s219 = sshll.u32 %s14, 4
      %s220 = int_to_ptr.hbm [resolvable:$true] %s219
      %s221 = sshll.u32 [#allocation25], 4
      %s222 = int_to_ptr.vmem [resolvable:$true] %s221
      %227 = dma.hbm_to_vmem [thread:$0]  %s220, 48, %s222, [#allocation24], 16, 16, 1
    $region61: #{spectral_classifier_forward.1} parent=1 // pred_fallthru
      _
    // Predicated region
    $region62: #{spectral_classifier_forward.1} parent=1 // pred_check
      _
    $region63: #{spectral_classifier_forward.1} parent=1 // pred_check_branch
      %229 = sbr.rel (0) target = $region65
    $region64: #{spectral_classifier_forward.1} parent=1 // pred_region
      %231 = vsyncadd [#allocation27], 0
      %s232 = sshll.u32 %s15, 4
      %s233 = int_to_ptr.hbm [resolvable:$true] %s232
      %s234 = sshll.u32 [#allocation26], 4
      %s235 = int_to_ptr.vmem [resolvable:$true] %s234
      %240 = dma.hbm_to_vmem [thread:$0]  %s233, 49152, %s235, [#allocation27], 1024, 1024, 64
    $region65: #{spectral_classifier_forward.1} parent=1 // pred_fallthru
      _
    // Predicated region
    $region66: #{spectral_classifier_forward.1} parent=1 // pred_check
      _
    $region67: #{spectral_classifier_forward.1} parent=1 // pred_check_branch
      %242 = sbr.rel (0) target = $region69
    $region68: #{spectral_classifier_forward.1} parent=1 // pred_region
      %244 = vsyncadd [#allocation27], 0
      %s245 = sshll.u32 %s16, 4
      %s246 = int_to_ptr.hbm [resolvable:$true] %s245
      %s247 = sshll.u32 [#allocation28], 4
      %s248 = int_to_ptr.vmem [resolvable:$true] %s247
      %253 = dma.hbm_to_vmem [thread:$0]  %s246, 768, %s248, [#allocation27], 256, 256, 16
    $region69: #{spectral_classifier_forward.1} parent=1 // pred_fallthru
      _
    // Predicated region
    $region70: #{spectral_classifier_forward.1} parent=1 // pred_check
      _
    $region71: #{spectral_classifier_forward.1} parent=1 // pred_check_branch
      %255 = sbr.rel (0) target = $region73
    $region72: #{spectral_classifier_forward.1} parent=1 // pred_region
      %257 = vsyncadd [#allocation30], 0
      %s258 = sshll.u32 %s17, 4
      %s259 = int_to_ptr.hbm [resolvable:$true] %s258
      %s260 = sshll.u32 [#allocation29], 4
      %s261 = int_to_ptr.vmem [resolvable:$true] %s260
      %266 = dma.hbm_to_vmem [thread:$0]  %s259, 49152, %s261, [#allocation30], 64, 64, 4
    $region73: #{spectral_classifier_forward.1} parent=1 // pred_fallthru
      _
    // Predicated region
    $region74: #{spectral_classifier_forward.1} parent=1 // pred_check
      _
    $region75: #{spectral_classifier_forward.1} parent=1 // pred_check_branch
      %268 = sbr.rel (0) target = $region77
    $region76: #{spectral_classifier_forward.1} parent=1 // pred_region
      %270 = vsyncadd [#allocation30], 0
      %s271 = sshll.u32 %s18, 4
      %s272 = int_to_ptr.hbm [resolvable:$true] %s271
      %s273 = sshll.u32 [#allocation31], 4
      %s274 = int_to_ptr.vmem [resolvable:$true] %s273
      %279 = dma.hbm_to_vmem [thread:$0]  %s272, 48, %s274, [#allocation30], 16, 16, 1
    $region77: #{spectral_classifier_forward.1} parent=1 // pred_fallthru
      _
    // Predicated region
    $region78: #{spectral_classifier_forward.1} parent=1 // pred_check
      _
    $region79: #{spectral_classifier_forward.1} parent=1 // pred_check_branch
      %281 = sbr.rel (0) target = $region81
    $region80: #{spectral_classifier_forward.1} parent=1 // pred_region
      %283 = vsyncadd [#allocation33], 0
      %s284 = sshll.u32 %s19, 4
      %s285 = int_to_ptr.hbm [resolvable:$true] %s284
      %s286 = sshll.u32 [#allocation32], 4
      %s287 = int_to_ptr.vmem [resolvable:$true] %s286
      %292 = dma.hbm_to_vmem [thread:$0]  %s285, 48, %s287, [#allocation33], 16, 16, 1
    $region81: #{spectral_classifier_forward.1} parent=1 // pred_fallthru
      _
    // Predicated region
    $region82: #{spectral_classifier_forward.1} parent=1 // pred_check
      _
    $region83: #{spectral_classifier_forward.1} parent=1 // pred_check_branch
      %294 = sbr.rel (0) target = $region85
    $region84: #{spectral_classifier_forward.1} parent=1 // pred_region
      %296 = vsyncadd [#allocation33], 0
      %s297 = sshll.u32 %s20, 4
      %s298 = int_to_ptr.hbm [resolvable:$true] %s297
      %s299 = sshll.u32 [#allocation34], 4
      %s300 = int_to_ptr.vmem [resolvable:$true] %s299
      %305 = dma.hbm_to_vmem [thread:$0]  %s298, 48, %s300, [#allocation33], 16, 16, 1
    $region85: #{spectral_classifier_forward.1} parent=1 // pred_fallthru
      _
    // Predicated region
    $region86: #{spectral_classifier_forward.1} parent=1 // pred_check
      _
    $region87: #{spectral_classifier_forward.1} parent=1 // pred_check_branch
      %307 = sbr.rel (0) target = $region89
    $region88: #{spectral_classifier_forward.1} parent=1 // pred_region
      _
    $region89: #{spectral_classifier_forward.1} parent=1 // pred_fallthru
      _
    // Predicated region
    $region90: #{spectral_classifier_forward.1} parent=1 // pred_check
      _
    $region91: #{spectral_classifier_forward.1} parent=1 // pred_check_branch
      %309 = sbr.rel (0) target = $region93
    $region92: #{spectral_classifier_forward.1} parent=1 // pred_region
      %311 = vsyncadd [#allocation36], 0
      %s313 = sshll.u32 %s22, 4
      %s314 = int_to_ptr.hbm [resolvable:$true] %s313
      %s315 = sshll.u32 [#allocation35], 4
      %s316 = int_to_ptr.vmem [resolvable:$true] %s315
      %318 = dma.hbm_to_vmem [thread:$0]  %s314, 16, %s316, [#allocation36]
    $region93: #{spectral_classifier_forward.1} parent=1 // pred_fallthru
      _
    // Predicated region
    $region94: #{spectral_classifier_forward.1} parent=1 // pred_check
      _
    $region95: #{spectral_classifier_forward.1} parent=1 // pred_check_branch
      %320 = sbr.rel (0) target = $region97
    $region96: #{spectral_classifier_forward.1} parent=1 // pred_region
      _
    $region97: #{spectral_classifier_forward.1} parent=1 // pred_fallthru
      _
    // Predicated region
    $region98: #{spectral_classifier_forward.1} parent=1 // pred_check
      _
    $region99: #{spectral_classifier_forward.1} parent=1 // pred_check_branch
      %322 = sbr.rel (0) target = $region101
    $region100: #{spectral_classifier_forward.1} parent=1 // pred_region
      %324 = vsyncadd [#allocation36], 0
      %s326 = sshll.u32 %s24, 4
      %s327 = int_to_ptr.hbm [resolvable:$true] %s326
      %s328 = sshll.u32 [#allocation37], 4
      %s329 = int_to_ptr.vmem [resolvable:$true] %s328
      %331 = dma.hbm_to_vmem [thread:$0]  %s327, 16, %s329, [#allocation36]
    $region101: #{spectral_classifier_forward.1} parent=1 // pred_fallthru
      _
    // Predicated region
    $region102: #{spectral_classifier_forward.1} parent=1 // pred_check
      _
    $region103: #{spectral_classifier_forward.1} parent=1 // pred_check_branch
      %333 = sbr.rel (0) target = $region105
    $region104: #{spectral_classifier_forward.1} parent=1 // pred_region
      %335 = dma.done [#allocation3], 32
    $region105: #{spectral_classifier_forward.1} parent=1 // pred_fallthru
      _
    // Predicated region
    $region106: #{spectral_classifier_forward.1} parent=1 // pred_check
      _
    $region107: #{spectral_classifier_forward.1} parent=1 // pred_check_branch
      %337 = sbr.rel (0) target = $region109
    $region108: #{spectral_classifier_forward.1} parent=1 // pred_region
      %339 = dma.done [#allocation6], 1024
    $region109: #{spectral_classifier_forward.1} parent=1 // pred_fallthru
      _
    // Predicated region
    $region110: #{spectral_classifier_forward.1} parent=1 // pred_check
      _
    $region111: #{spectral_classifier_forward.1} parent=1 // pred_check_branch
      %341 = sbr.rel (0) target = $region113
    $region112: #{spectral_classifier_forward.1} parent=1 // pred_region
      %343 = dma.done [#allocation6], 32
    $region113: #{spectral_classifier_forward.1} parent=1 // pred_fallthru
      _
    // Predicated region
    $region114: #{spectral_classifier_forward.1} parent=1 // pred_check
      _
    $region115: #{spectral_classifier_forward.1} parent=1 // pred_check_branch
      %345 = sbr.rel (0) target = $region117
    $region116: #{spectral_classifier_forward.1} parent=1 // pred_region
      %347 = dma.done [#allocation9], 16384
    $region117: #{spectral_classifier_forward.1} parent=1 // pred_fallthru
      _
    // Predicated region
    $region118: #{spectral_classifier_forward.1} parent=1 // pred_check
      _
    $region119: #{spectral_classifier_forward.1} parent=1 // pred_check_branch
      %349 = sbr.rel (0) target = $region121
    $region120: #{spectral_classifier_forward.1} parent=1 // pred_region
      %351 = dma.done [#allocation9], 32
    $region121: #{spectral_classifier_forward.1} parent=1 // pred_fallthru
      _
    // Predicated region
    $region122: #{spectral_classifier_forward.1} parent=1 // pred_check
      _
    $region123: #{spectral_classifier_forward.1} parent=1 // pred_check_branch
      %353 = sbr.rel (0) target = $region125
    $region124: #{spectral_classifier_forward.1} parent=1 // pred_region
      %355 = dma.done [#allocation12], 512
    $region125: #{spectral_classifier_forward.1} parent=1 // pred_fallthru
      _
    // Predicated region
    $region126: #{spectral_classifier_forward.1} parent=1 // pred_check
      _
    $region127: #{spectral_classifier_forward.1} parent=1 // pred_check_branch
      %357 = sbr.rel (0) target = $region129
    $region128: #{spectral_classifier_forward.1} parent=1 // pred_region
      %359 = dma.done [#allocation12], 128
    $region129: #{spectral_classifier_forward.1} parent=1 // pred_fallthru
      _
    // Predicated region
    $region130: #{spectral_classifier_forward.1} parent=1 // pred_check
      _
    $region131: #{spectral_classifier_forward.1} parent=1 // pred_check_branch
      %361 = sbr.rel (0) target = $region133
    $region132: #{spectral_classifier_forward.1} parent=1 // pred_region
      %363 = dma.done [#allocation15], 1024
    $region133: #{spectral_classifier_forward.1} parent=1 // pred_fallthru
      _
    // Predicated region
    $region134: #{spectral_classifier_forward.1} parent=1 // pred_check
      _
    $region135: #{spectral_classifier_forward.1} parent=1 // pred_check_branch
      %365 = sbr.rel (0) target = $region137
    $region136: #{spectral_classifier_forward.1} parent=1 // pred_region
      %367 = dma.done [#allocation15], 32
    $region137: #{spectral_classifier_forward.1} parent=1 // pred_fallthru
      _
    // Predicated region
    $region138: #{spectral_classifier_forward.1} parent=1 // pred_check
      _
    $region139: #{spectral_classifier_forward.1} parent=1 // pred_check_branch
      %369 = sbr.rel (0) target = $region141
    $region140: #{spectral_classifier_forward.1} parent=1 // pred_region
      %371 = dma.done [#allocation18], 9216
    $region141: #{spectral_classifier_forward.1} parent=1 // pred_fallthru
      _
    // Predicated region
    $region142: #{spectral_classifier_forward.1} parent=1 // pred_check
      _
    $region143: #{spectral_classifier_forward.1} parent=1 // pred_check_branch
      %373 = sbr.rel (0) target = $region145
    $region144: #{spectral_classifier_forward.1} parent=1 // pred_region
      %375 = dma.done [#allocation18], 144
    $region145: #{spectral_classifier_forward.1} parent=1 // pred_fallthru
      _
    // Predicated region
    $region146: #{spectral_classifier_forward.1} parent=1 // pred_check
      _
    $region147: #{spectral_classifier_forward.1} parent=1 // pred_check_branch
      %377 = sbr.rel (0) target = $region149
    $region148: #{spectral_classifier_forward.1} parent=1 // pred_region
      %379 = dma.done [#allocation21], 3072
    $region149: #{spectral_classifier_forward.1} parent=1 // pred_fallthru
      _
    // Predicated region
    $region150: #{spectral_classifier_forward.1} parent=1 // pred_check
      _
    $region151: #{spectral_classifier_forward.1} parent=1 // pred_check_branch
      %381 = sbr.rel (0) target = $region153
    $region152: #{spectral_classifier_forward.1} parent=1 // pred_region
      %383 = dma.done [#allocation21], 48
    $region153: #{spectral_classifier_forward.1} parent=1 // pred_fallthru
      _
    // Predicated region
    $region154: #{spectral_classifier_forward.1} parent=1 // pred_check
      _
    $region155: #{spectral_classifier_forward.1} parent=1 // pred_check_branch
      %385 = sbr.rel (0) target = $region157
    $region156: #{spectral_classifier_forward.1} parent=1 // pred_region
      %387 = dma.done [#allocation24], 48
    $region157: #{spectral_classifier_forward.1} parent=1 // pred_fallthru
      _
    // Predicated region
    $region158: #{spectral_classifier_forward.1} parent=1 // pred_check
      _
    $region159: #{spectral_classifier_forward.1} parent=1 // pred_check_branch
      %389 = sbr.rel (0) target = $region161
    $region160: #{spectral_classifier_forward.1} parent=1 // pred_region
      %391 = dma.done [#allocation24], 48
    $region161: #{spectral_classifier_forward.1} parent=1 // pred_fallthru
      _
    // Predicated region
    $region162: #{spectral_classifier_forward.1} parent=1 // pred_check
      _
    $region163: #{spectral_classifier_forward.1} parent=1 // pred_check_branch
      %393 = sbr.rel (0) target = $region165
    $region164: #{spectral_classifier_forward.1} parent=1 // pred_region
      %395 = dma.done [#allocation27], 49152
    $region165: #{spectral_classifier_forward.1} parent=1 // pred_fallthru
      _
    // Predicated region
    $region166: #{spectral_classifier_forward.1} parent=1 // pred_check
      _
    $region167: #{spectral_classifier_forward.1} parent=1 // pred_check_branch
      %397 = sbr.rel (0) target = $region169
    $region168: #{spectral_classifier_forward.1} parent=1 // pred_region
      %399 = dma.done [#allocation27], 768
    $region169: #{spectral_classifier_forward.1} parent=1 // pred_fallthru
      _
    // Predicated region
    $region170: #{spectral_classifier_forward.1} parent=1 // pred_check
      _
    $region171: #{spectral_classifier_forward.1} parent=1 // pred_check_branch
      %401 = sbr.rel (0) target = $region173
    $region172: #{spectral_classifier_forward.1} parent=1 // pred_region
      %403 = dma.done [#allocation30], 49152
    $region173: #{spectral_classifier_forward.1} parent=1 // pred_fallthru
      _
    // Predicated region
    $region174: #{spectral_classifier_forward.1} parent=1 // pred_check
      _
    $region175: #{spectral_classifier_forward.1} parent=1 // pred_check_branch
      %405 = sbr.rel (0) target = $region177
    $region176: #{spectral_classifier_forward.1} parent=1 // pred_region
      %407 = dma.done [#allocation30], 48
    $region177: #{spectral_classifier_forward.1} parent=1 // pred_fallthru
      _
    // Predicated region
    $region178: #{spectral_classifier_forward.1} parent=1 // pred_check
      _
    $region179: #{spectral_classifier_forward.1} parent=1 // pred_check_branch
      %409 = sbr.rel (0) target = $region181
    $region180: #{spectral_classifier_forward.1} parent=1 // pred_region
      %411 = dma.done [#allocation33], 48
    $region181: #{spectral_classifier_forward.1} parent=1 // pred_fallthru
      _
    // Predicated region
    $region182: #{spectral_classifier_forward.1} parent=1 // pred_check
      _
    $region183: #{spectral_classifier_forward.1} parent=1 // pred_check_branch
      %413 = sbr.rel (0) target = $region185
    $region184: #{spectral_classifier_forward.1} parent=1 // pred_region
      %415 = dma.done [#allocation33], 48
    $region185: #{spectral_classifier_forward.1} parent=1 // pred_fallthru
      _
    // Predicated region
    $region186: #{spectral_classifier_forward.1} parent=1 // pred_check
      _
    $region187: #{spectral_classifier_forward.1} parent=1 // pred_check_branch
      %417 = sbr.rel (0) target = $region189
    $region188: #{spectral_classifier_forward.1} parent=1 // pred_region
      %419 = dma.done [#allocation36], 16
    $region189: #{spectral_classifier_forward.1} parent=1 // pred_fallthru
      _
    // Predicated region
    $region190: #{spectral_classifier_forward.1} parent=1 // pred_check
      _
    $region191: #{spectral_classifier_forward.1} parent=1 // pred_check_branch
      %421 = sbr.rel (0) target = $region193
    $region192: #{spectral_classifier_forward.1} parent=1 // pred_region
      %423 = dma.done [#allocation36], 16
    $region193: #{spectral_classifier_forward.1} parent=1 // pred_fallthru
      _
    %v425 = vld [vmem:[#allocation2] sm:$0x3]
    %v426 = vld [vmem:[#allocation5] sm:$0xff]
    %v427 = vld [vmem:[#allocation5 + $0x8] sm:$0xff]
    %v428 = vld [vmem:[#allocation5 + $0x10] sm:$0xff]
    %v429 = vld [vmem:[#allocation5 + $0x18] sm:$0xff]
    %v430 = vld [vmem:[#allocation5 + $0x20] sm:$0xff]
    %v431 = vld [vmem:[#allocation5 + $0x28] sm:$0xff]
    %v432 = vld [vmem:[#allocation5 + $0x30] sm:$0xff]
    %v433 = vld [vmem:[#allocation5 + $0x38] sm:$0xff]
    %vm434 = vcmask 130048
    %v436 = vsel %vm434, %v425, 0
    %438 = vmatpush.msra.mxu0 0.0
    %439 = vmatpush.msra.mxu0 0.0
    %440 = vmatpush.msra.mxu0 0.0
    %441 = vmatpush.msra.mxu0 0.0
    %442 = vmatpush.msra.mxu0 0.0
    %443 = vmatpush.msra.mxu0 0.0
    %444 = vmatpush.msra.mxu0 0.0
    %445 = vmatpush.msra.mxu0 0.0
    %446 = vmatpush.msra.mxu0 0.0
    %447 = vmatpush.msra.mxu0 0.0
    %448 = vmatpush.msra.mxu0 0.0
    %449 = vmatpush.msra.mxu0 0.0
    %450 = vmatpush.msra.mxu0 0.0
    %451 = vmatpush.msra.mxu0 0.0
    %452 = vmatpush.msra.mxu0 %v430
    %453 = vmatpush.msra.mxu0 %v426
    %454 = vmatmul.f32.gmra.mxu0 %v436
    %v455 = vpop.f32.mrf.mxu0
    %v456 = vadd.f32 0.0, %v455
    %457 = vdwg.mxu0
    %458 = vmatpush.msra.mxu0 0.0
    %459 = vmatpush.msra.mxu0 0.0
    %460 = vmatpush.msra.mxu0 0.0
    %461 = vmatpush.msra.mxu0 0.0
    %462 = vmatpush.msra.mxu0 0.0
    %463 = vmatpush.msra.mxu0 0.0
    %464 = vmatpush.msra.mxu0 0.0
    %465 = vmatpush.msra.mxu0 0.0
    %466 = vmatpush.msra.mxu0 0.0
    %467 = vmatpush.msra.mxu0 0.0
    %468 = vmatpush.msra.mxu0 0.0
    %469 = vmatpush.msra.mxu0 0.0
    %470 = vmatpush.msra.mxu0 0.0
    %471 = vmatpush.msra.mxu0 0.0
    %472 = vmatpush.msra.mxu0 %v431
    %473 = vmatpush.msra.mxu0 %v427
    %474 = vmatmul.f32.gmra.mxu0 %v436
    %v475 = vpop.f32.mrf.mxu0
    %v476 = vadd.f32 0.0, %v475
    %477 = vdwg.mxu0
    %478 = vmatpush.msra.mxu0 0.0
    %479 = vmatpush.msra.mxu0 0.0
    %480 = vmatpush.msra.mxu0 0.0
    %481 = vmatpush.msra.mxu0 0.0
    %482 = vmatpush.msra.mxu0 0.0
    %483 = vmatpush.msra.mxu0 0.0
    %484 = vmatpush.msra.mxu0 0.0
    %485 = vmatpush.msra.mxu0 0.0
    %486 = vmatpush.msra.mxu0 0.0
    %487 = vmatpush.msra.mxu0 0.0
    %488 = vmatpush.msra.mxu0 0.0
    %489 = vmatpush.msra.mxu0 0.0
    %490 = vmatpush.msra.mxu0 0.0
    %491 = vmatpush.msra.mxu0 0.0
    %492 = vmatpush.msra.mxu0 %v432
    %493 = vmatpush.msra.mxu0 %v428
    %494 = vmatmul.f32.gmra.mxu0 %v436
    %v495 = vpop.f32.mrf.mxu0
    %v496 = vadd.f32 0.0, %v495
    %497 = vdwg.mxu0
    %498 = vmatpush.msra.mxu0 0.0
    %499 = vmatpush.msra.mxu0 0.0
    %500 = vmatpush.msra.mxu0 0.0
    %501 = vmatpush.msra.mxu0 0.0
    %502 = vmatpush.msra.mxu0 0.0
    %503 = vmatpush.msra.mxu0 0.0
    %504 = vmatpush.msra.mxu0 0.0
    %505 = vmatpush.msra.mxu0 0.0
    %506 = vmatpush.msra.mxu0 0.0
    %507 = vmatpush.msra.mxu0 0.0
    %508 = vmatpush.msra.mxu0 0.0
    %509 = vmatpush.msra.mxu0 0.0
    %510 = vmatpush.msra.mxu0 0.0
    %511 = vmatpush.msra.mxu0 0.0
    %512 = vmatpush.msra.mxu0 %v433
    %513 = vmatpush.msra.mxu0 %v429
    %514 = vmatmul.f32.gmra.mxu0 %v436
    %v515 = vpop.f32.mrf.mxu0
    %v516 = vadd.f32 0.0, %v515
    %517 = vdwg.mxu0
    %v518 = vmax.f32 %v456, %v496
    %v519 = vmax.f32 %v476, %v516
    %v520 = vld [vmem:[#allocation7] sm:$0x3]
    %v522 = vperm.slane %v520, 0
    %v523 = vperm.slane %v520, 1
    %v526 = vadd.f32 %v518, %v522
    %v527 = vadd.f32 %v519, %v523
    %v528 = vmax.f32 %v526, 0.0
    %v529 = vmax.f32 %v527, 0.0
    %v530 = vld [vmem:[#allocation8] sm:$0xff]
    %v531 = vld [vmem:[#allocation8 + $0x8] sm:$0xff]
    %v532 = vld [vmem:[#allocation8 + $0x10] sm:$0xff]
    %v533 = vld [vmem:[#allocation8 + $0x18] sm:$0xff]
    %v534 = vld [vmem:[#allocation8 + $0x20] sm:$0xff]
    %v535 = vld [vmem:[#allocation8 + $0x28] sm:$0xff]
    %v536 = vld [vmem:[#allocation8 + $0x30] sm:$0xff]
    %v537 = vld [vmem:[#allocation8 + $0x38] sm:$0xff]
    %v538 = vld [vmem:[#allocation8 + $0x40] sm:$0xff]
    %v539 = vld [vmem:[#allocation8 + $0x48] sm:$0xff]
    %v540 = vld [vmem:[#allocation8 + $0x50] sm:$0xff]
    %v541 = vld [vmem:[#allocation8 + $0x58] sm:$0xff]
    %v542 = vld [vmem:[#allocation8 + $0x60] sm:$0xff]
    %v543 = vld [vmem:[#allocation8 + $0x68] sm:$0xff]
    %v544 = vld [vmem:[#allocation8 + $0x70] sm:$0xff]
    %v545 = vld [vmem:[#allocation8 + $0x78] sm:$0xff]
    %v546 = vld [vmem:[#allocation8 + $0x80] sm:$0xff]
    %v547 = vld [vmem:[#allocation8 + $0x88] sm:$0xff]
    %v548 = vld [vmem:[#allocation8 + $0x90] sm:$0xff]
    %v549 = vld [vmem:[#allocation8 + $0x98] sm:$0xff]
    %v550 = vld [vmem:[#allocation8 + $0xa0] sm:$0xff]
    %v551 = vld [vmem:[#allocation8 + $0xa8] sm:$0xff]
    %v552 = vld [vmem:[#allocation8 + $0xb0] sm:$0xff]
    %v553 = vld [vmem:[#allocation8 + $0xb8] sm:$0xff]
    %v554 = vld [vmem:[#allocation8 + $0xc0] sm:$0xff]
    %v555 = vld [vmem:[#allocation8 + $0xc8] sm:$0xff]
    %v556 = vld [vmem:[#allocation8 + $0xd0] sm:$0xff]
    %v557 = vld [vmem:[#allocation8 + $0xd8] sm:$0xff]
    %v558 = vld [vmem:[#allocation8 + $0xe0] sm:$0xff]
    %v559 = vld [vmem:[#allocation8 + $0xe8] sm:$0xff]
    %v560 = vld [vmem:[#allocation8 + $0xf0] sm:$0xff]
    %v561 = vld [vmem:[#allocation8 + $0xf8] sm:$0xff]
    %v562 = vld [vmem:[#allocation8 + $0x100] sm:$0xff]
    %v563 = vld [vmem:[#allocation8 + $0x108] sm:$0xff]
    %v564 = vld [vmem:[#allocation8 + $0x110] sm:$0xff]
    %v565 = vld [vmem:[#allocation8 + $0x118] sm:$0xff]
    %v566 = vld [vmem:[#allocation8 + $0x120] sm:$0xff]
    %v567 = vld [vmem:[#allocation8 + $0x128] sm:$0xff]
    %v568 = vld [vmem:[#allocation8 + $0x130] sm:$0xff]
    %v569 = vld [vmem:[#allocation8 + $0x138] sm:$0xff]
    %v570 = vld [vmem:[#allocation8 + $0x140] sm:$0xff]
    %v571 = vld [vmem:[#allocation8 + $0x148] sm:$0xff]
    %v572 = vld [vmem:[#allocation8 + $0x150] sm:$0xff]
    %v573 = vld [vmem:[#allocation8 + $0x158] sm:$0xff]
    %v574 = vld [vmem:[#allocation8 + $0x160] sm:$0xff]
    %v575 = vld [vmem:[#allocation8 + $0x168] sm:$0xff]
    %v576 = vld [vmem:[#allocation8 + $0x170] sm:$0xff]
    %v577 = vld [vmem:[#allocation8 + $0x178] sm:$0xff]
    %v578 = vld [vmem:[#allocation8 + $0x180] sm:$0xff]
    %v579 = vld [vmem:[#allocation8 + $0x188] sm:$0xff]
    %v580 = vld [vmem:[#allocation8 + $0x190] sm:$0xff]
    %v581 = vld [vmem:[#allocation8 + $0x198] sm:$0xff]
    %v582 = vld [vmem:[#allocation8 + $0x1a0] sm:$0xff]
    %v583 = vld [vmem:[#allocation8 + $0x1a8] sm:$0xff]
    %v584 = vld [vmem:[#allocation8 + $0x1b0] sm:$0xff]
    %v585 = vld [vmem:[#allocation8 + $0x1b8] sm:$0xff]
    %v586 = vld [vmem:[#allocation8 + $0x1c0] sm:$0xff]
    %v587 = vld [vmem:[#allocation8 + $0x1c8] sm:$0xff]
    %v588 = vld [vmem:[#allocation8 + $0x1d0] sm:$0xff]
    %v589 = vld [vmem:[#allocation8 + $0x1d8] sm:$0xff]
    %v590 = vld [vmem:[#allocation8 + $0x1e0] sm:$0xff]
    %v591 = vld [vmem:[#allocation8 + $0x1e8] sm:$0xff]
    %v592 = vld [vmem:[#allocation8 + $0x1f0] sm:$0xff]
    %v593 = vld [vmem:[#allocation8 + $0x1f8] sm:$0xff]
    %v594 = vld [vmem:[#allocation8 + $0x200] sm:$0xff]
    %v595 = vld [vmem:[#allocation8 + $0x208] sm:$0xff]
    %v596 = vld [vmem:[#allocation8 + $0x210] sm:$0xff]
    %v597 = vld [vmem:[#allocation8 + $0x218] sm:$0xff]
    %v598 = vld [vmem:[#allocation8 + $0x220] sm:$0xff]
    %v599 = vld [vmem:[#allocation8 + $0x228] sm:$0xff]
    %v600 = vld [vmem:[#allocation8 + $0x230] sm:$0xff]
    %v601 = vld [vmem:[#allocation8 + $0x238] sm:$0xff]
    %v602 = vld [vmem:[#allocation8 + $0x240] sm:$0xff]
    %v603 = vld [vmem:[#allocation8 + $0x248] sm:$0xff]
    %v604 = vld [vmem:[#allocation8 + $0x250] sm:$0xff]
    %v605 = vld [vmem:[#allocation8 + $0x258] sm:$0xff]
    %v606 = vld [vmem:[#allocation8 + $0x260] sm:$0xff]
    %v607 = vld [vmem:[#allocation8 + $0x268] sm:$0xff]
    %v608 = vld [vmem:[#allocation8 + $0x270] sm:$0xff]
    %v609 = vld [vmem:[#allocation8 + $0x278] sm:$0xff]
    %v610 = vld [vmem:[#allocation8 + $0x280] sm:$0xff]
    %v611 = vld [vmem:[#allocation8 + $0x288] sm:$0xff]
    %v612 = vld [vmem:[#allocation8 + $0x290] sm:$0xff]
    %v613 = vld [vmem:[#allocation8 + $0x298] sm:$0xff]
    %v614 = vld [vmem:[#allocation8 + $0x2a0] sm:$0xff]
    %v615 = vld [vmem:[#allocation8 + $0x2a8] sm:$0xff]
    %v616 = vld [vmem:[#allocation8 + $0x2b0] sm:$0xff]
    %v617 = vld [vmem:[#allocation8 + $0x2b8] sm:$0xff]
    %v618 = vld [vmem:[#allocation8 + $0x2c0] sm:$0xff]
    %v619 = vld [vmem:[#allocation8 + $0x2c8] sm:$0xff]
    %v620 = vld [vmem:[#allocation8 + $0x2d0] sm:$0xff]
    %v621 = vld [vmem:[#allocation8 + $0x2d8] sm:$0xff]
    %v622 = vld [vmem:[#allocation8 + $0x2e0] sm:$0xff]
    %v623 = vld [vmem:[#allocation8 + $0x2e8] sm:$0xff]
    %v624 = vld [vmem:[#allocation8 + $0x2f0] sm:$0xff]
    %v625 = vld [vmem:[#allocation8 + $0x2f8] sm:$0xff]
    %v626 = vld [vmem:[#allocation8 + $0x300] sm:$0xff]
    %v627 = vld [vmem:[#allocation8 + $0x308] sm:$0xff]
    %v628 = vld [vmem:[#allocation8 + $0x310] sm:$0xff]
    %v629 = vld [vmem:[#allocation8 + $0x318] sm:$0xff]
    %v630 = vld [vmem:[#allocation8 + $0x320] sm:$0xff]
    %v631 = vld [vmem:[#allocation8 + $0x328] sm:$0xff]
    %v632 = vld [vmem:[#allocation8 + $0x330] sm:$0xff]
    %v633 = vld [vmem:[#allocation8 + $0x338] sm:$0xff]
    %v634 = vld [vmem:[#allocation8 + $0x340] sm:$0xff]
    %v635 = vld [vmem:[#allocation8 + $0x348] sm:$0xff]
    %v636 = vld [vmem:[#allocation8 + $0x350] sm:$0xff]
    %v637 = vld [vmem:[#allocation8 + $0x358] sm:$0xff]
    %v638 = vld [vmem:[#allocation8 + $0x360] sm:$0xff]
    %v639 = vld [vmem:[#allocation8 + $0x368] sm:$0xff]
    %v640 = vld [vmem:[#allocation8 + $0x370] sm:$0xff]
    %v641 = vld [vmem:[#allocation8 + $0x378] sm:$0xff]
    %v642 = vld [vmem:[#allocation8 + $0x380] sm:$0xff]
    %v643 = vld [vmem:[#allocation8 + $0x388] sm:$0xff]
    %v644 = vld [vmem:[#allocation8 + $0x390] sm:$0xff]
    %v645 = vld [vmem:[#allocation8 + $0x398] sm:$0xff]
    %v646 = vld [vmem:[#allocation8 + $0x3a0] sm:$0xff]
    %v647 = vld [vmem:[#allocation8 + $0x3a8] sm:$0xff]
    %v648 = vld [vmem:[#allocation8 + $0x3b0] sm:$0xff]
    %v649 = vld [vmem:[#allocation8 + $0x3b8] sm:$0xff]
    %v650 = vld [vmem:[#allocation8 + $0x3c0] sm:$0xff]
    %v651 = vld [vmem:[#allocation8 + $0x3c8] sm:$0xff]
    %v652 = vld [vmem:[#allocation8 + $0x3d0] sm:$0xff]
    %v653 = vld [vmem:[#allocation8 + $0x3d8] sm:$0xff]
    %v654 = vld [vmem:[#allocation8 + $0x3e0] sm:$0xff]
    %v655 = vld [vmem:[#allocation8 + $0x3e8] sm:$0xff]
    %v656 = vld [vmem:[#allocation8 + $0x3f0] sm:$0xff]
    %v657 = vld [vmem:[#allocation8 + $0x3f8] sm:$0xff]
    %658 = vmatpush.msra.mxu0 %v590
    %659 = vmatpush.msra.mxu0 %v586
    %660 = vmatpush.msra.mxu0 %v582
    %661 = vmatpush.msra.mxu0 %v578
    %662 = vmatpush.msra.mxu0 %v574
    %663 = vmatpush.msra.mxu0 %v570
    %664 = vmatpush.msra.mxu0 %v566
    %665 = vmatpush.msra.mxu0 %v562
    %666 = vmatpush.msra.mxu0 %v558
    %667 = vmatpush.msra.mxu0 %v554
    %668 = vmatpush.msra.mxu0 %v550
    %669 = vmatpush.msra.mxu0 %v546
    %670 = vmatpush.msra.mxu0 %v542
    %671 = vmatpush.msra.mxu0 %v538
    %672 = vmatpush.msra.mxu0 %v534
    %673 = vmatpush.msra.mxu0 %v530
    %674 = vmatmul.f32.gmra.mxu0 %v528
    %v675 = vpop.f32.mrf.mxu0
    %v676 = vadd.f32 0.0, %v675
    %677 = vdwg.mxu0
    %678 = vmatpush.msra.mxu0 %v654
    %679 = vmatpush.msra.mxu0 %v650
    %680 = vmatpush.msra.mxu0 %v646
    %681 = vmatpush.msra.mxu0 %v642
    %682 = vmatpush.msra.mxu0 %v638
    %683 = vmatpush.msra.mxu0 %v634
    %684 = vmatpush.msra.mxu0 %v630
    %685 = vmatpush.msra.mxu0 %v626
    %686 = vmatpush.msra.mxu0 %v622
    %687 = vmatpush.msra.mxu0 %v618
    %688 = vmatpush.msra.mxu0 %v614
    %689 = vmatpush.msra.mxu0 %v610
    %690 = vmatpush.msra.mxu0 %v606
    %691 = vmatpush.msra.mxu0 %v602
    %692 = vmatpush.msra.mxu0 %v598
    %693 = vmatpush.msra.mxu0 %v594
    %694 = vmatmul.f32.gmra.mxu0 %v529
    %v695 = vpop.f32.mrf.mxu0
    %v696 = vadd.f32 %v676, %v695
    %697 = vdwg.mxu0
    %698 = vmatpush.msra.mxu0 %v591
    %699 = vmatpush.msra.mxu0 %v587
    %700 = vmatpush.msra.mxu0 %v583
    %701 = vmatpush.msra.mxu0 %v579
    %702 = vmatpush.msra.mxu0 %v575
    %703 = vmatpush.msra.mxu0 %v571
    %704 = vmatpush.msra.mxu0 %v567
    %705 = vmatpush.msra.mxu0 %v563
    %706 = vmatpush.msra.mxu0 %v559
    %707 = vmatpush.msra.mxu0 %v555
    %708 = vmatpush.msra.mxu0 %v551
    %709 = vmatpush.msra.mxu0 %v547
    %710 = vmatpush.msra.mxu0 %v543
    %711 = vmatpush.msra.mxu0 %v539
    %712 = vmatpush.msra.mxu0 %v535
    %713 = vmatpush.msra.mxu0 %v531
    %714 = vmatmul.f32.gmra.mxu0 %v528
    %v715 = vpop.f32.mrf.mxu0
    %v716 = vadd.f32 0.0, %v715
    %717 = vdwg.mxu0
    %718 = vmatpush.msra.mxu0 %v655
    %719 = vmatpush.msra.mxu0 %v651
    %720 = vmatpush.msra.mxu0 %v647
    %721 = vmatpush.msra.mxu0 %v643
    %722 = vmatpush.msra.mxu0 %v639
    %723 = vmatpush.msra.mxu0 %v635
    %724 = vmatpush.msra.mxu0 %v631
    %725 = vmatpush.msra.mxu0 %v627
    %726 = vmatpush.msra.mxu0 %v623
    %727 = vmatpush.msra.mxu0 %v619
    %728 = vmatpush.msra.mxu0 %v615
    %729 = vmatpush.msra.mxu0 %v611
    %730 = vmatpush.msra.mxu0 %v607
    %731 = vmatpush.msra.mxu0 %v603
    %732 = vmatpush.msra.mxu0 %v599
    %733 = vmatpush.msra.mxu0 %v595
    %734 = vmatmul.f32.gmra.mxu0 %v529
    %v735 = vpop.f32.mrf.mxu0
    %v736 = vadd.f32 %v716, %v735
    %737 = vdwg.mxu0
    %738 = vmatpush.msra.mxu0 %v592
    %739 = vmatpush.msra.mxu0 %v588
    %740 = vmatpush.msra.mxu0 %v584
    %741 = vmatpush.msra.mxu0 %v580
    %742 = vmatpush.msra.mxu0 %v576
    %743 = vmatpush.msra.mxu0 %v572
    %744 = vmatpush.msra.mxu0 %v568
    %745 = vmatpush.msra.mxu0 %v564
    %746 = vmatpush.msra.mxu0 %v560
    %747 = vmatpush.msra.mxu0 %v556
    %748 = vmatpush.msra.mxu0 %v552
    %749 = vmatpush.msra.mxu0 %v548
    %750 = vmatpush.msra.mxu0 %v544
    %751 = vmatpush.msra.mxu0 %v540
    %752 = vmatpush.msra.mxu0 %v536
    %753 = vmatpush.msra.mxu0 %v532
    %754 = vmatmul.f32.gmra.mxu0 %v528
    %v755 = vpop.f32.mrf.mxu0
    %v756 = vadd.f32 0.0, %v755
    %757 = vdwg.mxu0
    %758 = vmatpush.msra.mxu0 %v656
    %759 = vmatpush.msra.mxu0 %v652
    %760 = vmatpush.msra.mxu0 %v648
    %761 = vmatpush.msra.mxu0 %v644
    %762 = vmatpush.msra.mxu0 %v640
    %763 = vmatpush.msra.mxu0 %v636
    %764 = vmatpush.msra.mxu0 %v632
    %765 = vmatpush.msra.mxu0 %v628
    %766 = vmatpush.msra.mxu0 %v624
    %767 = vmatpush.msra.mxu0 %v620
    %768 = vmatpush.msra.mxu0 %v616
    %769 = vmatpush.msra.mxu0 %v612
    %770 = vmatpush.msra.mxu0 %v608
    %771 = vmatpush.msra.mxu0 %v604
    %772 = vmatpush.msra.mxu0 %v600
    %773 = vmatpush.msra.mxu0 %v596
    %774 = vmatmul.f32.gmra.mxu0 %v529
    %v775 = vpop.f32.mrf.mxu0
    %v776 = vadd.f32 %v756, %v775
    %777 = vdwg.mxu0
    %778 = vmatpush.msra.mxu0 %v593
    %779 = vmatpush.msra.mxu0 %v589
    %780 = vmatpush.msra.mxu0 %v585
    %781 = vmatpush.msra.mxu0 %v581
    %782 = vmatpush.msra.mxu0 %v577
    %783 = vmatpush.msra.mxu0 %v573
    %784 = vmatpush.msra.mxu0 %v569
    %785 = vmatpush.msra.mxu0 %v565
    %786 = vmatpush.msra.mxu0 %v561
    %787 = vmatpush.msra.mxu0 %v557
    %788 = vmatpush.msra.mxu0 %v553
    %789 = vmatpush.msra.mxu0 %v549
    %790 = vmatpush.msra.mxu0 %v545
    %791 = vmatpush.msra.mxu0 %v541
    %792 = vmatpush.msra.mxu0 %v537
    %793 = vmatpush.msra.mxu0 %v533
    %794 = vmatmul.f32.gmra.mxu0 %v528
    %v795 = vpop.f32.mrf.mxu0
    %v796 = vadd.f32 0.0, %v795
    %797 = vdwg.mxu0
    %798 = vmatpush.msra.mxu0 %v657
    %799 = vmatpush.msra.mxu0 %v653
    %800 = vmatpush.msra.mxu0 %v649
    %801 = vmatpush.msra.mxu0 %v645
    %802 = vmatpush.msra.mxu0 %v641
    %803 = vmatpush.msra.mxu0 %v637
    %804 = vmatpush.msra.mxu0 %v633
    %805 = vmatpush.msra.mxu0 %v629
    %806 = vmatpush.msra.mxu0 %v625
    %807 = vmatpush.msra.mxu0 %v621
    %808 = vmatpush.msra.mxu0 %v617
    %809 = vmatpush.msra.mxu0 %v613
    %810 = vmatpush.msra.mxu0 %v609
    %811 = vmatpush.msra.mxu0 %v605
    %812 = vmatpush.msra.mxu0 %v601
    %813 = vmatpush.msra.mxu0 %v597
    %814 = vmatmul.f32.gmra.mxu0 %v529
    %v815 = vpop.f32.mrf.mxu0
    %v816 = vadd.f32 %v796, %v815
    %817 = vdwg.mxu0
    %v818 = vmax.f32 %v696, %v776
    %v819 = vmax.f32 %v736, %v816
    %v820 = vld [vmem:[#allocation10] sm:$0x3]
    %v822 = vperm.slane %v820, 0
    %v823 = vperm.slane %v820, 1
    %v826 = vadd.f32 %v818, %v822
    %v827 = vadd.f32 %v819, %v823
    %v828 = vmax.f32 %v826, 0.0
    %v829 = vmax.f32 %v827, 0.0
    %v831 = vrot.slane %v828, 6
    %832 = vrot.lane.b32.xlu0 %v831, 64
    %v833 = vpop.permute.xlu0 %832
    %v836 = vrot.slane %v829, 4
    %v838 = vrot.slane %v829, 2
    %839 = vrot.lane.b32.xlu0 %v838, 64
    %v840 = vpop.permute.xlu0 %839
    %vm842 = vcmask 1041408
    %v843 = vsel %vm842, %v828, %v833
    %vm844 = vcmask 1043456
    %v845 = vsel %vm844, %v843, %v836
    %vm846 = vcmask 1045504
    %v847 = vsel %vm846, %v845, %v840
    %v848 = vpack.c.bf16 %v847, %v847
    %v849 = vld [vmem:[#allocation11] sm:$0xf]
    %v850 = vld [vmem:[#allocation11 + $0x4] sm:$0xf]
    %v851 = vld [vmem:[#allocation11 + $0x8] sm:$0xf]
    %v852 = vld [vmem:[#allocation11 + $0xc] sm:$0xf]
    %v853 = vld [vmem:[#allocation11 + $0x10] sm:$0xf]
    %v854 = vld [vmem:[#allocation11 + $0x14] sm:$0xf]
    %v855 = vld [vmem:[#allocation11 + $0x18] sm:$0xf]
    %v856 = vld [vmem:[#allocation11 + $0x1c] sm:$0xf]
    %v857 = vld [vmem:[#allocation13] sm:$0xff]
    %v866 = vunpack.c.l.b16 %v849
    %v867 = vunpack.c.l.b16 %v850
    %v868 = vunpack.c.l.b16 %v851
    %v869 = vunpack.c.l.b16 %v852
    %v870 = vunpack.c.l.b16 %v853
    %v871 = vunpack.c.l.b16 %v854
    %v872 = vunpack.c.l.b16 %v855
    %v873 = vunpack.c.l.b16 %v856
    %v874 = vpack.c.b16 %v867, %v866
    %v875 = vpack.c.b16 %v869, %v868
    %v876 = vpack.c.b16 %v871, %v870
    %v877 = vpack.c.b16 %v873, %v872
    %vm882 = vcmask 523264
    %v884 = vsel %vm882, %v848, 0
    %886 = vmatpush.bf16.msra.mxu0 0
    %887 = vmatpush.bf16.msra.mxu0 0
    %888 = vmatpush.bf16.msra.mxu0 0
    %889 = vmatpush.bf16.msra.mxu0 0
    %890 = vmatpush.bf16.msra.mxu0 %v877
    %891 = vmatpush.bf16.msra.mxu0 %v876
    %892 = vmatpush.bf16.msra.mxu0 %v875
    %893 = vmatpush.bf16.msra.mxu0 %v874
    %894 = vmatmul.bf16.gmra.mxu0 %v884
    %v895 = vpop.f32.mrf.mxu0
    %v896 = vadd.f32 %v857, %v895
    %v897 = vpop.f32.mrf.mxu0
    %898 = vdwg.mxu0
    %v899 = vld [vmem:[#allocation14] sm:$0xff]
    %v900 = vld [vmem:[#allocation14 + $0x8] sm:$0xff]
    %v901 = vld [vmem:[#allocation14 + $0x10] sm:$0xff]
    %v902 = vld [vmem:[#allocation14 + $0x18] sm:$0xff]
    %v903 = vld [vmem:[#allocation14 + $0x20] sm:$0xff]
    %v904 = vld [vmem:[#allocation14 + $0x28] sm:$0xff]
    %v905 = vld [vmem:[#allocation14 + $0x30] sm:$0xff]
    %v906 = vld [vmem:[#allocation14 + $0x38] sm:$0xff]
    %v907 = vpack.c.bf16 %v896, %v896
    %v908 = vld [vmem:[#allocation17] sm:$0xff]
    %v909 = vld [vmem:[#allocation17 + $0x8] sm:$0xf]
    %v910 = vld [vmem:[#allocation17 + $0xc] sm:$0xff]
    %v911 = vld [vmem:[#allocation17 + $0x14] sm:$0xf]
    %v912 = vld [vmem:[#allocation17 + $0x18] sm:$0xff]
    %v913 = vld [vmem:[#allocation17 + $0x20] sm:$0xf]
    %v914 = vld [vmem:[#allocation17 + $0x24] sm:$0xff]
    %v915 = vld [vmem:[#allocation17 + $0x2c] sm:$0xf]
    %v916 = vld [vmem:[#allocation17 + $0x30] sm:$0xff]
    %v917 = vld [vmem:[#allocation17 + $0x38] sm:$0xf]
    %v918 = vld [vmem:[#allocation17 + $0x3c] sm:$0xff]
    %v919 = vld [vmem:[#allocation17 + $0x44] sm:$0xf]
    %v920 = vld [vmem:[#allocation17 + $0x48] sm:$0xff]
    %v921 = vld [vmem:[#allocation17 + $0x50] sm:$0xf]
    %v922 = vld [vmem:[#allocation17 + $0x54] sm:$0xff]
    %v923 = vld [vmem:[#allocation17 + $0x5c] sm:$0xf]
    %v924 = vld [vmem:[#allocation17 + $0x60] sm:$0xff]
    %v925 = vld [vmem:[#allocation17 + $0x68] sm:$0xf]
    %v926 = vld [vmem:[#allocation17 + $0x6c] sm:$0xff]
    %v927 = vld [vmem:[#allocation17 + $0x74] sm:$0xf]
    %v928 = vld [vmem:[#allocation17 + $0x78] sm:$0xff]
    %v929 = vld [vmem:[#allocation17 + $0x80] sm:$0xf]
    %v930 = vld [vmem:[#allocation17 + $0x84] sm:$0xff]
    %v931 = vld [vmem:[#allocation17 + $0x8c] sm:$0xf]
    %v932 = vld [vmem:[#allocation17 + $0x90] sm:$0xff]
    %v933 = vld [vmem:[#allocation17 + $0x98] sm:$0xf]
    %v934 = vld [vmem:[#allocation17 + $0x9c] sm:$0xff]
    %v935 = vld [vmem:[#allocation17 + $0xa4] sm:$0xf]
    %v936 = vld [vmem:[#allocation17 + $0xa8] sm:$0xff]
    %v937 = vld [vmem:[#allocation17 + $0xb0] sm:$0xf]
    %v938 = vld [vmem:[#allocation17 + $0xb4] sm:$0xff]
    %v939 = vld [vmem:[#allocation17 + $0xbc] sm:$0xf]
    %v940 = vld [vmem:[#allocation19] sm:$0x7]
    %v942 = vperm.slane %v940, 0
    %v943 = vperm.slane %v940, 1
    %v944 = vperm.slane %v940, 2
    %v980 = vunpack.c.l.b16 %v908
    %v981 = vunpack.c.h.b16 %v908
    %v982 = vunpack.c.l.b16 %v909
    %v983 = vunpack.c.l.b16 %v910
    %v984 = vunpack.c.h.b16 %v910
    %v985 = vunpack.c.l.b16 %v911
    %v986 = vunpack.c.l.b16 %v912
    %v987 = vunpack.c.h.b16 %v912
    %v988 = vunpack.c.l.b16 %v913
    %v989 = vunpack.c.l.b16 %v914
    %v990 = vunpack.c.h.b16 %v914
    %v991 = vunpack.c.l.b16 %v915
    %v992 = vunpack.c.l.b16 %v916
    %v993 = vunpack.c.h.b16 %v916
    %v994 = vunpack.c.l.b16 %v917
    %v995 = vunpack.c.l.b16 %v918
    %v996 = vunpack.c.h.b16 %v918
    %v997 = vunpack.c.l.b16 %v919
    %v998 = vunpack.c.l.b16 %v920
    %v999 = vunpack.c.h.b16 %v920
    %v1000 = vunpack.c.l.b16 %v921
    %v1001 = vunpack.c.l.b16 %v922
    %v1002 = vunpack.c.h.b16 %v922
    %v1003 = vunpack.c.l.b16 %v923
    %v1004 = vunpack.c.l.b16 %v924
    %v1005 = vunpack.c.h.b16 %v924
    %v1006 = vunpack.c.l.b16 %v925
    %v1007 = vunpack.c.l.b16 %v926
    %v1008 = vunpack.c.h.b16 %v926
    %v1009 = vunpack.c.l.b16 %v927
    %v1010 = vunpack.c.l.b16 %v928
    %v1011 = vunpack.c.h.b16 %v928
    %v1012 = vunpack.c.l.b16 %v929
    %v1013 = vunpack.c.l.b16 %v930
    %v1014 = vunpack.c.h.b16 %v930
    %v1015 = vunpack.c.l.b16 %v931
    %v1016 = vunpack.c.l.b16 %v932
    %v1017 = vunpack.c.h.b16 %v932
    %v1018 = vunpack.c.l.b16 %v933
    %v1019 = vunpack.c.l.b16 %v934
    %v1020 = vunpack.c.h.b16 %v934
    %v1021 = vunpack.c.l.b16 %v935
    %v1022 = vunpack.c.l.b16 %v936
    %v1023 = vunpack.c.h.b16 %v936
    %v1024 = vunpack.c.l.b16 %v937
    %v1025 = vunpack.c.l.b16 %v938
    %v1026 = vunpack.c.h.b16 %v938
    %v1027 = vunpack.c.l.b16 %v939
    %v1028 = vpack.c.b16 %v983, %v980
    %v1029 = vpack.c.b16 %v984, %v981
    %v1030 = vpack.c.b16 %v985, %v982
    %v1031 = vpack.c.b16 %v989, %v986
    %v1032 = vpack.c.b16 %v990, %v987
    %v1033 = vpack.c.b16 %v991, %v988
    %v1034 = vpack.c.b16 %v995, %v992
    %v1035 = vpack.c.b16 %v996, %v993
    %v1036 = vpack.c.b16 %v997, %v994
    %v1037 = vpack.c.b16 %v1001, %v998
    %v1038 = vpack.c.b16 %v1002, %v999
    %v1039 = vpack.c.b16 %v1003, %v1000
    %v1040 = vpack.c.b16 %v1007, %v1004
    %v1041 = vpack.c.b16 %v1008, %v1005
    %v1042 = vpack.c.b16 %v1009, %v1006
    %v1043 = vpack.c.b16 %v1013, %v1010
    %v1044 = vpack.c.b16 %v1014, %v1011
    %v1045 = vpack.c.b16 %v1015, %v1012
    %v1046 = vpack.c.b16 %v1019, %v1016
    %v1047 = vpack.c.b16 %v1020, %v1017
    %v1048 = vpack.c.b16 %v1021, %v1018
    %v1049 = vpack.c.b16 %v1025, %v1022
    %v1050 = vpack.c.b16 %v1026, %v1023
    %v1051 = vpack.c.b16 %v1027, %v1024
    %1076 = vmatpush.bf16.msra.mxu0 %v1049
    %1077 = vmatpush.bf16.msra.mxu0 %v1046
    %1078 = vmatpush.bf16.msra.mxu0 %v1043
    %1079 = vmatpush.bf16.msra.mxu0 %v1040
    %1080 = vmatpush.bf16.msra.mxu0 %v1037
    %1081 = vmatpush.bf16.msra.mxu0 %v1034
    %1082 = vmatpush.bf16.msra.mxu0 %v1031
    %1083 = vmatpush.bf16.msra.mxu0 %v1028
    %1084 = vmatmul.bf16.gmra.mxu0 %v907
    %v1085 = vpop.f32.mrf.mxu0
    %v1086 = vadd.f32 %v942, %v1085
    %v1087 = vpop.f32.mrf.mxu0
    %1088 = vdwg.mxu0
    %1089 = vmatpush.bf16.msra.mxu0 %v1050
    %1090 = vmatpush.bf16.msra.mxu0 %v1047
    %1091 = vmatpush.bf16.msra.mxu0 %v1044
    %1092 = vmatpush.bf16.msra.mxu0 %v1041
    %1093 = vmatpush.bf16.msra.mxu0 %v1038
    %1094 = vmatpush.bf16.msra.mxu0 %v1035
    %1095 = vmatpush.bf16.msra.mxu0 %v1032
    %1096 = vmatpush.bf16.msra.mxu0 %v1029
    %1097 = vmatmul.bf16.gmra.mxu0 %v907
    %v1098 = vpop.f32.mrf.mxu0
    %v1099 = vadd.f32 %v943, %v1098
    %v1100 = vpop.f32.mrf.mxu0
    %1101 = vdwg.mxu0
    %1102 = vmatpush.bf16.msra.mxu0 %v1051
    %1103 = vmatpush.bf16.msra.mxu0 %v1048
    %1104 = vmatpush.bf16.msra.mxu0 %v1045
    %1105 = vmatpush.bf16.msra.mxu0 %v1042
    %1106 = vmatpush.bf16.msra.mxu0 %v1039
    %1107 = vmatpush.bf16.msra.mxu0 %v1036
    %1108 = vmatpush.bf16.msra.mxu0 %v1033
    %1109 = vmatpush.bf16.msra.mxu0 %v1030
    %1110 = vmatmul.bf16.gmra.mxu0 %v907
    %v1111 = vpop.f32.mrf.mxu0
    %v1112 = vadd.f32 %v944, %v1111
    %v1113 = vpop.f32.mrf.mxu0
    %1114 = vdwg.mxu0
    %1116 = vrot.lane.b32.xlu0 %v1086, 112
    %v1117 = vpop.permute.xlu0 %1116
    %1118 = vrot.lane.b32.xlu0 %v1086, 96
    %v1119 = vpop.permute.xlu0 %1118
    %1120 = vrot.lane.b32.xlu0 %v1086, 80
    %v1121 = vpop.permute.xlu0 %1120
    %1122 = vrot.lane.b32.xlu0 %v1086, 64
    %v1123 = vpop.permute.xlu0 %1122
    %1124 = vrot.lane.b32.xlu0 %v1086, 48
    %v1125 = vpop.permute.xlu0 %1124
    %1126 = vrot.lane.b32.xlu0 %v1086, 32
    %v1127 = vpop.permute.xlu0 %1126
    %1128 = vrot.lane.b32.xlu0 %v1086, 16
    %v1129 = vpop.permute.xlu0 %1128
    %1131 = vrot.lane.b32.xlu0 %v1099, 112
    %v1132 = vpop.permute.xlu0 %1131
    %1133 = vrot.lane.b32.xlu0 %v1099, 96
    %v1134 = vpop.permute.xlu0 %1133
    %1135 = vrot.lane.b32.xlu0 %v1099, 80
    %v1136 = vpop.permute.xlu0 %1135
    %1137 = vrot.lane.b32.xlu0 %v1099, 64
    %v1138 = vpop.permute.xlu0 %1137
    %1139 = vrot.lane.b32.xlu0 %v1099, 48
    %v1140 = vpop.permute.xlu0 %1139
    %1141 = vrot.lane.b32.xlu0 %v1099, 32
    %v1142 = vpop.permute.xlu0 %1141
    %1143 = vrot.lane.b32.xlu0 %v1099, 16
    %v1144 = vpop.permute.xlu0 %1143
    %1146 = vrot.lane.b32.xlu0 %v1112, 112
    %v1147 = vpop.permute.xlu0 %1146
    %1149 = vrot.lane.b32.xlu0 %v1112, 96
    %v1150 = vpop.permute.xlu0 %1149
    %1152 = vrot.lane.b32.xlu0 %v1112, 80
    %v1153 = vpop.permute.xlu0 %1152
    %1155 = vrot.lane.b32.xlu0 %v1112, 64
    %v1156 = vpop.permute.xlu0 %1155
    %1158 = vrot.lane.b32.xlu0 %v1112, 48
    %v1159 = vpop.permute.xlu0 %1158
    %1161 = vrot.lane.b32.xlu0 %v1112, 32
    %v1162 = vpop.permute.xlu0 %1161
    %1164 = vrot.lane.b32.xlu0 %v1112, 16
    %v1165 = vpop.permute.xlu0 %1164
    %v1167 = vsel %vm434, %v1086, 0
    %v1169 = vsel %vm434, %v1117, 0
    %v1171 = vsel %vm434, %v1119, 0
    %v1173 = vsel %vm434, %v1121, 0
    %v1175 = vsel %vm434, %v1123, 0
    %v1177 = vsel %vm434, %v1125, 0
    %v1179 = vsel %vm434, %v1127, 0
    %v1181 = vsel %vm434, %v1129, 0
    %v1183 = vsel %vm434, %v1099, 0
    %v1185 = vsel %vm434, %v1132, 0
    %v1187 = vsel %vm434, %v1134, 0
    %v1189 = vsel %vm434, %v1136, 0
    %v1191 = vsel %vm434, %v1138, 0
    %v1193 = vsel %vm434, %v1140, 0
    %v1195 = vsel %vm434, %v1142, 0
    %v1197 = vsel %vm434, %v1144, 0
    %1199 = vmatpush.xpose.msra.mxu0 0.0
    %1200 = vmatpush.xpose.msra.mxu0 0.0
    %1201 = vmatpush.xpose.msra.mxu0 0.0
    %1202 = vmatpush.xpose.msra.mxu0 0.0
    %1203 = vmatpush.xpose.msra.mxu0 0.0
    %1204 = vmatpush.xpose.msra.mxu0 0.0
    %1205 = vmatpush.xpose.msra.mxu0 0.0
    %1206 = vmatpush.xpose.msra.mxu0 0.0
    %1207 = vmatpush.xpose.msra.mxu0 %v1197
    %1208 = vmatpush.xpose.msra.mxu0 %v1195
    %1209 = vmatpush.xpose.msra.mxu0 %v1193
    %1210 = vmatpush.xpose.msra.mxu0 %v1191
    %1211 = vmatpush.xpose.msra.mxu0 %v1189
    %1212 = vmatpush.xpose.msra.mxu0 %v1187
    %1213 = vmatpush.xpose.msra.mxu0 %v1185
    %1214 = vmatpush.xpose.msra.mxu0 %v1183
    %1215 = vmatmul.f32.gmra.mxu0 %v1167
    %v1216 = vpop.f32.mrf.mxu0
    %v1217 = vadd.f32 %v899, %v1216
    %1218 = vmatmul.f32.gmra.mxu0 %v1169
    %v1219 = vpop.f32.mrf.mxu0
    %v1220 = vadd.f32 %v900, %v1219
    %1221 = vmatmul.f32.gmra.mxu0 %v1171
    %v1222 = vpop.f32.mrf.mxu0
    %v1223 = vadd.f32 %v901, %v1222
    %1224 = vmatmul.f32.gmra.mxu0 %v1173
    %v1225 = vpop.f32.mrf.mxu0
    %v1226 = vadd.f32 %v902, %v1225
    %1227 = vmatmul.f32.gmra.mxu0 %v1175
    %v1228 = vpop.f32.mrf.mxu0
    %v1229 = vadd.f32 %v903, %v1228
    %1230 = vmatmul.f32.gmra.mxu0 %v1177
    %v1231 = vpop.f32.mrf.mxu0
    %v1232 = vadd.f32 %v904, %v1231
    %1233 = vmatmul.f32.gmra.mxu0 %v1179
    %v1234 = vpop.f32.mrf.mxu0
    %v1235 = vadd.f32 %v905, %v1234
    %1236 = vmatmul.f32.gmra.mxu0 %v1181
    %v1237 = vpop.f32.mrf.mxu0
    %v1238 = vadd.f32 %v906, %v1237
    %1239 = vdwg.mxu0
    %v1240 = vsel %vm882, %v1217, -inf
    %1241 = vmax.xlane.f32.xlu0 %v1240
    %v1242 = vpop.xlane.xlu0 %1241
    %v1243 = vsel %vm882, %v1220, -inf
    %1244 = vmax.xlane.f32.xlu0 %v1243
    %v1245 = vpop.xlane.xlu0 %1244
    %v1246 = vsel %vm882, %v1223, -inf
    %1247 = vmax.xlane.f32.xlu0 %v1246
    %v1248 = vpop.xlane.xlu0 %1247
    %v1249 = vsel %vm882, %v1226, -inf
    %1250 = vmax.xlane.f32.xlu0 %v1249
    %v1251 = vpop.xlane.xlu0 %1250
    %v1252 = vsel %vm882, %v1229, -inf
    %1253 = vmax.xlane.f32.xlu0 %v1252
    %v1254 = vpop.xlane.xlu0 %1253
    %v1255 = vsel %vm882, %v1232, -inf
    %1256 = vmax.xlane.f32.xlu0 %v1255
    %v1257 = vpop.xlane.xlu0 %1256
    %v1258 = vsel %vm882, %v1235, -inf
    %1259 = vmax.xlane.f32.xlu0 %v1258
    %v1260 = vpop.xlane.xlu0 %1259
    %v1261 = vsel %vm882, %v1238, -inf
    %1262 = vmax.xlane.f32.xlu0 %v1261
    %v1263 = vpop.xlane.xlu0 %1262
    %v1264 = vsub.f32 %v1217, %v1242
    %v1265 = vsub.f32 %v1220, %v1245
    %v1266 = vsub.f32 %v1223, %v1248
    %v1267 = vsub.f32 %v1226, %v1251
    %v1268 = vsub.f32 %v1229, %v1254
    %v1269 = vsub.f32 %v1232, %v1257
    %v1270 = vsub.f32 %v1235, %v1260
    %v1271 = vsub.f32 %v1238, %v1263
    %v1272 = vmul.f32 %v1264, 1.442695
    %v1273 = vpow.pop %v1272
    %v1274 = vmul.f32 %v1265, 1.442695
    %v1275 = vpow.pop %v1274
    %v1276 = vmul.f32 %v1266, 1.442695
    %v1277 = vpow.pop %v1276
    %v1278 = vmul.f32 %v1267, 1.442695
    %v1279 = vpow.pop %v1278
    %v1280 = vmul.f32 %v1268, 1.442695
    %v1281 = vpow.pop %v1280
    %v1282 = vmul.f32 %v1269, 1.442695
    %v1283 = vpow.pop %v1282
    %v1284 = vmul.f32 %v1270, 1.442695
    %v1285 = vpow.pop %v1284
    %v1286 = vmul.f32 %v1271, 1.442695
    %v1287 = vpow.pop %v1286
    %v1288 = vsel %vm882, %v1273, 0.0
    %1289 = vadd.xlane.f32.xlu0 %v1288
    %v1290 = vpop.xlane.xlu0 %1289
    %v1291 = vsel %vm882, %v1275, 0.0
    %1292 = vadd.xlane.f32.xlu0 %v1291
    %v1293 = vpop.xlane.xlu0 %1292
    %v1294 = vsel %vm882, %v1277, 0.0
    %1295 = vadd.xlane.f32.xlu0 %v1294
    %v1296 = vpop.xlane.xlu0 %1295
    %v1297 = vsel %vm882, %v1279, 0.0
    %1298 = vadd.xlane.f32.xlu0 %v1297
    %v1299 = vpop.xlane.xlu0 %1298
    %v1300 = vsel %vm882, %v1281, 0.0
    %1301 = vadd.xlane.f32.xlu0 %v1300
    %v1302 = vpop.xlane.xlu0 %1301
    %v1303 = vsel %vm882, %v1283, 0.0
    %1304 = vadd.xlane.f32.xlu0 %v1303
    %v1305 = vpop.xlane.xlu0 %1304
    %v1306 = vsel %vm882, %v1285, 0.0
    %1307 = vadd.xlane.f32.xlu0 %v1306
    %v1308 = vpop.xlane.xlu0 %1307
    %v1309 = vsel %vm882, %v1287, 0.0
    %1310 = vadd.xlane.f32.xlu0 %v1309
    %v1311 = vpop.xlane.xlu0 %1310
    %v1312 = vrcp.pop %v1290
    %v1313 = vrcp.pop %v1293
    %v1314 = vrcp.pop %v1296
    %v1315 = vrcp.pop %v1299
    %v1316 = vrcp.pop %v1302
    %v1317 = vrcp.pop %v1305
    %v1318 = vrcp.pop %v1308
    %v1319 = vrcp.pop %v1311
    %v1320 = vmul.f32 %v1273, %v1312
    %v1321 = vmul.f32 %v1275, %v1313
    %v1322 = vmul.f32 %v1277, %v1314
    %v1323 = vmul.f32 %v1279, %v1315
    %v1324 = vmul.f32 %v1281, %v1316
    %v1325 = vmul.f32 %v1283, %v1317
    %v1326 = vmul.f32 %v1285, %v1318
    %v1327 = vmul.f32 %v1287, %v1319
    %v1329 = vsel %vm882, %v1320, 0
    %v1332 = vsel %vm882, %v1321, 0
    %v1335 = vsel %vm882, %v1322, 0
    %v1338 = vsel %vm882, %v1323, 0
    %v1341 = vsel %vm882, %v1324, 0
    %v1344 = vsel %vm882, %v1325, 0
    %v1347 = vsel %vm882, %v1326, 0
    %v1350 = vsel %vm882, %v1327, 0
    %1352 = vmatpush.msra.mxu0 0.0
    %1353 = vmatpush.msra.mxu0 0.0
    %1354 = vmatpush.msra.mxu0 0.0
    %1355 = vmatpush.msra.mxu0 0.0
    %1356 = vmatpush.msra.mxu0 0.0
    %1357 = vmatpush.msra.mxu0 0.0
    %1358 = vmatpush.msra.mxu0 0.0
    %1359 = vmatpush.msra.mxu0 0.0
    %1360 = vmatpush.msra.mxu0 %v1165
    %1361 = vmatpush.msra.mxu0 %v1162
    %1362 = vmatpush.msra.mxu0 %v1159
    %1363 = vmatpush.msra.mxu0 %v1156
    %1364 = vmatpush.msra.mxu0 %v1153
    %1365 = vmatpush.msra.mxu0 %v1150
    %1366 = vmatpush.msra.mxu0 %v1147
    %1367 = vmatpush.msra.mxu0 %v1112
    %1368 = vmatmul.f32.gmra.mxu0 %v1329
    %v1369 = vpop.f32.mrf.mxu0
    %v1370 = vadd.f32 0.0, %v1369
    %1371 = vmatmul.f32.gmra.mxu0 %v1332
    %v1372 = vpop.f32.mrf.mxu0
    %v1373 = vadd.f32 0.0, %v1372
    %1374 = vmatmul.f32.gmra.mxu0 %v1335
    %v1375 = vpop.f32.mrf.mxu0
    %v1376 = vadd.f32 0.0, %v1375
    %1377 = vmatmul.f32.gmra.mxu0 %v1338
    %v1378 = vpop.f32.mrf.mxu0
    %v1379 = vadd.f32 0.0, %v1378
    %1380 = vmatmul.f32.gmra.mxu0 %v1341
    %v1381 = vpop.f32.mrf.mxu0
    %v1382 = vadd.f32 0.0, %v1381
    %1383 = vmatmul.f32.gmra.mxu0 %v1344
    %v1384 = vpop.f32.mrf.mxu0
    %v1385 = vadd.f32 0.0, %v1384
    %1386 = vmatmul.f32.gmra.mxu0 %v1347
    %v1387 = vpop.f32.mrf.mxu0
    %v1388 = vadd.f32 0.0, %v1387
    %1389 = vmatmul.f32.gmra.mxu0 %v1350
    %v1390 = vpop.f32.mrf.mxu0
    %v1391 = vadd.f32 0.0, %v1390
    %1392 = vdwg.mxu0
    %1394 = vrot.lane.b32.xlu0 %v1373, 16
    %v1395 = vpop.permute.xlu0 %1394
    %1398 = vrot.lane.b32.xlu0 %v1376, 32
    %v1399 = vpop.permute.xlu0 %1398
    %1402 = vrot.lane.b32.xlu0 %v1379, 48
    %v1403 = vpop.permute.xlu0 %1402
    %1406 = vrot.lane.b32.xlu0 %v1382, 64
    %v1407 = vpop.permute.xlu0 %1406
    %1410 = vrot.lane.b32.xlu0 %v1385, 80
    %v1411 = vpop.permute.xlu0 %1410
    %1414 = vrot.lane.b32.xlu0 %v1388, 96
    %v1415 = vpop.permute.xlu0 %1414
    %1418 = vrot.lane.b32.xlu0 %v1391, 112
    %v1419 = vpop.permute.xlu0 %1418
    %v1421 = vsel %vm434, %v1370, %v1395
    %vm1422 = vcmask 261120
    %v1423 = vsel %vm1422, %v1421, %v1399
    %vm1424 = vcmask 392192
    %v1425 = vsel %vm1424, %v1423, %v1403
    %v1426 = vsel %vm882, %v1425, %v1407
    %vm1427 = vcmask 654336
    %v1428 = vsel %vm1427, %v1426, %v1411
    %vm1429 = vcmask 785408
    %v1430 = vsel %vm1429, %v1428, %v1415
    %vm1431 = vcmask 916480
    %v1432 = vsel %vm1431, %v1430, %v1419
    %v1433 = vpack.c.bf16 %v1432, %v1432
    %v1434 = vld [vmem:[#allocation20] sm:$0xf]
    %v1435 = vld [vmem:[#allocation20 + $0x4] sm:$0xf]
    %v1436 = vld [vmem:[#allocation20 + $0x8] sm:$0xf]
    %v1437 = vld [vmem:[#allocation20 + $0xc] sm:$0xf]
    %v1438 = vld [vmem:[#allocation20 + $0x10] sm:$0xf]
    %v1439 = vld [vmem:[#allocation20 + $0x14] sm:$0xf]
    %v1440 = vld [vmem:[#allocation20 + $0x18] sm:$0xf]
    %v1441 = vld [vmem:[#allocation20 + $0x1c] sm:$0xf]
    %v1442 = vld [vmem:[#allocation20 + $0x20] sm:$0xf]
    %v1443 = vld [vmem:[#allocation20 + $0x24] sm:$0xf]
    %v1444 = vld [vmem:[#allocation20 + $0x28] sm:$0xf]
    %v1445 = vld [vmem:[#allocation20 + $0x2c] sm:$0xf]
    %v1446 = vld [vmem:[#allocation20 + $0x30] sm:$0xf]
    %v1447 = vld [vmem:[#allocation20 + $0x34] sm:$0xf]
    %v1448 = vld [vmem:[#allocation20 + $0x38] sm:$0xf]
    %v1449 = vld [vmem:[#allocation20 + $0x3c] sm:$0xf]
    %v1450 = vld [vmem:[#allocation22] sm:$0x1]
    %v1452 = vperm.slane %v1450, 0
    %v1470 = vunpack.c.l.b16 %v1434
    %v1471 = vunpack.c.l.b16 %v1435
    %v1472 = vunpack.c.l.b16 %v1436
    %v1473 = vunpack.c.l.b16 %v1437
    %v1474 = vunpack.c.l.b16 %v1438
    %v1475 = vunpack.c.l.b16 %v1439
    %v1476 = vunpack.c.l.b16 %v1440
    %v1477 = vunpack.c.l.b16 %v1441
    %v1478 = vunpack.c.l.b16 %v1442
    %v1479 = vunpack.c.l.b16 %v1443
    %v1480 = vunpack.c.l.b16 %v1444
    %v1481 = vunpack.c.l.b16 %v1445
    %v1482 = vunpack.c.l.b16 %v1446
    %v1483 = vunpack.c.l.b16 %v1447
    %v1484 = vunpack.c.l.b16 %v1448
    %v1485 = vunpack.c.l.b16 %v1449
    %v1486 = vpack.c.b16 %v1471, %v1470
    %v1487 = vpack.c.b16 %v1473, %v1472
    %v1488 = vpack.c.b16 %v1475, %v1474
    %v1489 = vpack.c.b16 %v1477, %v1476
    %v1490 = vpack.c.b16 %v1479, %v1478
    %v1491 = vpack.c.b16 %v1481, %v1480
    %v1492 = vpack.c.b16 %v1483, %v1482
    %v1493 = vpack.c.b16 %v1485, %v1484
    %1502 = vmatpush.bf16.msra.mxu0 %v1493
    %1503 = vmatpush.bf16.msra.mxu0 %v1492
    %1504 = vmatpush.bf16.msra.mxu0 %v1491
    %1505 = vmatpush.bf16.msra.mxu0 %v1490
    %1506 = vmatpush.bf16.msra.mxu0 %v1489
    %1507 = vmatpush.bf16.msra.mxu0 %v1488
    %1508 = vmatpush.bf16.msra.mxu0 %v1487
    %1509 = vmatpush.bf16.msra.mxu0 %v1486
    %1510 = vmatmul.bf16.gmra.mxu0 %v1433
    %v1511 = vpop.f32.mrf.mxu0
    %v1512 = vadd.f32 %v1452, %v1511
    %v1513 = vpop.f32.mrf.mxu0
    %1514 = vdwg.mxu0
    %v1515 = vadd.f32 %v896, %v1512
    %v1516 = vld [vmem:[#allocation23] sm:$0x1]
    %v1517 = vld [vmem:[#allocation25] sm:$0x1]
    %1518 = vadd.xlane.f32.xlu0 %v1515
    %v1519 = vpop.xlane.xlu0 %1518
    %v1520 = vrcp.pop 128.0
    %v1521 = vmul.f32 128.0, %v1520
    %v1522 = vsub.f32 1.0, %v1521
    %v1523 = vmul.f32 %v1520, %v1522
    %v1524 = vadd.f32 %v1520, %v1523
    %vm1525 = vweird.f32 %v1520
    %v1526 = vsel %vm1525, %v1520, %v1524
    %v1527 = vmul.f32 %v1519, %v1526
    %v1528 = vsub.f32 %v1515, %v1527
    %v1529 = vmul.f32 %v1528, %v1528
    %1530 = vadd.xlane.f32.xlu0 %v1529
    %v1531 = vpop.xlane.xlu0 %1530
    %v1532 = vmul.f32 %v1531, %v1526
    %v1533 = vadd.f32 %v1532, 1e-05
    %v1534 = vrsqrt.pop %v1533
    %v1535 = vmul.f32 %v1534, %v1533
    %v1536 = vmul.f32 %v1535, %v1534
    %v1537 = vmul.f32 0.5, %v1536
    %v1538 = vsub.f32 1.5, %v1537
    %v1539 = vmul.f32 %v1534, %v1538
    %vm1540 = vweird.f32 %v1533
    %vm1541 = vweird.f32 %v1534
    %vm1542 = vmor %vm1540, %vm1541
    %v1543 = vsel %vm1542, %v1534, %v1539
    %v1544 = vmul.f32 %v1528, %v1543
    %v1546 = vperm.slane %v1516, 0
    %v1548 = vmul.f32 %v1544, %v1546
    %v1550 = vperm.slane %v1517, 0
    %v1552 = vadd.f32 %v1548, %v1550
    %v1553 = vpack.c.bf16 %v1552, %v1552
    %v1554 = vld [vmem:[#allocation26] sm:$0xff]
    %v1555 = vld [vmem:[#allocation26 + $0x8] sm:$0xff]
    %v1556 = vld [vmem:[#allocation26 + $0x10] sm:$0xff]
    %v1557 = vld [vmem:[#allocation26 + $0x18] sm:$0xff]
    %v1558 = vld [vmem:[#allocation26 + $0x20] sm:$0xff]
    %v1559 = vld [vmem:[#allocation26 + $0x28] sm:$0xff]
    %v1560 = vld [vmem:[#allocation26 + $0x30] sm:$0xff]
    %v1561 = vld [vmem:[#allocation26 + $0x38] sm:$0xff]
    %v1562 = vld [vmem:[#allocation26 + $0x40] sm:$0xff]
    %v1563 = vld [vmem:[#allocation26 + $0x48] sm:$0xff]
    %v1564 = vld [vmem:[#allocation26 + $0x50] sm:$0xff]
    %v1565 = vld [vmem:[#allocation26 + $0x58] sm:$0xff]
    %v1566 = vld [vmem:[#allocation26 + $0x60] sm:$0xff]
    %v1567 = vld [vmem:[#allocation26 + $0x68] sm:$0xff]
    %v1568 = vld [vmem:[#allocation26 + $0x70] sm:$0xff]
    %v1569 = vld [vmem:[#allocation26 + $0x78] sm:$0xff]
    %v1570 = vld [vmem:[#allocation26 + $0x80] sm:$0xff]
    %v1571 = vld [vmem:[#allocation26 + $0x88] sm:$0xff]
    %v1572 = vld [vmem:[#allocation26 + $0x90] sm:$0xff]
    %v1573 = vld [vmem:[#allocation26 + $0x98] sm:$0xff]
    %v1574 = vld [vmem:[#allocation26 + $0xa0] sm:$0xff]
    %v1575 = vld [vmem:[#allocation26 + $0xa8] sm:$0xff]
    %v1576 = vld [vmem:[#allocation26 + $0xb0] sm:$0xff]
    %v1577 = vld [vmem:[#allocation26 + $0xb8] sm:$0xff]
    %v1578 = vld [vmem:[#allocation26 + $0xc0] sm:$0xff]
    %v1579 = vld [vmem:[#allocation26 + $0xc8] sm:$0xff]
    %v1580 = vld [vmem:[#allocation26 + $0xd0] sm:$0xff]
    %v1581 = vld [vmem:[#allocation26 + $0xd8] sm:$0xff]
    %v1582 = vld [vmem:[#allocation26 + $0xe0] sm:$0xff]
    %v1583 = vld [vmem:[#allocation26 + $0xe8] sm:$0xff]
    %v1584 = vld [vmem:[#allocation26 + $0xf0] sm:$0xff]
    %v1585 = vld [vmem:[#allocation26 + $0xf8] sm:$0xff]
    %v1586 = vld [vmem:[#allocation26 + $0x100] sm:$0xff]
    %v1587 = vld [vmem:[#allocation26 + $0x108] sm:$0xff]
    %v1588 = vld [vmem:[#allocation26 + $0x110] sm:$0xff]
    %v1589 = vld [vmem:[#allocation26 + $0x118] sm:$0xff]
    %v1590 = vld [vmem:[#allocation26 + $0x120] sm:$0xff]
    %v1591 = vld [vmem:[#allocation26 + $0x128] sm:$0xff]
    %v1592 = vld [vmem:[#allocation26 + $0x130] sm:$0xff]
    %v1593 = vld [vmem:[#allocation26 + $0x138] sm:$0xff]
    %v1594 = vld [vmem:[#allocation26 + $0x140] sm:$0xff]
    %v1595 = vld [vmem:[#allocation26 + $0x148] sm:$0xff]
    %v1596 = vld [vmem:[#allocation26 + $0x150] sm:$0xff]
    %v1597 = vld [vmem:[#allocation26 + $0x158] sm:$0xff]
    %v1598 = vld [vmem:[#allocation26 + $0x160] sm:$0xff]
    %v1599 = vld [vmem:[#allocation26 + $0x168] sm:$0xff]
    %v1600 = vld [vmem:[#allocation26 + $0x170] sm:$0xff]
    %v1601 = vld [vmem:[#allocation26 + $0x178] sm:$0xff]
    %v1602 = vld [vmem:[#allocation26 + $0x180] sm:$0xff]
    %v1603 = vld [vmem:[#allocation26 + $0x188] sm:$0xff]
    %v1604 = vld [vmem:[#allocation26 + $0x190] sm:$0xff]
    %v1605 = vld [vmem:[#allocation26 + $0x198] sm:$0xff]
    %v1606 = vld [vmem:[#allocation26 + $0x1a0] sm:$0xff]
    %v1607 = vld [vmem:[#allocation26 + $0x1a8] sm:$0xff]
    %v1608 = vld [vmem:[#allocation26 + $0x1b0] sm:$0xff]
    %v1609 = vld [vmem:[#allocation26 + $0x1b8] sm:$0xff]
    %v1610 = vld [vmem:[#allocation26 + $0x1c0] sm:$0xff]
    %v1611 = vld [vmem:[#allocation26 + $0x1c8] sm:$0xff]
    %v1612 = vld [vmem:[#allocation26 + $0x1d0] sm:$0xff]
    %v1613 = vld [vmem:[#allocation26 + $0x1d8] sm:$0xff]
    %v1614 = vld [vmem:[#allocation26 + $0x1e0] sm:$0xff]
    %v1615 = vld [vmem:[#allocation26 + $0x1e8] sm:$0xff]
    %v1616 = vld [vmem:[#allocation26 + $0x1f0] sm:$0xff]
    %v1617 = vld [vmem:[#allocation26 + $0x1f8] sm:$0xff]
    %v1618 = vld [vmem:[#allocation26 + $0x200] sm:$0xff]
    %v1619 = vld [vmem:[#allocation26 + $0x208] sm:$0xff]
    %v1620 = vld [vmem:[#allocation26 + $0x210] sm:$0xff]
    %v1621 = vld [vmem:[#allocation26 + $0x218] sm:$0xff]
    %v1622 = vld [vmem:[#allocation26 + $0x220] sm:$0xff]
    %v1623 = vld [vmem:[#allocation26 + $0x228] sm:$0xff]
    %v1624 = vld [vmem:[#allocation26 + $0x230] sm:$0xff]
    %v1625 = vld [vmem:[#allocation26 + $0x238] sm:$0xff]
    %v1626 = vld [vmem:[#allocation26 + $0x240] sm:$0xff]
    %v1627 = vld [vmem:[#allocation26 + $0x248] sm:$0xff]
    %v1628 = vld [vmem:[#allocation26 + $0x250] sm:$0xff]
    %v1629 = vld [vmem:[#allocation26 + $0x258] sm:$0xff]
    %v1630 = vld [vmem:[#allocation26 + $0x260] sm:$0xff]
    %v1631 = vld [vmem:[#allocation26 + $0x268] sm:$0xff]
    %v1632 = vld [vmem:[#allocation26 + $0x270] sm:$0xff]
    %v1633 = vld [vmem:[#allocation26 + $0x278] sm:$0xff]
    %v1634 = vld [vmem:[#allocation26 + $0x280] sm:$0xff]
    %v1635 = vld [vmem:[#allocation26 + $0x288] sm:$0xff]
    %v1636 = vld [vmem:[#allocation26 + $0x290] sm:$0xff]
    %v1637 = vld [vmem:[#allocation26 + $0x298] sm:$0xff]
    %v1638 = vld [vmem:[#allocation26 + $0x2a0] sm:$0xff]
    %v1639 = vld [vmem:[#allocation26 + $0x2a8] sm:$0xff]
    %v1640 = vld [vmem:[#allocation26 + $0x2b0] sm:$0xff]
    %v1641 = vld [vmem:[#allocation26 + $0x2b8] sm:$0xff]
    %v1642 = vld [vmem:[#allocation26 + $0x2c0] sm:$0xff]
    %v1643 = vld [vmem:[#allocation26 + $0x2c8] sm:$0xff]
    %v1644 = vld [vmem:[#allocation26 + $0x2d0] sm:$0xff]
    %v1645 = vld [vmem:[#allocation26 + $0x2d8] sm:$0xff]
    %v1646 = vld [vmem:[#allocation26 + $0x2e0] sm:$0xff]
    %v1647 = vld [vmem:[#allocation26 + $0x2e8] sm:$0xff]
    %v1648 = vld [vmem:[#allocation26 + $0x2f0] sm:$0xff]
    %v1649 = vld [vmem:[#allocation26 + $0x2f8] sm:$0xff]
    %v1650 = vld [vmem:[#allocation26 + $0x300] sm:$0xff]
    %v1651 = vld [vmem:[#allocation26 + $0x308] sm:$0xff]
    %v1652 = vld [vmem:[#allocation26 + $0x310] sm:$0xff]
    %v1653 = vld [vmem:[#allocation26 + $0x318] sm:$0xff]
    %v1654 = vld [vmem:[#allocation26 + $0x320] sm:$0xff]
    %v1655 = vld [vmem:[#allocation26 + $0x328] sm:$0xff]
    %v1656 = vld [vmem:[#allocation26 + $0x330] sm:$0xff]
    %v1657 = vld [vmem:[#allocation26 + $0x338] sm:$0xff]
    %v1658 = vld [vmem:[#allocation26 + $0x340] sm:$0xff]
    %v1659 = vld [vmem:[#allocation26 + $0x348] sm:$0xff]
    %v1660 = vld [vmem:[#allocation26 + $0x350] sm:$0xff]
    %v1661 = vld [vmem:[#allocation26 + $0x358] sm:$0xff]
    %v1662 = vld [vmem:[#allocation26 + $0x360] sm:$0xff]
    %v1663 = vld [vmem:[#allocation26 + $0x368] sm:$0xff]
    %v1664 = vld [vmem:[#allocation26 + $0x370] sm:$0xff]
    %v1665 = vld [vmem:[#allocation26 + $0x378] sm:$0xff]
    %v1666 = vld [vmem:[#allocation26 + $0x380] sm:$0xff]
    %v1667 = vld [vmem:[#allocation26 + $0x388] sm:$0xff]
    %v1668 = vld [vmem:[#allocation26 + $0x390] sm:$0xff]
    %v1669 = vld [vmem:[#allocation26 + $0x398] sm:$0xff]
    %v1670 = vld [vmem:[#allocation26 + $0x3a0] sm:$0xff]
    %v1671 = vld [vmem:[#allocation26 + $0x3a8] sm:$0xff]
    %v1672 = vld [vmem:[#allocation26 + $0x3b0] sm:$0xff]
    %v1673 = vld [vmem:[#allocation26 + $0x3b8] sm:$0xff]
    %v1674 = vld [vmem:[#allocation26 + $0x3c0] sm:$0xff]
    %v1675 = vld [vmem:[#allocation26 + $0x3c8] sm:$0xff]
    %v1676 = vld [vmem:[#allocation26 + $0x3d0] sm:$0xff]
    %v1677 = vld [vmem:[#allocation26 + $0x3d8] sm:$0xff]
    %v1678 = vld [vmem:[#allocation26 + $0x3e0] sm:$0xff]
    %v1679 = vld [vmem:[#allocation26 + $0x3e8] sm:$0xff]
    %v1680 = vld [vmem:[#allocation26 + $0x3f0] sm:$0xff]
    %v1681 = vld [vmem:[#allocation26 + $0x3f8] sm:$0xff]
    %v1682 = vld [vmem:[#allocation28] sm:$0xff]
    %v1683 = vld [vmem:[#allocation28 + $0x8] sm:$0xff]
    %v1686 = vperm.slane %v1682, 0
    %v1687 = vperm.slane %v1682, 1
    %v1688 = vperm.slane %v1682, 2
    %v1689 = vperm.slane %v1682, 3
    %v1690 = vperm.slane %v1682, 4
    %v1691 = vperm.slane %v1682, 5
    %v1692 = vperm.slane %v1682, 6
    %v1693 = vperm.slane %v1682, 7
    %v1694 = vperm.slane %v1683, 0
    %v1695 = vperm.slane %v1683, 1
    %v1696 = vperm.slane %v1683, 2
    %v1697 = vperm.slane %v1683, 3
    %v1698 = vperm.slane %v1683, 4
    %v1699 = vperm.slane %v1683, 5
    %v1700 = vperm.slane %v1683, 6
    %v1701 = vperm.slane %v1683, 7
    %v1846 = vunpack.c.l.b16 %v1554
    %v1847 = vunpack.c.h.b16 %v1554
    %v1848 = vunpack.c.l.b16 %v1555
    %v1849 = vunpack.c.h.b16 %v1555
    %v1850 = vunpack.c.l.b16 %v1556
    %v1851 = vunpack.c.h.b16 %v1556
    %v1852 = vunpack.c.l.b16 %v1557
    %v1853 = vunpack.c.h.b16 %v1557
    %v1854 = vunpack.c.l.b16 %v1558
    %v1855 = vunpack.c.h.b16 %v1558
    %v1856 = vunpack.c.l.b16 %v1559
    %v1857 = vunpack.c.h.b16 %v1559
    %v1858 = vunpack.c.l.b16 %v1560
    %v1859 = vunpack.c.h.b16 %v1560
    %v1860 = vunpack.c.l.b16 %v1561
    %v1861 = vunpack.c.h.b16 %v1561
    %v1862 = vunpack.c.l.b16 %v1562
    %v1863 = vunpack.c.h.b16 %v1562
    %v1864 = vunpack.c.l.b16 %v1563
    %v1865 = vunpack.c.h.b16 %v1563
    %v1866 = vunpack.c.l.b16 %v1564
    %v1867 = vunpack.c.h.b16 %v1564
    %v1868 = vunpack.c.l.b16 %v1565
    %v1869 = vunpack.c.h.b16 %v1565
    %v1870 = vunpack.c.l.b16 %v1566
    %v1871 = vunpack.c.h.b16 %v1566
    %v1872 = vunpack.c.l.b16 %v1567
    %v1873 = vunpack.c.h.b16 %v1567
    %v1874 = vunpack.c.l.b16 %v1568
    %v1875 = vunpack.c.h.b16 %v1568
    %v1876 = vunpack.c.l.b16 %v1569
    %v1877 = vunpack.c.h.b16 %v1569
    %v1878 = vunpack.c.l.b16 %v1570
    %v1879 = vunpack.c.h.b16 %v1570
    %v1880 = vunpack.c.l.b16 %v1571
    %v1881 = vunpack.c.h.b16 %v1571
    %v1882 = vunpack.c.l.b16 %v1572
    %v1883 = vunpack.c.h.b16 %v1572
    %v1884 = vunpack.c.l.b16 %v1573
    %v1885 = vunpack.c.h.b16 %v1573
    %v1886 = vunpack.c.l.b16 %v1574
    %v1887 = vunpack.c.h.b16 %v1574
    %v1888 = vunpack.c.l.b16 %v1575
    %v1889 = vunpack.c.h.b16 %v1575
    %v1890 = vunpack.c.l.b16 %v1576
    %v1891 = vunpack.c.h.b16 %v1576
    %v1892 = vunpack.c.l.b16 %v1577
    %v1893 = vunpack.c.h.b16 %v1577
    %v1894 = vunpack.c.l.b16 %v1578
    %v1895 = vunpack.c.h.b16 %v1578
    %v1896 = vunpack.c.l.b16 %v1579
    %v1897 = vunpack.c.h.b16 %v1579
    %v1898 = vunpack.c.l.b16 %v1580
    %v1899 = vunpack.c.h.b16 %v1580
    %v1900 = vunpack.c.l.b16 %v1581
    %v1901 = vunpack.c.h.b16 %v1581
    %v1902 = vunpack.c.l.b16 %v1582
    %v1903 = vunpack.c.h.b16 %v1582
    %v1904 = vunpack.c.l.b16 %v1583
    %v1905 = vunpack.c.h.b16 %v1583
    %v1906 = vunpack.c.l.b16 %v1584
    %v1907 = vunpack.c.h.b16 %v1584
    %v1908 = vunpack.c.l.b16 %v1585
    %v1909 = vunpack.c.h.b16 %v1585
    %v1910 = vunpack.c.l.b16 %v1586
    %v1911 = vunpack.c.h.b16 %v1586
    %v1912 = vunpack.c.l.b16 %v1587
    %v1913 = vunpack.c.h.b16 %v1587
    %v1914 = vunpack.c.l.b16 %v1588
    %v1915 = vunpack.c.h.b16 %v1588
    %v1916 = vunpack.c.l.b16 %v1589
    %v1917 = vunpack.c.h.b16 %v1589
    %v1918 = vunpack.c.l.b16 %v1590
    %v1919 = vunpack.c.h.b16 %v1590
    %v1920 = vunpack.c.l.b16 %v1591
    %v1921 = vunpack.c.h.b16 %v1591
    %v1922 = vunpack.c.l.b16 %v1592
    %v1923 = vunpack.c.h.b16 %v1592
    %v1924 = vunpack.c.l.b16 %v1593
    %v1925 = vunpack.c.h.b16 %v1593
    %v1926 = vunpack.c.l.b16 %v1594
    %v1927 = vunpack.c.h.b16 %v1594
    %v1928 = vunpack.c.l.b16 %v1595
    %v1929 = vunpack.c.h.b16 %v1595
    %v1930 = vunpack.c.l.b16 %v1596
    %v1931 = vunpack.c.h.b16 %v1596
    %v1932 = vunpack.c.l.b16 %v1597
    %v1933 = vunpack.c.h.b16 %v1597
    %v1934 = vunpack.c.l.b16 %v1598
    %v1935 = vunpack.c.h.b16 %v1598
    %v1936 = vunpack.c.l.b16 %v1599
    %v1937 = vunpack.c.h.b16 %v1599
    %v1938 = vunpack.c.l.b16 %v1600
    %v1939 = vunpack.c.h.b16 %v1600
    %v1940 = vunpack.c.l.b16 %v1601
    %v1941 = vunpack.c.h.b16 %v1601
    %v1942 = vunpack.c.l.b16 %v1602
    %v1943 = vunpack.c.h.b16 %v1602
    %v1944 = vunpack.c.l.b16 %v1603
    %v1945 = vunpack.c.h.b16 %v1603
    %v1946 = vunpack.c.l.b16 %v1604
    %v1947 = vunpack.c.h.b16 %v1604
    %v1948 = vunpack.c.l.b16 %v1605
    %v1949 = vunpack.c.h.b16 %v1605
    %v1950 = vunpack.c.l.b16 %v1606
    %v1951 = vunpack.c.h.b16 %v1606
    %v1952 = vunpack.c.l.b16 %v1607
    %v1953 = vunpack.c.h.b16 %v1607
    %v1954 = vunpack.c.l.b16 %v1608
    %v1955 = vunpack.c.h.b16 %v1608
    %v1956 = vunpack.c.l.b16 %v1609
    %v1957 = vunpack.c.h.b16 %v1609
    %v1958 = vunpack.c.l.b16 %v1610
    %v1959 = vunpack.c.h.b16 %v1610
    %v1960 = vunpack.c.l.b16 %v1611
    %v1961 = vunpack.c.h.b16 %v1611
    %v1962 = vunpack.c.l.b16 %v1612
    %v1963 = vunpack.c.h.b16 %v1612
    %v1964 = vunpack.c.l.b16 %v1613
    %v1965 = vunpack.c.h.b16 %v1613
    %v1966 = vunpack.c.l.b16 %v1614
    %v1967 = vunpack.c.h.b16 %v1614
    %v1968 = vunpack.c.l.b16 %v1615
    %v1969 = vunpack.c.h.b16 %v1615
    %v1970 = vunpack.c.l.b16 %v1616
    %v1971 = vunpack.c.h.b16 %v1616
    %v1972 = vunpack.c.l.b16 %v1617
    %v1973 = vunpack.c.h.b16 %v1617
    %v1974 = vunpack.c.l.b16 %v1618
    %v1975 = vunpack.c.h.b16 %v1618
    %v1976 = vunpack.c.l.b16 %v1619
    %v1977 = vunpack.c.h.b16 %v1619
    %v1978 = vunpack.c.l.b16 %v1620
    %v1979 = vunpack.c.h.b16 %v1620
    %v1980 = vunpack.c.l.b16 %v1621
    %v1981 = vunpack.c.h.b16 %v1621
    %v1982 = vunpack.c.l.b16 %v1622
    %v1983 = vunpack.c.h.b16 %v1622
    %v1984 = vunpack.c.l.b16 %v1623
    %v1985 = vunpack.c.h.b16 %v1623
    %v1986 = vunpack.c.l.b16 %v1624
    %v1987 = vunpack.c.h.b16 %v1624
    %v1988 = vunpack.c.l.b16 %v1625
    %v1989 = vunpack.c.h.b16 %v1625
    %v1990 = vunpack.c.l.b16 %v1626
    %v1991 = vunpack.c.h.b16 %v1626
    %v1992 = vunpack.c.l.b16 %v1627
    %v1993 = vunpack.c.h.b16 %v1627
    %v1994 = vunpack.c.l.b16 %v1628
    %v1995 = vunpack.c.h.b16 %v1628
    %v1996 = vunpack.c.l.b16 %v1629
    %v1997 = vunpack.c.h.b16 %v1629
    %v1998 = vunpack.c.l.b16 %v1630
    %v1999 = vunpack.c.h.b16 %v1630
    %v2000 = vunpack.c.l.b16 %v1631
    %v2001 = vunpack.c.h.b16 %v1631
    %v2002 = vunpack.c.l.b16 %v1632
    %v2003 = vunpack.c.h.b16 %v1632
    %v2004 = vunpack.c.l.b16 %v1633
    %v2005 = vunpack.c.h.b16 %v1633
    %v2006 = vunpack.c.l.b16 %v1634
    %v2007 = vunpack.c.h.b16 %v1634
    %v2008 = vunpack.c.l.b16 %v1635
    %v2009 = vunpack.c.h.b16 %v1635
    %v2010 = vunpack.c.l.b16 %v1636
    %v2011 = vunpack.c.h.b16 %v1636
    %v2012 = vunpack.c.l.b16 %v1637
    %v2013 = vunpack.c.h.b16 %v1637
    %v2014 = vunpack.c.l.b16 %v1638
    %v2015 = vunpack.c.h.b16 %v1638
    %v2016 = vunpack.c.l.b16 %v1639
    %v2017 = vunpack.c.h.b16 %v1639
    %v2018 = vunpack.c.l.b16 %v1640
    %v2019 = vunpack.c.h.b16 %v1640
    %v2020 = vunpack.c.l.b16 %v1641
    %v2021 = vunpack.c.h.b16 %v1641
    %v2022 = vunpack.c.l.b16 %v1642
    %v2023 = vunpack.c.h.b16 %v1642
    %v2024 = vunpack.c.l.b16 %v1643
    %v2025 = vunpack.c.h.b16 %v1643
    %v2026 = vunpack.c.l.b16 %v1644
    %v2027 = vunpack.c.h.b16 %v1644
    %v2028 = vunpack.c.l.b16 %v1645
    %v2029 = vunpack.c.h.b16 %v1645
    %v2030 = vunpack.c.l.b16 %v1646
    %v2031 = vunpack.c.h.b16 %v1646
    %v2032 = vunpack.c.l.b16 %v1647
    %v2033 = vunpack.c.h.b16 %v1647
    %v2034 = vunpack.c.l.b16 %v1648
    %v2035 = vunpack.c.h.b16 %v1648
    %v2036 = vunpack.c.l.b16 %v1649
    %v2037 = vunpack.c.h.b16 %v1649
    %v2038 = vunpack.c.l.b16 %v1650
    %v2039 = vunpack.c.h.b16 %v1650
    %v2040 = vunpack.c.l.b16 %v1651
    %v2041 = vunpack.c.h.b16 %v1651
    %v2042 = vunpack.c.l.b16 %v1652
    %v2043 = vunpack.c.h.b16 %v1652
    %v2044 = vunpack.c.l.b16 %v1653
    %v2045 = vunpack.c.h.b16 %v1653
    %v2046 = vunpack.c.l.b16 %v1654
    %v2047 = vunpack.c.h.b16 %v1654
    %v2048 = vunpack.c.l.b16 %v1655
    %v2049 = vunpack.c.h.b16 %v1655
    %v2050 = vunpack.c.l.b16 %v1656
    %v2051 = vunpack.c.h.b16 %v1656
    %v2052 = vunpack.c.l.b16 %v1657
    %v2053 = vunpack.c.h.b16 %v1657
    %v2054 = vunpack.c.l.b16 %v1658
    %v2055 = vunpack.c.h.b16 %v1658
    %v2056 = vunpack.c.l.b16 %v1659
    %v2057 = vunpack.c.h.b16 %v1659
    %v2058 = vunpack.c.l.b16 %v1660
    %v2059 = vunpack.c.h.b16 %v1660
    %v2060 = vunpack.c.l.b16 %v1661
    %v2061 = vunpack.c.h.b16 %v1661
    %v2062 = vunpack.c.l.b16 %v1662
    %v2063 = vunpack.c.h.b16 %v1662
    %v2064 = vunpack.c.l.b16 %v1663
    %v2065 = vunpack.c.h.b16 %v1663
    %v2066 = vunpack.c.l.b16 %v1664
    %v2067 = vunpack.c.h.b16 %v1664
    %v2068 = vunpack.c.l.b16 %v1665
    %v2069 = vunpack.c.h.b16 %v1665
    %v2070 = vunpack.c.l.b16 %v1666
    %v2071 = vunpack.c.h.b16 %v1666
    %v2072 = vunpack.c.l.b16 %v1667
    %v2073 = vunpack.c.h.b16 %v1667
    %v2074 = vunpack.c.l.b16 %v1668
    %v2075 = vunpack.c.h.b16 %v1668
    %v2076 = vunpack.c.l.b16 %v1669
    %v2077 = vunpack.c.h.b16 %v1669
    %v2078 = vunpack.c.l.b16 %v1670
    %v2079 = vunpack.c.h.b16 %v1670
    %v2080 = vunpack.c.l.b16 %v1671
    %v2081 = vunpack.c.h.b16 %v1671
    %v2082 = vunpack.c.l.b16 %v1672
    %v2083 = vunpack.c.h.b16 %v1672
    %v2084 = vunpack.c.l.b16 %v1673
    %v2085 = vunpack.c.h.b16 %v1673
    %v2086 = vunpack.c.l.b16 %v1674
    %v2087 = vunpack.c.h.b16 %v1674
    %v2088 = vunpack.c.l.b16 %v1675
    %v2089 = vunpack.c.h.b16 %v1675
    %v2090 = vunpack.c.l.b16 %v1676
    %v2091 = vunpack.c.h.b16 %v1676
    %v2092 = vunpack.c.l.b16 %v1677
    %v2093 = vunpack.c.h.b16 %v1677
    %v2094 = vunpack.c.l.b16 %v1678
    %v2095 = vunpack.c.h.b16 %v1678
    %v2096 = vunpack.c.l.b16 %v1679
    %v2097 = vunpack.c.h.b16 %v1679
    %v2098 = vunpack.c.l.b16 %v1680
    %v2099 = vunpack.c.h.b16 %v1680
    %v2100 = vunpack.c.l.b16 %v1681
    %v2101 = vunpack.c.h.b16 %v1681
    %v2102 = vpack.c.b16 %v1862, %v1846
    %v2103 = vpack.c.b16 %v1863, %v1847
    %v2104 = vpack.c.b16 %v1864, %v1848
    %v2105 = vpack.c.b16 %v1865, %v1849
    %v2106 = vpack.c.b16 %v1866, %v1850
    %v2107 = vpack.c.b16 %v1867, %v1851
    %v2108 = vpack.c.b16 %v1868, %v1852
    %v2109 = vpack.c.b16 %v1869, %v1853
    %v2110 = vpack.c.b16 %v1870, %v1854
    %v2111 = vpack.c.b16 %v1871, %v1855
    %v2112 = vpack.c.b16 %v1872, %v1856
    %v2113 = vpack.c.b16 %v1873, %v1857
    %v2114 = vpack.c.b16 %v1874, %v1858
    %v2115 = vpack.c.b16 %v1875, %v1859
    %v2116 = vpack.c.b16 %v1876, %v1860
    %v2117 = vpack.c.b16 %v1877, %v1861
    %v2118 = vpack.c.b16 %v1894, %v1878
    %v2119 = vpack.c.b16 %v1895, %v1879
    %v2120 = vpack.c.b16 %v1896, %v1880
    %v2121 = vpack.c.b16 %v1897, %v1881
    %v2122 = vpack.c.b16 %v1898, %v1882
    %v2123 = vpack.c.b16 %v1899, %v1883
    %v2124 = vpack.c.b16 %v1900, %v1884
    %v2125 = vpack.c.b16 %v1901, %v1885
    %v2126 = vpack.c.b16 %v1902, %v1886
    %v2127 = vpack.c.b16 %v1903, %v1887
    %v2128 = vpack.c.b16 %v1904, %v1888
    %v2129 = vpack.c.b16 %v1905, %v1889
    %v2130 = vpack.c.b16 %v1906, %v1890
    %v2131 = vpack.c.b16 %v1907, %v1891
    %v2132 = vpack.c.b16 %v1908, %v1892
    %v2133 = vpack.c.b16 %v1909, %v1893
    %v2134 = vpack.c.b16 %v1926, %v1910
    %v2135 = vpack.c.b16 %v1927, %v1911
    %v2136 = vpack.c.b16 %v1928, %v1912
    %v2137 = vpack.c.b16 %v1929, %v1913
    %v2138 = vpack.c.b16 %v1930, %v1914
    %v2139 = vpack.c.b16 %v1931, %v1915
    %v2140 = vpack.c.b16 %v1932, %v1916
    %v2141 = vpack.c.b16 %v1933, %v1917
    %v2142 = vpack.c.b16 %v1934, %v1918
    %v2143 = vpack.c.b16 %v1935, %v1919
    %v2144 = vpack.c.b16 %v1936, %v1920
    %v2145 = vpack.c.b16 %v1937, %v1921
    %v2146 = vpack.c.b16 %v1938, %v1922
    %v2147 = vpack.c.b16 %v1939, %v1923
    %v2148 = vpack.c.b16 %v1940, %v1924
    %v2149 = vpack.c.b16 %v1941, %v1925
    %v2150 = vpack.c.b16 %v1958, %v1942
    %v2151 = vpack.c.b16 %v1959, %v1943
    %v2152 = vpack.c.b16 %v1960, %v1944
    %v2153 = vpack.c.b16 %v1961, %v1945
    %v2154 = vpack.c.b16 %v1962, %v1946
    %v2155 = vpack.c.b16 %v1963, %v1947
    %v2156 = vpack.c.b16 %v1964, %v1948
    %v2157 = vpack.c.b16 %v1965, %v1949
    %v2158 = vpack.c.b16 %v1966, %v1950
    %v2159 = vpack.c.b16 %v1967, %v1951
    %v2160 = vpack.c.b16 %v1968, %v1952
    %v2161 = vpack.c.b16 %v1969, %v1953
    %v2162 = vpack.c.b16 %v1970, %v1954
    %v2163 = vpack.c.b16 %v1971, %v1955
    %v2164 = vpack.c.b16 %v1972, %v1956
    %v2165 = vpack.c.b16 %v1973, %v1957
    %v2166 = vpack.c.b16 %v1990, %v1974
    %v2167 = vpack.c.b16 %v1991, %v1975
    %v2168 = vpack.c.b16 %v1992, %v1976
    %v2169 = vpack.c.b16 %v1993, %v1977
    %v2170 = vpack.c.b16 %v1994, %v1978
    %v2171 = vpack.c.b16 %v1995, %v1979
    %v2172 = vpack.c.b16 %v1996, %v1980
    %v2173 = vpack.c.b16 %v1997, %v1981
    %v2174 = vpack.c.b16 %v1998, %v1982
    %v2175 = vpack.c.b16 %v1999, %v1983
    %v2176 = vpack.c.b16 %v2000, %v1984
    %v2177 = vpack.c.b16 %v2001, %v1985
    %v2178 = vpack.c.b16 %v2002, %v1986
    %v2179 = vpack.c.b16 %v2003, %v1987
    %v2180 = vpack.c.b16 %v2004, %v1988
    %v2181 = vpack.c.b16 %v2005, %v1989
    %v2182 = vpack.c.b16 %v2022, %v2006
    %v2183 = vpack.c.b16 %v2023, %v2007
    %v2184 = vpack.c.b16 %v2024, %v2008
    %v2185 = vpack.c.b16 %v2025, %v2009
    %v2186 = vpack.c.b16 %v2026, %v2010
    %v2187 = vpack.c.b16 %v2027, %v2011
    %v2188 = vpack.c.b16 %v2028, %v2012
    %v2189 = vpack.c.b16 %v2029, %v2013
    %v2190 = vpack.c.b16 %v2030, %v2014
    %v2191 = vpack.c.b16 %v2031, %v2015
    %v2192 = vpack.c.b16 %v2032, %v2016
    %v2193 = vpack.c.b16 %v2033, %v2017
    %v2194 = vpack.c.b16 %v2034, %v2018
    %v2195 = vpack.c.b16 %v2035, %v2019
    %v2196 = vpack.c.b16 %v2036, %v2020
    %v2197 = vpack.c.b16 %v2037, %v2021
    %v2198 = vpack.c.b16 %v2054, %v2038
    %v2199 = vpack.c.b16 %v2055, %v2039
    %v2200 = vpack.c.b16 %v2056, %v2040
    %v2201 = vpack.c.b16 %v2057, %v2041
    %v2202 = vpack.c.b16 %v2058, %v2042
    %v2203 = vpack.c.b16 %v2059, %v2043
    %v2204 = vpack.c.b16 %v2060, %v2044
    %v2205 = vpack.c.b16 %v2061, %v2045
    %v2206 = vpack.c.b16 %v2062, %v2046
    %v2207 = vpack.c.b16 %v2063, %v2047
    %v2208 = vpack.c.b16 %v2064, %v2048
    %v2209 = vpack.c.b16 %v2065, %v2049
    %v2210 = vpack.c.b16 %v2066, %v2050
    %v2211 = vpack.c.b16 %v2067, %v2051
    %v2212 = vpack.c.b16 %v2068, %v2052
    %v2213 = vpack.c.b16 %v2069, %v2053
    %v2214 = vpack.c.b16 %v2086, %v2070
    %v2215 = vpack.c.b16 %v2087, %v2071
    %v2216 = vpack.c.b16 %v2088, %v2072
    %v2217 = vpack.c.b16 %v2089, %v2073
    %v2218 = vpack.c.b16 %v2090, %v2074
    %v2219 = vpack.c.b16 %v2091, %v2075
    %v2220 = vpack.c.b16 %v2092, %v2076
    %v2221 = vpack.c.b16 %v2093, %v2077
    %v2222 = vpack.c.b16 %v2094, %v2078
    %v2223 = vpack.c.b16 %v2095, %v2079
    %v2224 = vpack.c.b16 %v2096, %v2080
    %v2225 = vpack.c.b16 %v2097, %v2081
    %v2226 = vpack.c.b16 %v2098, %v2082
    %v2227 = vpack.c.b16 %v2099, %v2083
    %v2228 = vpack.c.b16 %v2100, %v2084
    %v2229 = vpack.c.b16 %v2101, %v2085
    %2358 = vmatpush.bf16.msra.mxu0 %v2214
    %2359 = vmatpush.bf16.msra.mxu0 %v2198
    %2360 = vmatpush.bf16.msra.mxu0 %v2182
    %2361 = vmatpush.bf16.msra.mxu0 %v2166
    %2362 = vmatpush.bf16.msra.mxu0 %v2150
    %2363 = vmatpush.bf16.msra.mxu0 %v2134
    %2364 = vmatpush.bf16.msra.mxu0 %v2118
    %2365 = vmatpush.bf16.msra.mxu0 %v2102
    %2366 = vmatmul.bf16.gmra.mxu0 %v1553
    %v2367 = vpop.f32.mrf.mxu0
    %v2368 = vadd.f32 %v1686, %v2367
    %v2369 = vpop.f32.mrf.mxu0
    %2370 = vdwg.mxu0
    %2371 = vmatpush.bf16.msra.mxu0 %v2215
    %2372 = vmatpush.bf16.msra.mxu0 %v2199
    %2373 = vmatpush.bf16.msra.mxu0 %v2183
    %2374 = vmatpush.bf16.msra.mxu0 %v2167
    %2375 = vmatpush.bf16.msra.mxu0 %v2151
    %2376 = vmatpush.bf16.msra.mxu0 %v2135
    %2377 = vmatpush.bf16.msra.mxu0 %v2119
    %2378 = vmatpush.bf16.msra.mxu0 %v2103
    %2379 = vmatmul.bf16.gmra.mxu0 %v1553
    %v2380 = vpop.f32.mrf.mxu0
    %v2381 = vadd.f32 %v1687, %v2380
    %v2382 = vpop.f32.mrf.mxu0
    %2383 = vdwg.mxu0
    %2384 = vmatpush.bf16.msra.mxu0 %v2216
    %2385 = vmatpush.bf16.msra.mxu0 %v2200
    %2386 = vmatpush.bf16.msra.mxu0 %v2184
    %2387 = vmatpush.bf16.msra.mxu0 %v2168
    %2388 = vmatpush.bf16.msra.mxu0 %v2152
    %2389 = vmatpush.bf16.msra.mxu0 %v2136
    %2390 = vmatpush.bf16.msra.mxu0 %v2120
    %2391 = vmatpush.bf16.msra.mxu0 %v2104
    %2392 = vmatmul.bf16.gmra.mxu0 %v1553
    %v2393 = vpop.f32.mrf.mxu0
    %v2394 = vadd.f32 %v1688, %v2393
    %v2395 = vpop.f32.mrf.mxu0
    %2396 = vdwg.mxu0
    %2397 = vmatpush.bf16.msra.mxu0 %v2217
    %2398 = vmatpush.bf16.msra.mxu0 %v2201
    %2399 = vmatpush.bf16.msra.mxu0 %v2185
    %2400 = vmatpush.bf16.msra.mxu0 %v2169
    %2401 = vmatpush.bf16.msra.mxu0 %v2153
    %2402 = vmatpush.bf16.msra.mxu0 %v2137
    %2403 = vmatpush.bf16.msra.mxu0 %v2121
    %2404 = vmatpush.bf16.msra.mxu0 %v2105
    %2405 = vmatmul.bf16.gmra.mxu0 %v1553
    %v2406 = vpop.f32.mrf.mxu0
    %v2407 = vadd.f32 %v1689, %v2406
    %v2408 = vpop.f32.mrf.mxu0
    %2409 = vdwg.mxu0
    %2410 = vmatpush.bf16.msra.mxu0 %v2218
    %2411 = vmatpush.bf16.msra.mxu0 %v2202
    %2412 = vmatpush.bf16.msra.mxu0 %v2186
    %2413 = vmatpush.bf16.msra.mxu0 %v2170
    %2414 = vmatpush.bf16.msra.mxu0 %v2154
    %2415 = vmatpush.bf16.msra.mxu0 %v2138
    %2416 = vmatpush.bf16.msra.mxu0 %v2122
    %2417 = vmatpush.bf16.msra.mxu0 %v2106
    %2418 = vmatmul.bf16.gmra.mxu0 %v1553
    %v2419 = vpop.f32.mrf.mxu0
    %v2420 = vadd.f32 %v1690, %v2419
    %v2421 = vpop.f32.mrf.mxu0
    %2422 = vdwg.mxu0
    %2423 = vmatpush.bf16.msra.mxu0 %v2219
    %2424 = vmatpush.bf16.msra.mxu0 %v2203
    %2425 = vmatpush.bf16.msra.mxu0 %v2187
    %2426 = vmatpush.bf16.msra.mxu0 %v2171
    %2427 = vmatpush.bf16.msra.mxu0 %v2155
    %2428 = vmatpush.bf16.msra.mxu0 %v2139
    %2429 = vmatpush.bf16.msra.mxu0 %v2123
    %2430 = vmatpush.bf16.msra.mxu0 %v2107
    %2431 = vmatmul.bf16.gmra.mxu0 %v1553
    %v2432 = vpop.f32.mrf.mxu0
    %v2433 = vadd.f32 %v1691, %v2432
    %v2434 = vpop.f32.mrf.mxu0
    %2435 = vdwg.mxu0
    %2436 = vmatpush.bf16.msra.mxu0 %v2220
    %2437 = vmatpush.bf16.msra.mxu0 %v2204
    %2438 = vmatpush.bf16.msra.mxu0 %v2188
    %2439 = vmatpush.bf16.msra.mxu0 %v2172
    %2440 = vmatpush.bf16.msra.mxu0 %v2156
    %2441 = vmatpush.bf16.msra.mxu0 %v2140
    %2442 = vmatpush.bf16.msra.mxu0 %v2124
    %2443 = vmatpush.bf16.msra.mxu0 %v2108
    %2444 = vmatmul.bf16.gmra.mxu0 %v1553
    %v2445 = vpop.f32.mrf.mxu0
    %v2446 = vadd.f32 %v1692, %v2445
    %v2447 = vpop.f32.mrf.mxu0
    %2448 = vdwg.mxu0
    %2449 = vmatpush.bf16.msra.mxu0 %v2221
    %2450 = vmatpush.bf16.msra.mxu0 %v2205
    %2451 = vmatpush.bf16.msra.mxu0 %v2189
    %2452 = vmatpush.bf16.msra.mxu0 %v2173
    %2453 = vmatpush.bf16.msra.mxu0 %v2157
    %2454 = vmatpush.bf16.msra.mxu0 %v2141
    %2455 = vmatpush.bf16.msra.mxu0 %v2125
    %2456 = vmatpush.bf16.msra.mxu0 %v2109
    %2457 = vmatmul.bf16.gmra.mxu0 %v1553
    %v2458 = vpop.f32.mrf.mxu0
    %v2459 = vadd.f32 %v1693, %v2458
    %v2460 = vpop.f32.mrf.mxu0
    %2461 = vdwg.mxu0
    %2462 = vmatpush.bf16.msra.mxu0 %v2222
    %2463 = vmatpush.bf16.msra.mxu0 %v2206
    %2464 = vmatpush.bf16.msra.mxu0 %v2190
    %2465 = vmatpush.bf16.msra.mxu0 %v2174
    %2466 = vmatpush.bf16.msra.mxu0 %v2158
    %2467 = vmatpush.bf16.msra.mxu0 %v2142
    %2468 = vmatpush.bf16.msra.mxu0 %v2126
    %2469 = vmatpush.bf16.msra.mxu0 %v2110
    %2470 = vmatmul.bf16.gmra.mxu0 %v1553
    %v2471 = vpop.f32.mrf.mxu0
    %v2472 = vadd.f32 %v1694, %v2471
    %v2473 = vpop.f32.mrf.mxu0
    %2474 = vdwg.mxu0
    %2475 = vmatpush.bf16.msra.mxu0 %v2223
    %2476 = vmatpush.bf16.msra.mxu0 %v2207
    %2477 = vmatpush.bf16.msra.mxu0 %v2191
    %2478 = vmatpush.bf16.msra.mxu0 %v2175
    %2479 = vmatpush.bf16.msra.mxu0 %v2159
    %2480 = vmatpush.bf16.msra.mxu0 %v2143
    %2481 = vmatpush.bf16.msra.mxu0 %v2127
    %2482 = vmatpush.bf16.msra.mxu0 %v2111
    %2483 = vmatmul.bf16.gmra.mxu0 %v1553
    %v2484 = vpop.f32.mrf.mxu0
    %v2485 = vadd.f32 %v1695, %v2484
    %v2486 = vpop.f32.mrf.mxu0
    %2487 = vdwg.mxu0
    %2488 = vmatpush.bf16.msra.mxu0 %v2224
    %2489 = vmatpush.bf16.msra.mxu0 %v2208
    %2490 = vmatpush.bf16.msra.mxu0 %v2192
    %2491 = vmatpush.bf16.msra.mxu0 %v2176
    %2492 = vmatpush.bf16.msra.mxu0 %v2160
    %2493 = vmatpush.bf16.msra.mxu0 %v2144
    %2494 = vmatpush.bf16.msra.mxu0 %v2128
    %2495 = vmatpush.bf16.msra.mxu0 %v2112
    %2496 = vmatmul.bf16.gmra.mxu0 %v1553
    %v2497 = vpop.f32.mrf.mxu0
    %v2498 = vadd.f32 %v1696, %v2497
    %v2499 = vpop.f32.mrf.mxu0
    %2500 = vdwg.mxu0
    %2501 = vmatpush.bf16.msra.mxu0 %v2225
    %2502 = vmatpush.bf16.msra.mxu0 %v2209
    %2503 = vmatpush.bf16.msra.mxu0 %v2193
    %2504 = vmatpush.bf16.msra.mxu0 %v2177
    %2505 = vmatpush.bf16.msra.mxu0 %v2161
    %2506 = vmatpush.bf16.msra.mxu0 %v2145
    %2507 = vmatpush.bf16.msra.mxu0 %v2129
    %2508 = vmatpush.bf16.msra.mxu0 %v2113
    %2509 = vmatmul.bf16.gmra.mxu0 %v1553
    %v2510 = vpop.f32.mrf.mxu0
    %v2511 = vadd.f32 %v1697, %v2510
    %v2512 = vpop.f32.mrf.mxu0
    %2513 = vdwg.mxu0
    %2514 = vmatpush.bf16.msra.mxu0 %v2226
    %2515 = vmatpush.bf16.msra.mxu0 %v2210
    %2516 = vmatpush.bf16.msra.mxu0 %v2194
    %2517 = vmatpush.bf16.msra.mxu0 %v2178
    %2518 = vmatpush.bf16.msra.mxu0 %v2162
    %2519 = vmatpush.bf16.msra.mxu0 %v2146
    %2520 = vmatpush.bf16.msra.mxu0 %v2130
    %2521 = vmatpush.bf16.msra.mxu0 %v2114
    %2522 = vmatmul.bf16.gmra.mxu0 %v1553
    %v2523 = vpop.f32.mrf.mxu0
    %v2524 = vadd.f32 %v1698, %v2523
    %v2525 = vpop.f32.mrf.mxu0
    %2526 = vdwg.mxu0
    %2527 = vmatpush.bf16.msra.mxu0 %v2227
    %2528 = vmatpush.bf16.msra.mxu0 %v2211
    %2529 = vmatpush.bf16.msra.mxu0 %v2195
    %2530 = vmatpush.bf16.msra.mxu0 %v2179
    %2531 = vmatpush.bf16.msra.mxu0 %v2163
    %2532 = vmatpush.bf16.msra.mxu0 %v2147
    %2533 = vmatpush.bf16.msra.mxu0 %v2131
    %2534 = vmatpush.bf16.msra.mxu0 %v2115
    %2535 = vmatmul.bf16.gmra.mxu0 %v1553
    %v2536 = vpop.f32.mrf.mxu0
    %v2537 = vadd.f32 %v1699, %v2536
    %v2538 = vpop.f32.mrf.mxu0
    %2539 = vdwg.mxu0
    %2540 = vmatpush.bf16.msra.mxu0 %v2228
    %2541 = vmatpush.bf16.msra.mxu0 %v2212
    %2542 = vmatpush.bf16.msra.mxu0 %v2196
    %2543 = vmatpush.bf16.msra.mxu0 %v2180
    %2544 = vmatpush.bf16.msra.mxu0 %v2164
    %2545 = vmatpush.bf16.msra.mxu0 %v2148
    %2546 = vmatpush.bf16.msra.mxu0 %v2132
    %2547 = vmatpush.bf16.msra.mxu0 %v2116
    %2548 = vmatmul.bf16.gmra.mxu0 %v1553
    %v2549 = vpop.f32.mrf.mxu0
    %v2550 = vadd.f32 %v1700, %v2549
    %v2551 = vpop.f32.mrf.mxu0
    %2552 = vdwg.mxu0
    %2553 = vmatpush.bf16.msra.mxu0 %v2229
    %2554 = vmatpush.bf16.msra.mxu0 %v2213
    %2555 = vmatpush.bf16.msra.mxu0 %v2197
    %2556 = vmatpush.bf16.msra.mxu0 %v2181
    %2557 = vmatpush.bf16.msra.mxu0 %v2165
    %2558 = vmatpush.bf16.msra.mxu0 %v2149
    %2559 = vmatpush.bf16.msra.mxu0 %v2133
    %2560 = vmatpush.bf16.msra.mxu0 %v2117
    %2561 = vmatmul.bf16.gmra.mxu0 %v1553
    %v2562 = vpop.f32.mrf.mxu0
    %v2563 = vadd.f32 %v1701, %v2562
    %v2564 = vpop.f32.mrf.mxu0
    %2565 = vdwg.mxu0
    %v2566 = vmax.f32 %v2368, 0.0
    %v2567 = vmax.f32 %v2381, 0.0
    %v2568 = vmax.f32 %v2394, 0.0
    %v2569 = vmax.f32 %v2407, 0.0
    %v2570 = vmax.f32 %v2420, 0.0
    %v2571 = vmax.f32 %v2433, 0.0
    %v2572 = vmax.f32 %v2446, 0.0
    %v2573 = vmax.f32 %v2459, 0.0
    %v2574 = vmax.f32 %v2472, 0.0
    %v2575 = vmax.f32 %v2485, 0.0
    %v2576 = vmax.f32 %v2498, 0.0
    %v2577 = vmax.f32 %v2511, 0.0
    %v2578 = vmax.f32 %v2524, 0.0
    %v2579 = vmax.f32 %v2537, 0.0
    %v2580 = vmax.f32 %v2550, 0.0
    %v2581 = vmax.f32 %v2563, 0.0
    %v2582 = vpack.c.bf16 %v2566, %v2566
    %v2583 = vpack.c.bf16 %v2567, %v2567
    %v2584 = vpack.c.bf16 %v2568, %v2568
    %v2585 = vpack.c.bf16 %v2569, %v2569
    %v2586 = vpack.c.bf16 %v2570, %v2570
    %v2587 = vpack.c.bf16 %v2571, %v2571
    %v2588 = vpack.c.bf16 %v2572, %v2572
    %v2589 = vpack.c.bf16 %v2573, %v2573
    %v2590 = vpack.c.bf16 %v2574, %v2574
    %v2591 = vpack.c.bf16 %v2575, %v2575
    %v2592 = vpack.c.bf16 %v2576, %v2576
    %v2593 = vpack.c.bf16 %v2577, %v2577
    %v2594 = vpack.c.bf16 %v2578, %v2578
    %v2595 = vpack.c.bf16 %v2579, %v2579
    %v2596 = vpack.c.bf16 %v2580, %v2580
    %v2597 = vpack.c.bf16 %v2581, %v2581
    %v2598 = vld [vmem:[#allocation29] sm:$0xf]
    %v2599 = vld [vmem:[#allocation29 + $0x4] sm:$0xf]
    %v2600 = vld [vmem:[#allocation29 + $0x8] sm:$0xf]
    %v2601 = vld [vmem:[#allocation29 + $0xc] sm:$0xf]
    %v2602 = vld [vmem:[#allocation29 + $0x10] sm:$0xf]
    %v2603 = vld [vmem:[#allocation29 + $0x14] sm:$0xf]
    %v2604 = vld [vmem:[#allocation29 + $0x18] sm:$0xf]
    %v2605 = vld [vmem:[#allocation29 + $0x1c] sm:$0xf]
    %v2606 = vld [vmem:[#allocation29 + $0x20] sm:$0xf]
    %v2607 = vld [vmem:[#allocation29 + $0x24] sm:$0xf]
    %v2608 = vld [vmem:[#allocation29 + $0x28] sm:$0xf]
    %v2609 = vld [vmem:[#allocation29 + $0x2c] sm:$0xf]
    %v2610 = vld [vmem:[#allocation29 + $0x30] sm:$0xf]
    %v2611 = vld [vmem:[#allocation29 + $0x34] sm:$0xf]
    %v2612 = vld [vmem:[#allocation29 + $0x38] sm:$0xf]
    %v2613 = vld [vmem:[#allocation29 + $0x3c] sm:$0xf]
    %v2614 = vld [vmem:[#allocation29 + $0x40] sm:$0xf]
    %v2615 = vld [vmem:[#allocation29 + $0x44] sm:$0xf]
    %v2616 = vld [vmem:[#allocation29 + $0x48] sm:$0xf]
    %v2617 = vld [vmem:[#allocation29 + $0x4c] sm:$0xf]
    %v2618 = vld [vmem:[#allocation29 + $0x50] sm:$0xf]
    %v2619 = vld [vmem:[#allocation29 + $0x54] sm:$0xf]
    %v2620 = vld [vmem:[#allocation29 + $0x58] sm:$0xf]
    %v2621 = vld [vmem:[#allocation29 + $0x5c] sm:$0xf]
    %v2622 = vld [vmem:[#allocation29 + $0x60] sm:$0xf]
    %v2623 = vld [vmem:[#allocation29 + $0x64] sm:$0xf]
    %v2624 = vld [vmem:[#allocation29 + $0x68] sm:$0xf]
    %v2625 = vld [vmem:[#allocation29 + $0x6c] sm:$0xf]
    %v2626 = vld [vmem:[#allocation29 + $0x70] sm:$0xf]
    %v2627 = vld [vmem:[#allocation29 + $0x74] sm:$0xf]
    %v2628 = vld [vmem:[#allocation29 + $0x78] sm:$0xf]
    %v2629 = vld [vmem:[#allocation29 + $0x7c] sm:$0xf]
    %v2630 = vld [vmem:[#allocation29 + $0x80] sm:$0xf]
    %v2631 = vld [vmem:[#allocation29 + $0x84] sm:$0xf]
    %v2632 = vld [vmem:[#allocation29 + $0x88] sm:$0xf]
    %v2633 = vld [vmem:[#allocation29 + $0x8c] sm:$0xf]
    %v2634 = vld [vmem:[#allocation29 + $0x90] sm:$0xf]
    %v2635 = vld [vmem:[#allocation29 + $0x94] sm:$0xf]
    %v2636 = vld [vmem:[#allocation29 + $0x98] sm:$0xf]
    %v2637 = vld [vmem:[#allocation29 + $0x9c] sm:$0xf]
    %v2638 = vld [vmem:[#allocation29 + $0xa0] sm:$0xf]
    %v2639 = vld [vmem:[#allocation29 + $0xa4] sm:$0xf]
    %v2640 = vld [vmem:[#allocation29 + $0xa8] sm:$0xf]
    %v2641 = vld [vmem:[#allocation29 + $0xac] sm:$0xf]
    %v2642 = vld [vmem:[#allocation29 + $0xb0] sm:$0xf]
    %v2643 = vld [vmem:[#allocation29 + $0xb4] sm:$0xf]
    %v2644 = vld [vmem:[#allocation29 + $0xb8] sm:$0xf]
    %v2645 = vld [vmem:[#allocation29 + $0xbc] sm:$0xf]
    %v2646 = vld [vmem:[#allocation29 + $0xc0] sm:$0xf]
    %v2647 = vld [vmem:[#allocation29 + $0xc4] sm:$0xf]
    %v2648 = vld [vmem:[#allocation29 + $0xc8] sm:$0xf]
    %v2649 = vld [vmem:[#allocation29 + $0xcc] sm:$0xf]
    %v2650 = vld [vmem:[#allocation29 + $0xd0] sm:$0xf]
    %v2651 = vld [vmem:[#allocation29 + $0xd4] sm:$0xf]
    %v2652 = vld [vmem:[#allocation29 + $0xd8] sm:$0xf]
    %v2653 = vld [vmem:[#allocation29 + $0xdc] sm:$0xf]
    %v2654 = vld [vmem:[#allocation29 + $0xe0] sm:$0xf]
    %v2655 = vld [vmem:[#allocation29 + $0xe4] sm:$0xf]
    %v2656 = vld [vmem:[#allocation29 + $0xe8] sm:$0xf]
    %v2657 = vld [vmem:[#allocation29 + $0xec] sm:$0xf]
    %v2658 = vld [vmem:[#allocation29 + $0xf0] sm:$0xf]
    %v2659 = vld [vmem:[#allocation29 + $0xf4] sm:$0xf]
    %v2660 = vld [vmem:[#allocation29 + $0xf8] sm:$0xf]
    %v2661 = vld [vmem:[#allocation29 + $0xfc] sm:$0xf]
    %v2662 = vld [vmem:[#allocation29 + $0x100] sm:$0xf]
    %v2663 = vld [vmem:[#allocation29 + $0x104] sm:$0xf]
    %v2664 = vld [vmem:[#allocation29 + $0x108] sm:$0xf]
    %v2665 = vld [vmem:[#allocation29 + $0x10c] sm:$0xf]
    %v2666 = vld [vmem:[#allocation29 + $0x110] sm:$0xf]
    %v2667 = vld [vmem:[#allocation29 + $0x114] sm:$0xf]
    %v2668 = vld [vmem:[#allocation29 + $0x118] sm:$0xf]
    %v2669 = vld [vmem:[#allocation29 + $0x11c] sm:$0xf]
    %v2670 = vld [vmem:[#allocation29 + $0x120] sm:$0xf]
    %v2671 = vld [vmem:[#allocation29 + $0x124] sm:$0xf]
    %v2672 = vld [vmem:[#allocation29 + $0x128] sm:$0xf]
    %v2673 = vld [vmem:[#allocation29 + $0x12c] sm:$0xf]
    %v2674 = vld [vmem:[#allocation29 + $0x130] sm:$0xf]
    %v2675 = vld [vmem:[#allocation29 + $0x134] sm:$0xf]
    %v2676 = vld [vmem:[#allocation29 + $0x138] sm:$0xf]
    %v2677 = vld [vmem:[#allocation29 + $0x13c] sm:$0xf]
    %v2678 = vld [vmem:[#allocation29 + $0x140] sm:$0xf]
    %v2679 = vld [vmem:[#allocation29 + $0x144] sm:$0xf]
    %v2680 = vld [vmem:[#allocation29 + $0x148] sm:$0xf]
    %v2681 = vld [vmem:[#allocation29 + $0x14c] sm:$0xf]
    %v2682 = vld [vmem:[#allocation29 + $0x150] sm:$0xf]
    %v2683 = vld [vmem:[#allocation29 + $0x154] sm:$0xf]
    %v2684 = vld [vmem:[#allocation29 + $0x158] sm:$0xf]
    %v2685 = vld [vmem:[#allocation29 + $0x15c] sm:$0xf]
    %v2686 = vld [vmem:[#allocation29 + $0x160] sm:$0xf]
    %v2687 = vld [vmem:[#allocation29 + $0x164] sm:$0xf]
    %v2688 = vld [vmem:[#allocation29 + $0x168] sm:$0xf]
    %v2689 = vld [vmem:[#allocation29 + $0x16c] sm:$0xf]
    %v2690 = vld [vmem:[#allocation29 + $0x170] sm:$0xf]
    %v2691 = vld [vmem:[#allocation29 + $0x174] sm:$0xf]
    %v2692 = vld [vmem:[#allocation29 + $0x178] sm:$0xf]
    %v2693 = vld [vmem:[#allocation29 + $0x17c] sm:$0xf]
    %v2694 = vld [vmem:[#allocation29 + $0x180] sm:$0xf]
    %v2695 = vld [vmem:[#allocation29 + $0x184] sm:$0xf]
    %v2696 = vld [vmem:[#allocation29 + $0x188] sm:$0xf]
    %v2697 = vld [vmem:[#allocation29 + $0x18c] sm:$0xf]
    %v2698 = vld [vmem:[#allocation29 + $0x190] sm:$0xf]
    %v2699 = vld [vmem:[#allocation29 + $0x194] sm:$0xf]
    %v2700 = vld [vmem:[#allocation29 + $0x198] sm:$0xf]
    %v2701 = vld [vmem:[#allocation29 + $0x19c] sm:$0xf]
    %v2702 = vld [vmem:[#allocation29 + $0x1a0] sm:$0xf]
    %v2703 = vld [vmem:[#allocation29 + $0x1a4] sm:$0xf]
    %v2704 = vld [vmem:[#allocation29 + $0x1a8] sm:$0xf]
    %v2705 = vld [vmem:[#allocation29 + $0x1ac] sm:$0xf]
    %v2706 = vld [vmem:[#allocation29 + $0x1b0] sm:$0xf]
    %v2707 = vld [vmem:[#allocation29 + $0x1b4] sm:$0xf]
    %v2708 = vld [vmem:[#allocation29 + $0x1b8] sm:$0xf]
    %v2709 = vld [vmem:[#allocation29 + $0x1bc] sm:$0xf]
    %v2710 = vld [vmem:[#allocation29 + $0x1c0] sm:$0xf]
    %v2711 = vld [vmem:[#allocation29 + $0x1c4] sm:$0xf]
    %v2712 = vld [vmem:[#allocation29 + $0x1c8] sm:$0xf]
    %v2713 = vld [vmem:[#allocation29 + $0x1cc] sm:$0xf]
    %v2714 = vld [vmem:[#allocation29 + $0x1d0] sm:$0xf]
    %v2715 = vld [vmem:[#allocation29 + $0x1d4] sm:$0xf]
    %v2716 = vld [vmem:[#allocation29 + $0x1d8] sm:$0xf]
    %v2717 = vld [vmem:[#allocation29 + $0x1dc] sm:$0xf]
    %v2718 = vld [vmem:[#allocation29 + $0x1e0] sm:$0xf]
    %v2719 = vld [vmem:[#allocation29 + $0x1e4] sm:$0xf]
    %v2720 = vld [vmem:[#allocation29 + $0x1e8] sm:$0xf]
    %v2721 = vld [vmem:[#allocation29 + $0x1ec] sm:$0xf]
    %v2722 = vld [vmem:[#allocation29 + $0x1f0] sm:$0xf]
    %v2723 = vld [vmem:[#allocation29 + $0x1f4] sm:$0xf]
    %v2724 = vld [vmem:[#allocation29 + $0x1f8] sm:$0xf]
    %v2725 = vld [vmem:[#allocation29 + $0x1fc] sm:$0xf]
    %v2726 = vld [vmem:[#allocation29 + $0x200] sm:$0xf]
    %v2727 = vld [vmem:[#allocation29 + $0x204] sm:$0xf]
    %v2728 = vld [vmem:[#allocation29 + $0x208] sm:$0xf]
    %v2729 = vld [vmem:[#allocation29 + $0x20c] sm:$0xf]
    %v2730 = vld [vmem:[#allocation29 + $0x210] sm:$0xf]
    %v2731 = vld [vmem:[#allocation29 + $0x214] sm:$0xf]
    %v2732 = vld [vmem:[#allocation29 + $0x218] sm:$0xf]
    %v2733 = vld [vmem:[#allocation29 + $0x21c] sm:$0xf]
    %v2734 = vld [vmem:[#allocation29 + $0x220] sm:$0xf]
    %v2735 = vld [vmem:[#allocation29 + $0x224] sm:$0xf]
    %v2736 = vld [vmem:[#allocation29 + $0x228] sm:$0xf]
    %v2737 = vld [vmem:[#allocation29 + $0x22c] sm:$0xf]
    %v2738 = vld [vmem:[#allocation29 + $0x230] sm:$0xf]
    %v2739 = vld [vmem:[#allocation29 + $0x234] sm:$0xf]
    %v2740 = vld [vmem:[#allocation29 + $0x238] sm:$0xf]
    %v2741 = vld [vmem:[#allocation29 + $0x23c] sm:$0xf]
    %v2742 = vld [vmem:[#allocation29 + $0x240] sm:$0xf]
    %v2743 = vld [vmem:[#allocation29 + $0x244] sm:$0xf]
    %v2744 = vld [vmem:[#allocation29 + $0x248] sm:$0xf]
    %v2745 = vld [vmem:[#allocation29 + $0x24c] sm:$0xf]
    %v2746 = vld [vmem:[#allocation29 + $0x250] sm:$0xf]
    %v2747 = vld [vmem:[#allocation29 + $0x254] sm:$0xf]
    %v2748 = vld [vmem:[#allocation29 + $0x258] sm:$0xf]
    %v2749 = vld [vmem:[#allocation29 + $0x25c] sm:$0xf]
    %v2750 = vld [vmem:[#allocation29 + $0x260] sm:$0xf]
    %v2751 = vld [vmem:[#allocation29 + $0x264] sm:$0xf]
    %v2752 = vld [vmem:[#allocation29 + $0x268] sm:$0xf]
    %v2753 = vld [vmem:[#allocation29 + $0x26c] sm:$0xf]
    %v2754 = vld [vmem:[#allocation29 + $0x270] sm:$0xf]
    %v2755 = vld [vmem:[#allocation29 + $0x274] sm:$0xf]
    %v2756 = vld [vmem:[#allocation29 + $0x278] sm:$0xf]
    %v2757 = vld [vmem:[#allocation29 + $0x27c] sm:$0xf]
    %v2758 = vld [vmem:[#allocation29 + $0x280] sm:$0xf]
    %v2759 = vld [vmem:[#allocation29 + $0x284] sm:$0xf]
    %v2760 = vld [vmem:[#allocation29 + $0x288] sm:$0xf]
    %v2761 = vld [vmem:[#allocation29 + $0x28c] sm:$0xf]
    %v2762 = vld [vmem:[#allocation29 + $0x290] sm:$0xf]
    %v2763 = vld [vmem:[#allocation29 + $0x294] sm:$0xf]
    %v2764 = vld [vmem:[#allocation29 + $0x298] sm:$0xf]
    %v2765 = vld [vmem:[#allocation29 + $0x29c] sm:$0xf]
    %v2766 = vld [vmem:[#allocation29 + $0x2a0] sm:$0xf]
    %v2767 = vld [vmem:[#allocation29 + $0x2a4] sm:$0xf]
    %v2768 = vld [vmem:[#allocation29 + $0x2a8] sm:$0xf]
    %v2769 = vld [vmem:[#allocation29 + $0x2ac] sm:$0xf]
    %v2770 = vld [vmem:[#allocation29 + $0x2b0] sm:$0xf]
    %v2771 = vld [vmem:[#allocation29 + $0x2b4] sm:$0xf]
    %v2772 = vld [vmem:[#allocation29 + $0x2b8] sm:$0xf]
    %v2773 = vld [vmem:[#allocation29 + $0x2bc] sm:$0xf]
    %v2774 = vld [vmem:[#allocation29 + $0x2c0] sm:$0xf]
    %v2775 = vld [vmem:[#allocation29 + $0x2c4] sm:$0xf]
    %v2776 = vld [vmem:[#allocation29 + $0x2c8] sm:$0xf]
    %v2777 = vld [vmem:[#allocation29 + $0x2cc] sm:$0xf]
    %v2778 = vld [vmem:[#allocation29 + $0x2d0] sm:$0xf]
    %v2779 = vld [vmem:[#allocation29 + $0x2d4] sm:$0xf]
    %v2780 = vld [vmem:[#allocation29 + $0x2d8] sm:$0xf]
    %v2781 = vld [vmem:[#allocation29 + $0x2dc] sm:$0xf]
    %v2782 = vld [vmem:[#allocation29 + $0x2e0] sm:$0xf]
    %v2783 = vld [vmem:[#allocation29 + $0x2e4] sm:$0xf]
    %v2784 = vld [vmem:[#allocation29 + $0x2e8] sm:$0xf]
    %v2785 = vld [vmem:[#allocation29 + $0x2ec] sm:$0xf]
    %v2786 = vld [vmem:[#allocation29 + $0x2f0] sm:$0xf]
    %v2787 = vld [vmem:[#allocation29 + $0x2f4] sm:$0xf]
    %v2788 = vld [vmem:[#allocation29 + $0x2f8] sm:$0xf]
    %v2789 = vld [vmem:[#allocation29 + $0x2fc] sm:$0xf]
    %v2790 = vld [vmem:[#allocation29 + $0x300] sm:$0xf]
    %v2791 = vld [vmem:[#allocation29 + $0x304] sm:$0xf]
    %v2792 = vld [vmem:[#allocation29 + $0x308] sm:$0xf]
    %v2793 = vld [vmem:[#allocation29 + $0x30c] sm:$0xf]
    %v2794 = vld [vmem:[#allocation29 + $0x310] sm:$0xf]
    %v2795 = vld [vmem:[#allocation29 + $0x314] sm:$0xf]
    %v2796 = vld [vmem:[#allocation29 + $0x318] sm:$0xf]
    %v2797 = vld [vmem:[#allocation29 + $0x31c] sm:$0xf]
    %v2798 = vld [vmem:[#allocation29 + $0x320] sm:$0xf]
    %v2799 = vld [vmem:[#allocation29 + $0x324] sm:$0xf]
    %v2800 = vld [vmem:[#allocation29 + $0x328] sm:$0xf]
    %v2801 = vld [vmem:[#allocation29 + $0x32c] sm:$0xf]
    %v2802 = vld [vmem:[#allocation29 + $0x330] sm:$0xf]
    %v2803 = vld [vmem:[#allocation29 + $0x334] sm:$0xf]
    %v2804 = vld [vmem:[#allocation29 + $0x338] sm:$0xf]
    %v2805 = vld [vmem:[#allocation29 + $0x33c] sm:$0xf]
    %v2806 = vld [vmem:[#allocation29 + $0x340] sm:$0xf]
    %v2807 = vld [vmem:[#allocation29 + $0x344] sm:$0xf]
    %v2808 = vld [vmem:[#allocation29 + $0x348] sm:$0xf]
    %v2809 = vld [vmem:[#allocation29 + $0x34c] sm:$0xf]
    %v2810 = vld [vmem:[#allocation29 + $0x350] sm:$0xf]
    %v2811 = vld [vmem:[#allocation29 + $0x354] sm:$0xf]
    %v2812 = vld [vmem:[#allocation29 + $0x358] sm:$0xf]
    %v2813 = vld [vmem:[#allocation29 + $0x35c] sm:$0xf]
    %v2814 = vld [vmem:[#allocation29 + $0x360] sm:$0xf]
    %v2815 = vld [vmem:[#allocation29 + $0x364] sm:$0xf]
    %v2816 = vld [vmem:[#allocation29 + $0x368] sm:$0xf]
    %v2817 = vld [vmem:[#allocation29 + $0x36c] sm:$0xf]
    %v2818 = vld [vmem:[#allocation29 + $0x370] sm:$0xf]
    %v2819 = vld [vmem:[#allocation29 + $0x374] sm:$0xf]
    %v2820 = vld [vmem:[#allocation29 + $0x378] sm:$0xf]
    %v2821 = vld [vmem:[#allocation29 + $0x37c] sm:$0xf]
    %v2822 = vld [vmem:[#allocation29 + $0x380] sm:$0xf]
    %v2823 = vld [vmem:[#allocation29 + $0x384] sm:$0xf]
    %v2824 = vld [vmem:[#allocation29 + $0x388] sm:$0xf]
    %v2825 = vld [vmem:[#allocation29 + $0x38c] sm:$0xf]
    %v2826 = vld [vmem:[#allocation29 + $0x390] sm:$0xf]
    %v2827 = vld [vmem:[#allocation29 + $0x394] sm:$0xf]
    %v2828 = vld [vmem:[#allocation29 + $0x398] sm:$0xf]
    %v2829 = vld [vmem:[#allocation29 + $0x39c] sm:$0xf]
    %v2830 = vld [vmem:[#allocation29 + $0x3a0] sm:$0xf]
    %v2831 = vld [vmem:[#allocation29 + $0x3a4] sm:$0xf]
    %v2832 = vld [vmem:[#allocation29 + $0x3a8] sm:$0xf]
    %v2833 = vld [vmem:[#allocation29 + $0x3ac] sm:$0xf]
    %v2834 = vld [vmem:[#allocation29 + $0x3b0] sm:$0xf]
    %v2835 = vld [vmem:[#allocation29 + $0x3b4] sm:$0xf]
    %v2836 = vld [vmem:[#allocation29 + $0x3b8] sm:$0xf]
    %v2837 = vld [vmem:[#allocation29 + $0x3bc] sm:$0xf]
    %v2838 = vld [vmem:[#allocation29 + $0x3c0] sm:$0xf]
    %v2839 = vld [vmem:[#allocation29 + $0x3c4] sm:$0xf]
    %v2840 = vld [vmem:[#allocation29 + $0x3c8] sm:$0xf]
    %v2841 = vld [vmem:[#allocation29 + $0x3cc] sm:$0xf]
    %v2842 = vld [vmem:[#allocation29 + $0x3d0] sm:$0xf]
    %v2843 = vld [vmem:[#allocation29 + $0x3d4] sm:$0xf]
    %v2844 = vld [vmem:[#allocation29 + $0x3d8] sm:$0xf]
    %v2845 = vld [vmem:[#allocation29 + $0x3dc] sm:$0xf]
    %v2846 = vld [vmem:[#allocation29 + $0x3e0] sm:$0xf]
    %v2847 = vld [vmem:[#allocation29 + $0x3e4] sm:$0xf]
    %v2848 = vld [vmem:[#allocation29 + $0x3e8] sm:$0xf]
    %v2849 = vld [vmem:[#allocation29 + $0x3ec] sm:$0xf]
    %v2850 = vld [vmem:[#allocation29 + $0x3f0] sm:$0xf]
    %v2851 = vld [vmem:[#allocation29 + $0x3f4] sm:$0xf]
    %v2852 = vld [vmem:[#allocation29 + $0x3f8] sm:$0xf]
    %v2853 = vld [vmem:[#allocation29 + $0x3fc] sm:$0xf]
    %v2854 = vld [vmem:[#allocation31] sm:$0x1]
    %v2856 = vperm.slane %v2854, 0
    %v3114 = vunpack.c.l.b16 %v2598
    %v3115 = vunpack.c.l.b16 %v2599
    %v3116 = vunpack.c.l.b16 %v2600
    %v3117 = vunpack.c.l.b16 %v2601
    %v3118 = vunpack.c.l.b16 %v2602
    %v3119 = vunpack.c.l.b16 %v2603
    %v3120 = vunpack.c.l.b16 %v2604
    %v3121 = vunpack.c.l.b16 %v2605
    %v3122 = vunpack.c.l.b16 %v2606
    %v3123 = vunpack.c.l.b16 %v2607
    %v3124 = vunpack.c.l.b16 %v2608
    %v3125 = vunpack.c.l.b16 %v2609
    %v3126 = vunpack.c.l.b16 %v2610
    %v3127 = vunpack.c.l.b16 %v2611
    %v3128 = vunpack.c.l.b16 %v2612
    %v3129 = vunpack.c.l.b16 %v2613
    %v3130 = vunpack.c.l.b16 %v2614
    %v3131 = vunpack.c.l.b16 %v2615
    %v3132 = vunpack.c.l.b16 %v2616
    %v3133 = vunpack.c.l.b16 %v2617
    %v3134 = vunpack.c.l.b16 %v2618
    %v3135 = vunpack.c.l.b16 %v2619
    %v3136 = vunpack.c.l.b16 %v2620
    %v3137 = vunpack.c.l.b16 %v2621
    %v3138 = vunpack.c.l.b16 %v2622
    %v3139 = vunpack.c.l.b16 %v2623
    %v3140 = vunpack.c.l.b16 %v2624
    %v3141 = vunpack.c.l.b16 %v2625
    %v3142 = vunpack.c.l.b16 %v2626
    %v3143 = vunpack.c.l.b16 %v2627
    %v3144 = vunpack.c.l.b16 %v2628
    %v3145 = vunpack.c.l.b16 %v2629
    %v3146 = vunpack.c.l.b16 %v2630
    %v3147 = vunpack.c.l.b16 %v2631
    %v3148 = vunpack.c.l.b16 %v2632
    %v3149 = vunpack.c.l.b16 %v2633
    %v3150 = vunpack.c.l.b16 %v2634
    %v3151 = vunpack.c.l.b16 %v2635
    %v3152 = vunpack.c.l.b16 %v2636
    %v3153 = vunpack.c.l.b16 %v2637
    %v3154 = vunpack.c.l.b16 %v2638
    %v3155 = vunpack.c.l.b16 %v2639
    %v3156 = vunpack.c.l.b16 %v2640
    %v3157 = vunpack.c.l.b16 %v2641
    %v3158 = vunpack.c.l.b16 %v2642
    %v3159 = vunpack.c.l.b16 %v2643
    %v3160 = vunpack.c.l.b16 %v2644
    %v3161 = vunpack.c.l.b16 %v2645
    %v3162 = vunpack.c.l.b16 %v2646
    %v3163 = vunpack.c.l.b16 %v2647
    %v3164 = vunpack.c.l.b16 %v2648
    %v3165 = vunpack.c.l.b16 %v2649
    %v3166 = vunpack.c.l.b16 %v2650
    %v3167 = vunpack.c.l.b16 %v2651
    %v3168 = vunpack.c.l.b16 %v2652
    %v3169 = vunpack.c.l.b16 %v2653
    %v3170 = vunpack.c.l.b16 %v2654
    %v3171 = vunpack.c.l.b16 %v2655
    %v3172 = vunpack.c.l.b16 %v2656
    %v3173 = vunpack.c.l.b16 %v2657
    %v3174 = vunpack.c.l.b16 %v2658
    %v3175 = vunpack.c.l.b16 %v2659
    %v3176 = vunpack.c.l.b16 %v2660
    %v3177 = vunpack.c.l.b16 %v2661
    %v3178 = vunpack.c.l.b16 %v2662
    %v3179 = vunpack.c.l.b16 %v2663
    %v3180 = vunpack.c.l.b16 %v2664
    %v3181 = vunpack.c.l.b16 %v2665
    %v3182 = vunpack.c.l.b16 %v2666
    %v3183 = vunpack.c.l.b16 %v2667
    %v3184 = vunpack.c.l.b16 %v2668
    %v3185 = vunpack.c.l.b16 %v2669
    %v3186 = vunpack.c.l.b16 %v2670
    %v3187 = vunpack.c.l.b16 %v2671
    %v3188 = vunpack.c.l.b16 %v2672
    %v3189 = vunpack.c.l.b16 %v2673
    %v3190 = vunpack.c.l.b16 %v2674
    %v3191 = vunpack.c.l.b16 %v2675
    %v3192 = vunpack.c.l.b16 %v2676
    %v3193 = vunpack.c.l.b16 %v2677
    %v3194 = vunpack.c.l.b16 %v2678
    %v3195 = vunpack.c.l.b16 %v2679
    %v3196 = vunpack.c.l.b16 %v2680
    %v3197 = vunpack.c.l.b16 %v2681
    %v3198 = vunpack.c.l.b16 %v2682
    %v3199 = vunpack.c.l.b16 %v2683
    %v3200 = vunpack.c.l.b16 %v2684
    %v3201 = vunpack.c.l.b16 %v2685
    %v3202 = vunpack.c.l.b16 %v2686
    %v3203 = vunpack.c.l.b16 %v2687
    %v3204 = vunpack.c.l.b16 %v2688
    %v3205 = vunpack.c.l.b16 %v2689
    %v3206 = vunpack.c.l.b16 %v2690
    %v3207 = vunpack.c.l.b16 %v2691
    %v3208 = vunpack.c.l.b16 %v2692
    %v3209 = vunpack.c.l.b16 %v2693
    %v3210 = vunpack.c.l.b16 %v2694
    %v3211 = vunpack.c.l.b16 %v2695
    %v3212 = vunpack.c.l.b16 %v2696
    %v3213 = vunpack.c.l.b16 %v2697
    %v3214 = vunpack.c.l.b16 %v2698
    %v3215 = vunpack.c.l.b16 %v2699
    %v3216 = vunpack.c.l.b16 %v2700
    %v3217 = vunpack.c.l.b16 %v2701
    %v3218 = vunpack.c.l.b16 %v2702
    %v3219 = vunpack.c.l.b16 %v2703
    %v3220 = vunpack.c.l.b16 %v2704
    %v3221 = vunpack.c.l.b16 %v2705
    %v3222 = vunpack.c.l.b16 %v2706
    %v3223 = vunpack.c.l.b16 %v2707
    %v3224 = vunpack.c.l.b16 %v2708
    %v3225 = vunpack.c.l.b16 %v2709
    %v3226 = vunpack.c.l.b16 %v2710
    %v3227 = vunpack.c.l.b16 %v2711
    %v3228 = vunpack.c.l.b16 %v2712
    %v3229 = vunpack.c.l.b16 %v2713
    %v3230 = vunpack.c.l.b16 %v2714
    %v3231 = vunpack.c.l.b16 %v2715
    %v3232 = vunpack.c.l.b16 %v2716
    %v3233 = vunpack.c.l.b16 %v2717
    %v3234 = vunpack.c.l.b16 %v2718
    %v3235 = vunpack.c.l.b16 %v2719
    %v3236 = vunpack.c.l.b16 %v2720
    %v3237 = vunpack.c.l.b16 %v2721
    %v3238 = vunpack.c.l.b16 %v2722
    %v3239 = vunpack.c.l.b16 %v2723
    %v3240 = vunpack.c.l.b16 %v2724
    %v3241 = vunpack.c.l.b16 %v2725
    %v3242 = vunpack.c.l.b16 %v2726
    %v3243 = vunpack.c.l.b16 %v2727
    %v3244 = vunpack.c.l.b16 %v2728
    %v3245 = vunpack.c.l.b16 %v2729
    %v3246 = vunpack.c.l.b16 %v2730
    %v3247 = vunpack.c.l.b16 %v2731
    %v3248 = vunpack.c.l.b16 %v2732
    %v3249 = vunpack.c.l.b16 %v2733
    %v3250 = vunpack.c.l.b16 %v2734
    %v3251 = vunpack.c.l.b16 %v2735
    %v3252 = vunpack.c.l.b16 %v2736
    %v3253 = vunpack.c.l.b16 %v2737
    %v3254 = vunpack.c.l.b16 %v2738
    %v3255 = vunpack.c.l.b16 %v2739
    %v3256 = vunpack.c.l.b16 %v2740
    %v3257 = vunpack.c.l.b16 %v2741
    %v3258 = vunpack.c.l.b16 %v2742
    %v3259 = vunpack.c.l.b16 %v2743
    %v3260 = vunpack.c.l.b16 %v2744
    %v3261 = vunpack.c.l.b16 %v2745
    %v3262 = vunpack.c.l.b16 %v2746
    %v3263 = vunpack.c.l.b16 %v2747
    %v3264 = vunpack.c.l.b16 %v2748
    %v3265 = vunpack.c.l.b16 %v2749
    %v3266 = vunpack.c.l.b16 %v2750
    %v3267 = vunpack.c.l.b16 %v2751
    %v3268 = vunpack.c.l.b16 %v2752
    %v3269 = vunpack.c.l.b16 %v2753
    %v3270 = vunpack.c.l.b16 %v2754
    %v3271 = vunpack.c.l.b16 %v2755
    %v3272 = vunpack.c.l.b16 %v2756
    %v3273 = vunpack.c.l.b16 %v2757
    %v3274 = vunpack.c.l.b16 %v2758
    %v3275 = vunpack.c.l.b16 %v2759
    %v3276 = vunpack.c.l.b16 %v2760
    %v3277 = vunpack.c.l.b16 %v2761
    %v3278 = vunpack.c.l.b16 %v2762
    %v3279 = vunpack.c.l.b16 %v2763
    %v3280 = vunpack.c.l.b16 %v2764
    %v3281 = vunpack.c.l.b16 %v2765
    %v3282 = vunpack.c.l.b16 %v2766
    %v3283 = vunpack.c.l.b16 %v2767
    %v3284 = vunpack.c.l.b16 %v2768
    %v3285 = vunpack.c.l.b16 %v2769
    %v3286 = vunpack.c.l.b16 %v2770
    %v3287 = vunpack.c.l.b16 %v2771
    %v3288 = vunpack.c.l.b16 %v2772
    %v3289 = vunpack.c.l.b16 %v2773
    %v3290 = vunpack.c.l.b16 %v2774
    %v3291 = vunpack.c.l.b16 %v2775
    %v3292 = vunpack.c.l.b16 %v2776
    %v3293 = vunpack.c.l.b16 %v2777
    %v3294 = vunpack.c.l.b16 %v2778
    %v3295 = vunpack.c.l.b16 %v2779
    %v3296 = vunpack.c.l.b16 %v2780
    %v3297 = vunpack.c.l.b16 %v2781
    %v3298 = vunpack.c.l.b16 %v2782
    %v3299 = vunpack.c.l.b16 %v2783
    %v3300 = vunpack.c.l.b16 %v2784
    %v3301 = vunpack.c.l.b16 %v2785
    %v3302 = vunpack.c.l.b16 %v2786
    %v3303 = vunpack.c.l.b16 %v2787
    %v3304 = vunpack.c.l.b16 %v2788
    %v3305 = vunpack.c.l.b16 %v2789
    %v3306 = vunpack.c.l.b16 %v2790
    %v3307 = vunpack.c.l.b16 %v2791
    %v3308 = vunpack.c.l.b16 %v2792
    %v3309 = vunpack.c.l.b16 %v2793
    %v3310 = vunpack.c.l.b16 %v2794
    %v3311 = vunpack.c.l.b16 %v2795
    %v3312 = vunpack.c.l.b16 %v2796
    %v3313 = vunpack.c.l.b16 %v2797
    %v3314 = vunpack.c.l.b16 %v2798
    %v3315 = vunpack.c.l.b16 %v2799
    %v3316 = vunpack.c.l.b16 %v2800
    %v3317 = vunpack.c.l.b16 %v2801
    %v3318 = vunpack.c.l.b16 %v2802
    %v3319 = vunpack.c.l.b16 %v2803
    %v3320 = vunpack.c.l.b16 %v2804
    %v3321 = vunpack.c.l.b16 %v2805
    %v3322 = vunpack.c.l.b16 %v2806
    %v3323 = vunpack.c.l.b16 %v2807
    %v3324 = vunpack.c.l.b16 %v2808
    %v3325 = vunpack.c.l.b16 %v2809
    %v3326 = vunpack.c.l.b16 %v2810
    %v3327 = vunpack.c.l.b16 %v2811
    %v3328 = vunpack.c.l.b16 %v2812
    %v3329 = vunpack.c.l.b16 %v2813
    %v3330 = vunpack.c.l.b16 %v2814
    %v3331 = vunpack.c.l.b16 %v2815
    %v3332 = vunpack.c.l.b16 %v2816
    %v3333 = vunpack.c.l.b16 %v2817
    %v3334 = vunpack.c.l.b16 %v2818
    %v3335 = vunpack.c.l.b16 %v2819
    %v3336 = vunpack.c.l.b16 %v2820
    %v3337 = vunpack.c.l.b16 %v2821
    %v3338 = vunpack.c.l.b16 %v2822
    %v3339 = vunpack.c.l.b16 %v2823
    %v3340 = vunpack.c.l.b16 %v2824
    %v3341 = vunpack.c.l.b16 %v2825
    %v3342 = vunpack.c.l.b16 %v2826
    %v3343 = vunpack.c.l.b16 %v2827
    %v3344 = vunpack.c.l.b16 %v2828
    %v3345 = vunpack.c.l.b16 %v2829
    %v3346 = vunpack.c.l.b16 %v2830
    %v3347 = vunpack.c.l.b16 %v2831
    %v3348 = vunpack.c.l.b16 %v2832
    %v3349 = vunpack.c.l.b16 %v2833
    %v3350 = vunpack.c.l.b16 %v2834
    %v3351 = vunpack.c.l.b16 %v2835
    %v3352 = vunpack.c.l.b16 %v2836
    %v3353 = vunpack.c.l.b16 %v2837
    %v3354 = vunpack.c.l.b16 %v2838
    %v3355 = vunpack.c.l.b16 %v2839
    %v3356 = vunpack.c.l.b16 %v2840
    %v3357 = vunpack.c.l.b16 %v2841
    %v3358 = vunpack.c.l.b16 %v2842
    %v3359 = vunpack.c.l.b16 %v2843
    %v3360 = vunpack.c.l.b16 %v2844
    %v3361 = vunpack.c.l.b16 %v2845
    %v3362 = vunpack.c.l.b16 %v2846
    %v3363 = vunpack.c.l.b16 %v2847
    %v3364 = vunpack.c.l.b16 %v2848
    %v3365 = vunpack.c.l.b16 %v2849
    %v3366 = vunpack.c.l.b16 %v2850
    %v3367 = vunpack.c.l.b16 %v2851
    %v3368 = vunpack.c.l.b16 %v2852
    %v3369 = vunpack.c.l.b16 %v2853
    %v3370 = vpack.c.b16 %v3115, %v3114
    %v3371 = vpack.c.b16 %v3117, %v3116
    %v3372 = vpack.c.b16 %v3119, %v3118
    %v3373 = vpack.c.b16 %v3121, %v3120
    %v3374 = vpack.c.b16 %v3123, %v3122
    %v3375 = vpack.c.b16 %v3125, %v3124
    %v3376 = vpack.c.b16 %v3127, %v3126
    %v3377 = vpack.c.b16 %v3129, %v3128
    %v3378 = vpack.c.b16 %v3131, %v3130
    %v3379 = vpack.c.b16 %v3133, %v3132
    %v3380 = vpack.c.b16 %v3135, %v3134
    %v3381 = vpack.c.b16 %v3137, %v3136
    %v3382 = vpack.c.b16 %v3139, %v3138
    %v3383 = vpack.c.b16 %v3141, %v3140
    %v3384 = vpack.c.b16 %v3143, %v3142
    %v3385 = vpack.c.b16 %v3145, %v3144
    %v3386 = vpack.c.b16 %v3147, %v3146
    %v3387 = vpack.c.b16 %v3149, %v3148
    %v3388 = vpack.c.b16 %v3151, %v3150
    %v3389 = vpack.c.b16 %v3153, %v3152
    %v3390 = vpack.c.b16 %v3155, %v3154
    %v3391 = vpack.c.b16 %v3157, %v3156
    %v3392 = vpack.c.b16 %v3159, %v3158
    %v3393 = vpack.c.b16 %v3161, %v3160
    %v3394 = vpack.c.b16 %v3163, %v3162
    %v3395 = vpack.c.b16 %v3165, %v3164
    %v3396 = vpack.c.b16 %v3167, %v3166
    %v3397 = vpack.c.b16 %v3169, %v3168
    %v3398 = vpack.c.b16 %v3171, %v3170
    %v3399 = vpack.c.b16 %v3173, %v3172
    %v3400 = vpack.c.b16 %v3175, %v3174
    %v3401 = vpack.c.b16 %v3177, %v3176
    %v3402 = vpack.c.b16 %v3179, %v3178
    %v3403 = vpack.c.b16 %v3181, %v3180
    %v3404 = vpack.c.b16 %v3183, %v3182
    %v3405 = vpack.c.b16 %v3185, %v3184
    %v3406 = vpack.c.b16 %v3187, %v3186
    %v3407 = vpack.c.b16 %v3189, %v3188
    %v3408 = vpack.c.b16 %v3191, %v3190
    %v3409 = vpack.c.b16 %v3193, %v3192
    %v3410 = vpack.c.b16 %v3195, %v3194
    %v3411 = vpack.c.b16 %v3197, %v3196
    %v3412 = vpack.c.b16 %v3199, %v3198
    %v3413 = vpack.c.b16 %v3201, %v3200
    %v3414 = vpack.c.b16 %v3203, %v3202
    %v3415 = vpack.c.b16 %v3205, %v3204
    %v3416 = vpack.c.b16 %v3207, %v3206
    %v3417 = vpack.c.b16 %v3209, %v3208
    %v3418 = vpack.c.b16 %v3211, %v3210
    %v3419 = vpack.c.b16 %v3213, %v3212
    %v3420 = vpack.c.b16 %v3215, %v3214
    %v3421 = vpack.c.b16 %v3217, %v3216
    %v3422 = vpack.c.b16 %v3219, %v3218
    %v3423 = vpack.c.b16 %v3221, %v3220
    %v3424 = vpack.c.b16 %v3223, %v3222
    %v3425 = vpack.c.b16 %v3225, %v3224
    %v3426 = vpack.c.b16 %v3227, %v3226
    %v3427 = vpack.c.b16 %v3229, %v3228
    %v3428 = vpack.c.b16 %v3231, %v3230
    %v3429 = vpack.c.b16 %v3233, %v3232
    %v3430 = vpack.c.b16 %v3235, %v3234
    %v3431 = vpack.c.b16 %v3237, %v3236
    %v3432 = vpack.c.b16 %v3239, %v3238
    %v3433 = vpack.c.b16 %v3241, %v3240
    %v3434 = vpack.c.b16 %v3243, %v3242
    %v3435 = vpack.c.b16 %v3245, %v3244
    %v3436 = vpack.c.b16 %v3247, %v3246
    %v3437 = vpack.c.b16 %v3249, %v3248
    %v3438 = vpack.c.b16 %v3251, %v3250
    %v3439 = vpack.c.b16 %v3253, %v3252
    %v3440 = vpack.c.b16 %v3255, %v3254
    %v3441 = vpack.c.b16 %v3257, %v3256
    %v3442 = vpack.c.b16 %v3259, %v3258
    %v3443 = vpack.c.b16 %v3261, %v3260
    %v3444 = vpack.c.b16 %v3263, %v3262
    %v3445 = vpack.c.b16 %v3265, %v3264
    %v3446 = vpack.c.b16 %v3267, %v3266
    %v3447 = vpack.c.b16 %v3269, %v3268
    %v3448 = vpack.c.b16 %v3271, %v3270
    %v3449 = vpack.c.b16 %v3273, %v3272
    %v3450 = vpack.c.b16 %v3275, %v3274
    %v3451 = vpack.c.b16 %v3277, %v3276
    %v3452 = vpack.c.b16 %v3279, %v3278
    %v3453 = vpack.c.b16 %v3281, %v3280
    %v3454 = vpack.c.b16 %v3283, %v3282
    %v3455 = vpack.c.b16 %v3285, %v3284
    %v3456 = vpack.c.b16 %v3287, %v3286
    %v3457 = vpack.c.b16 %v3289, %v3288
    %v3458 = vpack.c.b16 %v3291, %v3290
    %v3459 = vpack.c.b16 %v3293, %v3292
    %v3460 = vpack.c.b16 %v3295, %v3294
    %v3461 = vpack.c.b16 %v3297, %v3296
    %v3462 = vpack.c.b16 %v3299, %v3298
    %v3463 = vpack.c.b16 %v3301, %v3300
    %v3464 = vpack.c.b16 %v3303, %v3302
    %v3465 = vpack.c.b16 %v3305, %v3304
    %v3466 = vpack.c.b16 %v3307, %v3306
    %v3467 = vpack.c.b16 %v3309, %v3308
    %v3468 = vpack.c.b16 %v3311, %v3310
    %v3469 = vpack.c.b16 %v3313, %v3312
    %v3470 = vpack.c.b16 %v3315, %v3314
    %v3471 = vpack.c.b16 %v3317, %v3316
    %v3472 = vpack.c.b16 %v3319, %v3318
    %v3473 = vpack.c.b16 %v3321, %v3320
    %v3474 = vpack.c.b16 %v3323, %v3322
    %v3475 = vpack.c.b16 %v3325, %v3324
    %v3476 = vpack.c.b16 %v3327, %v3326
    %v3477 = vpack.c.b16 %v3329, %v3328
    %v3478 = vpack.c.b16 %v3331, %v3330
    %v3479 = vpack.c.b16 %v3333, %v3332
    %v3480 = vpack.c.b16 %v3335, %v3334
    %v3481 = vpack.c.b16 %v3337, %v3336
    %v3482 = vpack.c.b16 %v3339, %v3338
    %v3483 = vpack.c.b16 %v3341, %v3340
    %v3484 = vpack.c.b16 %v3343, %v3342
    %v3485 = vpack.c.b16 %v3345, %v3344
    %v3486 = vpack.c.b16 %v3347, %v3346
    %v3487 = vpack.c.b16 %v3349, %v3348
    %v3488 = vpack.c.b16 %v3351, %v3350
    %v3489 = vpack.c.b16 %v3353, %v3352
    %v3490 = vpack.c.b16 %v3355, %v3354
    %v3491 = vpack.c.b16 %v3357, %v3356
    %v3492 = vpack.c.b16 %v3359, %v3358
    %v3493 = vpack.c.b16 %v3361, %v3360
    %v3494 = vpack.c.b16 %v3363, %v3362
    %v3495 = vpack.c.b16 %v3365, %v3364
    %v3496 = vpack.c.b16 %v3367, %v3366
    %v3497 = vpack.c.b16 %v3369, %v3368
    %3626 = vmatpush.bf16.msra.mxu0 %v3377
    %3627 = vmatpush.bf16.msra.mxu0 %v3376
    %3628 = vmatpush.bf16.msra.mxu0 %v3375
    %3629 = vmatpush.bf16.msra.mxu0 %v3374
    %3630 = vmatpush.bf16.msra.mxu0 %v3373
    %3631 = vmatpush.bf16.msra.mxu0 %v3372
    %3632 = vmatpush.bf16.msra.mxu0 %v3371
    %3633 = vmatpush.bf16.msra.mxu0 %v3370
    %3634 = vmatmul.bf16.gmra.mxu0 %v2582
    %v3635 = vpop.f32.mrf.mxu0
    %v3636 = vadd.f32 %v2856, %v3635
    %v3637 = vpop.f32.mrf.mxu0
    %3638 = vdwg.mxu0
    %3639 = vmatpush.bf16.msra.mxu0 %v3385
    %3640 = vmatpush.bf16.msra.mxu0 %v3384
    %3641 = vmatpush.bf16.msra.mxu0 %v3383
    %3642 = vmatpush.bf16.msra.mxu0 %v3382
    %3643 = vmatpush.bf16.msra.mxu0 %v3381
    %3644 = vmatpush.bf16.msra.mxu0 %v3380
    %3645 = vmatpush.bf16.msra.mxu0 %v3379
    %3646 = vmatpush.bf16.msra.mxu0 %v3378
    %3647 = vmatmul.bf16.gmra.mxu0 %v2583
    %v3648 = vpop.f32.mrf.mxu0
    %v3649 = vadd.f32 %v3636, %v3648
    %v3650 = vpop.f32.mrf.mxu0
    %3651 = vdwg.mxu0
    %3652 = vmatpush.bf16.msra.mxu0 %v3393
    %3653 = vmatpush.bf16.msra.mxu0 %v3392
    %3654 = vmatpush.bf16.msra.mxu0 %v3391
    %3655 = vmatpush.bf16.msra.mxu0 %v3390
    %3656 = vmatpush.bf16.msra.mxu0 %v3389
    %3657 = vmatpush.bf16.msra.mxu0 %v3388
    %3658 = vmatpush.bf16.msra.mxu0 %v3387
    %3659 = vmatpush.bf16.msra.mxu0 %v3386
    %3660 = vmatmul.bf16.gmra.mxu0 %v2584
    %v3661 = vpop.f32.mrf.mxu0
    %v3662 = vadd.f32 %v3649, %v3661
    %v3663 = vpop.f32.mrf.mxu0
    %3664 = vdwg.mxu0
    %3665 = vmatpush.bf16.msra.mxu0 %v3401
    %3666 = vmatpush.bf16.msra.mxu0 %v3400
    %3667 = vmatpush.bf16.msra.mxu0 %v3399
    %3668 = vmatpush.bf16.msra.mxu0 %v3398
    %3669 = vmatpush.bf16.msra.mxu0 %v3397
    %3670 = vmatpush.bf16.msra.mxu0 %v3396
    %3671 = vmatpush.bf16.msra.mxu0 %v3395
    %3672 = vmatpush.bf16.msra.mxu0 %v3394
    %3673 = vmatmul.bf16.gmra.mxu0 %v2585
    %v3674 = vpop.f32.mrf.mxu0
    %v3675 = vadd.f32 %v3662, %v3674
    %v3676 = vpop.f32.mrf.mxu0
    %3677 = vdwg.mxu0
    %3678 = vmatpush.bf16.msra.mxu0 %v3409
    %3679 = vmatpush.bf16.msra.mxu0 %v3408
    %3680 = vmatpush.bf16.msra.mxu0 %v3407
    %3681 = vmatpush.bf16.msra.mxu0 %v3406
    %3682 = vmatpush.bf16.msra.mxu0 %v3405
    %3683 = vmatpush.bf16.msra.mxu0 %v3404
    %3684 = vmatpush.bf16.msra.mxu0 %v3403
    %3685 = vmatpush.bf16.msra.mxu0 %v3402
    %3686 = vmatmul.bf16.gmra.mxu0 %v2586
    %v3687 = vpop.f32.mrf.mxu0
    %v3688 = vadd.f32 %v3675, %v3687
    %v3689 = vpop.f32.mrf.mxu0
    %3690 = vdwg.mxu0
    %3691 = vmatpush.bf16.msra.mxu0 %v3417
    %3692 = vmatpush.bf16.msra.mxu0 %v3416
    %3693 = vmatpush.bf16.msra.mxu0 %v3415
    %3694 = vmatpush.bf16.msra.mxu0 %v3414
    %3695 = vmatpush.bf16.msra.mxu0 %v3413
    %3696 = vmatpush.bf16.msra.mxu0 %v3412
    %3697 = vmatpush.bf16.msra.mxu0 %v3411
    %3698 = vmatpush.bf16.msra.mxu0 %v3410
    %3699 = vmatmul.bf16.gmra.mxu0 %v2587
    %v3700 = vpop.f32.mrf.mxu0
    %v3701 = vadd.f32 %v3688, %v3700
    %v3702 = vpop.f32.mrf.mxu0
    %3703 = vdwg.mxu0
    %3704 = vmatpush.bf16.msra.mxu0 %v3425
    %3705 = vmatpush.bf16.msra.mxu0 %v3424
    %3706 = vmatpush.bf16.msra.mxu0 %v3423
    %3707 = vmatpush.bf16.msra.mxu0 %v3422
    %3708 = vmatpush.bf16.msra.mxu0 %v3421
    %3709 = vmatpush.bf16.msra.mxu0 %v3420
    %3710 = vmatpush.bf16.msra.mxu0 %v3419
    %3711 = vmatpush.bf16.msra.mxu0 %v3418
    %3712 = vmatmul.bf16.gmra.mxu0 %v2588
    %v3713 = vpop.f32.mrf.mxu0
    %v3714 = vadd.f32 %v3701, %v3713
    %v3715 = vpop.f32.mrf.mxu0
    %3716 = vdwg.mxu0
    %3717 = vmatpush.bf16.msra.mxu0 %v3433
    %3718 = vmatpush.bf16.msra.mxu0 %v3432
    %3719 = vmatpush.bf16.msra.mxu0 %v3431
    %3720 = vmatpush.bf16.msra.mxu0 %v3430
    %3721 = vmatpush.bf16.msra.mxu0 %v3429
    %3722 = vmatpush.bf16.msra.mxu0 %v3428
    %3723 = vmatpush.bf16.msra.mxu0 %v3427
    %3724 = vmatpush.bf16.msra.mxu0 %v3426
    %3725 = vmatmul.bf16.gmra.mxu0 %v2589
    %v3726 = vpop.f32.mrf.mxu0
    %v3727 = vadd.f32 %v3714, %v3726
    %v3728 = vpop.f32.mrf.mxu0
    %3729 = vdwg.mxu0
    %3730 = vmatpush.bf16.msra.mxu0 %v3441
    %3731 = vmatpush.bf16.msra.mxu0 %v3440
    %3732 = vmatpush.bf16.msra.mxu0 %v3439
    %3733 = vmatpush.bf16.msra.mxu0 %v3438
    %3734 = vmatpush.bf16.msra.mxu0 %v3437
    %3735 = vmatpush.bf16.msra.mxu0 %v3436
    %3736 = vmatpush.bf16.msra.mxu0 %v3435
    %3737 = vmatpush.bf16.msra.mxu0 %v3434
    %3738 = vmatmul.bf16.gmra.mxu0 %v2590
    %v3739 = vpop.f32.mrf.mxu0
    %v3740 = vadd.f32 %v3727, %v3739
    %v3741 = vpop.f32.mrf.mxu0
    %3742 = vdwg.mxu0
    %3743 = vmatpush.bf16.msra.mxu0 %v3449
    %3744 = vmatpush.bf16.msra.mxu0 %v3448
    %3745 = vmatpush.bf16.msra.mxu0 %v3447
    %3746 = vmatpush.bf16.msra.mxu0 %v3446
    %3747 = vmatpush.bf16.msra.mxu0 %v3445
    %3748 = vmatpush.bf16.msra.mxu0 %v3444
    %3749 = vmatpush.bf16.msra.mxu0 %v3443
    %3750 = vmatpush.bf16.msra.mxu0 %v3442
    %3751 = vmatmul.bf16.gmra.mxu0 %v2591
    %v3752 = vpop.f32.mrf.mxu0
    %v3753 = vadd.f32 %v3740, %v3752
    %v3754 = vpop.f32.mrf.mxu0
    %3755 = vdwg.mxu0
    %3756 = vmatpush.bf16.msra.mxu0 %v3457
    %3757 = vmatpush.bf16.msra.mxu0 %v3456
    %3758 = vmatpush.bf16.msra.mxu0 %v3455
    %3759 = vmatpush.bf16.msra.mxu0 %v3454
    %3760 = vmatpush.bf16.msra.mxu0 %v3453
    %3761 = vmatpush.bf16.msra.mxu0 %v3452
    %3762 = vmatpush.bf16.msra.mxu0 %v3451
    %3763 = vmatpush.bf16.msra.mxu0 %v3450
    %3764 = vmatmul.bf16.gmra.mxu0 %v2592
    %v3765 = vpop.f32.mrf.mxu0
    %v3766 = vadd.f32 %v3753, %v3765
    %v3767 = vpop.f32.mrf.mxu0
    %3768 = vdwg.mxu0
    %3769 = vmatpush.bf16.msra.mxu0 %v3465
    %3770 = vmatpush.bf16.msra.mxu0 %v3464
    %3771 = vmatpush.bf16.msra.mxu0 %v3463
    %3772 = vmatpush.bf16.msra.mxu0 %v3462
    %3773 = vmatpush.bf16.msra.mxu0 %v3461
    %3774 = vmatpush.bf16.msra.mxu0 %v3460
    %3775 = vmatpush.bf16.msra.mxu0 %v3459
    %3776 = vmatpush.bf16.msra.mxu0 %v3458
    %3777 = vmatmul.bf16.gmra.mxu0 %v2593
    %v3778 = vpop.f32.mrf.mxu0
    %v3779 = vadd.f32 %v3766, %v3778
    %v3780 = vpop.f32.mrf.mxu0
    %3781 = vdwg.mxu0
    %3782 = vmatpush.bf16.msra.mxu0 %v3473
    %3783 = vmatpush.bf16.msra.mxu0 %v3472
    %3784 = vmatpush.bf16.msra.mxu0 %v3471
    %3785 = vmatpush.bf16.msra.mxu0 %v3470
    %3786 = vmatpush.bf16.msra.mxu0 %v3469
    %3787 = vmatpush.bf16.msra.mxu0 %v3468
    %3788 = vmatpush.bf16.msra.mxu0 %v3467
    %3789 = vmatpush.bf16.msra.mxu0 %v3466
    %3790 = vmatmul.bf16.gmra.mxu0 %v2594
    %v3791 = vpop.f32.mrf.mxu0
    %v3792 = vadd.f32 %v3779, %v3791
    %v3793 = vpop.f32.mrf.mxu0
    %3794 = vdwg.mxu0
    %3795 = vmatpush.bf16.msra.mxu0 %v3481
    %3796 = vmatpush.bf16.msra.mxu0 %v3480
    %3797 = vmatpush.bf16.msra.mxu0 %v3479
    %3798 = vmatpush.bf16.msra.mxu0 %v3478
    %3799 = vmatpush.bf16.msra.mxu0 %v3477
    %3800 = vmatpush.bf16.msra.mxu0 %v3476
    %3801 = vmatpush.bf16.msra.mxu0 %v3475
    %3802 = vmatpush.bf16.msra.mxu0 %v3474
    %3803 = vmatmul.bf16.gmra.mxu0 %v2595
    %v3804 = vpop.f32.mrf.mxu0
    %v3805 = vadd.f32 %v3792, %v3804
    %v3806 = vpop.f32.mrf.mxu0
    %3807 = vdwg.mxu0
    %3808 = vmatpush.bf16.msra.mxu0 %v3489
    %3809 = vmatpush.bf16.msra.mxu0 %v3488
    %3810 = vmatpush.bf16.msra.mxu0 %v3487
    %3811 = vmatpush.bf16.msra.mxu0 %v3486
    %3812 = vmatpush.bf16.msra.mxu0 %v3485
    %3813 = vmatpush.bf16.msra.mxu0 %v3484
    %3814 = vmatpush.bf16.msra.mxu0 %v3483
    %3815 = vmatpush.bf16.msra.mxu0 %v3482
    %3816 = vmatmul.bf16.gmra.mxu0 %v2596
    %v3817 = vpop.f32.mrf.mxu0
    %v3818 = vadd.f32 %v3805, %v3817
    %v3819 = vpop.f32.mrf.mxu0
    %3820 = vdwg.mxu0
    %3821 = vmatpush.bf16.msra.mxu0 %v3497
    %3822 = vmatpush.bf16.msra.mxu0 %v3496
    %3823 = vmatpush.bf16.msra.mxu0 %v3495
    %3824 = vmatpush.bf16.msra.mxu0 %v3494
    %3825 = vmatpush.bf16.msra.mxu0 %v3493
    %3826 = vmatpush.bf16.msra.mxu0 %v3492
    %3827 = vmatpush.bf16.msra.mxu0 %v3491
    %3828 = vmatpush.bf16.msra.mxu0 %v3490
    %3829 = vmatmul.bf16.gmra.mxu0 %v2597
    %v3830 = vpop.f32.mrf.mxu0
    %v3831 = vadd.f32 %v3818, %v3830
    %v3832 = vpop.f32.mrf.mxu0
    %3833 = vdwg.mxu0
    %v3834 = vadd.f32 %v1552, %v3831
    %v3835 = vld [vmem:[#allocation32] sm:$0x1]
    %v3836 = vld [vmem:[#allocation34] sm:$0x1]
    %3837 = vadd.xlane.f32.xlu0 %v3834
    %v3838 = vpop.xlane.xlu0 %3837
    %v3839 = vmul.f32 %v3838, %v1526
    %v3840 = vsub.f32 %v3834, %v3839
    %v3841 = vmul.f32 %v3840, %v3840
    %3842 = vadd.xlane.f32.xlu0 %v3841
    %v3843 = vpop.xlane.xlu0 %3842
    %v3844 = vmul.f32 %v3843, %v1526
    %v3845 = vadd.f32 %v3844, 1e-05
    %v3846 = vrsqrt.pop %v3845
    %v3847 = vmul.f32 %v3846, %v3845
    %v3848 = vmul.f32 %v3847, %v3846
    %v3849 = vmul.f32 0.5, %v3848
    %v3850 = vsub.f32 1.5, %v3849
    %v3851 = vmul.f32 %v3846, %v3850
    %vm3852 = vweird.f32 %v3845
    %vm3853 = vweird.f32 %v3846
    %vm3854 = vmor %vm3852, %vm3853
    %v3855 = vsel %vm3854, %v3846, %v3851
    %v3856 = vmul.f32 %v3840, %v3855
    %v3858 = vperm.slane %v3835, 0
    %v3860 = vmul.f32 %v3856, %v3858
    %v3862 = vperm.slane %v3836, 0
    %v3864 = vadd.f32 %v3860, %v3862
    %v3865 = vpack.c.bf16 %v3864, %v3864
    %s3866 = scalar_lea.vmem [#allocation17], 192
    %v3867 = vld [vmem:[%s3866] sm:$0xff]
    %v3868 = vld [vmem:[%s3866 + $0x8] sm:$0xf]
    %v3869 = vld [vmem:[%s3866 + $0xc] sm:$0xff]
    %v3870 = vld [vmem:[%s3866 + $0x14] sm:$0xf]
    %v3871 = vld [vmem:[%s3866 + $0x18] sm:$0xff]
    %v3872 = vld [vmem:[%s3866 + $0x20] sm:$0xf]
    %v3873 = vld [vmem:[%s3866 + $0x24] sm:$0xff]
    %v3874 = vld [vmem:[%s3866 + $0x2c] sm:$0xf]
    %v3875 = vld [vmem:[%s3866 + $0x30] sm:$0xff]
    %v3876 = vld [vmem:[%s3866 + $0x38] sm:$0xf]
    %v3877 = vld [vmem:[%s3866 + $0x3c] sm:$0xff]
    %v3878 = vld [vmem:[%s3866 + $0x44] sm:$0xf]
    %v3879 = vld [vmem:[%s3866 + $0x48] sm:$0xff]
    %v3880 = vld [vmem:[%s3866 + $0x50] sm:$0xf]
    %v3881 = vld [vmem:[%s3866 + $0x54] sm:$0xff]
    %v3882 = vld [vmem:[%s3866 + $0x5c] sm:$0xf]
    %v3883 = vld [vmem:[%s3866 + $0x60] sm:$0xff]
    %v3884 = vld [vmem:[%s3866 + $0x68] sm:$0xf]
    %v3885 = vld [vmem:[%s3866 + $0x6c] sm:$0xff]
    %v3886 = vld [vmem:[%s3866 + $0x74] sm:$0xf]
    %v3887 = vld [vmem:[%s3866 + $0x78] sm:$0xff]
    %v3888 = vld [vmem:[%s3866 + $0x80] sm:$0xf]
    %v3889 = vld [vmem:[%s3866 + $0x84] sm:$0xff]
    %v3890 = vld [vmem:[%s3866 + $0x8c] sm:$0xf]
    %v3891 = vld [vmem:[%s3866 + $0x90] sm:$0xff]
    %v3892 = vld [vmem:[%s3866 + $0x98] sm:$0xf]
    %v3893 = vld [vmem:[%s3866 + $0x9c] sm:$0xff]
    %v3894 = vld [vmem:[%s3866 + $0xa4] sm:$0xf]
    %v3895 = vld [vmem:[%s3866 + $0xa8] sm:$0xff]
    %v3896 = vld [vmem:[%s3866 + $0xb0] sm:$0xf]
    %v3897 = vld [vmem:[%s3866 + $0xb4] sm:$0xff]
    %v3898 = vld [vmem:[%s3866 + $0xbc] sm:$0xf]
    %s3899 = scalar_lea.vmem [#allocation19], 3
    %v3900 = vld [vmem:[%s3899] sm:$0x7]
    %v3902 = vperm.slane %v3900, 0
    %v3903 = vperm.slane %v3900, 1
    %v3904 = vperm.slane %v3900, 2
    %v3940 = vunpack.c.l.b16 %v3867
    %v3941 = vunpack.c.h.b16 %v3867
    %v3942 = vunpack.c.l.b16 %v3868
    %v3943 = vunpack.c.l.b16 %v3869
    %v3944 = vunpack.c.h.b16 %v3869
    %v3945 = vunpack.c.l.b16 %v3870
    %v3946 = vunpack.c.l.b16 %v3871
    %v3947 = vunpack.c.h.b16 %v3871
    %v3948 = vunpack.c.l.b16 %v3872
    %v3949 = vunpack.c.l.b16 %v3873
    %v3950 = vunpack.c.h.b16 %v3873
    %v3951 = vunpack.c.l.b16 %v3874
    %v3952 = vunpack.c.l.b16 %v3875
    %v3953 = vunpack.c.h.b16 %v3875
    %v3954 = vunpack.c.l.b16 %v3876
    %v3955 = vunpack.c.l.b16 %v3877
    %v3956 = vunpack.c.h.b16 %v3877
    %v3957 = vunpack.c.l.b16 %v3878
    %v3958 = vunpack.c.l.b16 %v3879
    %v3959 = vunpack.c.h.b16 %v3879
    %v3960 = vunpack.c.l.b16 %v3880
    %v3961 = vunpack.c.l.b16 %v3881
    %v3962 = vunpack.c.h.b16 %v3881
    %v3963 = vunpack.c.l.b16 %v3882
    %v3964 = vunpack.c.l.b16 %v3883
    %v3965 = vunpack.c.h.b16 %v3883
    %v3966 = vunpack.c.l.b16 %v3884
    %v3967 = vunpack.c.l.b16 %v3885
    %v3968 = vunpack.c.h.b16 %v3885
    %v3969 = vunpack.c.l.b16 %v3886
    %v3970 = vunpack.c.l.b16 %v3887
    %v3971 = vunpack.c.h.b16 %v3887
    %v3972 = vunpack.c.l.b16 %v3888
    %v3973 = vunpack.c.l.b16 %v3889
    %v3974 = vunpack.c.h.b16 %v3889
    %v3975 = vunpack.c.l.b16 %v3890
    %v3976 = vunpack.c.l.b16 %v3891
    %v3977 = vunpack.c.h.b16 %v3891
    %v3978 = vunpack.c.l.b16 %v3892
    %v3979 = vunpack.c.l.b16 %v3893
    %v3980 = vunpack.c.h.b16 %v3893
    %v3981 = vunpack.c.l.b16 %v3894
    %v3982 = vunpack.c.l.b16 %v3895
    %v3983 = vunpack.c.h.b16 %v3895
    %v3984 = vunpack.c.l.b16 %v3896
    %v3985 = vunpack.c.l.b16 %v3897
    %v3986 = vunpack.c.h.b16 %v3897
    %v3987 = vunpack.c.l.b16 %v3898
    %v3988 = vpack.c.b16 %v3943, %v3940
    %v3989 = vpack.c.b16 %v3944, %v3941
    %v3990 = vpack.c.b16 %v3945, %v3942
    %v3991 = vpack.c.b16 %v3949, %v3946
    %v3992 = vpack.c.b16 %v3950, %v3947
    %v3993 = vpack.c.b16 %v3951, %v3948
    %v3994 = vpack.c.b16 %v3955, %v3952
    %v3995 = vpack.c.b16 %v3956, %v3953
    %v3996 = vpack.c.b16 %v3957, %v3954
    %v3997 = vpack.c.b16 %v3961, %v3958
    %v3998 = vpack.c.b16 %v3962, %v3959
    %v3999 = vpack.c.b16 %v3963, %v3960
    %v4000 = vpack.c.b16 %v3967, %v3964
    %v4001 = vpack.c.b16 %v3968, %v3965
    %v4002 = vpack.c.b16 %v3969, %v3966
    %v4003 = vpack.c.b16 %v3973, %v3970
    %v4004 = vpack.c.b16 %v3974, %v3971
    %v4005 = vpack.c.b16 %v3975, %v3972
    %v4006 = vpack.c.b16 %v3979, %v3976
    %v4007 = vpack.c.b16 %v3980, %v3977
    %v4008 = vpack.c.b16 %v3981, %v3978
    %v4009 = vpack.c.b16 %v3985, %v3982
    %v4010 = vpack.c.b16 %v3986, %v3983
    %v4011 = vpack.c.b16 %v3987, %v3984
    %4036 = vmatpush.bf16.msra.mxu0 %v4009
    %4037 = vmatpush.bf16.msra.mxu0 %v4006
    %4038 = vmatpush.bf16.msra.mxu0 %v4003
    %4039 = vmatpush.bf16.msra.mxu0 %v4000
    %4040 = vmatpush.bf16.msra.mxu0 %v3997
    %4041 = vmatpush.bf16.msra.mxu0 %v3994
    %4042 = vmatpush.bf16.msra.mxu0 %v3991
    %4043 = vmatpush.bf16.msra.mxu0 %v3988
    %4044 = vmatmul.bf16.gmra.mxu0 %v3865
    %v4045 = vpop.f32.mrf.mxu0
    %v4046 = vadd.f32 %v3902, %v4045
    %v4047 = vpop.f32.mrf.mxu0
    %4048 = vdwg.mxu0
    %4049 = vmatpush.bf16.msra.mxu0 %v4010
    %4050 = vmatpush.bf16.msra.mxu0 %v4007
    %4051 = vmatpush.bf16.msra.mxu0 %v4004
    %4052 = vmatpush.bf16.msra.mxu0 %v4001
    %4053 = vmatpush.bf16.msra.mxu0 %v3998
    %4054 = vmatpush.bf16.msra.mxu0 %v3995
    %4055 = vmatpush.bf16.msra.mxu0 %v3992
    %4056 = vmatpush.bf16.msra.mxu0 %v3989
    %4057 = vmatmul.bf16.gmra.mxu0 %v3865
    %v4058 = vpop.f32.mrf.mxu0
    %v4059 = vadd.f32 %v3903, %v4058
    %v4060 = vpop.f32.mrf.mxu0
    %4061 = vdwg.mxu0
    %4062 = vmatpush.bf16.msra.mxu0 %v4011
    %4063 = vmatpush.bf16.msra.mxu0 %v4008
    %4064 = vmatpush.bf16.msra.mxu0 %v4005
    %4065 = vmatpush.bf16.msra.mxu0 %v4002
    %4066 = vmatpush.bf16.msra.mxu0 %v3999
    %4067 = vmatpush.bf16.msra.mxu0 %v3996
    %4068 = vmatpush.bf16.msra.mxu0 %v3993
    %4069 = vmatpush.bf16.msra.mxu0 %v3990
    %4070 = vmatmul.bf16.gmra.mxu0 %v3865
    %v4071 = vpop.f32.mrf.mxu0
    %v4072 = vadd.f32 %v3904, %v4071
    %v4073 = vpop.f32.mrf.mxu0
    %4074 = vdwg.mxu0
    %4076 = vrot.lane.b32.xlu0 %v4046, 112
    %v4077 = vpop.permute.xlu0 %4076
    %4078 = vrot.lane.b32.xlu0 %v4046, 96
    %v4079 = vpop.permute.xlu0 %4078
    %4080 = vrot.lane.b32.xlu0 %v4046, 80
    %v4081 = vpop.permute.xlu0 %4080
    %4082 = vrot.lane.b32.xlu0 %v4046, 64
    %v4083 = vpop.permute.xlu0 %4082
    %4084 = vrot.lane.b32.xlu0 %v4046, 48
    %v4085 = vpop.permute.xlu0 %4084
    %4086 = vrot.lane.b32.xlu0 %v4046, 32
    %v4087 = vpop.permute.xlu0 %4086
    %4088 = vrot.lane.b32.xlu0 %v4046, 16
    %v4089 = vpop.permute.xlu0 %4088
    %4091 = vrot.lane.b32.xlu0 %v4059, 112
    %v4092 = vpop.permute.xlu0 %4091
    %4093 = vrot.lane.b32.xlu0 %v4059, 96
    %v4094 = vpop.permute.xlu0 %4093
    %4095 = vrot.lane.b32.xlu0 %v4059, 80
    %v4096 = vpop.permute.xlu0 %4095
    %4097 = vrot.lane.b32.xlu0 %v4059, 64
    %v4098 = vpop.permute.xlu0 %4097
    %4099 = vrot.lane.b32.xlu0 %v4059, 48
    %v4100 = vpop.permute.xlu0 %4099
    %4101 = vrot.lane.b32.xlu0 %v4059, 32
    %v4102 = vpop.permute.xlu0 %4101
    %4103 = vrot.lane.b32.xlu0 %v4059, 16
    %v4104 = vpop.permute.xlu0 %4103
    %4106 = vrot.lane.b32.xlu0 %v4072, 112
    %v4107 = vpop.permute.xlu0 %4106
    %4109 = vrot.lane.b32.xlu0 %v4072, 96
    %v4110 = vpop.permute.xlu0 %4109
    %4112 = vrot.lane.b32.xlu0 %v4072, 80
    %v4113 = vpop.permute.xlu0 %4112
    %4115 = vrot.lane.b32.xlu0 %v4072, 64
    %v4116 = vpop.permute.xlu0 %4115
    %4118 = vrot.lane.b32.xlu0 %v4072, 48
    %v4119 = vpop.permute.xlu0 %4118
    %4121 = vrot.lane.b32.xlu0 %v4072, 32
    %v4122 = vpop.permute.xlu0 %4121
    %4124 = vrot.lane.b32.xlu0 %v4072, 16
    %v4125 = vpop.permute.xlu0 %4124
    %v4127 = vsel %vm434, %v4046, 0
    %v4129 = vsel %vm434, %v4077, 0
    %v4131 = vsel %vm434, %v4079, 0
    %v4133 = vsel %vm434, %v4081, 0
    %v4135 = vsel %vm434, %v4083, 0
    %v4137 = vsel %vm434, %v4085, 0
    %v4139 = vsel %vm434, %v4087, 0
    %v4141 = vsel %vm434, %v4089, 0
    %v4143 = vsel %vm434, %v4059, 0
    %v4145 = vsel %vm434, %v4092, 0
    %v4147 = vsel %vm434, %v4094, 0
    %v4149 = vsel %vm434, %v4096, 0
    %v4151 = vsel %vm434, %v4098, 0
    %v4153 = vsel %vm434, %v4100, 0
    %v4155 = vsel %vm434, %v4102, 0
    %v4157 = vsel %vm434, %v4104, 0
    %4159 = vmatpush.xpose.msra.mxu0 0.0
    %4160 = vmatpush.xpose.msra.mxu0 0.0
    %4161 = vmatpush.xpose.msra.mxu0 0.0
    %4162 = vmatpush.xpose.msra.mxu0 0.0
    %4163 = vmatpush.xpose.msra.mxu0 0.0
    %4164 = vmatpush.xpose.msra.mxu0 0.0
    %4165 = vmatpush.xpose.msra.mxu0 0.0
    %4166 = vmatpush.xpose.msra.mxu0 0.0
    %4167 = vmatpush.xpose.msra.mxu0 %v4157
    %4168 = vmatpush.xpose.msra.mxu0 %v4155
    %4169 = vmatpush.xpose.msra.mxu0 %v4153
    %4170 = vmatpush.xpose.msra.mxu0 %v4151
    %4171 = vmatpush.xpose.msra.mxu0 %v4149
    %4172 = vmatpush.xpose.msra.mxu0 %v4147
    %4173 = vmatpush.xpose.msra.mxu0 %v4145
    %4174 = vmatpush.xpose.msra.mxu0 %v4143
    %4175 = vmatmul.f32.gmra.mxu0 %v4127
    %v4176 = vpop.f32.mrf.mxu0
    %v4177 = vadd.f32 %v899, %v4176
    %4178 = vmatmul.f32.gmra.mxu0 %v4129
    %v4179 = vpop.f32.mrf.mxu0
    %v4180 = vadd.f32 %v900, %v4179
    %4181 = vmatmul.f32.gmra.mxu0 %v4131
    %v4182 = vpop.f32.mrf.mxu0
    %v4183 = vadd.f32 %v901, %v4182
    %4184 = vmatmul.f32.gmra.mxu0 %v4133
    %v4185 = vpop.f32.mrf.mxu0
    %v4186 = vadd.f32 %v902, %v4185
    %4187 = vmatmul.f32.gmra.mxu0 %v4135
    %v4188 = vpop.f32.mrf.mxu0
    %v4189 = vadd.f32 %v903, %v4188
    %4190 = vmatmul.f32.gmra.mxu0 %v4137
    %v4191 = vpop.f32.mrf.mxu0
    %v4192 = vadd.f32 %v904, %v4191
    %4193 = vmatmul.f32.gmra.mxu0 %v4139
    %v4194 = vpop.f32.mrf.mxu0
    %v4195 = vadd.f32 %v905, %v4194
    %4196 = vmatmul.f32.gmra.mxu0 %v4141
    %v4197 = vpop.f32.mrf.mxu0
    %v4198 = vadd.f32 %v906, %v4197
    %4199 = vdwg.mxu0
    %v4200 = vsel %vm882, %v4177, -inf
    %4201 = vmax.xlane.f32.xlu0 %v4200
    %v4202 = vpop.xlane.xlu0 %4201
    %v4203 = vsel %vm882, %v4180, -inf
    %4204 = vmax.xlane.f32.xlu0 %v4203
    %v4205 = vpop.xlane.xlu0 %4204
    %v4206 = vsel %vm882, %v4183, -inf
    %4207 = vmax.xlane.f32.xlu0 %v4206
    %v4208 = vpop.xlane.xlu0 %4207
    %v4209 = vsel %vm882, %v4186, -inf
    %4210 = vmax.xlane.f32.xlu0 %v4209
    %v4211 = vpop.xlane.xlu0 %4210
    %v4212 = vsel %vm882, %v4189, -inf
    %4213 = vmax.xlane.f32.xlu0 %v4212
    %v4214 = vpop.xlane.xlu0 %4213
    %v4215 = vsel %vm882, %v4192, -inf
    %4216 = vmax.xlane.f32.xlu0 %v4215
    %v4217 = vpop.xlane.xlu0 %4216
    %v4218 = vsel %vm882, %v4195, -inf
    %4219 = vmax.xlane.f32.xlu0 %v4218
    %v4220 = vpop.xlane.xlu0 %4219
    %v4221 = vsel %vm882, %v4198, -inf
    %4222 = vmax.xlane.f32.xlu0 %v4221
    %v4223 = vpop.xlane.xlu0 %4222
    %v4224 = vsub.f32 %v4177, %v4202
    %v4225 = vsub.f32 %v4180, %v4205
    %v4226 = vsub.f32 %v4183, %v4208
    %v4227 = vsub.f32 %v4186, %v4211
    %v4228 = vsub.f32 %v4189, %v4214
    %v4229 = vsub.f32 %v4192, %v4217
    %v4230 = vsub.f32 %v4195, %v4220
    %v4231 = vsub.f32 %v4198, %v4223
    %v4232 = vmul.f32 %v4224, 1.442695
    %v4233 = vpow.pop %v4232
    %v4234 = vmul.f32 %v4225, 1.442695
    %v4235 = vpow.pop %v4234
    %v4236 = vmul.f32 %v4226, 1.442695
    %v4237 = vpow.pop %v4236
    %v4238 = vmul.f32 %v4227, 1.442695
    %v4239 = vpow.pop %v4238
    %v4240 = vmul.f32 %v4228, 1.442695
    %v4241 = vpow.pop %v4240
    %v4242 = vmul.f32 %v4229, 1.442695
    %v4243 = vpow.pop %v4242
    %v4244 = vmul.f32 %v4230, 1.442695
    %v4245 = vpow.pop %v4244
    %v4246 = vmul.f32 %v4231, 1.442695
    %v4247 = vpow.pop %v4246
    %v4248 = vsel %vm882, %v4233, 0.0
    %4249 = vadd.xlane.f32.xlu0 %v4248
    %v4250 = vpop.xlane.xlu0 %4249
    %v4251 = vsel %vm882, %v4235, 0.0
    %4252 = vadd.xlane.f32.xlu0 %v4251
    %v4253 = vpop.xlane.xlu0 %4252
    %v4254 = vsel %vm882, %v4237, 0.0
    %4255 = vadd.xlane.f32.xlu0 %v4254
    %v4256 = vpop.xlane.xlu0 %4255
    %v4257 = vsel %vm882, %v4239, 0.0
    %4258 = vadd.xlane.f32.xlu0 %v4257
    %v4259 = vpop.xlane.xlu0 %4258
    %v4260 = vsel %vm882, %v4241, 0.0
    %4261 = vadd.xlane.f32.xlu0 %v4260
    %v4262 = vpop.xlane.xlu0 %4261
    %v4263 = vsel %vm882, %v4243, 0.0
    %4264 = vadd.xlane.f32.xlu0 %v4263
    %v4265 = vpop.xlane.xlu0 %4264
    %v4266 = vsel %vm882, %v4245, 0.0
    %4267 = vadd.xlane.f32.xlu0 %v4266
    %v4268 = vpop.xlane.xlu0 %4267
    %v4269 = vsel %vm882, %v4247, 0.0
    %4270 = vadd.xlane.f32.xlu0 %v4269
    %v4271 = vpop.xlane.xlu0 %4270
    %v4272 = vrcp.pop %v4250
    %v4273 = vrcp.pop %v4253
    %v4274 = vrcp.pop %v4256
    %v4275 = vrcp.pop %v4259
    %v4276 = vrcp.pop %v4262
    %v4277 = vrcp.pop %v4265
    %v4278 = vrcp.pop %v4268
    %v4279 = vrcp.pop %v4271
    %v4280 = vmul.f32 %v4233, %v4272
    %v4281 = vmul.f32 %v4235, %v4273
    %v4282 = vmul.f32 %v4237, %v4274
    %v4283 = vmul.f32 %v4239, %v4275
    %v4284 = vmul.f32 %v4241, %v4276
    %v4285 = vmul.f32 %v4243, %v4277
    %v4286 = vmul.f32 %v4245, %v4278
    %v4287 = vmul.f32 %v4247, %v4279
    %v4289 = vsel %vm882, %v4280, 0
    %v4292 = vsel %vm882, %v4281, 0
    %v4295 = vsel %vm882, %v4282, 0
    %v4298 = vsel %vm882, %v4283, 0
    %v4301 = vsel %vm882, %v4284, 0
    %v4304 = vsel %vm882, %v4285, 0
    %v4307 = vsel %vm882, %v4286, 0
    %v4310 = vsel %vm882, %v4287, 0
    %4312 = vmatpush.msra.mxu0 0.0
    %4313 = vmatpush.msra.mxu0 0.0
    %4314 = vmatpush.msra.mxu0 0.0
    %4315 = vmatpush.msra.mxu0 0.0
    %4316 = vmatpush.msra.mxu0 0.0
    %4317 = vmatpush.msra.mxu0 0.0
    %4318 = vmatpush.msra.mxu0 0.0
    %4319 = vmatpush.msra.mxu0 0.0
    %4320 = vmatpush.msra.mxu0 %v4125
    %4321 = vmatpush.msra.mxu0 %v4122
    %4322 = vmatpush.msra.mxu0 %v4119
    %4323 = vmatpush.msra.mxu0 %v4116
    %4324 = vmatpush.msra.mxu0 %v4113
    %4325 = vmatpush.msra.mxu0 %v4110
    %4326 = vmatpush.msra.mxu0 %v4107
    %4327 = vmatpush.msra.mxu0 %v4072
    %4328 = vmatmul.f32.gmra.mxu0 %v4289
    %v4329 = vpop.f32.mrf.mxu0
    %v4330 = vadd.f32 0.0, %v4329
    %4331 = vmatmul.f32.gmra.mxu0 %v4292
    %v4332 = vpop.f32.mrf.mxu0
    %v4333 = vadd.f32 0.0, %v4332
    %4334 = vmatmul.f32.gmra.mxu0 %v4295
    %v4335 = vpop.f32.mrf.mxu0
    %v4336 = vadd.f32 0.0, %v4335
    %4337 = vmatmul.f32.gmra.mxu0 %v4298
    %v4338 = vpop.f32.mrf.mxu0
    %v4339 = vadd.f32 0.0, %v4338
    %4340 = vmatmul.f32.gmra.mxu0 %v4301
    %v4341 = vpop.f32.mrf.mxu0
    %v4342 = vadd.f32 0.0, %v4341
    %4343 = vmatmul.f32.gmra.mxu0 %v4304
    %v4344 = vpop.f32.mrf.mxu0
    %v4345 = vadd.f32 0.0, %v4344
    %4346 = vmatmul.f32.gmra.mxu0 %v4307
    %v4347 = vpop.f32.mrf.mxu0
    %v4348 = vadd.f32 0.0, %v4347
    %4349 = vmatmul.f32.gmra.mxu0 %v4310
    %v4350 = vpop.f32.mrf.mxu0
    %v4351 = vadd.f32 0.0, %v4350
    %4352 = vdwg.mxu0
    %4354 = vrot.lane.b32.xlu0 %v4333, 16
    %v4355 = vpop.permute.xlu0 %4354
    %4358 = vrot.lane.b32.xlu0 %v4336, 32
    %v4359 = vpop.permute.xlu0 %4358
    %4362 = vrot.lane.b32.xlu0 %v4339, 48
    %v4363 = vpop.permute.xlu0 %4362
    %4366 = vrot.lane.b32.xlu0 %v4342, 64
    %v4367 = vpop.permute.xlu0 %4366
    %4370 = vrot.lane.b32.xlu0 %v4345, 80
    %v4371 = vpop.permute.xlu0 %4370
    %4374 = vrot.lane.b32.xlu0 %v4348, 96
    %v4375 = vpop.permute.xlu0 %4374
    %4378 = vrot.lane.b32.xlu0 %v4351, 112
    %v4379 = vpop.permute.xlu0 %4378
    %v4381 = vsel %vm434, %v4330, %v4355
    %v4382 = vsel %vm1422, %v4381, %v4359
    %v4383 = vsel %vm1424, %v4382, %v4363
    %v4384 = vsel %vm882, %v4383, %v4367
    %v4385 = vsel %vm1427, %v4384, %v4371
    %v4386 = vsel %vm1429, %v4385, %v4375
    %v4387 = vsel %vm1431, %v4386, %v4379
    %v4388 = vpack.c.bf16 %v4387, %v4387
    %s4389 = scalar_lea.vmem [#allocation20], 64
    %v4390 = vld [vmem:[%s4389] sm:$0xf]
    %v4391 = vld [vmem:[%s4389 + $0x4] sm:$0xf]
    %v4392 = vld [vmem:[%s4389 + $0x8] sm:$0xf]
    %v4393 = vld [vmem:[%s4389 + $0xc] sm:$0xf]
    %v4394 = vld [vmem:[%s4389 + $0x10] sm:$0xf]
    %v4395 = vld [vmem:[%s4389 + $0x14] sm:$0xf]
    %v4396 = vld [vmem:[%s4389 + $0x18] sm:$0xf]
    %v4397 = vld [vmem:[%s4389 + $0x1c] sm:$0xf]
    %v4398 = vld [vmem:[%s4389 + $0x20] sm:$0xf]
    %v4399 = vld [vmem:[%s4389 + $0x24] sm:$0xf]
    %v4400 = vld [vmem:[%s4389 + $0x28] sm:$0xf]
    %v4401 = vld [vmem:[%s4389 + $0x2c] sm:$0xf]
    %v4402 = vld [vmem:[%s4389 + $0x30] sm:$0xf]
    %v4403 = vld [vmem:[%s4389 + $0x34] sm:$0xf]
    %v4404 = vld [vmem:[%s4389 + $0x38] sm:$0xf]
    %v4405 = vld [vmem:[%s4389 + $0x3c] sm:$0xf]
    %s4406 = scalar_lea.vmem [#allocation22], 1
    %v4407 = vld [vmem:[%s4406] sm:$0x1]
    %v4409 = vperm.slane %v4407, 0
    %v4427 = vunpack.c.l.b16 %v4390
    %v4428 = vunpack.c.l.b16 %v4391
    %v4429 = vunpack.c.l.b16 %v4392
    %v4430 = vunpack.c.l.b16 %v4393
    %v4431 = vunpack.c.l.b16 %v4394
    %v4432 = vunpack.c.l.b16 %v4395
    %v4433 = vunpack.c.l.b16 %v4396
    %v4434 = vunpack.c.l.b16 %v4397
    %v4435 = vunpack.c.l.b16 %v4398
    %v4436 = vunpack.c.l.b16 %v4399
    %v4437 = vunpack.c.l.b16 %v4400
    %v4438 = vunpack.c.l.b16 %v4401
    %v4439 = vunpack.c.l.b16 %v4402
    %v4440 = vunpack.c.l.b16 %v4403
    %v4441 = vunpack.c.l.b16 %v4404
    %v4442 = vunpack.c.l.b16 %v4405
    %v4443 = vpack.c.b16 %v4428, %v4427
    %v4444 = vpack.c.b16 %v4430, %v4429
    %v4445 = vpack.c.b16 %v4432, %v4431
    %v4446 = vpack.c.b16 %v4434, %v4433
    %v4447 = vpack.c.b16 %v4436, %v4435
    %v4448 = vpack.c.b16 %v4438, %v4437
    %v4449 = vpack.c.b16 %v4440, %v4439
    %v4450 = vpack.c.b16 %v4442, %v4441
    %4459 = vmatpush.bf16.msra.mxu0 %v4450
    %4460 = vmatpush.bf16.msra.mxu0 %v4449
    %4461 = vmatpush.bf16.msra.mxu0 %v4448
    %4462 = vmatpush.bf16.msra.mxu0 %v4447
    %4463 = vmatpush.bf16.msra.mxu0 %v4446
    %4464 = vmatpush.bf16.msra.mxu0 %v4445
    %4465 = vmatpush.bf16.msra.mxu0 %v4444
    %4466 = vmatpush.bf16.msra.mxu0 %v4443
    %4467 = vmatmul.bf16.gmra.mxu0 %v4388
    %v4468 = vpop.f32.mrf.mxu0
    %v4469 = vadd.f32 %v4409, %v4468
    %v4470 = vpop.f32.mrf.mxu0
    %4471 = vdwg.mxu0
    %v4472 = vadd.f32 %v3864, %v4469
    %s4473 = scalar_lea.vmem [#allocation23], 1
    %v4474 = vld [vmem:[%s4473] sm:$0x1]
    %s4475 = scalar_lea.vmem [#allocation25], 1
    %v4476 = vld [vmem:[%s4475] sm:$0x1]
    %4477 = vadd.xlane.f32.xlu0 %v4472
    %v4478 = vpop.xlane.xlu0 %4477
    %v4479 = vmul.f32 %v4478, %v1526
    %v4480 = vsub.f32 %v4472, %v4479
    %v4481 = vmul.f32 %v4480, %v4480
    %4482 = vadd.xlane.f32.xlu0 %v4481
    %v4483 = vpop.xlane.xlu0 %4482
    %v4484 = vmul.f32 %v4483, %v1526
    %v4485 = vadd.f32 %v4484, 1e-05
    %v4486 = vrsqrt.pop %v4485
    %v4487 = vmul.f32 %v4486, %v4485
    %v4488 = vmul.f32 %v4487, %v4486
    %v4489 = vmul.f32 0.5, %v4488
    %v4490 = vsub.f32 1.5, %v4489
    %v4491 = vmul.f32 %v4486, %v4490
    %vm4492 = vweird.f32 %v4485
    %vm4493 = vweird.f32 %v4486
    %vm4494 = vmor %vm4492, %vm4493
    %v4495 = vsel %vm4494, %v4486, %v4491
    %v4496 = vmul.f32 %v4480, %v4495
    %v4498 = vperm.slane %v4474, 0
    %v4500 = vmul.f32 %v4496, %v4498
    %v4502 = vperm.slane %v4476, 0
    %v4504 = vadd.f32 %v4500, %v4502
    %v4505 = vpack.c.bf16 %v4504, %v4504
    %s4506 = scalar_lea.vmem [#allocation26], 1024
    %v4507 = vld [vmem:[%s4506] sm:$0xff]
    %v4508 = vld [vmem:[%s4506 + $0x8] sm:$0xff]
    %v4509 = vld [vmem:[%s4506 + $0x10] sm:$0xff]
    %v4510 = vld [vmem:[%s4506 + $0x18] sm:$0xff]
    %v4511 = vld [vmem:[%s4506 + $0x20] sm:$0xff]
    %v4512 = vld [vmem:[%s4506 + $0x28] sm:$0xff]
    %v4513 = vld [vmem:[%s4506 + $0x30] sm:$0xff]
    %v4514 = vld [vmem:[%s4506 + $0x38] sm:$0xff]
    %v4515 = vld [vmem:[%s4506 + $0x40] sm:$0xff]
    %v4516 = vld [vmem:[%s4506 + $0x48] sm:$0xff]
    %v4517 = vld [vmem:[%s4506 + $0x50] sm:$0xff]
    %v4518 = vld [vmem:[%s4506 + $0x58] sm:$0xff]
    %v4519 = vld [vmem:[%s4506 + $0x60] sm:$0xff]
    %v4520 = vld [vmem:[%s4506 + $0x68] sm:$0xff]
    %v4521 = vld [vmem:[%s4506 + $0x70] sm:$0xff]
    %v4522 = vld [vmem:[%s4506 + $0x78] sm:$0xff]
    %v4523 = vld [vmem:[%s4506 + $0x80] sm:$0xff]
    %v4524 = vld [vmem:[%s4506 + $0x88] sm:$0xff]
    %v4525 = vld [vmem:[%s4506 + $0x90] sm:$0xff]
    %v4526 = vld [vmem:[%s4506 + $0x98] sm:$0xff]
    %v4527 = vld [vmem:[%s4506 + $0xa0] sm:$0xff]
    %v4528 = vld [vmem:[%s4506 + $0xa8] sm:$0xff]
    %v4529 = vld [vmem:[%s4506 + $0xb0] sm:$0xff]
    %v4530 = vld [vmem:[%s4506 + $0xb8] sm:$0xff]
    %v4531 = vld [vmem:[%s4506 + $0xc0] sm:$0xff]
    %v4532 = vld [vmem:[%s4506 + $0xc8] sm:$0xff]
    %v4533 = vld [vmem:[%s4506 + $0xd0] sm:$0xff]
    %v4534 = vld [vmem:[%s4506 + $0xd8] sm:$0xff]
    %v4535 = vld [vmem:[%s4506 + $0xe0] sm:$0xff]
    %v4536 = vld [vmem:[%s4506 + $0xe8] sm:$0xff]
    %v4537 = vld [vmem:[%s4506 + $0xf0] sm:$0xff]
    %v4538 = vld [vmem:[%s4506 + $0xf8] sm:$0xff]
    %v4539 = vld [vmem:[%s4506 + $0x100] sm:$0xff]
    %v4540 = vld [vmem:[%s4506 + $0x108] sm:$0xff]
    %v4541 = vld [vmem:[%s4506 + $0x110] sm:$0xff]
    %v4542 = vld [vmem:[%s4506 + $0x118] sm:$0xff]
    %v4543 = vld [vmem:[%s4506 + $0x120] sm:$0xff]
    %v4544 = vld [vmem:[%s4506 + $0x128] sm:$0xff]
    %v4545 = vld [vmem:[%s4506 + $0x130] sm:$0xff]
    %v4546 = vld [vmem:[%s4506 + $0x138] sm:$0xff]
    %v4547 = vld [vmem:[%s4506 + $0x140] sm:$0xff]
    %v4548 = vld [vmem:[%s4506 + $0x148] sm:$0xff]
    %v4549 = vld [vmem:[%s4506 + $0x150] sm:$0xff]
    %v4550 = vld [vmem:[%s4506 + $0x158] sm:$0xff]
    %v4551 = vld [vmem:[%s4506 + $0x160] sm:$0xff]
    %v4552 = vld [vmem:[%s4506 + $0x168] sm:$0xff]
    %v4553 = vld [vmem:[%s4506 + $0x170] sm:$0xff]
    %v4554 = vld [vmem:[%s4506 + $0x178] sm:$0xff]
    %v4555 = vld [vmem:[%s4506 + $0x180] sm:$0xff]
    %v4556 = vld [vmem:[%s4506 + $0x188] sm:$0xff]
    %v4557 = vld [vmem:[%s4506 + $0x190] sm:$0xff]
    %v4558 = vld [vmem:[%s4506 + $0x198] sm:$0xff]
    %v4559 = vld [vmem:[%s4506 + $0x1a0] sm:$0xff]
    %v4560 = vld [vmem:[%s4506 + $0x1a8] sm:$0xff]
    %v4561 = vld [vmem:[%s4506 + $0x1b0] sm:$0xff]
    %v4562 = vld [vmem:[%s4506 + $0x1b8] sm:$0xff]
    %v4563 = vld [vmem:[%s4506 + $0x1c0] sm:$0xff]
    %v4564 = vld [vmem:[%s4506 + $0x1c8] sm:$0xff]
    %v4565 = vld [vmem:[%s4506 + $0x1d0] sm:$0xff]
    %v4566 = vld [vmem:[%s4506 + $0x1d8] sm:$0xff]
    %v4567 = vld [vmem:[%s4506 + $0x1e0] sm:$0xff]
    %v4568 = vld [vmem:[%s4506 + $0x1e8] sm:$0xff]
    %v4569 = vld [vmem:[%s4506 + $0x1f0] sm:$0xff]
    %v4570 = vld [vmem:[%s4506 + $0x1f8] sm:$0xff]
    %v4571 = vld [vmem:[%s4506 + $0x200] sm:$0xff]
    %v4572 = vld [vmem:[%s4506 + $0x208] sm:$0xff]
    %v4573 = vld [vmem:[%s4506 + $0x210] sm:$0xff]
    %v4574 = vld [vmem:[%s4506 + $0x218] sm:$0xff]
    %v4575 = vld [vmem:[%s4506 + $0x220] sm:$0xff]
    %v4576 = vld [vmem:[%s4506 + $0x228] sm:$0xff]
    %v4577 = vld [vmem:[%s4506 + $0x230] sm:$0xff]
    %v4578 = vld [vmem:[%s4506 + $0x238] sm:$0xff]
    %v4579 = vld [vmem:[%s4506 + $0x240] sm:$0xff]
    %v4580 = vld [vmem:[%s4506 + $0x248] sm:$0xff]
    %v4581 = vld [vmem:[%s4506 + $0x250] sm:$0xff]
    %v4582 = vld [vmem:[%s4506 + $0x258] sm:$0xff]
    %v4583 = vld [vmem:[%s4506 + $0x260] sm:$0xff]
    %v4584 = vld [vmem:[%s4506 + $0x268] sm:$0xff]
    %v4585 = vld [vmem:[%s4506 + $0x270] sm:$0xff]
    %v4586 = vld [vmem:[%s4506 + $0x278] sm:$0xff]
    %v4587 = vld [vmem:[%s4506 + $0x280] sm:$0xff]
    %v4588 = vld [vmem:[%s4506 + $0x288] sm:$0xff]
    %v4589 = vld [vmem:[%s4506 + $0x290] sm:$0xff]
    %v4590 = vld [vmem:[%s4506 + $0x298] sm:$0xff]
    %v4591 = vld [vmem:[%s4506 + $0x2a0] sm:$0xff]
    %v4592 = vld [vmem:[%s4506 + $0x2a8] sm:$0xff]
    %v4593 = vld [vmem:[%s4506 + $0x2b0] sm:$0xff]
    %v4594 = vld [vmem:[%s4506 + $0x2b8] sm:$0xff]
    %v4595 = vld [vmem:[%s4506 + $0x2c0] sm:$0xff]
    %v4596 = vld [vmem:[%s4506 + $0x2c8] sm:$0xff]
    %v4597 = vld [vmem:[%s4506 + $0x2d0] sm:$0xff]
    %v4598 = vld [vmem:[%s4506 + $0x2d8] sm:$0xff]
    %v4599 = vld [vmem:[%s4506 + $0x2e0] sm:$0xff]
    %v4600 = vld [vmem:[%s4506 + $0x2e8] sm:$0xff]
    %v4601 = vld [vmem:[%s4506 + $0x2f0] sm:$0xff]
    %v4602 = vld [vmem:[%s4506 + $0x2f8] sm:$0xff]
    %v4603 = vld [vmem:[%s4506 + $0x300] sm:$0xff]
    %v4604 = vld [vmem:[%s4506 + $0x308] sm:$0xff]
    %v4605 = vld [vmem:[%s4506 + $0x310] sm:$0xff]
    %v4606 = vld [vmem:[%s4506 + $0x318] sm:$0xff]
    %v4607 = vld [vmem:[%s4506 + $0x320] sm:$0xff]
    %v4608 = vld [vmem:[%s4506 + $0x328] sm:$0xff]
    %v4609 = vld [vmem:[%s4506 + $0x330] sm:$0xff]
    %v4610 = vld [vmem:[%s4506 + $0x338] sm:$0xff]
    %v4611 = vld [vmem:[%s4506 + $0x340] sm:$0xff]
    %v4612 = vld [vmem:[%s4506 + $0x348] sm:$0xff]
    %v4613 = vld [vmem:[%s4506 + $0x350] sm:$0xff]
    %v4614 = vld [vmem:[%s4506 + $0x358] sm:$0xff]
    %v4615 = vld [vmem:[%s4506 + $0x360] sm:$0xff]
    %v4616 = vld [vmem:[%s4506 + $0x368] sm:$0xff]
    %v4617 = vld [vmem:[%s4506 + $0x370] sm:$0xff]
    %v4618 = vld [vmem:[%s4506 + $0x378] sm:$0xff]
    %v4619 = vld [vmem:[%s4506 + $0x380] sm:$0xff]
    %v4620 = vld [vmem:[%s4506 + $0x388] sm:$0xff]
    %v4621 = vld [vmem:[%s4506 + $0x390] sm:$0xff]
    %v4622 = vld [vmem:[%s4506 + $0x398] sm:$0xff]
    %v4623 = vld [vmem:[%s4506 + $0x3a0] sm:$0xff]
    %v4624 = vld [vmem:[%s4506 + $0x3a8] sm:$0xff]
    %v4625 = vld [vmem:[%s4506 + $0x3b0] sm:$0xff]
    %v4626 = vld [vmem:[%s4506 + $0x3b8] sm:$0xff]
    %v4627 = vld [vmem:[%s4506 + $0x3c0] sm:$0xff]
    %v4628 = vld [vmem:[%s4506 + $0x3c8] sm:$0xff]
    %v4629 = vld [vmem:[%s4506 + $0x3d0] sm:$0xff]
    %v4630 = vld [vmem:[%s4506 + $0x3d8] sm:$0xff]
    %v4631 = vld [vmem:[%s4506 + $0x3e0] sm:$0xff]
    %v4632 = vld [vmem:[%s4506 + $0x3e8] sm:$0xff]
    %v4633 = vld [vmem:[%s4506 + $0x3f0] sm:$0xff]
    %v4634 = vld [vmem:[%s4506 + $0x3f8] sm:$0xff]
    %s4635 = scalar_lea.vmem [#allocation28], 16
    %v4636 = vld [vmem:[%s4635] sm:$0xff]
    %v4637 = vld [vmem:[%s4635 + $0x8] sm:$0xff]
    %v4640 = vperm.slane %v4636, 0
    %v4641 = vperm.slane %v4636, 1
    %v4642 = vperm.slane %v4636, 2
    %v4643 = vperm.slane %v4636, 3
    %v4644 = vperm.slane %v4636, 4
    %v4645 = vperm.slane %v4636, 5
    %v4646 = vperm.slane %v4636, 6
    %v4647 = vperm.slane %v4636, 7
    %v4648 = vperm.slane %v4637, 0
    %v4649 = vperm.slane %v4637, 1
    %v4650 = vperm.slane %v4637, 2
    %v4651 = vperm.slane %v4637, 3
    %v4652 = vperm.slane %v4637, 4
    %v4653 = vperm.slane %v4637, 5
    %v4654 = vperm.slane %v4637, 6
    %v4655 = vperm.slane %v4637, 7
    %v4800 = vunpack.c.l.b16 %v4507
    %v4801 = vunpack.c.h.b16 %v4507
    %v4802 = vunpack.c.l.b16 %v4508
    %v4803 = vunpack.c.h.b16 %v4508
    %v4804 = vunpack.c.l.b16 %v4509
    %v4805 = vunpack.c.h.b16 %v4509
    %v4806 = vunpack.c.l.b16 %v4510
    %v4807 = vunpack.c.h.b16 %v4510
    %v4808 = vunpack.c.l.b16 %v4511
    %v4809 = vunpack.c.h.b16 %v4511
    %v4810 = vunpack.c.l.b16 %v4512
    %v4811 = vunpack.c.h.b16 %v4512
    %v4812 = vunpack.c.l.b16 %v4513
    %v4813 = vunpack.c.h.b16 %v4513
    %v4814 = vunpack.c.l.b16 %v4514
    %v4815 = vunpack.c.h.b16 %v4514
    %v4816 = vunpack.c.l.b16 %v4515
    %v4817 = vunpack.c.h.b16 %v4515
    %v4818 = vunpack.c.l.b16 %v4516
    %v4819 = vunpack.c.h.b16 %v4516
    %v4820 = vunpack.c.l.b16 %v4517
    %v4821 = vunpack.c.h.b16 %v4517
    %v4822 = vunpack.c.l.b16 %v4518
    %v4823 = vunpack.c.h.b16 %v4518
    %v4824 = vunpack.c.l.b16 %v4519
    %v4825 = vunpack.c.h.b16 %v4519
    %v4826 = vunpack.c.l.b16 %v4520
    %v4827 = vunpack.c.h.b16 %v4520
    %v4828 = vunpack.c.l.b16 %v4521
    %v4829 = vunpack.c.h.b16 %v4521
    %v4830 = vunpack.c.l.b16 %v4522
    %v4831 = vunpack.c.h.b16 %v4522
    %v4832 = vunpack.c.l.b16 %v4523
    %v4833 = vunpack.c.h.b16 %v4523
    %v4834 = vunpack.c.l.b16 %v4524
    %v4835 = vunpack.c.h.b16 %v4524
    %v4836 = vunpack.c.l.b16 %v4525
    %v4837 = vunpack.c.h.b16 %v4525
    %v4838 = vunpack.c.l.b16 %v4526
    %v4839 = vunpack.c.h.b16 %v4526
    %v4840 = vunpack.c.l.b16 %v4527
    %v4841 = vunpack.c.h.b16 %v4527
    %v4842 = vunpack.c.l.b16 %v4528
    %v4843 = vunpack.c.h.b16 %v4528
    %v4844 = vunpack.c.l.b16 %v4529
    %v4845 = vunpack.c.h.b16 %v4529
    %v4846 = vunpack.c.l.b16 %v4530
    %v4847 = vunpack.c.h.b16 %v4530
    %v4848 = vunpack.c.l.b16 %v4531
    %v4849 = vunpack.c.h.b16 %v4531
    %v4850 = vunpack.c.l.b16 %v4532
    %v4851 = vunpack.c.h.b16 %v4532
    %v4852 = vunpack.c.l.b16 %v4533
    %v4853 = vunpack.c.h.b16 %v4533
    %v4854 = vunpack.c.l.b16 %v4534
    %v4855 = vunpack.c.h.b16 %v4534
    %v4856 = vunpack.c.l.b16 %v4535
    %v4857 = vunpack.c.h.b16 %v4535
    %v4858 = vunpack.c.l.b16 %v4536
    %v4859 = vunpack.c.h.b16 %v4536
    %v4860 = vunpack.c.l.b16 %v4537
    %v4861 = vunpack.c.h.b16 %v4537
    %v4862 = vunpack.c.l.b16 %v4538
    %v4863 = vunpack.c.h.b16 %v4538
    %v4864 = vunpack.c.l.b16 %v4539
    %v4865 = vunpack.c.h.b16 %v4539
    %v4866 = vunpack.c.l.b16 %v4540
    %v4867 = vunpack.c.h.b16 %v4540
    %v4868 = vunpack.c.l.b16 %v4541
    %v4869 = vunpack.c.h.b16 %v4541
    %v4870 = vunpack.c.l.b16 %v4542
    %v4871 = vunpack.c.h.b16 %v4542
    %v4872 = vunpack.c.l.b16 %v4543
    %v4873 = vunpack.c.h.b16 %v4543
    %v4874 = vunpack.c.l.b16 %v4544
    %v4875 = vunpack.c.h.b16 %v4544
    %v4876 = vunpack.c.l.b16 %v4545
    %v4877 = vunpack.c.h.b16 %v4545
    %v4878 = vunpack.c.l.b16 %v4546
    %v4879 = vunpack.c.h.b16 %v4546
    %v4880 = vunpack.c.l.b16 %v4547
    %v4881 = vunpack.c.h.b16 %v4547
    %v4882 = vunpack.c.l.b16 %v4548
    %v4883 = vunpack.c.h.b16 %v4548
    %v4884 = vunpack.c.l.b16 %v4549
    %v4885 = vunpack.c.h.b16 %v4549
    %v4886 = vunpack.c.l.b16 %v4550
    %v4887 = vunpack.c.h.b16 %v4550
    %v4888 = vunpack.c.l.b16 %v4551
    %v4889 = vunpack.c.h.b16 %v4551
    %v4890 = vunpack.c.l.b16 %v4552
    %v4891 = vunpack.c.h.b16 %v4552
    %v4892 = vunpack.c.l.b16 %v4553
    %v4893 = vunpack.c.h.b16 %v4553
    %v4894 = vunpack.c.l.b16 %v4554
    %v4895 = vunpack.c.h.b16 %v4554
    %v4896 = vunpack.c.l.b16 %v4555
    %v4897 = vunpack.c.h.b16 %v4555
    %v4898 = vunpack.c.l.b16 %v4556
    %v4899 = vunpack.c.h.b16 %v4556
    %v4900 = vunpack.c.l.b16 %v4557
    %v4901 = vunpack.c.h.b16 %v4557
    %v4902 = vunpack.c.l.b16 %v4558
    %v4903 = vunpack.c.h.b16 %v4558
    %v4904 = vunpack.c.l.b16 %v4559
    %v4905 = vunpack.c.h.b16 %v4559
    %v4906 = vunpack.c.l.b16 %v4560
    %v4907 = vunpack.c.h.b16 %v4560
    %v4908 = vunpack.c.l.b16 %v4561
    %v4909 = vunpack.c.h.b16 %v4561
    %v4910 = vunpack.c.l.b16 %v4562
    %v4911 = vunpack.c.h.b16 %v4562
    %v4912 = vunpack.c.l.b16 %v4563
    %v4913 = vunpack.c.h.b16 %v4563
    %v4914 = vunpack.c.l.b16 %v4564
    %v4915 = vunpack.c.h.b16 %v4564
    %v4916 = vunpack.c.l.b16 %v4565
    %v4917 = vunpack.c.h.b16 %v4565
    %v4918 = vunpack.c.l.b16 %v4566
    %v4919 = vunpack.c.h.b16 %v4566
    %v4920 = vunpack.c.l.b16 %v4567
    %v4921 = vunpack.c.h.b16 %v4567
    %v4922 = vunpack.c.l.b16 %v4568
    %v4923 = vunpack.c.h.b16 %v4568
    %v4924 = vunpack.c.l.b16 %v4569
    %v4925 = vunpack.c.h.b16 %v4569
    %v4926 = vunpack.c.l.b16 %v4570
    %v4927 = vunpack.c.h.b16 %v4570
    %v4928 = vunpack.c.l.b16 %v4571
    %v4929 = vunpack.c.h.b16 %v4571
    %v4930 = vunpack.c.l.b16 %v4572
    %v4931 = vunpack.c.h.b16 %v4572
    %v4932 = vunpack.c.l.b16 %v4573
    %v4933 = vunpack.c.h.b16 %v4573
    %v4934 = vunpack.c.l.b16 %v4574
    %v4935 = vunpack.c.h.b16 %v4574
    %v4936 = vunpack.c.l.b16 %v4575
    %v4937 = vunpack.c.h.b16 %v4575
    %v4938 = vunpack.c.l.b16 %v4576
    %v4939 = vunpack.c.h.b16 %v4576
    %v4940 = vunpack.c.l.b16 %v4577
    %v4941 = vunpack.c.h.b16 %v4577
    %v4942 = vunpack.c.l.b16 %v4578
    %v4943 = vunpack.c.h.b16 %v4578
    %v4944 = vunpack.c.l.b16 %v4579
    %v4945 = vunpack.c.h.b16 %v4579
    %v4946 = vunpack.c.l.b16 %v4580
    %v4947 = vunpack.c.h.b16 %v4580
    %v4948 = vunpack.c.l.b16 %v4581
    %v4949 = vunpack.c.h.b16 %v4581
    %v4950 = vunpack.c.l.b16 %v4582
    %v4951 = vunpack.c.h.b16 %v4582
    %v4952 = vunpack.c.l.b16 %v4583
    %v4953 = vunpack.c.h.b16 %v4583
    %v4954 = vunpack.c.l.b16 %v4584
    %v4955 = vunpack.c.h.b16 %v4584
    %v4956 = vunpack.c.l.b16 %v4585
    %v4957 = vunpack.c.h.b16 %v4585
    %v4958 = vunpack.c.l.b16 %v4586
    %v4959 = vunpack.c.h.b16 %v4586
    %v4960 = vunpack.c.l.b16 %v4587
    %v4961 = vunpack.c.h.b16 %v4587
    %v4962 = vunpack.c.l.b16 %v4588
    %v4963 = vunpack.c.h.b16 %v4588
    %v4964 = vunpack.c.l.b16 %v4589
    %v4965 = vunpack.c.h.b16 %v4589
    %v4966 = vunpack.c.l.b16 %v4590
    %v4967 = vunpack.c.h.b16 %v4590
    %v4968 = vunpack.c.l.b16 %v4591
    %v4969 = vunpack.c.h.b16 %v4591
    %v4970 = vunpack.c.l.b16 %v4592
    %v4971 = vunpack.c.h.b16 %v4592
    %v4972 = vunpack.c.l.b16 %v4593
    %v4973 = vunpack.c.h.b16 %v4593
    %v4974 = vunpack.c.l.b16 %v4594
    %v4975 = vunpack.c.h.b16 %v4594
    %v4976 = vunpack.c.l.b16 %v4595
    %v4977 = vunpack.c.h.b16 %v4595
    %v4978 = vunpack.c.l.b16 %v4596
    %v4979 = vunpack.c.h.b16 %v4596
    %v4980 = vunpack.c.l.b16 %v4597
    %v4981 = vunpack.c.h.b16 %v4597
    %v4982 = vunpack.c.l.b16 %v4598
    %v4983 = vunpack.c.h.b16 %v4598
    %v4984 = vunpack.c.l.b16 %v4599
    %v4985 = vunpack.c.h.b16 %v4599
    %v4986 = vunpack.c.l.b16 %v4600
    %v4987 = vunpack.c.h.b16 %v4600
    %v4988 = vunpack.c.l.b16 %v4601
    %v4989 = vunpack.c.h.b16 %v4601
    %v4990 = vunpack.c.l.b16 %v4602
    %v4991 = vunpack.c.h.b16 %v4602
    %v4992 = vunpack.c.l.b16 %v4603
    %v4993 = vunpack.c.h.b16 %v4603
    %v4994 = vunpack.c.l.b16 %v4604
    %v4995 = vunpack.c.h.b16 %v4604
    %v4996 = vunpack.c.l.b16 %v4605
    %v4997 = vunpack.c.h.b16 %v4605
    %v4998 = vunpack.c.l.b16 %v4606
    %v4999 = vunpack.c.h.b16 %v4606
    %v5000 = vunpack.c.l.b16 %v4607
    %v5001 = vunpack.c.h.b16 %v4607
    %v5002 = vunpack.c.l.b16 %v4608
    %v5003 = vunpack.c.h.b16 %v4608
    %v5004 = vunpack.c.l.b16 %v4609
    %v5005 = vunpack.c.h.b16 %v4609
    %v5006 = vunpack.c.l.b16 %v4610
    %v5007 = vunpack.c.h.b16 %v4610
    %v5008 = vunpack.c.l.b16 %v4611
    %v5009 = vunpack.c.h.b16 %v4611
    %v5010 = vunpack.c.l.b16 %v4612
    %v5011 = vunpack.c.h.b16 %v4612
    %v5012 = vunpack.c.l.b16 %v4613
    %v5013 = vunpack.c.h.b16 %v4613
    %v5014 = vunpack.c.l.b16 %v4614
    %v5015 = vunpack.c.h.b16 %v4614
    %v5016 = vunpack.c.l.b16 %v4615
    %v5017 = vunpack.c.h.b16 %v4615
    %v5018 = vunpack.c.l.b16 %v4616
    %v5019 = vunpack.c.h.b16 %v4616
    %v5020 = vunpack.c.l.b16 %v4617
    %v5021 = vunpack.c.h.b16 %v4617
    %v5022 = vunpack.c.l.b16 %v4618
    %v5023 = vunpack.c.h.b16 %v4618
    %v5024 = vunpack.c.l.b16 %v4619
    %v5025 = vunpack.c.h.b16 %v4619
    %v5026 = vunpack.c.l.b16 %v4620
    %v5027 = vunpack.c.h.b16 %v4620
    %v5028 = vunpack.c.l.b16 %v4621
    %v5029 = vunpack.c.h.b16 %v4621
    %v5030 = vunpack.c.l.b16 %v4622
    %v5031 = vunpack.c.h.b16 %v4622
    %v5032 = vunpack.c.l.b16 %v4623
    %v5033 = vunpack.c.h.b16 %v4623
    %v5034 = vunpack.c.l.b16 %v4624
    %v5035 = vunpack.c.h.b16 %v4624
    %v5036 = vunpack.c.l.b16 %v4625
    %v5037 = vunpack.c.h.b16 %v4625
    %v5038 = vunpack.c.l.b16 %v4626
    %v5039 = vunpack.c.h.b16 %v4626
    %v5040 = vunpack.c.l.b16 %v4627
    %v5041 = vunpack.c.h.b16 %v4627
    %v5042 = vunpack.c.l.b16 %v4628
    %v5043 = vunpack.c.h.b16 %v4628
    %v5044 = vunpack.c.l.b16 %v4629
    %v5045 = vunpack.c.h.b16 %v4629
    %v5046 = vunpack.c.l.b16 %v4630
    %v5047 = vunpack.c.h.b16 %v4630
    %v5048 = vunpack.c.l.b16 %v4631
    %v5049 = vunpack.c.h.b16 %v4631
    %v5050 = vunpack.c.l.b16 %v4632
    %v5051 = vunpack.c.h.b16 %v4632
    %v5052 = vunpack.c.l.b16 %v4633
    %v5053 = vunpack.c.h.b16 %v4633
    %v5054 = vunpack.c.l.b16 %v4634
    %v5055 = vunpack.c.h.b16 %v4634
    %v5056 = vpack.c.b16 %v4816, %v4800
    %v5057 = vpack.c.b16 %v4817, %v4801
    %v5058 = vpack.c.b16 %v4818, %v4802
    %v5059 = vpack.c.b16 %v4819, %v4803
    %v5060 = vpack.c.b16 %v4820, %v4804
    %v5061 = vpack.c.b16 %v4821, %v4805
    %v5062 = vpack.c.b16 %v4822, %v4806
    %v5063 = vpack.c.b16 %v4823, %v4807
    %v5064 = vpack.c.b16 %v4824, %v4808
    %v5065 = vpack.c.b16 %v4825, %v4809
    %v5066 = vpack.c.b16 %v4826, %v4810
    %v5067 = vpack.c.b16 %v4827, %v4811
    %v5068 = vpack.c.b16 %v4828, %v4812
    %v5069 = vpack.c.b16 %v4829, %v4813
    %v5070 = vpack.c.b16 %v4830, %v4814
    %v5071 = vpack.c.b16 %v4831, %v4815
    %v5072 = vpack.c.b16 %v4848, %v4832
    %v5073 = vpack.c.b16 %v4849, %v4833
    %v5074 = vpack.c.b16 %v4850, %v4834
    %v5075 = vpack.c.b16 %v4851, %v4835
    %v5076 = vpack.c.b16 %v4852, %v4836
    %v5077 = vpack.c.b16 %v4853, %v4837
    %v5078 = vpack.c.b16 %v4854, %v4838
    %v5079 = vpack.c.b16 %v4855, %v4839
    %v5080 = vpack.c.b16 %v4856, %v4840
    %v5081 = vpack.c.b16 %v4857, %v4841
    %v5082 = vpack.c.b16 %v4858, %v4842
    %v5083 = vpack.c.b16 %v4859, %v4843
    %v5084 = vpack.c.b16 %v4860, %v4844
    %v5085 = vpack.c.b16 %v4861, %v4845
    %v5086 = vpack.c.b16 %v4862, %v4846
    %v5087 = vpack.c.b16 %v4863, %v4847
    %v5088 = vpack.c.b16 %v4880, %v4864
    %v5089 = vpack.c.b16 %v4881, %v4865
    %v5090 = vpack.c.b16 %v4882, %v4866
    %v5091 = vpack.c.b16 %v4883, %v4867
    %v5092 = vpack.c.b16 %v4884, %v4868
    %v5093 = vpack.c.b16 %v4885, %v4869
    %v5094 = vpack.c.b16 %v4886, %v4870
    %v5095 = vpack.c.b16 %v4887, %v4871
    %v5096 = vpack.c.b16 %v4888, %v4872
    %v5097 = vpack.c.b16 %v4889, %v4873
    %v5098 = vpack.c.b16 %v4890, %v4874
    %v5099 = vpack.c.b16 %v4891, %v4875
    %v5100 = vpack.c.b16 %v4892, %v4876
    %v5101 = vpack.c.b16 %v4893, %v4877
    %v5102 = vpack.c.b16 %v4894, %v4878
    %v5103 = vpack.c.b16 %v4895, %v4879
    %v5104 = vpack.c.b16 %v4912, %v4896
    %v5105 = vpack.c.b16 %v4913, %v4897
    %v5106 = vpack.c.b16 %v4914, %v4898
    %v5107 = vpack.c.b16 %v4915, %v4899
    %v5108 = vpack.c.b16 %v4916, %v4900
    %v5109 = vpack.c.b16 %v4917, %v4901
    %v5110 = vpack.c.b16 %v4918, %v4902
    %v5111 = vpack.c.b16 %v4919, %v4903
    %v5112 = vpack.c.b16 %v4920, %v4904
    %v5113 = vpack.c.b16 %v4921, %v4905
    %v5114 = vpack.c.b16 %v4922, %v4906
    %v5115 = vpack.c.b16 %v4923, %v4907
    %v5116 = vpack.c.b16 %v4924, %v4908
    %v5117 = vpack.c.b16 %v4925, %v4909
    %v5118 = vpack.c.b16 %v4926, %v4910
    %v5119 = vpack.c.b16 %v4927, %v4911
    %v5120 = vpack.c.b16 %v4944, %v4928
    %v5121 = vpack.c.b16 %v4945, %v4929
    %v5122 = vpack.c.b16 %v4946, %v4930
    %v5123 = vpack.c.b16 %v4947, %v4931
    %v5124 = vpack.c.b16 %v4948, %v4932
    %v5125 = vpack.c.b16 %v4949, %v4933
    %v5126 = vpack.c.b16 %v4950, %v4934
    %v5127 = vpack.c.b16 %v4951, %v4935
    %v5128 = vpack.c.b16 %v4952, %v4936
    %v5129 = vpack.c.b16 %v4953, %v4937
    %v5130 = vpack.c.b16 %v4954, %v4938
    %v5131 = vpack.c.b16 %v4955, %v4939
    %v5132 = vpack.c.b16 %v4956, %v4940
    %v5133 = vpack.c.b16 %v4957, %v4941
    %v5134 = vpack.c.b16 %v4958, %v4942
    %v5135 = vpack.c.b16 %v4959, %v4943
    %v5136 = vpack.c.b16 %v4976, %v4960
    %v5137 = vpack.c.b16 %v4977, %v4961
    %v5138 = vpack.c.b16 %v4978, %v4962
    %v5139 = vpack.c.b16 %v4979, %v4963
    %v5140 = vpack.c.b16 %v4980, %v4964
    %v5141 = vpack.c.b16 %v4981, %v4965
    %v5142 = vpack.c.b16 %v4982, %v4966
    %v5143 = vpack.c.b16 %v4983, %v4967
    %v5144 = vpack.c.b16 %v4984, %v4968
    %v5145 = vpack.c.b16 %v4985, %v4969
    %v5146 = vpack.c.b16 %v4986, %v4970
    %v5147 = vpack.c.b16 %v4987, %v4971
    %v5148 = vpack.c.b16 %v4988, %v4972
    %v5149 = vpack.c.b16 %v4989, %v4973
    %v5150 = vpack.c.b16 %v4990, %v4974
    %v5151 = vpack.c.b16 %v4991, %v4975
    %v5152 = vpack.c.b16 %v5008, %v4992
    %v5153 = vpack.c.b16 %v5009, %v4993
    %v5154 = vpack.c.b16 %v5010, %v4994
    %v5155 = vpack.c.b16 %v5011, %v4995
    %v5156 = vpack.c.b16 %v5012, %v4996
    %v5157 = vpack.c.b16 %v5013, %v4997
    %v5158 = vpack.c.b16 %v5014, %v4998
    %v5159 = vpack.c.b16 %v5015, %v4999
    %v5160 = vpack.c.b16 %v5016, %v5000
    %v5161 = vpack.c.b16 %v5017, %v5001
    %v5162 = vpack.c.b16 %v5018, %v5002
    %v5163 = vpack.c.b16 %v5019, %v5003
    %v5164 = vpack.c.b16 %v5020, %v5004
    %v5165 = vpack.c.b16 %v5021, %v5005
    %v5166 = vpack.c.b16 %v5022, %v5006
    %v5167 = vpack.c.b16 %v5023, %v5007
    %v5168 = vpack.c.b16 %v5040, %v5024
    %v5169 = vpack.c.b16 %v5041, %v5025
    %v5170 = vpack.c.b16 %v5042, %v5026
    %v5171 = vpack.c.b16 %v5043, %v5027
    %v5172 = vpack.c.b16 %v5044, %v5028
    %v5173 = vpack.c.b16 %v5045, %v5029
    %v5174 = vpack.c.b16 %v5046, %v5030
    %v5175 = vpack.c.b16 %v5047, %v5031
    %v5176 = vpack.c.b16 %v5048, %v5032
    %v5177 = vpack.c.b16 %v5049, %v5033
    %v5178 = vpack.c.b16 %v5050, %v5034
    %v5179 = vpack.c.b16 %v5051, %v5035
    %v5180 = vpack.c.b16 %v5052, %v5036
    %v5181 = vpack.c.b16 %v5053, %v5037
    %v5182 = vpack.c.b16 %v5054, %v5038
    %v5183 = vpack.c.b16 %v5055, %v5039
    %5312 = vmatpush.bf16.msra.mxu0 %v5168
    %5313 = vmatpush.bf16.msra.mxu0 %v5152
    %5314 = vmatpush.bf16.msra.mxu0 %v5136
    %5315 = vmatpush.bf16.msra.mxu0 %v5120
    %5316 = vmatpush.bf16.msra.mxu0 %v5104
    %5317 = vmatpush.bf16.msra.mxu0 %v5088
    %5318 = vmatpush.bf16.msra.mxu0 %v5072
    %5319 = vmatpush.bf16.msra.mxu0 %v5056
    %5320 = vmatmul.bf16.gmra.mxu0 %v4505
    %v5321 = vpop.f32.mrf.mxu0
    %v5322 = vadd.f32 %v4640, %v5321
    %v5323 = vpop.f32.mrf.mxu0
    %5324 = vdwg.mxu0
    %5325 = vmatpush.bf16.msra.mxu0 %v5169
    %5326 = vmatpush.bf16.msra.mxu0 %v5153
    %5327 = vmatpush.bf16.msra.mxu0 %v5137
    %5328 = vmatpush.bf16.msra.mxu0 %v5121
    %5329 = vmatpush.bf16.msra.mxu0 %v5105
    %5330 = vmatpush.bf16.msra.mxu0 %v5089
    %5331 = vmatpush.bf16.msra.mxu0 %v5073
    %5332 = vmatpush.bf16.msra.mxu0 %v5057
    %5333 = vmatmul.bf16.gmra.mxu0 %v4505
    %v5334 = vpop.f32.mrf.mxu0
    %v5335 = vadd.f32 %v4641, %v5334
    %v5336 = vpop.f32.mrf.mxu0
    %5337 = vdwg.mxu0
    %5338 = vmatpush.bf16.msra.mxu0 %v5170
    %5339 = vmatpush.bf16.msra.mxu0 %v5154
    %5340 = vmatpush.bf16.msra.mxu0 %v5138
    %5341 = vmatpush.bf16.msra.mxu0 %v5122
    %5342 = vmatpush.bf16.msra.mxu0 %v5106
    %5343 = vmatpush.bf16.msra.mxu0 %v5090
    %5344 = vmatpush.bf16.msra.mxu0 %v5074
    %5345 = vmatpush.bf16.msra.mxu0 %v5058
    %5346 = vmatmul.bf16.gmra.mxu0 %v4505
    %v5347 = vpop.f32.mrf.mxu0
    %v5348 = vadd.f32 %v4642, %v5347
    %v5349 = vpop.f32.mrf.mxu0
    %5350 = vdwg.mxu0
    %5351 = vmatpush.bf16.msra.mxu0 %v5171
    %5352 = vmatpush.bf16.msra.mxu0 %v5155
    %5353 = vmatpush.bf16.msra.mxu0 %v5139
    %5354 = vmatpush.bf16.msra.mxu0 %v5123
    %5355 = vmatpush.bf16.msra.mxu0 %v5107
    %5356 = vmatpush.bf16.msra.mxu0 %v5091
    %5357 = vmatpush.bf16.msra.mxu0 %v5075
    %5358 = vmatpush.bf16.msra.mxu0 %v5059
    %5359 = vmatmul.bf16.gmra.mxu0 %v4505
    %v5360 = vpop.f32.mrf.mxu0
    %v5361 = vadd.f32 %v4643, %v5360
    %v5362 = vpop.f32.mrf.mxu0
    %5363 = vdwg.mxu0
    %5364 = vmatpush.bf16.msra.mxu0 %v5172
    %5365 = vmatpush.bf16.msra.mxu0 %v5156
    %5366 = vmatpush.bf16.msra.mxu0 %v5140
    %5367 = vmatpush.bf16.msra.mxu0 %v5124
    %5368 = vmatpush.bf16.msra.mxu0 %v5108
    %5369 = vmatpush.bf16.msra.mxu0 %v5092
    %5370 = vmatpush.bf16.msra.mxu0 %v5076
    %5371 = vmatpush.bf16.msra.mxu0 %v5060
    %5372 = vmatmul.bf16.gmra.mxu0 %v4505
    %v5373 = vpop.f32.mrf.mxu0
    %v5374 = vadd.f32 %v4644, %v5373
    %v5375 = vpop.f32.mrf.mxu0
    %5376 = vdwg.mxu0
    %5377 = vmatpush.bf16.msra.mxu0 %v5173
    %5378 = vmatpush.bf16.msra.mxu0 %v5157
    %5379 = vmatpush.bf16.msra.mxu0 %v5141
    %5380 = vmatpush.bf16.msra.mxu0 %v5125
    %5381 = vmatpush.bf16.msra.mxu0 %v5109
    %5382 = vmatpush.bf16.msra.mxu0 %v5093
    %5383 = vmatpush.bf16.msra.mxu0 %v5077
    %5384 = vmatpush.bf16.msra.mxu0 %v5061
    %5385 = vmatmul.bf16.gmra.mxu0 %v4505
    %v5386 = vpop.f32.mrf.mxu0
    %v5387 = vadd.f32 %v4645, %v5386
    %v5388 = vpop.f32.mrf.mxu0
    %5389 = vdwg.mxu0
    %5390 = vmatpush.bf16.msra.mxu0 %v5174
    %5391 = vmatpush.bf16.msra.mxu0 %v5158
    %5392 = vmatpush.bf16.msra.mxu0 %v5142
    %5393 = vmatpush.bf16.msra.mxu0 %v5126
    %5394 = vmatpush.bf16.msra.mxu0 %v5110
    %5395 = vmatpush.bf16.msra.mxu0 %v5094
    %5396 = vmatpush.bf16.msra.mxu0 %v5078
    %5397 = vmatpush.bf16.msra.mxu0 %v5062
    %5398 = vmatmul.bf16.gmra.mxu0 %v4505
    %v5399 = vpop.f32.mrf.mxu0
    %v5400 = vadd.f32 %v4646, %v5399
    %v5401 = vpop.f32.mrf.mxu0
    %5402 = vdwg.mxu0
    %5403 = vmatpush.bf16.msra.mxu0 %v5175
    %5404 = vmatpush.bf16.msra.mxu0 %v5159
    %5405 = vmatpush.bf16.msra.mxu0 %v5143
    %5406 = vmatpush.bf16.msra.mxu0 %v5127
    %5407 = vmatpush.bf16.msra.mxu0 %v5111
    %5408 = vmatpush.bf16.msra.mxu0 %v5095
    %5409 = vmatpush.bf16.msra.mxu0 %v5079
    %5410 = vmatpush.bf16.msra.mxu0 %v5063
    %5411 = vmatmul.bf16.gmra.mxu0 %v4505
    %v5412 = vpop.f32.mrf.mxu0
    %v5413 = vadd.f32 %v4647, %v5412
    %v5414 = vpop.f32.mrf.mxu0
    %5415 = vdwg.mxu0
    %5416 = vmatpush.bf16.msra.mxu0 %v5176
    %5417 = vmatpush.bf16.msra.mxu0 %v5160
    %5418 = vmatpush.bf16.msra.mxu0 %v5144
    %5419 = vmatpush.bf16.msra.mxu0 %v5128
    %5420 = vmatpush.bf16.msra.mxu0 %v5112
    %5421 = vmatpush.bf16.msra.mxu0 %v5096
    %5422 = vmatpush.bf16.msra.mxu0 %v5080
    %5423 = vmatpush.bf16.msra.mxu0 %v5064
    %5424 = vmatmul.bf16.gmra.mxu0 %v4505
    %v5425 = vpop.f32.mrf.mxu0
    %v5426 = vadd.f32 %v4648, %v5425
    %v5427 = vpop.f32.mrf.mxu0
    %5428 = vdwg.mxu0
    %5429 = vmatpush.bf16.msra.mxu0 %v5177
    %5430 = vmatpush.bf16.msra.mxu0 %v5161
    %5431 = vmatpush.bf16.msra.mxu0 %v5145
    %5432 = vmatpush.bf16.msra.mxu0 %v5129
    %5433 = vmatpush.bf16.msra.mxu0 %v5113
    %5434 = vmatpush.bf16.msra.mxu0 %v5097
    %5435 = vmatpush.bf16.msra.mxu0 %v5081
    %5436 = vmatpush.bf16.msra.mxu0 %v5065
    %5437 = vmatmul.bf16.gmra.mxu0 %v4505
    %v5438 = vpop.f32.mrf.mxu0
    %v5439 = vadd.f32 %v4649, %v5438
    %v5440 = vpop.f32.mrf.mxu0
    %5441 = vdwg.mxu0
    %5442 = vmatpush.bf16.msra.mxu0 %v5178
    %5443 = vmatpush.bf16.msra.mxu0 %v5162
    %5444 = vmatpush.bf16.msra.mxu0 %v5146
    %5445 = vmatpush.bf16.msra.mxu0 %v5130
    %5446 = vmatpush.bf16.msra.mxu0 %v5114
    %5447 = vmatpush.bf16.msra.mxu0 %v5098
    %5448 = vmatpush.bf16.msra.mxu0 %v5082
    %5449 = vmatpush.bf16.msra.mxu0 %v5066
    %5450 = vmatmul.bf16.gmra.mxu0 %v4505
    %v5451 = vpop.f32.mrf.mxu0
    %v5452 = vadd.f32 %v4650, %v5451
    %v5453 = vpop.f32.mrf.mxu0
    %5454 = vdwg.mxu0
    %5455 = vmatpush.bf16.msra.mxu0 %v5179
    %5456 = vmatpush.bf16.msra.mxu0 %v5163
    %5457 = vmatpush.bf16.msra.mxu0 %v5147
    %5458 = vmatpush.bf16.msra.mxu0 %v5131
    %5459 = vmatpush.bf16.msra.mxu0 %v5115
    %5460 = vmatpush.bf16.msra.mxu0 %v5099
    %5461 = vmatpush.bf16.msra.mxu0 %v5083
    %5462 = vmatpush.bf16.msra.mxu0 %v5067
    %5463 = vmatmul.bf16.gmra.mxu0 %v4505
    %v5464 = vpop.f32.mrf.mxu0
    %v5465 = vadd.f32 %v4651, %v5464
    %v5466 = vpop.f32.mrf.mxu0
    %5467 = vdwg.mxu0
    %5468 = vmatpush.bf16.msra.mxu0 %v5180
    %5469 = vmatpush.bf16.msra.mxu0 %v5164
    %5470 = vmatpush.bf16.msra.mxu0 %v5148
    %5471 = vmatpush.bf16.msra.mxu0 %v5132
    %5472 = vmatpush.bf16.msra.mxu0 %v5116
    %5473 = vmatpush.bf16.msra.mxu0 %v5100
    %5474 = vmatpush.bf16.msra.mxu0 %v5084
    %5475 = vmatpush.bf16.msra.mxu0 %v5068
    %5476 = vmatmul.bf16.gmra.mxu0 %v4505
    %v5477 = vpop.f32.mrf.mxu0
    %v5478 = vadd.f32 %v4652, %v5477
    %v5479 = vpop.f32.mrf.mxu0
    %5480 = vdwg.mxu0
    %5481 = vmatpush.bf16.msra.mxu0 %v5181
    %5482 = vmatpush.bf16.msra.mxu0 %v5165
    %5483 = vmatpush.bf16.msra.mxu0 %v5149
    %5484 = vmatpush.bf16.msra.mxu0 %v5133
    %5485 = vmatpush.bf16.msra.mxu0 %v5117
    %5486 = vmatpush.bf16.msra.mxu0 %v5101
    %5487 = vmatpush.bf16.msra.mxu0 %v5085
    %5488 = vmatpush.bf16.msra.mxu0 %v5069
    %5489 = vmatmul.bf16.gmra.mxu0 %v4505
    %v5490 = vpop.f32.mrf.mxu0
    %v5491 = vadd.f32 %v4653, %v5490
    %v5492 = vpop.f32.mrf.mxu0
    %5493 = vdwg.mxu0
    %5494 = vmatpush.bf16.msra.mxu0 %v5182
    %5495 = vmatpush.bf16.msra.mxu0 %v5166
    %5496 = vmatpush.bf16.msra.mxu0 %v5150
    %5497 = vmatpush.bf16.msra.mxu0 %v5134
    %5498 = vmatpush.bf16.msra.mxu0 %v5118
    %5499 = vmatpush.bf16.msra.mxu0 %v5102
    %5500 = vmatpush.bf16.msra.mxu0 %v5086
    %5501 = vmatpush.bf16.msra.mxu0 %v5070
    %5502 = vmatmul.bf16.gmra.mxu0 %v4505
    %v5503 = vpop.f32.mrf.mxu0
    %v5504 = vadd.f32 %v4654, %v5503
    %v5505 = vpop.f32.mrf.mxu0
    %5506 = vdwg.mxu0
    %5507 = vmatpush.bf16.msra.mxu0 %v5183
    %5508 = vmatpush.bf16.msra.mxu0 %v5167
    %5509 = vmatpush.bf16.msra.mxu0 %v5151
    %5510 = vmatpush.bf16.msra.mxu0 %v5135
    %5511 = vmatpush.bf16.msra.mxu0 %v5119
    %5512 = vmatpush.bf16.msra.mxu0 %v5103
    %5513 = vmatpush.bf16.msra.mxu0 %v5087
    %5514 = vmatpush.bf16.msra.mxu0 %v5071
    %5515 = vmatmul.bf16.gmra.mxu0 %v4505
    %v5516 = vpop.f32.mrf.mxu0
    %v5517 = vadd.f32 %v4655, %v5516
    %v5518 = vpop.f32.mrf.mxu0
    %5519 = vdwg.mxu0
    %v5520 = vmax.f32 %v5322, 0.0
    %v5521 = vmax.f32 %v5335, 0.0
    %v5522 = vmax.f32 %v5348, 0.0
    %v5523 = vmax.f32 %v5361, 0.0
    %v5524 = vmax.f32 %v5374, 0.0
    %v5525 = vmax.f32 %v5387, 0.0
    %v5526 = vmax.f32 %v5400, 0.0
    %v5527 = vmax.f32 %v5413, 0.0
    %v5528 = vmax.f32 %v5426, 0.0
    %v5529 = vmax.f32 %v5439, 0.0
    %v5530 = vmax.f32 %v5452, 0.0
    %v5531 = vmax.f32 %v5465, 0.0
    %v5532 = vmax.f32 %v5478, 0.0
    %v5533 = vmax.f32 %v5491, 0.0
    %v5534 = vmax.f32 %v5504, 0.0
    %v5535 = vmax.f32 %v5517, 0.0
    %v5536 = vpack.c.bf16 %v5520, %v5520
    %v5537 = vpack.c.bf16 %v5521, %v5521
    %v5538 = vpack.c.bf16 %v5522, %v5522
    %v5539 = vpack.c.bf16 %v5523, %v5523
    %v5540 = vpack.c.bf16 %v5524, %v5524
    %v5541 = vpack.c.bf16 %v5525, %v5525
    %v5542 = vpack.c.bf16 %v5526, %v5526
    %v5543 = vpack.c.bf16 %v5527, %v5527
    %v5544 = vpack.c.bf16 %v5528, %v5528
    %v5545 = vpack.c.bf16 %v5529, %v5529
    %v5546 = vpack.c.bf16 %v5530, %v5530
    %v5547 = vpack.c.bf16 %v5531, %v5531
    %v5548 = vpack.c.bf16 %v5532, %v5532
    %v5549 = vpack.c.bf16 %v5533, %v5533
    %v5550 = vpack.c.bf16 %v5534, %v5534
    %v5551 = vpack.c.bf16 %v5535, %v5535
    %s5552 = scalar_lea.vmem [#allocation29], 1024
    %v5553 = vld [vmem:[%s5552] sm:$0xf]
    %v5554 = vld [vmem:[%s5552 + $0x4] sm:$0xf]
    %v5555 = vld [vmem:[%s5552 + $0x8] sm:$0xf]
    %v5556 = vld [vmem:[%s5552 + $0xc] sm:$0xf]
    %v5557 = vld [vmem:[%s5552 + $0x10] sm:$0xf]
    %v5558 = vld [vmem:[%s5552 + $0x14] sm:$0xf]
    %v5559 = vld [vmem:[%s5552 + $0x18] sm:$0xf]
    %v5560 = vld [vmem:[%s5552 + $0x1c] sm:$0xf]
    %v5561 = vld [vmem:[%s5552 + $0x20] sm:$0xf]
    %v5562 = vld [vmem:[%s5552 + $0x24] sm:$0xf]
    %v5563 = vld [vmem:[%s5552 + $0x28] sm:$0xf]
    %v5564 = vld [vmem:[%s5552 + $0x2c] sm:$0xf]
    %v5565 = vld [vmem:[%s5552 + $0x30] sm:$0xf]
    %v5566 = vld [vmem:[%s5552 + $0x34] sm:$0xf]
    %v5567 = vld [vmem:[%s5552 + $0x38] sm:$0xf]
    %v5568 = vld [vmem:[%s5552 + $0x3c] sm:$0xf]
    %v5569 = vld [vmem:[%s5552 + $0x40] sm:$0xf]
    %v5570 = vld [vmem:[%s5552 + $0x44] sm:$0xf]
    %v5571 = vld [vmem:[%s5552 + $0x48] sm:$0xf]
    %v5572 = vld [vmem:[%s5552 + $0x4c] sm:$0xf]
    %v5573 = vld [vmem:[%s5552 + $0x50] sm:$0xf]
    %v5574 = vld [vmem:[%s5552 + $0x54] sm:$0xf]
    %v5575 = vld [vmem:[%s5552 + $0x58] sm:$0xf]
    %v5576 = vld [vmem:[%s5552 + $0x5c] sm:$0xf]
    %v5577 = vld [vmem:[%s5552 + $0x60] sm:$0xf]
    %v5578 = vld [vmem:[%s5552 + $0x64] sm:$0xf]
    %v5579 = vld [vmem:[%s5552 + $0x68] sm:$0xf]
    %v5580 = vld [vmem:[%s5552 + $0x6c] sm:$0xf]
    %v5581 = vld [vmem:[%s5552 + $0x70] sm:$0xf]
    %v5582 = vld [vmem:[%s5552 + $0x74] sm:$0xf]
    %v5583 = vld [vmem:[%s5552 + $0x78] sm:$0xf]
    %v5584 = vld [vmem:[%s5552 + $0x7c] sm:$0xf]
    %v5585 = vld [vmem:[%s5552 + $0x80] sm:$0xf]
    %v5586 = vld [vmem:[%s5552 + $0x84] sm:$0xf]
    %v5587 = vld [vmem:[%s5552 + $0x88] sm:$0xf]
    %v5588 = vld [vmem:[%s5552 + $0x8c] sm:$0xf]
    %v5589 = vld [vmem:[%s5552 + $0x90] sm:$0xf]
    %v5590 = vld [vmem:[%s5552 + $0x94] sm:$0xf]
    %v5591 = vld [vmem:[%s5552 + $0x98] sm:$0xf]
    %v5592 = vld [vmem:[%s5552 + $0x9c] sm:$0xf]
    %v5593 = vld [vmem:[%s5552 + $0xa0] sm:$0xf]
    %v5594 = vld [vmem:[%s5552 + $0xa4] sm:$0xf]
    %v5595 = vld [vmem:[%s5552 + $0xa8] sm:$0xf]
    %v5596 = vld [vmem:[%s5552 + $0xac] sm:$0xf]
    %v5597 = vld [vmem:[%s5552 + $0xb0] sm:$0xf]
    %v5598 = vld [vmem:[%s5552 + $0xb4] sm:$0xf]
    %v5599 = vld [vmem:[%s5552 + $0xb8] sm:$0xf]
    %v5600 = vld [vmem:[%s5552 + $0xbc] sm:$0xf]
    %v5601 = vld [vmem:[%s5552 + $0xc0] sm:$0xf]
    %v5602 = vld [vmem:[%s5552 + $0xc4] sm:$0xf]
    %v5603 = vld [vmem:[%s5552 + $0xc8] sm:$0xf]
    %v5604 = vld [vmem:[%s5552 + $0xcc] sm:$0xf]
    %v5605 = vld [vmem:[%s5552 + $0xd0] sm:$0xf]
    %v5606 = vld [vmem:[%s5552 + $0xd4] sm:$0xf]
    %v5607 = vld [vmem:[%s5552 + $0xd8] sm:$0xf]
    %v5608 = vld [vmem:[%s5552 + $0xdc] sm:$0xf]
    %v5609 = vld [vmem:[%s5552 + $0xe0] sm:$0xf]
    %v5610 = vld [vmem:[%s5552 + $0xe4] sm:$0xf]
    %v5611 = vld [vmem:[%s5552 + $0xe8] sm:$0xf]
    %v5612 = vld [vmem:[%s5552 + $0xec] sm:$0xf]
    %v5613 = vld [vmem:[%s5552 + $0xf0] sm:$0xf]
    %v5614 = vld [vmem:[%s5552 + $0xf4] sm:$0xf]
    %v5615 = vld [vmem:[%s5552 + $0xf8] sm:$0xf]
    %v5616 = vld [vmem:[%s5552 + $0xfc] sm:$0xf]
    %v5617 = vld [vmem:[%s5552 + $0x100] sm:$0xf]
    %v5618 = vld [vmem:[%s5552 + $0x104] sm:$0xf]
    %v5619 = vld [vmem:[%s5552 + $0x108] sm:$0xf]
    %v5620 = vld [vmem:[%s5552 + $0x10c] sm:$0xf]
    %v5621 = vld [vmem:[%s5552 + $0x110] sm:$0xf]
    %v5622 = vld [vmem:[%s5552 + $0x114] sm:$0xf]
    %v5623 = vld [vmem:[%s5552 + $0x118] sm:$0xf]
    %v5624 = vld [vmem:[%s5552 + $0x11c] sm:$0xf]
    %v5625 = vld [vmem:[%s5552 + $0x120] sm:$0xf]
    %v5626 = vld [vmem:[%s5552 + $0x124] sm:$0xf]
    %v5627 = vld [vmem:[%s5552 + $0x128] sm:$0xf]
    %v5628 = vld [vmem:[%s5552 + $0x12c] sm:$0xf]
    %v5629 = vld [vmem:[%s5552 + $0x130] sm:$0xf]
    %v5630 = vld [vmem:[%s5552 + $0x134] sm:$0xf]
    %v5631 = vld [vmem:[%s5552 + $0x138] sm:$0xf]
    %v5632 = vld [vmem:[%s5552 + $0x13c] sm:$0xf]
    %v5633 = vld [vmem:[%s5552 + $0x140] sm:$0xf]
    %v5634 = vld [vmem:[%s5552 + $0x144] sm:$0xf]
    %v5635 = vld [vmem:[%s5552 + $0x148] sm:$0xf]
    %v5636 = vld [vmem:[%s5552 + $0x14c] sm:$0xf]
    %v5637 = vld [vmem:[%s5552 + $0x150] sm:$0xf]
    %v5638 = vld [vmem:[%s5552 + $0x154] sm:$0xf]
    %v5639 = vld [vmem:[%s5552 + $0x158] sm:$0xf]
    %v5640 = vld [vmem:[%s5552 + $0x15c] sm:$0xf]
    %v5641 = vld [vmem:[%s5552 + $0x160] sm:$0xf]
    %v5642 = vld [vmem:[%s5552 + $0x164] sm:$0xf]
    %v5643 = vld [vmem:[%s5552 + $0x168] sm:$0xf]
    %v5644 = vld [vmem:[%s5552 + $0x16c] sm:$0xf]
    %v5645 = vld [vmem:[%s5552 + $0x170] sm:$0xf]
    %v5646 = vld [vmem:[%s5552 + $0x174] sm:$0xf]
    %v5647 = vld [vmem:[%s5552 + $0x178] sm:$0xf]
    %v5648 = vld [vmem:[%s5552 + $0x17c] sm:$0xf]
    %v5649 = vld [vmem:[%s5552 + $0x180] sm:$0xf]
    %v5650 = vld [vmem:[%s5552 + $0x184] sm:$0xf]
    %v5651 = vld [vmem:[%s5552 + $0x188] sm:$0xf]
    %v5652 = vld [vmem:[%s5552 + $0x18c] sm:$0xf]
    %v5653 = vld [vmem:[%s5552 + $0x190] sm:$0xf]
    %v5654 = vld [vmem:[%s5552 + $0x194] sm:$0xf]
    %v5655 = vld [vmem:[%s5552 + $0x198] sm:$0xf]
    %v5656 = vld [vmem:[%s5552 + $0x19c] sm:$0xf]
    %v5657 = vld [vmem:[%s5552 + $0x1a0] sm:$0xf]
    %v5658 = vld [vmem:[%s5552 + $0x1a4] sm:$0xf]
    %v5659 = vld [vmem:[%s5552 + $0x1a8] sm:$0xf]
    %v5660 = vld [vmem:[%s5552 + $0x1ac] sm:$0xf]
    %v5661 = vld [vmem:[%s5552 + $0x1b0] sm:$0xf]
    %v5662 = vld [vmem:[%s5552 + $0x1b4] sm:$0xf]
    %v5663 = vld [vmem:[%s5552 + $0x1b8] sm:$0xf]
    %v5664 = vld [vmem:[%s5552 + $0x1bc] sm:$0xf]
    %v5665 = vld [vmem:[%s5552 + $0x1c0] sm:$0xf]
    %v5666 = vld [vmem:[%s5552 + $0x1c4] sm:$0xf]
    %v5667 = vld [vmem:[%s5552 + $0x1c8] sm:$0xf]
    %v5668 = vld [vmem:[%s5552 + $0x1cc] sm:$0xf]
    %v5669 = vld [vmem:[%s5552 + $0x1d0] sm:$0xf]
    %v5670 = vld [vmem:[%s5552 + $0x1d4] sm:$0xf]
    %v5671 = vld [vmem:[%s5552 + $0x1d8] sm:$0xf]
    %v5672 = vld [vmem:[%s5552 + $0x1dc] sm:$0xf]
    %v5673 = vld [vmem:[%s5552 + $0x1e0] sm:$0xf]
    %v5674 = vld [vmem:[%s5552 + $0x1e4] sm:$0xf]
    %v5675 = vld [vmem:[%s5552 + $0x1e8] sm:$0xf]
    %v5676 = vld [vmem:[%s5552 + $0x1ec] sm:$0xf]
    %v5677 = vld [vmem:[%s5552 + $0x1f0] sm:$0xf]
    %v5678 = vld [vmem:[%s5552 + $0x1f4] sm:$0xf]
    %v5679 = vld [vmem:[%s5552 + $0x1f8] sm:$0xf]
    %v5680 = vld [vmem:[%s5552 + $0x1fc] sm:$0xf]
    %v5681 = vld [vmem:[%s5552 + $0x200] sm:$0xf]
    %v5682 = vld [vmem:[%s5552 + $0x204] sm:$0xf]
    %v5683 = vld [vmem:[%s5552 + $0x208] sm:$0xf]
    %v5684 = vld [vmem:[%s5552 + $0x20c] sm:$0xf]
    %v5685 = vld [vmem:[%s5552 + $0x210] sm:$0xf]
    %v5686 = vld [vmem:[%s5552 + $0x214] sm:$0xf]
    %v5687 = vld [vmem:[%s5552 + $0x218] sm:$0xf]
    %v5688 = vld [vmem:[%s5552 + $0x21c] sm:$0xf]
    %v5689 = vld [vmem:[%s5552 + $0x220] sm:$0xf]
    %v5690 = vld [vmem:[%s5552 + $0x224] sm:$0xf]
    %v5691 = vld [vmem:[%s5552 + $0x228] sm:$0xf]
    %v5692 = vld [vmem:[%s5552 + $0x22c] sm:$0xf]
    %v5693 = vld [vmem:[%s5552 + $0x230] sm:$0xf]
    %v5694 = vld [vmem:[%s5552 + $0x234] sm:$0xf]
    %v5695 = vld [vmem:[%s5552 + $0x238] sm:$0xf]
    %v5696 = vld [vmem:[%s5552 + $0x23c] sm:$0xf]
    %v5697 = vld [vmem:[%s5552 + $0x240] sm:$0xf]
    %v5698 = vld [vmem:[%s5552 + $0x244] sm:$0xf]
    %v5699 = vld [vmem:[%s5552 + $0x248] sm:$0xf]
    %v5700 = vld [vmem:[%s5552 + $0x24c] sm:$0xf]
    %v5701 = vld [vmem:[%s5552 + $0x250] sm:$0xf]
    %v5702 = vld [vmem:[%s5552 + $0x254] sm:$0xf]
    %v5703 = vld [vmem:[%s5552 + $0x258] sm:$0xf]
    %v5704 = vld [vmem:[%s5552 + $0x25c] sm:$0xf]
    %v5705 = vld [vmem:[%s5552 + $0x260] sm:$0xf]
    %v5706 = vld [vmem:[%s5552 + $0x264] sm:$0xf]
    %v5707 = vld [vmem:[%s5552 + $0x268] sm:$0xf]
    %v5708 = vld [vmem:[%s5552 + $0x26c] sm:$0xf]
    %v5709 = vld [vmem:[%s5552 + $0x270] sm:$0xf]
    %v5710 = vld [vmem:[%s5552 + $0x274] sm:$0xf]
    %v5711 = vld [vmem:[%s5552 + $0x278] sm:$0xf]
    %v5712 = vld [vmem:[%s5552 + $0x27c] sm:$0xf]
    %v5713 = vld [vmem:[%s5552 + $0x280] sm:$0xf]
    %v5714 = vld [vmem:[%s5552 + $0x284] sm:$0xf]
    %v5715 = vld [vmem:[%s5552 + $0x288] sm:$0xf]
    %v5716 = vld [vmem:[%s5552 + $0x28c] sm:$0xf]
    %v5717 = vld [vmem:[%s5552 + $0x290] sm:$0xf]
    %v5718 = vld [vmem:[%s5552 + $0x294] sm:$0xf]
    %v5719 = vld [vmem:[%s5552 + $0x298] sm:$0xf]
    %v5720 = vld [vmem:[%s5552 + $0x29c] sm:$0xf]
    %v5721 = vld [vmem:[%s5552 + $0x2a0] sm:$0xf]
    %v5722 = vld [vmem:[%s5552 + $0x2a4] sm:$0xf]
    %v5723 = vld [vmem:[%s5552 + $0x2a8] sm:$0xf]
    %v5724 = vld [vmem:[%s5552 + $0x2ac] sm:$0xf]
    %v5725 = vld [vmem:[%s5552 + $0x2b0] sm:$0xf]
    %v5726 = vld [vmem:[%s5552 + $0x2b4] sm:$0xf]
    %v5727 = vld [vmem:[%s5552 + $0x2b8] sm:$0xf]
    %v5728 = vld [vmem:[%s5552 + $0x2bc] sm:$0xf]
    %v5729 = vld [vmem:[%s5552 + $0x2c0] sm:$0xf]
    %v5730 = vld [vmem:[%s5552 + $0x2c4] sm:$0xf]
    %v5731 = vld [vmem:[%s5552 + $0x2c8] sm:$0xf]
    %v5732 = vld [vmem:[%s5552 + $0x2cc] sm:$0xf]
    %v5733 = vld [vmem:[%s5552 + $0x2d0] sm:$0xf]
    %v5734 = vld [vmem:[%s5552 + $0x2d4] sm:$0xf]
    %v5735 = vld [vmem:[%s5552 + $0x2d8] sm:$0xf]
    %v5736 = vld [vmem:[%s5552 + $0x2dc] sm:$0xf]
    %v5737 = vld [vmem:[%s5552 + $0x2e0] sm:$0xf]
    %v5738 = vld [vmem:[%s5552 + $0x2e4] sm:$0xf]
    %v5739 = vld [vmem:[%s5552 + $0x2e8] sm:$0xf]
    %v5740 = vld [vmem:[%s5552 + $0x2ec] sm:$0xf]
    %v5741 = vld [vmem:[%s5552 + $0x2f0] sm:$0xf]
    %v5742 = vld [vmem:[%s5552 + $0x2f4] sm:$0xf]
    %v5743 = vld [vmem:[%s5552 + $0x2f8] sm:$0xf]
    %v5744 = vld [vmem:[%s5552 + $0x2fc] sm:$0xf]
    %v5745 = vld [vmem:[%s5552 + $0x300] sm:$0xf]
    %v5746 = vld [vmem:[%s5552 + $0x304] sm:$0xf]
    %v5747 = vld [vmem:[%s5552 + $0x308] sm:$0xf]
    %v5748 = vld [vmem:[%s5552 + $0x30c] sm:$0xf]
    %v5749 = vld [vmem:[%s5552 + $0x310] sm:$0xf]
    %v5750 = vld [vmem:[%s5552 + $0x314] sm:$0xf]
    %v5751 = vld [vmem:[%s5552 + $0x318] sm:$0xf]
    %v5752 = vld [vmem:[%s5552 + $0x31c] sm:$0xf]
    %v5753 = vld [vmem:[%s5552 + $0x320] sm:$0xf]
    %v5754 = vld [vmem:[%s5552 + $0x324] sm:$0xf]
    %v5755 = vld [vmem:[%s5552 + $0x328] sm:$0xf]
    %v5756 = vld [vmem:[%s5552 + $0x32c] sm:$0xf]
    %v5757 = vld [vmem:[%s5552 + $0x330] sm:$0xf]
    %v5758 = vld [vmem:[%s5552 + $0x334] sm:$0xf]
    %v5759 = vld [vmem:[%s5552 + $0x338] sm:$0xf]
    %v5760 = vld [vmem:[%s5552 + $0x33c] sm:$0xf]
    %v5761 = vld [vmem:[%s5552 + $0x340] sm:$0xf]
    %v5762 = vld [vmem:[%s5552 + $0x344] sm:$0xf]
    %v5763 = vld [vmem:[%s5552 + $0x348] sm:$0xf]
    %v5764 = vld [vmem:[%s5552 + $0x34c] sm:$0xf]
    %v5765 = vld [vmem:[%s5552 + $0x350] sm:$0xf]
    %v5766 = vld [vmem:[%s5552 + $0x354] sm:$0xf]
    %v5767 = vld [vmem:[%s5552 + $0x358] sm:$0xf]
    %v5768 = vld [vmem:[%s5552 + $0x35c] sm:$0xf]
    %v5769 = vld [vmem:[%s5552 + $0x360] sm:$0xf]
    %v5770 = vld [vmem:[%s5552 + $0x364] sm:$0xf]
    %v5771 = vld [vmem:[%s5552 + $0x368] sm:$0xf]
    %v5772 = vld [vmem:[%s5552 + $0x36c] sm:$0xf]
    %v5773 = vld [vmem:[%s5552 + $0x370] sm:$0xf]
    %v5774 = vld [vmem:[%s5552 + $0x374] sm:$0xf]
    %v5775 = vld [vmem:[%s5552 + $0x378] sm:$0xf]
    %v5776 = vld [vmem:[%s5552 + $0x37c] sm:$0xf]
    %v5777 = vld [vmem:[%s5552 + $0x380] sm:$0xf]
    %v5778 = vld [vmem:[%s5552 + $0x384] sm:$0xf]
    %v5779 = vld [vmem:[%s5552 + $0x388] sm:$0xf]
    %v5780 = vld [vmem:[%s5552 + $0x38c] sm:$0xf]
    %v5781 = vld [vmem:[%s5552 + $0x390] sm:$0xf]
    %v5782 = vld [vmem:[%s5552 + $0x394] sm:$0xf]
    %v5783 = vld [vmem:[%s5552 + $0x398] sm:$0xf]
    %v5784 = vld [vmem:[%s5552 + $0x39c] sm:$0xf]
    %v5785 = vld [vmem:[%s5552 + $0x3a0] sm:$0xf]
    %v5786 = vld [vmem:[%s5552 + $0x3a4] sm:$0xf]
    %v5787 = vld [vmem:[%s5552 + $0x3a8] sm:$0xf]
    %v5788 = vld [vmem:[%s5552 + $0x3ac] sm:$0xf]
    %v5789 = vld [vmem:[%s5552 + $0x3b0] sm:$0xf]
    %v5790 = vld [vmem:[%s5552 + $0x3b4] sm:$0xf]
    %v5791 = vld [vmem:[%s5552 + $0x3b8] sm:$0xf]
    %v5792 = vld [vmem:[%s5552 + $0x3bc] sm:$0xf]
    %v5793 = vld [vmem:[%s5552 + $0x3c0] sm:$0xf]
    %v5794 = vld [vmem:[%s5552 + $0x3c4] sm:$0xf]
    %v5795 = vld [vmem:[%s5552 + $0x3c8] sm:$0xf]
    %v5796 = vld [vmem:[%s5552 + $0x3cc] sm:$0xf]
    %v5797 = vld [vmem:[%s5552 + $0x3d0] sm:$0xf]
    %v5798 = vld [vmem:[%s5552 + $0x3d4] sm:$0xf]
    %v5799 = vld [vmem:[%s5552 + $0x3d8] sm:$0xf]
    %v5800 = vld [vmem:[%s5552 + $0x3dc] sm:$0xf]
    %v5801 = vld [vmem:[%s5552 + $0x3e0] sm:$0xf]
    %v5802 = vld [vmem:[%s5552 + $0x3e4] sm:$0xf]
    %v5803 = vld [vmem:[%s5552 + $0x3e8] sm:$0xf]
    %v5804 = vld [vmem:[%s5552 + $0x3ec] sm:$0xf]
    %v5805 = vld [vmem:[%s5552 + $0x3f0] sm:$0xf]
    %v5806 = vld [vmem:[%s5552 + $0x3f4] sm:$0xf]
    %v5807 = vld [vmem:[%s5552 + $0x3f8] sm:$0xf]
    %v5808 = vld [vmem:[%s5552 + $0x3fc] sm:$0xf]
    %s5809 = scalar_lea.vmem [#allocation31], 1
    %v5810 = vld [vmem:[%s5809] sm:$0x1]
    %v5812 = vperm.slane %v5810, 0
    %v6070 = vunpack.c.l.b16 %v5553
    %v6071 = vunpack.c.l.b16 %v5554
    %v6072 = vunpack.c.l.b16 %v5555
    %v6073 = vunpack.c.l.b16 %v5556
    %v6074 = vunpack.c.l.b16 %v5557
    %v6075 = vunpack.c.l.b16 %v5558
    %v6076 = vunpack.c.l.b16 %v5559
    %v6077 = vunpack.c.l.b16 %v5560
    %v6078 = vunpack.c.l.b16 %v5561
    %v6079 = vunpack.c.l.b16 %v5562
    %v6080 = vunpack.c.l.b16 %v5563
    %v6081 = vunpack.c.l.b16 %v5564
    %v6082 = vunpack.c.l.b16 %v5565
    %v6083 = vunpack.c.l.b16 %v5566
    %v6084 = vunpack.c.l.b16 %v5567
    %v6085 = vunpack.c.l.b16 %v5568
    %v6086 = vunpack.c.l.b16 %v5569
    %v6087 = vunpack.c.l.b16 %v5570
    %v6088 = vunpack.c.l.b16 %v5571
    %v6089 = vunpack.c.l.b16 %v5572
    %v6090 = vunpack.c.l.b16 %v5573
    %v6091 = vunpack.c.l.b16 %v5574
    %v6092 = vunpack.c.l.b16 %v5575
    %v6093 = vunpack.c.l.b16 %v5576
    %v6094 = vunpack.c.l.b16 %v5577
    %v6095 = vunpack.c.l.b16 %v5578
    %v6096 = vunpack.c.l.b16 %v5579
    %v6097 = vunpack.c.l.b16 %v5580
    %v6098 = vunpack.c.l.b16 %v5581
    %v6099 = vunpack.c.l.b16 %v5582
    %v6100 = vunpack.c.l.b16 %v5583
    %v6101 = vunpack.c.l.b16 %v5584
    %v6102 = vunpack.c.l.b16 %v5585
    %v6103 = vunpack.c.l.b16 %v5586
    %v6104 = vunpack.c.l.b16 %v5587
    %v6105 = vunpack.c.l.b16 %v5588
    %v6106 = vunpack.c.l.b16 %v5589
    %v6107 = vunpack.c.l.b16 %v5590
    %v6108 = vunpack.c.l.b16 %v5591
    %v6109 = vunpack.c.l.b16 %v5592
    %v6110 = vunpack.c.l.b16 %v5593
    %v6111 = vunpack.c.l.b16 %v5594
    %v6112 = vunpack.c.l.b16 %v5595
    %v6113 = vunpack.c.l.b16 %v5596
    %v6114 = vunpack.c.l.b16 %v5597
    %v6115 = vunpack.c.l.b16 %v5598
    %v6116 = vunpack.c.l.b16 %v5599
    %v6117 = vunpack.c.l.b16 %v5600
    %v6118 = vunpack.c.l.b16 %v5601
    %v6119 = vunpack.c.l.b16 %v5602
    %v6120 = vunpack.c.l.b16 %v5603
    %v6121 = vunpack.c.l.b16 %v5604
    %v6122 = vunpack.c.l.b16 %v5605
    %v6123 = vunpack.c.l.b16 %v5606
    %v6124 = vunpack.c.l.b16 %v5607
    %v6125 = vunpack.c.l.b16 %v5608
    %v6126 = vunpack.c.l.b16 %v5609
    %v6127 = vunpack.c.l.b16 %v5610
    %v6128 = vunpack.c.l.b16 %v5611
    %v6129 = vunpack.c.l.b16 %v5612
    %v6130 = vunpack.c.l.b16 %v5613
    %v6131 = vunpack.c.l.b16 %v5614
    %v6132 = vunpack.c.l.b16 %v5615
    %v6133 = vunpack.c.l.b16 %v5616
    %v6134 = vunpack.c.l.b16 %v5617
    %v6135 = vunpack.c.l.b16 %v5618
    %v6136 = vunpack.c.l.b16 %v5619
    %v6137 = vunpack.c.l.b16 %v5620
    %v6138 = vunpack.c.l.b16 %v5621
    %v6139 = vunpack.c.l.b16 %v5622
    %v6140 = vunpack.c.l.b16 %v5623
    %v6141 = vunpack.c.l.b16 %v5624
    %v6142 = vunpack.c.l.b16 %v5625
    %v6143 = vunpack.c.l.b16 %v5626
    %v6144 = vunpack.c.l.b16 %v5627
    %v6145 = vunpack.c.l.b16 %v5628
    %v6146 = vunpack.c.l.b16 %v5629
    %v6147 = vunpack.c.l.b16 %v5630
    %v6148 = vunpack.c.l.b16 %v5631
    %v6149 = vunpack.c.l.b16 %v5632
    %v6150 = vunpack.c.l.b16 %v5633
    %v6151 = vunpack.c.l.b16 %v5634
    %v6152 = vunpack.c.l.b16 %v5635
    %v6153 = vunpack.c.l.b16 %v5636
    %v6154 = vunpack.c.l.b16 %v5637
    %v6155 = vunpack.c.l.b16 %v5638
    %v6156 = vunpack.c.l.b16 %v5639
    %v6157 = vunpack.c.l.b16 %v5640
    %v6158 = vunpack.c.l.b16 %v5641
    %v6159 = vunpack.c.l.b16 %v5642
    %v6160 = vunpack.c.l.b16 %v5643
    %v6161 = vunpack.c.l.b16 %v5644
    %v6162 = vunpack.c.l.b16 %v5645
    %v6163 = vunpack.c.l.b16 %v5646
    %v6164 = vunpack.c.l.b16 %v5647
    %v6165 = vunpack.c.l.b16 %v5648
    %v6166 = vunpack.c.l.b16 %v5649
    %v6167 = vunpack.c.l.b16 %v5650
    %v6168 = vunpack.c.l.b16 %v5651
    %v6169 = vunpack.c.l.b16 %v5652
    %v6170 = vunpack.c.l.b16 %v5653
    %v6171 = vunpack.c.l.b16 %v5654
    %v6172 = vunpack.c.l.b16 %v5655
    %v6173 = vunpack.c.l.b16 %v5656
    %v6174 = vunpack.c.l.b16 %v5657
    %v6175 = vunpack.c.l.b16 %v5658
    %v6176 = vunpack.c.l.b16 %v5659
    %v6177 = vunpack.c.l.b16 %v5660
    %v6178 = vunpack.c.l.b16 %v5661
    %v6179 = vunpack.c.l.b16 %v5662
    %v6180 = vunpack.c.l.b16 %v5663
    %v6181 = vunpack.c.l.b16 %v5664
    %v6182 = vunpack.c.l.b16 %v5665
    %v6183 = vunpack.c.l.b16 %v5666
    %v6184 = vunpack.c.l.b16 %v5667
    %v6185 = vunpack.c.l.b16 %v5668
    %v6186 = vunpack.c.l.b16 %v5669
    %v6187 = vunpack.c.l.b16 %v5670
    %v6188 = vunpack.c.l.b16 %v5671
    %v6189 = vunpack.c.l.b16 %v5672
    %v6190 = vunpack.c.l.b16 %v5673
    %v6191 = vunpack.c.l.b16 %v5674
    %v6192 = vunpack.c.l.b16 %v5675
    %v6193 = vunpack.c.l.b16 %v5676
    %v6194 = vunpack.c.l.b16 %v5677
    %v6195 = vunpack.c.l.b16 %v5678
    %v6196 = vunpack.c.l.b16 %v5679
    %v6197 = vunpack.c.l.b16 %v5680
    %v6198 = vunpack.c.l.b16 %v5681
    %v6199 = vunpack.c.l.b16 %v5682
    %v6200 = vunpack.c.l.b16 %v5683
    %v6201 = vunpack.c.l.b16 %v5684
    %v6202 = vunpack.c.l.b16 %v5685
    %v6203 = vunpack.c.l.b16 %v5686
    %v6204 = vunpack.c.l.b16 %v5687
    %v6205 = vunpack.c.l.b16 %v5688
    %v6206 = vunpack.c.l.b16 %v5689
    %v6207 = vunpack.c.l.b16 %v5690
    %v6208 = vunpack.c.l.b16 %v5691
    %v6209 = vunpack.c.l.b16 %v5692
    %v6210 = vunpack.c.l.b16 %v5693
    %v6211 = vunpack.c.l.b16 %v5694
    %v6212 = vunpack.c.l.b16 %v5695
    %v6213 = vunpack.c.l.b16 %v5696
    %v6214 = vunpack.c.l.b16 %v5697
    %v6215 = vunpack.c.l.b16 %v5698
    %v6216 = vunpack.c.l.b16 %v5699
    %v6217 = vunpack.c.l.b16 %v5700
    %v6218 = vunpack.c.l.b16 %v5701
    %v6219 = vunpack.c.l.b16 %v5702
    %v6220 = vunpack.c.l.b16 %v5703
    %v6221 = vunpack.c.l.b16 %v5704
    %v6222 = vunpack.c.l.b16 %v5705
    %v6223 = vunpack.c.l.b16 %v5706
    %v6224 = vunpack.c.l.b16 %v5707
    %v6225 = vunpack.c.l.b16 %v5708
    %v6226 = vunpack.c.l.b16 %v5709
    %v6227 = vunpack.c.l.b16 %v5710
    %v6228 = vunpack.c.l.b16 %v5711
    %v6229 = vunpack.c.l.b16 %v5712
    %v6230 = vunpack.c.l.b16 %v5713
    %v6231 = vunpack.c.l.b16 %v5714
    %v6232 = vunpack.c.l.b16 %v5715
    %v6233 = vunpack.c.l.b16 %v5716
    %v6234 = vunpack.c.l.b16 %v5717
    %v6235 = vunpack.c.l.b16 %v5718
    %v6236 = vunpack.c.l.b16 %v5719
    %v6237 = vunpack.c.l.b16 %v5720
    %v6238 = vunpack.c.l.b16 %v5721
    %v6239 = vunpack.c.l.b16 %v5722
    %v6240 = vunpack.c.l.b16 %v5723
    %v6241 = vunpack.c.l.b16 %v5724
    %v6242 = vunpack.c.l.b16 %v5725
    %v6243 = vunpack.c.l.b16 %v5726
    %v6244 = vunpack.c.l.b16 %v5727
    %v6245 = vunpack.c.l.b16 %v5728
    %v6246 = vunpack.c.l.b16 %v5729
    %v6247 = vunpack.c.l.b16 %v5730
    %v6248 = vunpack.c.l.b16 %v5731
    %v6249 = vunpack.c.l.b16 %v5732
    %v6250 = vunpack.c.l.b16 %v5733
    %v6251 = vunpack.c.l.b16 %v5734
    %v6252 = vunpack.c.l.b16 %v5735
    %v6253 = vunpack.c.l.b16 %v5736
    %v6254 = vunpack.c.l.b16 %v5737
    %v6255 = vunpack.c.l.b16 %v5738
    %v6256 = vunpack.c.l.b16 %v5739
    %v6257 = vunpack.c.l.b16 %v5740
    %v6258 = vunpack.c.l.b16 %v5741
    %v6259 = vunpack.c.l.b16 %v5742
    %v6260 = vunpack.c.l.b16 %v5743
    %v6261 = vunpack.c.l.b16 %v5744
    %v6262 = vunpack.c.l.b16 %v5745
    %v6263 = vunpack.c.l.b16 %v5746
    %v6264 = vunpack.c.l.b16 %v5747
    %v6265 = vunpack.c.l.b16 %v5748
    %v6266 = vunpack.c.l.b16 %v5749
    %v6267 = vunpack.c.l.b16 %v5750
    %v6268 = vunpack.c.l.b16 %v5751
    %v6269 = vunpack.c.l.b16 %v5752
    %v6270 = vunpack.c.l.b16 %v5753
    %v6271 = vunpack.c.l.b16 %v5754
    %v6272 = vunpack.c.l.b16 %v5755
    %v6273 = vunpack.c.l.b16 %v5756
    %v6274 = vunpack.c.l.b16 %v5757
    %v6275 = vunpack.c.l.b16 %v5758
    %v6276 = vunpack.c.l.b16 %v5759
    %v6277 = vunpack.c.l.b16 %v5760
    %v6278 = vunpack.c.l.b16 %v5761
    %v6279 = vunpack.c.l.b16 %v5762
    %v6280 = vunpack.c.l.b16 %v5763
    %v6281 = vunpack.c.l.b16 %v5764
    %v6282 = vunpack.c.l.b16 %v5765
    %v6283 = vunpack.c.l.b16 %v5766
    %v6284 = vunpack.c.l.b16 %v5767
    %v6285 = vunpack.c.l.b16 %v5768
    %v6286 = vunpack.c.l.b16 %v5769
    %v6287 = vunpack.c.l.b16 %v5770
    %v6288 = vunpack.c.l.b16 %v5771
    %v6289 = vunpack.c.l.b16 %v5772
    %v6290 = vunpack.c.l.b16 %v5773
    %v6291 = vunpack.c.l.b16 %v5774
    %v6292 = vunpack.c.l.b16 %v5775
    %v6293 = vunpack.c.l.b16 %v5776
    %v6294 = vunpack.c.l.b16 %v5777
    %v6295 = vunpack.c.l.b16 %v5778
    %v6296 = vunpack.c.l.b16 %v5779
    %v6297 = vunpack.c.l.b16 %v5780
    %v6298 = vunpack.c.l.b16 %v5781
    %v6299 = vunpack.c.l.b16 %v5782
    %v6300 = vunpack.c.l.b16 %v5783
    %v6301 = vunpack.c.l.b16 %v5784
    %v6302 = vunpack.c.l.b16 %v5785
    %v6303 = vunpack.c.l.b16 %v5786
    %v6304 = vunpack.c.l.b16 %v5787
    %v6305 = vunpack.c.l.b16 %v5788
    %v6306 = vunpack.c.l.b16 %v5789
    %v6307 = vunpack.c.l.b16 %v5790
    %v6308 = vunpack.c.l.b16 %v5791
    %v6309 = vunpack.c.l.b16 %v5792
    %v6310 = vunpack.c.l.b16 %v5793
    %v6311 = vunpack.c.l.b16 %v5794
    %v6312 = vunpack.c.l.b16 %v5795
    %v6313 = vunpack.c.l.b16 %v5796
    %v6314 = vunpack.c.l.b16 %v5797
    %v6315 = vunpack.c.l.b16 %v5798
    %v6316 = vunpack.c.l.b16 %v5799
    %v6317 = vunpack.c.l.b16 %v5800
    %v6318 = vunpack.c.l.b16 %v5801
    %v6319 = vunpack.c.l.b16 %v5802
    %v6320 = vunpack.c.l.b16 %v5803
    %v6321 = vunpack.c.l.b16 %v5804
    %v6322 = vunpack.c.l.b16 %v5805
    %v6323 = vunpack.c.l.b16 %v5806
    %v6324 = vunpack.c.l.b16 %v5807
    %v6325 = vunpack.c.l.b16 %v5808
    %v6326 = vpack.c.b16 %v6071, %v6070
    %v6327 = vpack.c.b16 %v6073, %v6072
    %v6328 = vpack.c.b16 %v6075, %v6074
    %v6329 = vpack.c.b16 %v6077, %v6076
    %v6330 = vpack.c.b16 %v6079, %v6078
    %v6331 = vpack.c.b16 %v6081, %v6080
    %v6332 = vpack.c.b16 %v6083, %v6082
    %v6333 = vpack.c.b16 %v6085, %v6084
    %v6334 = vpack.c.b16 %v6087, %v6086
    %v6335 = vpack.c.b16 %v6089, %v6088
    %v6336 = vpack.c.b16 %v6091, %v6090
    %v6337 = vpack.c.b16 %v6093, %v6092
    %v6338 = vpack.c.b16 %v6095, %v6094
    %v6339 = vpack.c.b16 %v6097, %v6096
    %v6340 = vpack.c.b16 %v6099, %v6098
    %v6341 = vpack.c.b16 %v6101, %v6100
    %v6342 = vpack.c.b16 %v6103, %v6102
    %v6343 = vpack.c.b16 %v6105, %v6104
    %v6344 = vpack.c.b16 %v6107, %v6106
    %v6345 = vpack.c.b16 %v6109, %v6108
    %v6346 = vpack.c.b16 %v6111, %v6110
    %v6347 = vpack.c.b16 %v6113, %v6112
    %v6348 = vpack.c.b16 %v6115, %v6114
    %v6349 = vpack.c.b16 %v6117, %v6116
    %v6350 = vpack.c.b16 %v6119, %v6118
    %v6351 = vpack.c.b16 %v6121, %v6120
    %v6352 = vpack.c.b16 %v6123, %v6122
    %v6353 = vpack.c.b16 %v6125, %v6124
    %v6354 = vpack.c.b16 %v6127, %v6126
    %v6355 = vpack.c.b16 %v6129, %v6128
    %v6356 = vpack.c.b16 %v6131, %v6130
    %v6357 = vpack.c.b16 %v6133, %v6132
    %v6358 = vpack.c.b16 %v6135, %v6134
    %v6359 = vpack.c.b16 %v6137, %v6136
    %v6360 = vpack.c.b16 %v6139, %v6138
    %v6361 = vpack.c.b16 %v6141, %v6140
    %v6362 = vpack.c.b16 %v6143, %v6142
    %v6363 = vpack.c.b16 %v6145, %v6144
    %v6364 = vpack.c.b16 %v6147, %v6146
    %v6365 = vpack.c.b16 %v6149, %v6148
    %v6366 = vpack.c.b16 %v6151, %v6150
    %v6367 = vpack.c.b16 %v6153, %v6152
    %v6368 = vpack.c.b16 %v6155, %v6154
    %v6369 = vpack.c.b16 %v6157, %v6156
    %v6370 = vpack.c.b16 %v6159, %v6158
    %v6371 = vpack.c.b16 %v6161, %v6160
    %v6372 = vpack.c.b16 %v6163, %v6162
    %v6373 = vpack.c.b16 %v6165, %v6164
    %v6374 = vpack.c.b16 %v6167, %v6166
    %v6375 = vpack.c.b16 %v6169, %v6168
    %v6376 = vpack.c.b16 %v6171, %v6170
    %v6377 = vpack.c.b16 %v6173, %v6172
    %v6378 = vpack.c.b16 %v6175, %v6174
    %v6379 = vpack.c.b16 %v6177, %v6176
    %v6380 = vpack.c.b16 %v6179, %v6178
    %v6381 = vpack.c.b16 %v6181, %v6180
    %v6382 = vpack.c.b16 %v6183, %v6182
    %v6383 = vpack.c.b16 %v6185, %v6184
    %v6384 = vpack.c.b16 %v6187, %v6186
    %v6385 = vpack.c.b16 %v6189, %v6188
    %v6386 = vpack.c.b16 %v6191, %v6190
    %v6387 = vpack.c.b16 %v6193, %v6192
    %v6388 = vpack.c.b16 %v6195, %v6194
    %v6389 = vpack.c.b16 %v6197, %v6196
    %v6390 = vpack.c.b16 %v6199, %v6198
    %v6391 = vpack.c.b16 %v6201, %v6200
    %v6392 = vpack.c.b16 %v6203, %v6202
    %v6393 = vpack.c.b16 %v6205, %v6204
    %v6394 = vpack.c.b16 %v6207, %v6206
    %v6395 = vpack.c.b16 %v6209, %v6208
    %v6396 = vpack.c.b16 %v6211, %v6210
    %v6397 = vpack.c.b16 %v6213, %v6212
    %v6398 = vpack.c.b16 %v6215, %v6214
    %v6399 = vpack.c.b16 %v6217, %v6216
    %v6400 = vpack.c.b16 %v6219, %v6218
    %v6401 = vpack.c.b16 %v6221, %v6220
    %v6402 = vpack.c.b16 %v6223, %v6222
    %v6403 = vpack.c.b16 %v6225, %v6224
    %v6404 = vpack.c.b16 %v6227, %v6226
    %v6405 = vpack.c.b16 %v6229, %v6228
    %v6406 = vpack.c.b16 %v6231, %v6230
    %v6407 = vpack.c.b16 %v6233, %v6232
    %v6408 = vpack.c.b16 %v6235, %v6234
    %v6409 = vpack.c.b16 %v6237, %v6236
    %v6410 = vpack.c.b16 %v6239, %v6238
    %v6411 = vpack.c.b16 %v6241, %v6240
    %v6412 = vpack.c.b16 %v6243, %v6242
    %v6413 = vpack.c.b16 %v6245, %v6244
    %v6414 = vpack.c.b16 %v6247, %v6246
    %v6415 = vpack.c.b16 %v6249, %v6248
    %v6416 = vpack.c.b16 %v6251, %v6250
    %v6417 = vpack.c.b16 %v6253, %v6252
    %v6418 = vpack.c.b16 %v6255, %v6254
    %v6419 = vpack.c.b16 %v6257, %v6256
    %v6420 = vpack.c.b16 %v6259, %v6258
    %v6421 = vpack.c.b16 %v6261, %v6260
    %v6422 = vpack.c.b16 %v6263, %v6262
    %v6423 = vpack.c.b16 %v6265, %v6264
    %v6424 = vpack.c.b16 %v6267, %v6266
    %v6425 = vpack.c.b16 %v6269, %v6268
    %v6426 = vpack.c.b16 %v6271, %v6270
    %v6427 = vpack.c.b16 %v6273, %v6272
    %v6428 = vpack.c.b16 %v6275, %v6274
    %v6429 = vpack.c.b16 %v6277, %v6276
    %v6430 = vpack.c.b16 %v6279, %v6278
    %v6431 = vpack.c.b16 %v6281, %v6280
    %v6432 = vpack.c.b16 %v6283, %v6282
    %v6433 = vpack.c.b16 %v6285, %v6284
    %v6434 = vpack.c.b16 %v6287, %v6286
    %v6435 = vpack.c.b16 %v6289, %v6288
    %v6436 = vpack.c.b16 %v6291, %v6290
    %v6437 = vpack.c.b16 %v6293, %v6292
    %v6438 = vpack.c.b16 %v6295, %v6294
    %v6439 = vpack.c.b16 %v6297, %v6296
    %v6440 = vpack.c.b16 %v6299, %v6298
    %v6441 = vpack.c.b16 %v6301, %v6300
    %v6442 = vpack.c.b16 %v6303, %v6302
    %v6443 = vpack.c.b16 %v6305, %v6304
    %v6444 = vpack.c.b16 %v6307, %v6306
    %v6445 = vpack.c.b16 %v6309, %v6308
    %v6446 = vpack.c.b16 %v6311, %v6310
    %v6447 = vpack.c.b16 %v6313, %v6312
    %v6448 = vpack.c.b16 %v6315, %v6314
    %v6449 = vpack.c.b16 %v6317, %v6316
    %v6450 = vpack.c.b16 %v6319, %v6318
    %v6451 = vpack.c.b16 %v6321, %v6320
    %v6452 = vpack.c.b16 %v6323, %v6322
    %v6453 = vpack.c.b16 %v6325, %v6324
    %6582 = vmatpush.bf16.msra.mxu0 %v6333
    %6583 = vmatpush.bf16.msra.mxu0 %v6332
    %6584 = vmatpush.bf16.msra.mxu0 %v6331
    %6585 = vmatpush.bf16.msra.mxu0 %v6330
    %6586 = vmatpush.bf16.msra.mxu0 %v6329
    %6587 = vmatpush.bf16.msra.mxu0 %v6328
    %6588 = vmatpush.bf16.msra.mxu0 %v6327
    %6589 = vmatpush.bf16.msra.mxu0 %v6326
    %6590 = vmatmul.bf16.gmra.mxu0 %v5536
    %v6591 = vpop.f32.mrf.mxu0
    %v6592 = vadd.f32 %v5812, %v6591
    %v6593 = vpop.f32.mrf.mxu0
    %6594 = vdwg.mxu0
    %6595 = vmatpush.bf16.msra.mxu0 %v6341
    %6596 = vmatpush.bf16.msra.mxu0 %v6340
    %6597 = vmatpush.bf16.msra.mxu0 %v6339
    %6598 = vmatpush.bf16.msra.mxu0 %v6338
    %6599 = vmatpush.bf16.msra.mxu0 %v6337
    %6600 = vmatpush.bf16.msra.mxu0 %v6336
    %6601 = vmatpush.bf16.msra.mxu0 %v6335
    %6602 = vmatpush.bf16.msra.mxu0 %v6334
    %6603 = vmatmul.bf16.gmra.mxu0 %v5537
    %v6604 = vpop.f32.mrf.mxu0
    %v6605 = vadd.f32 %v6592, %v6604
    %v6606 = vpop.f32.mrf.mxu0
    %6607 = vdwg.mxu0
    %6608 = vmatpush.bf16.msra.mxu0 %v6349
    %6609 = vmatpush.bf16.msra.mxu0 %v6348
    %6610 = vmatpush.bf16.msra.mxu0 %v6347
    %6611 = vmatpush.bf16.msra.mxu0 %v6346
    %6612 = vmatpush.bf16.msra.mxu0 %v6345
    %6613 = vmatpush.bf16.msra.mxu0 %v6344
    %6614 = vmatpush.bf16.msra.mxu0 %v6343
    %6615 = vmatpush.bf16.msra.mxu0 %v6342
    %6616 = vmatmul.bf16.gmra.mxu0 %v5538
    %v6617 = vpop.f32.mrf.mxu0
    %v6618 = vadd.f32 %v6605, %v6617
    %v6619 = vpop.f32.mrf.mxu0
    %6620 = vdwg.mxu0
    %6621 = vmatpush.bf16.msra.mxu0 %v6357
    %6622 = vmatpush.bf16.msra.mxu0 %v6356
    %6623 = vmatpush.bf16.msra.mxu0 %v6355
    %6624 = vmatpush.bf16.msra.mxu0 %v6354
    %6625 = vmatpush.bf16.msra.mxu0 %v6353
    %6626 = vmatpush.bf16.msra.mxu0 %v6352
    %6627 = vmatpush.bf16.msra.mxu0 %v6351
    %6628 = vmatpush.bf16.msra.mxu0 %v6350
    %6629 = vmatmul.bf16.gmra.mxu0 %v5539
    %v6630 = vpop.f32.mrf.mxu0
    %v6631 = vadd.f32 %v6618, %v6630
    %v6632 = vpop.f32.mrf.mxu0
    %6633 = vdwg.mxu0
    %6634 = vmatpush.bf16.msra.mxu0 %v6365
    %6635 = vmatpush.bf16.msra.mxu0 %v6364
    %6636 = vmatpush.bf16.msra.mxu0 %v6363
    %6637 = vmatpush.bf16.msra.mxu0 %v6362
    %6638 = vmatpush.bf16.msra.mxu0 %v6361
    %6639 = vmatpush.bf16.msra.mxu0 %v6360
    %6640 = vmatpush.bf16.msra.mxu0 %v6359
    %6641 = vmatpush.bf16.msra.mxu0 %v6358
    %6642 = vmatmul.bf16.gmra.mxu0 %v5540
    %v6643 = vpop.f32.mrf.mxu0
    %v6644 = vadd.f32 %v6631, %v6643
    %v6645 = vpop.f32.mrf.mxu0
    %6646 = vdwg.mxu0
    %6647 = vmatpush.bf16.msra.mxu0 %v6373
    %6648 = vmatpush.bf16.msra.mxu0 %v6372
    %6649 = vmatpush.bf16.msra.mxu0 %v6371
    %6650 = vmatpush.bf16.msra.mxu0 %v6370
    %6651 = vmatpush.bf16.msra.mxu0 %v6369
    %6652 = vmatpush.bf16.msra.mxu0 %v6368
    %6653 = vmatpush.bf16.msra.mxu0 %v6367
    %6654 = vmatpush.bf16.msra.mxu0 %v6366
    %6655 = vmatmul.bf16.gmra.mxu0 %v5541
    %v6656 = vpop.f32.mrf.mxu0
    %v6657 = vadd.f32 %v6644, %v6656
    %v6658 = vpop.f32.mrf.mxu0
    %6659 = vdwg.mxu0
    %6660 = vmatpush.bf16.msra.mxu0 %v6381
    %6661 = vmatpush.bf16.msra.mxu0 %v6380
    %6662 = vmatpush.bf16.msra.mxu0 %v6379
    %6663 = vmatpush.bf16.msra.mxu0 %v6378
    %6664 = vmatpush.bf16.msra.mxu0 %v6377
    %6665 = vmatpush.bf16.msra.mxu0 %v6376
    %6666 = vmatpush.bf16.msra.mxu0 %v6375
    %6667 = vmatpush.bf16.msra.mxu0 %v6374
    %6668 = vmatmul.bf16.gmra.mxu0 %v5542
    %v6669 = vpop.f32.mrf.mxu0
    %v6670 = vadd.f32 %v6657, %v6669
    %v6671 = vpop.f32.mrf.mxu0
    %6672 = vdwg.mxu0
    %6673 = vmatpush.bf16.msra.mxu0 %v6389
    %6674 = vmatpush.bf16.msra.mxu0 %v6388
    %6675 = vmatpush.bf16.msra.mxu0 %v6387
    %6676 = vmatpush.bf16.msra.mxu0 %v6386
    %6677 = vmatpush.bf16.msra.mxu0 %v6385
    %6678 = vmatpush.bf16.msra.mxu0 %v6384
    %6679 = vmatpush.bf16.msra.mxu0 %v6383
    %6680 = vmatpush.bf16.msra.mxu0 %v6382
    %6681 = vmatmul.bf16.gmra.mxu0 %v5543
    %v6682 = vpop.f32.mrf.mxu0
    %v6683 = vadd.f32 %v6670, %v6682
    %v6684 = vpop.f32.mrf.mxu0
    %6685 = vdwg.mxu0
    %6686 = vmatpush.bf16.msra.mxu0 %v6397
    %6687 = vmatpush.bf16.msra.mxu0 %v6396
    %6688 = vmatpush.bf16.msra.mxu0 %v6395
    %6689 = vmatpush.bf16.msra.mxu0 %v6394
    %6690 = vmatpush.bf16.msra.mxu0 %v6393
    %6691 = vmatpush.bf16.msra.mxu0 %v6392
    %6692 = vmatpush.bf16.msra.mxu0 %v6391
    %6693 = vmatpush.bf16.msra.mxu0 %v6390
    %6694 = vmatmul.bf16.gmra.mxu0 %v5544
    %v6695 = vpop.f32.mrf.mxu0
    %v6696 = vadd.f32 %v6683, %v6695
    %v6697 = vpop.f32.mrf.mxu0
    %6698 = vdwg.mxu0
    %6699 = vmatpush.bf16.msra.mxu0 %v6405
    %6700 = vmatpush.bf16.msra.mxu0 %v6404
    %6701 = vmatpush.bf16.msra.mxu0 %v6403
    %6702 = vmatpush.bf16.msra.mxu0 %v6402
    %6703 = vmatpush.bf16.msra.mxu0 %v6401
    %6704 = vmatpush.bf16.msra.mxu0 %v6400
    %6705 = vmatpush.bf16.msra.mxu0 %v6399
    %6706 = vmatpush.bf16.msra.mxu0 %v6398
    %6707 = vmatmul.bf16.gmra.mxu0 %v5545
    %v6708 = vpop.f32.mrf.mxu0
    %v6709 = vadd.f32 %v6696, %v6708
    %v6710 = vpop.f32.mrf.mxu0
    %6711 = vdwg.mxu0
    %6712 = vmatpush.bf16.msra.mxu0 %v6413
    %6713 = vmatpush.bf16.msra.mxu0 %v6412
    %6714 = vmatpush.bf16.msra.mxu0 %v6411
    %6715 = vmatpush.bf16.msra.mxu0 %v6410
    %6716 = vmatpush.bf16.msra.mxu0 %v6409
    %6717 = vmatpush.bf16.msra.mxu0 %v6408
    %6718 = vmatpush.bf16.msra.mxu0 %v6407
    %6719 = vmatpush.bf16.msra.mxu0 %v6406
    %6720 = vmatmul.bf16.gmra.mxu0 %v5546
    %v6721 = vpop.f32.mrf.mxu0
    %v6722 = vadd.f32 %v6709, %v6721
    %v6723 = vpop.f32.mrf.mxu0
    %6724 = vdwg.mxu0
    %6725 = vmatpush.bf16.msra.mxu0 %v6421
    %6726 = vmatpush.bf16.msra.mxu0 %v6420
    %6727 = vmatpush.bf16.msra.mxu0 %v6419
    %6728 = vmatpush.bf16.msra.mxu0 %v6418
    %6729 = vmatpush.bf16.msra.mxu0 %v6417
    %6730 = vmatpush.bf16.msra.mxu0 %v6416
    %6731 = vmatpush.bf16.msra.mxu0 %v6415
    %6732 = vmatpush.bf16.msra.mxu0 %v6414
    %6733 = vmatmul.bf16.gmra.mxu0 %v5547
    %v6734 = vpop.f32.mrf.mxu0
    %v6735 = vadd.f32 %v6722, %v6734
    %v6736 = vpop.f32.mrf.mxu0
    %6737 = vdwg.mxu0
    %6738 = vmatpush.bf16.msra.mxu0 %v6429
    %6739 = vmatpush.bf16.msra.mxu0 %v6428
    %6740 = vmatpush.bf16.msra.mxu0 %v6427
    %6741 = vmatpush.bf16.msra.mxu0 %v6426
    %6742 = vmatpush.bf16.msra.mxu0 %v6425
    %6743 = vmatpush.bf16.msra.mxu0 %v6424
    %6744 = vmatpush.bf16.msra.mxu0 %v6423
    %6745 = vmatpush.bf16.msra.mxu0 %v6422
    %6746 = vmatmul.bf16.gmra.mxu0 %v5548
    %v6747 = vpop.f32.mrf.mxu0
    %v6748 = vadd.f32 %v6735, %v6747
    %v6749 = vpop.f32.mrf.mxu0
    %6750 = vdwg.mxu0
    %6751 = vmatpush.bf16.msra.mxu0 %v6437
    %6752 = vmatpush.bf16.msra.mxu0 %v6436
    %6753 = vmatpush.bf16.msra.mxu0 %v6435
    %6754 = vmatpush.bf16.msra.mxu0 %v6434
    %6755 = vmatpush.bf16.msra.mxu0 %v6433
    %6756 = vmatpush.bf16.msra.mxu0 %v6432
    %6757 = vmatpush.bf16.msra.mxu0 %v6431
    %6758 = vmatpush.bf16.msra.mxu0 %v6430
    %6759 = vmatmul.bf16.gmra.mxu0 %v5549
    %v6760 = vpop.f32.mrf.mxu0
    %v6761 = vadd.f32 %v6748, %v6760
    %v6762 = vpop.f32.mrf.mxu0
    %6763 = vdwg.mxu0
    %6764 = vmatpush.bf16.msra.mxu0 %v6445
    %6765 = vmatpush.bf16.msra.mxu0 %v6444
    %6766 = vmatpush.bf16.msra.mxu0 %v6443
    %6767 = vmatpush.bf16.msra.mxu0 %v6442
    %6768 = vmatpush.bf16.msra.mxu0 %v6441
    %6769 = vmatpush.bf16.msra.mxu0 %v6440
    %6770 = vmatpush.bf16.msra.mxu0 %v6439
    %6771 = vmatpush.bf16.msra.mxu0 %v6438
    %6772 = vmatmul.bf16.gmra.mxu0 %v5550
    %v6773 = vpop.f32.mrf.mxu0
    %v6774 = vadd.f32 %v6761, %v6773
    %v6775 = vpop.f32.mrf.mxu0
    %6776 = vdwg.mxu0
    %6777 = vmatpush.bf16.msra.mxu0 %v6453
    %6778 = vmatpush.bf16.msra.mxu0 %v6452
    %6779 = vmatpush.bf16.msra.mxu0 %v6451
    %6780 = vmatpush.bf16.msra.mxu0 %v6450
    %6781 = vmatpush.bf16.msra.mxu0 %v6449
    %6782 = vmatpush.bf16.msra.mxu0 %v6448
    %6783 = vmatpush.bf16.msra.mxu0 %v6447
    %6784 = vmatpush.bf16.msra.mxu0 %v6446
    %6785 = vmatmul.bf16.gmra.mxu0 %v5551
    %v6786 = vpop.f32.mrf.mxu0
    %v6787 = vadd.f32 %v6774, %v6786
    %v6788 = vpop.f32.mrf.mxu0
    %6789 = vdwg.mxu0
    %v6790 = vadd.f32 %v4504, %v6787
    %s6791 = scalar_lea.vmem [#allocation32], 1
    %v6792 = vld [vmem:[%s6791] sm:$0x1]
    %s6793 = scalar_lea.vmem [#allocation34], 1
    %v6794 = vld [vmem:[%s6793] sm:$0x1]
    %6795 = vadd.xlane.f32.xlu0 %v6790
    %v6796 = vpop.xlane.xlu0 %6795
    %v6797 = vmul.f32 %v6796, %v1526
    %v6798 = vsub.f32 %v6790, %v6797
    %v6799 = vmul.f32 %v6798, %v6798
    %6800 = vadd.xlane.f32.xlu0 %v6799
    %v6801 = vpop.xlane.xlu0 %6800
    %v6802 = vmul.f32 %v6801, %v1526
    %v6803 = vadd.f32 %v6802, 1e-05
    %v6804 = vrsqrt.pop %v6803
    %v6805 = vmul.f32 %v6804, %v6803
    %v6806 = vmul.f32 %v6805, %v6804
    %v6807 = vmul.f32 0.5, %v6806
    %v6808 = vsub.f32 1.5, %v6807
    %v6809 = vmul.f32 %v6804, %v6808
    %vm6810 = vweird.f32 %v6803
    %vm6811 = vweird.f32 %v6804
    %vm6812 = vmor %vm6810, %vm6811
    %v6813 = vsel %vm6812, %v6804, %v6809
    %v6814 = vmul.f32 %v6798, %v6813
    %v6816 = vperm.slane %v6792, 0
    %v6818 = vmul.f32 %v6814, %v6816
    %v6820 = vperm.slane %v6794, 0
    %v6822 = vadd.f32 %v6818, %v6820
    %v6823 = vpack.c.bf16 %v6822, %v6822
    %s6824 = scalar_lea.vmem [#allocation17], 384
    %v6825 = vld [vmem:[%s6824] sm:$0xff]
    %v6826 = vld [vmem:[%s6824 + $0x8] sm:$0xf]
    %v6827 = vld [vmem:[%s6824 + $0xc] sm:$0xff]
    %v6828 = vld [vmem:[%s6824 + $0x14] sm:$0xf]
    %v6829 = vld [vmem:[%s6824 + $0x18] sm:$0xff]
    %v6830 = vld [vmem:[%s6824 + $0x20] sm:$0xf]
    %v6831 = vld [vmem:[%s6824 + $0x24] sm:$0xff]
    %v6832 = vld [vmem:[%s6824 + $0x2c] sm:$0xf]
    %v6833 = vld [vmem:[%s6824 + $0x30] sm:$0xff]
    %v6834 = vld [vmem:[%s6824 + $0x38] sm:$0xf]
    %v6835 = vld [vmem:[%s6824 + $0x3c] sm:$0xff]
    %v6836 = vld [vmem:[%s6824 + $0x44] sm:$0xf]
    %v6837 = vld [vmem:[%s6824 + $0x48] sm:$0xff]
    %v6838 = vld [vmem:[%s6824 + $0x50] sm:$0xf]
    %v6839 = vld [vmem:[%s6824 + $0x54] sm:$0xff]
    %v6840 = vld [vmem:[%s6824 + $0x5c] sm:$0xf]
    %v6841 = vld [vmem:[%s6824 + $0x60] sm:$0xff]
    %v6842 = vld [vmem:[%s6824 + $0x68] sm:$0xf]
    %v6843 = vld [vmem:[%s6824 + $0x6c] sm:$0xff]
    %v6844 = vld [vmem:[%s6824 + $0x74] sm:$0xf]
    %v6845 = vld [vmem:[%s6824 + $0x78] sm:$0xff]
    %v6846 = vld [vmem:[%s6824 + $0x80] sm:$0xf]
    %v6847 = vld [vmem:[%s6824 + $0x84] sm:$0xff]
    %v6848 = vld [vmem:[%s6824 + $0x8c] sm:$0xf]
    %v6849 = vld [vmem:[%s6824 + $0x90] sm:$0xff]
    %v6850 = vld [vmem:[%s6824 + $0x98] sm:$0xf]
    %v6851 = vld [vmem:[%s6824 + $0x9c] sm:$0xff]
    %v6852 = vld [vmem:[%s6824 + $0xa4] sm:$0xf]
    %v6853 = vld [vmem:[%s6824 + $0xa8] sm:$0xff]
    %v6854 = vld [vmem:[%s6824 + $0xb0] sm:$0xf]
    %v6855 = vld [vmem:[%s6824 + $0xb4] sm:$0xff]
    %v6856 = vld [vmem:[%s6824 + $0xbc] sm:$0xf]
    %s6857 = scalar_lea.vmem [#allocation19], 6
    %v6858 = vld [vmem:[%s6857] sm:$0x7]
    %v6860 = vperm.slane %v6858, 0
    %v6861 = vperm.slane %v6858, 1
    %v6862 = vperm.slane %v6858, 2
    %v6898 = vunpack.c.l.b16 %v6825
    %v6899 = vunpack.c.h.b16 %v6825
    %v6900 = vunpack.c.l.b16 %v6826
    %v6901 = vunpack.c.l.b16 %v6827
    %v6902 = vunpack.c.h.b16 %v6827
    %v6903 = vunpack.c.l.b16 %v6828
    %v6904 = vunpack.c.l.b16 %v6829
    %v6905 = vunpack.c.h.b16 %v6829
    %v6906 = vunpack.c.l.b16 %v6830
    %v6907 = vunpack.c.l.b16 %v6831
    %v6908 = vunpack.c.h.b16 %v6831
    %v6909 = vunpack.c.l.b16 %v6832
    %v6910 = vunpack.c.l.b16 %v6833
    %v6911 = vunpack.c.h.b16 %v6833
    %v6912 = vunpack.c.l.b16 %v6834
    %v6913 = vunpack.c.l.b16 %v6835
    %v6914 = vunpack.c.h.b16 %v6835
    %v6915 = vunpack.c.l.b16 %v6836
    %v6916 = vunpack.c.l.b16 %v6837
    %v6917 = vunpack.c.h.b16 %v6837
    %v6918 = vunpack.c.l.b16 %v6838
    %v6919 = vunpack.c.l.b16 %v6839
    %v6920 = vunpack.c.h.b16 %v6839
    %v6921 = vunpack.c.l.b16 %v6840
    %v6922 = vunpack.c.l.b16 %v6841
    %v6923 = vunpack.c.h.b16 %v6841
    %v6924 = vunpack.c.l.b16 %v6842
    %v6925 = vunpack.c.l.b16 %v6843
    %v6926 = vunpack.c.h.b16 %v6843
    %v6927 = vunpack.c.l.b16 %v6844
    %v6928 = vunpack.c.l.b16 %v6845
    %v6929 = vunpack.c.h.b16 %v6845
    %v6930 = vunpack.c.l.b16 %v6846
    %v6931 = vunpack.c.l.b16 %v6847
    %v6932 = vunpack.c.h.b16 %v6847
    %v6933 = vunpack.c.l.b16 %v6848
    %v6934 = vunpack.c.l.b16 %v6849
    %v6935 = vunpack.c.h.b16 %v6849
    %v6936 = vunpack.c.l.b16 %v6850
    %v6937 = vunpack.c.l.b16 %v6851
    %v6938 = vunpack.c.h.b16 %v6851
    %v6939 = vunpack.c.l.b16 %v6852
    %v6940 = vunpack.c.l.b16 %v6853
    %v6941 = vunpack.c.h.b16 %v6853
    %v6942 = vunpack.c.l.b16 %v6854
    %v6943 = vunpack.c.l.b16 %v6855
    %v6944 = vunpack.c.h.b16 %v6855
    %v6945 = vunpack.c.l.b16 %v6856
    %v6946 = vpack.c.b16 %v6901, %v6898
    %v6947 = vpack.c.b16 %v6902, %v6899
    %v6948 = vpack.c.b16 %v6903, %v6900
    %v6949 = vpack.c.b16 %v6907, %v6904
    %v6950 = vpack.c.b16 %v6908, %v6905
    %v6951 = vpack.c.b16 %v6909, %v6906
    %v6952 = vpack.c.b16 %v6913, %v6910
    %v6953 = vpack.c.b16 %v6914, %v6911
    %v6954 = vpack.c.b16 %v6915, %v6912
    %v6955 = vpack.c.b16 %v6919, %v6916
    %v6956 = vpack.c.b16 %v6920, %v6917
    %v6957 = vpack.c.b16 %v6921, %v6918
    %v6958 = vpack.c.b16 %v6925, %v6922
    %v6959 = vpack.c.b16 %v6926, %v6923
    %v6960 = vpack.c.b16 %v6927, %v6924
    %v6961 = vpack.c.b16 %v6931, %v6928
    %v6962 = vpack.c.b16 %v6932, %v6929
    %v6963 = vpack.c.b16 %v6933, %v6930
    %v6964 = vpack.c.b16 %v6937, %v6934
    %v6965 = vpack.c.b16 %v6938, %v6935
    %v6966 = vpack.c.b16 %v6939, %v6936
    %v6967 = vpack.c.b16 %v6943, %v6940
    %v6968 = vpack.c.b16 %v6944, %v6941
    %v6969 = vpack.c.b16 %v6945, %v6942
    %6994 = vmatpush.bf16.msra.mxu0 %v6967
    %6995 = vmatpush.bf16.msra.mxu0 %v6964
    %6996 = vmatpush.bf16.msra.mxu0 %v6961
    %6997 = vmatpush.bf16.msra.mxu0 %v6958
    %6998 = vmatpush.bf16.msra.mxu0 %v6955
    %6999 = vmatpush.bf16.msra.mxu0 %v6952
    %7000 = vmatpush.bf16.msra.mxu0 %v6949
    %7001 = vmatpush.bf16.msra.mxu0 %v6946
    %7002 = vmatmul.bf16.gmra.mxu0 %v6823
    %v7003 = vpop.f32.mrf.mxu0
    %v7004 = vadd.f32 %v6860, %v7003
    %v7005 = vpop.f32.mrf.mxu0
    %7006 = vdwg.mxu0
    %7007 = vmatpush.bf16.msra.mxu0 %v6968
    %7008 = vmatpush.bf16.msra.mxu0 %v6965
    %7009 = vmatpush.bf16.msra.mxu0 %v6962
    %7010 = vmatpush.bf16.msra.mxu0 %v6959
    %7011 = vmatpush.bf16.msra.mxu0 %v6956
    %7012 = vmatpush.bf16.msra.mxu0 %v6953
    %7013 = vmatpush.bf16.msra.mxu0 %v6950
    %7014 = vmatpush.bf16.msra.mxu0 %v6947
    %7015 = vmatmul.bf16.gmra.mxu0 %v6823
    %v7016 = vpop.f32.mrf.mxu0
    %v7017 = vadd.f32 %v6861, %v7016
    %v7018 = vpop.f32.mrf.mxu0
    %7019 = vdwg.mxu0
    %7020 = vmatpush.bf16.msra.mxu0 %v6969
    %7021 = vmatpush.bf16.msra.mxu0 %v6966
    %7022 = vmatpush.bf16.msra.mxu0 %v6963
    %7023 = vmatpush.bf16.msra.mxu0 %v6960
    %7024 = vmatpush.bf16.msra.mxu0 %v6957
    %7025 = vmatpush.bf16.msra.mxu0 %v6954
    %7026 = vmatpush.bf16.msra.mxu0 %v6951
    %7027 = vmatpush.bf16.msra.mxu0 %v6948
    %7028 = vmatmul.bf16.gmra.mxu0 %v6823
    %v7029 = vpop.f32.mrf.mxu0
    %v7030 = vadd.f32 %v6862, %v7029
    %v7031 = vpop.f32.mrf.mxu0
    %7032 = vdwg.mxu0
    %7034 = vrot.lane.b32.xlu0 %v7004, 112
    %v7035 = vpop.permute.xlu0 %7034
    %7036 = vrot.lane.b32.xlu0 %v7004, 96
    %v7037 = vpop.permute.xlu0 %7036
    %7038 = vrot.lane.b32.xlu0 %v7004, 80
    %v7039 = vpop.permute.xlu0 %7038
    %7040 = vrot.lane.b32.xlu0 %v7004, 64
    %v7041 = vpop.permute.xlu0 %7040
    %7042 = vrot.lane.b32.xlu0 %v7004, 48
    %v7043 = vpop.permute.xlu0 %7042
    %7044 = vrot.lane.b32.xlu0 %v7004, 32
    %v7045 = vpop.permute.xlu0 %7044
    %7046 = vrot.lane.b32.xlu0 %v7004, 16
    %v7047 = vpop.permute.xlu0 %7046
    %7049 = vrot.lane.b32.xlu0 %v7017, 112
    %v7050 = vpop.permute.xlu0 %7049
    %7051 = vrot.lane.b32.xlu0 %v7017, 96
    %v7052 = vpop.permute.xlu0 %7051
    %7053 = vrot.lane.b32.xlu0 %v7017, 80
    %v7054 = vpop.permute.xlu0 %7053
    %7055 = vrot.lane.b32.xlu0 %v7017, 64
    %v7056 = vpop.permute.xlu0 %7055
    %7057 = vrot.lane.b32.xlu0 %v7017, 48
    %v7058 = vpop.permute.xlu0 %7057
    %7059 = vrot.lane.b32.xlu0 %v7017, 32
    %v7060 = vpop.permute.xlu0 %7059
    %7061 = vrot.lane.b32.xlu0 %v7017, 16
    %v7062 = vpop.permute.xlu0 %7061
    %7064 = vrot.lane.b32.xlu0 %v7030, 112
    %v7065 = vpop.permute.xlu0 %7064
    %7067 = vrot.lane.b32.xlu0 %v7030, 96
    %v7068 = vpop.permute.xlu0 %7067
    %7070 = vrot.lane.b32.xlu0 %v7030, 80
    %v7071 = vpop.permute.xlu0 %7070
    %7073 = vrot.lane.b32.xlu0 %v7030, 64
    %v7074 = vpop.permute.xlu0 %7073
    %7076 = vrot.lane.b32.xlu0 %v7030, 48
    %v7077 = vpop.permute.xlu0 %7076
    %7079 = vrot.lane.b32.xlu0 %v7030, 32
    %v7080 = vpop.permute.xlu0 %7079
    %7082 = vrot.lane.b32.xlu0 %v7030, 16
    %v7083 = vpop.permute.xlu0 %7082
    %v7085 = vsel %vm434, %v7004, 0
    %v7087 = vsel %vm434, %v7035, 0
    %v7089 = vsel %vm434, %v7037, 0
    %v7091 = vsel %vm434, %v7039, 0
    %v7093 = vsel %vm434, %v7041, 0
    %v7095 = vsel %vm434, %v7043, 0
    %v7097 = vsel %vm434, %v7045, 0
    %v7099 = vsel %vm434, %v7047, 0
    %v7101 = vsel %vm434, %v7017, 0
    %v7103 = vsel %vm434, %v7050, 0
    %v7105 = vsel %vm434, %v7052, 0
    %v7107 = vsel %vm434, %v7054, 0
    %v7109 = vsel %vm434, %v7056, 0
    %v7111 = vsel %vm434, %v7058, 0
    %v7113 = vsel %vm434, %v7060, 0
    %v7115 = vsel %vm434, %v7062, 0
    %7117 = vmatpush.xpose.msra.mxu0 0.0
    %7118 = vmatpush.xpose.msra.mxu0 0.0
    %7119 = vmatpush.xpose.msra.mxu0 0.0
    %7120 = vmatpush.xpose.msra.mxu0 0.0
    %7121 = vmatpush.xpose.msra.mxu0 0.0
    %7122 = vmatpush.xpose.msra.mxu0 0.0
    %7123 = vmatpush.xpose.msra.mxu0 0.0
    %7124 = vmatpush.xpose.msra.mxu0 0.0
    %7125 = vmatpush.xpose.msra.mxu0 %v7115
    %7126 = vmatpush.xpose.msra.mxu0 %v7113
    %7127 = vmatpush.xpose.msra.mxu0 %v7111
    %7128 = vmatpush.xpose.msra.mxu0 %v7109
    %7129 = vmatpush.xpose.msra.mxu0 %v7107
    %7130 = vmatpush.xpose.msra.mxu0 %v7105
    %7131 = vmatpush.xpose.msra.mxu0 %v7103
    %7132 = vmatpush.xpose.msra.mxu0 %v7101
    %7133 = vmatmul.f32.gmra.mxu0 %v7085
    %v7134 = vpop.f32.mrf.mxu0
    %v7135 = vadd.f32 %v899, %v7134
    %7136 = vmatmul.f32.gmra.mxu0 %v7087
    %v7137 = vpop.f32.mrf.mxu0
    %v7138 = vadd.f32 %v900, %v7137
    %7139 = vmatmul.f32.gmra.mxu0 %v7089
    %v7140 = vpop.f32.mrf.mxu0
    %v7141 = vadd.f32 %v901, %v7140
    %7142 = vmatmul.f32.gmra.mxu0 %v7091
    %v7143 = vpop.f32.mrf.mxu0
    %v7144 = vadd.f32 %v902, %v7143
    %7145 = vmatmul.f32.gmra.mxu0 %v7093
    %v7146 = vpop.f32.mrf.mxu0
    %v7147 = vadd.f32 %v903, %v7146
    %7148 = vmatmul.f32.gmra.mxu0 %v7095
    %v7149 = vpop.f32.mrf.mxu0
    %v7150 = vadd.f32 %v904, %v7149
    %7151 = vmatmul.f32.gmra.mxu0 %v7097
    %v7152 = vpop.f32.mrf.mxu0
    %v7153 = vadd.f32 %v905, %v7152
    %7154 = vmatmul.f32.gmra.mxu0 %v7099
    %v7155 = vpop.f32.mrf.mxu0
    %v7156 = vadd.f32 %v906, %v7155
    %7157 = vdwg.mxu0
    %v7158 = vsel %vm882, %v7135, -inf
    %7159 = vmax.xlane.f32.xlu0 %v7158
    %v7160 = vpop.xlane.xlu0 %7159
    %v7161 = vsel %vm882, %v7138, -inf
    %7162 = vmax.xlane.f32.xlu0 %v7161
    %v7163 = vpop.xlane.xlu0 %7162
    %v7164 = vsel %vm882, %v7141, -inf
    %7165 = vmax.xlane.f32.xlu0 %v7164
    %v7166 = vpop.xlane.xlu0 %7165
    %v7167 = vsel %vm882, %v7144, -inf
    %7168 = vmax.xlane.f32.xlu0 %v7167
    %v7169 = vpop.xlane.xlu0 %7168
    %v7170 = vsel %vm882, %v7147, -inf
    %7171 = vmax.xlane.f32.xlu0 %v7170
    %v7172 = vpop.xlane.xlu0 %7171
    %v7173 = vsel %vm882, %v7150, -inf
    %7174 = vmax.xlane.f32.xlu0 %v7173
    %v7175 = vpop.xlane.xlu0 %7174
    %v7176 = vsel %vm882, %v7153, -inf
    %7177 = vmax.xlane.f32.xlu0 %v7176
    %v7178 = vpop.xlane.xlu0 %7177
    %v7179 = vsel %vm882, %v7156, -inf
    %7180 = vmax.xlane.f32.xlu0 %v7179
    %v7181 = vpop.xlane.xlu0 %7180
    %v7182 = vsub.f32 %v7135, %v7160
    %v7183 = vsub.f32 %v7138, %v7163
    %v7184 = vsub.f32 %v7141, %v7166
    %v7185 = vsub.f32 %v7144, %v7169
    %v7186 = vsub.f32 %v7147, %v7172
    %v7187 = vsub.f32 %v7150, %v7175
    %v7188 = vsub.f32 %v7153, %v7178
    %v7189 = vsub.f32 %v7156, %v7181
    %v7190 = vmul.f32 %v7182, 1.442695
    %v7191 = vpow.pop %v7190
    %v7192 = vmul.f32 %v7183, 1.442695
    %v7193 = vpow.pop %v7192
    %v7194 = vmul.f32 %v7184, 1.442695
    %v7195 = vpow.pop %v7194
    %v7196 = vmul.f32 %v7185, 1.442695
    %v7197 = vpow.pop %v7196
    %v7198 = vmul.f32 %v7186, 1.442695
    %v7199 = vpow.pop %v7198
    %v7200 = vmul.f32 %v7187, 1.442695
    %v7201 = vpow.pop %v7200
    %v7202 = vmul.f32 %v7188, 1.442695
    %v7203 = vpow.pop %v7202
    %v7204 = vmul.f32 %v7189, 1.442695
    %v7205 = vpow.pop %v7204
    %v7206 = vsel %vm882, %v7191, 0.0
    %7207 = vadd.xlane.f32.xlu0 %v7206
    %v7208 = vpop.xlane.xlu0 %7207
    %v7209 = vsel %vm882, %v7193, 0.0
    %7210 = vadd.xlane.f32.xlu0 %v7209
    %v7211 = vpop.xlane.xlu0 %7210
    %v7212 = vsel %vm882, %v7195, 0.0
    %7213 = vadd.xlane.f32.xlu0 %v7212
    %v7214 = vpop.xlane.xlu0 %7213
    %v7215 = vsel %vm882, %v7197, 0.0
    %7216 = vadd.xlane.f32.xlu0 %v7215
    %v7217 = vpop.xlane.xlu0 %7216
    %v7218 = vsel %vm882, %v7199, 0.0
    %7219 = vadd.xlane.f32.xlu0 %v7218
    %v7220 = vpop.xlane.xlu0 %7219
    %v7221 = vsel %vm882, %v7201, 0.0
    %7222 = vadd.xlane.f32.xlu0 %v7221
    %v7223 = vpop.xlane.xlu0 %7222
    %v7224 = vsel %vm882, %v7203, 0.0
    %7225 = vadd.xlane.f32.xlu0 %v7224
    %v7226 = vpop.xlane.xlu0 %7225
    %v7227 = vsel %vm882, %v7205, 0.0
    %7228 = vadd.xlane.f32.xlu0 %v7227
    %v7229 = vpop.xlane.xlu0 %7228
    %v7230 = vrcp.pop %v7208
    %v7231 = vrcp.pop %v7211
    %v7232 = vrcp.pop %v7214
    %v7233 = vrcp.pop %v7217
    %v7234 = vrcp.pop %v7220
    %v7235 = vrcp.pop %v7223
    %v7236 = vrcp.pop %v7226
    %v7237 = vrcp.pop %v7229
    %v7238 = vmul.f32 %v7191, %v7230
    %v7239 = vmul.f32 %v7193, %v7231
    %v7240 = vmul.f32 %v7195, %v7232
    %v7241 = vmul.f32 %v7197, %v7233
    %v7242 = vmul.f32 %v7199, %v7234
    %v7243 = vmul.f32 %v7201, %v7235
    %v7244 = vmul.f32 %v7203, %v7236
    %v7245 = vmul.f32 %v7205, %v7237
    %v7247 = vsel %vm882, %v7238, 0
    %v7250 = vsel %vm882, %v7239, 0
    %v7253 = vsel %vm882, %v7240, 0
    %v7256 = vsel %vm882, %v7241, 0
    %v7259 = vsel %vm882, %v7242, 0
    %v7262 = vsel %vm882, %v7243, 0
    %v7265 = vsel %vm882, %v7244, 0
    %v7268 = vsel %vm882, %v7245, 0
    %7270 = vmatpush.msra.mxu0 0.0
    %7271 = vmatpush.msra.mxu0 0.0
    %7272 = vmatpush.msra.mxu0 0.0
    %7273 = vmatpush.msra.mxu0 0.0
    %7274 = vmatpush.msra.mxu0 0.0
    %7275 = vmatpush.msra.mxu0 0.0
    %7276 = vmatpush.msra.mxu0 0.0
    %7277 = vmatpush.msra.mxu0 0.0
    %7278 = vmatpush.msra.mxu0 %v7083
    %7279 = vmatpush.msra.mxu0 %v7080
    %7280 = vmatpush.msra.mxu0 %v7077
    %7281 = vmatpush.msra.mxu0 %v7074
    %7282 = vmatpush.msra.mxu0 %v7071
    %7283 = vmatpush.msra.mxu0 %v7068
    %7284 = vmatpush.msra.mxu0 %v7065
    %7285 = vmatpush.msra.mxu0 %v7030
    %7286 = vmatmul.f32.gmra.mxu0 %v7247
    %v7287 = vpop.f32.mrf.mxu0
    %v7288 = vadd.f32 0.0, %v7287
    %7289 = vmatmul.f32.gmra.mxu0 %v7250
    %v7290 = vpop.f32.mrf.mxu0
    %v7291 = vadd.f32 0.0, %v7290
    %7292 = vmatmul.f32.gmra.mxu0 %v7253
    %v7293 = vpop.f32.mrf.mxu0
    %v7294 = vadd.f32 0.0, %v7293
    %7295 = vmatmul.f32.gmra.mxu0 %v7256
    %v7296 = vpop.f32.mrf.mxu0
    %v7297 = vadd.f32 0.0, %v7296
    %7298 = vmatmul.f32.gmra.mxu0 %v7259
    %v7299 = vpop.f32.mrf.mxu0
    %v7300 = vadd.f32 0.0, %v7299
    %7301 = vmatmul.f32.gmra.mxu0 %v7262
    %v7302 = vpop.f32.mrf.mxu0
    %v7303 = vadd.f32 0.0, %v7302
    %7304 = vmatmul.f32.gmra.mxu0 %v7265
    %v7305 = vpop.f32.mrf.mxu0
    %v7306 = vadd.f32 0.0, %v7305
    %7307 = vmatmul.f32.gmra.mxu0 %v7268
    %v7308 = vpop.f32.mrf.mxu0
    %v7309 = vadd.f32 0.0, %v7308
    %7310 = vdwg.mxu0
    %7312 = vrot.lane.b32.xlu0 %v7291, 16
    %v7313 = vpop.permute.xlu0 %7312
    %7316 = vrot.lane.b32.xlu0 %v7294, 32
    %v7317 = vpop.permute.xlu0 %7316
    %7320 = vrot.lane.b32.xlu0 %v7297, 48
    %v7321 = vpop.permute.xlu0 %7320
    %7324 = vrot.lane.b32.xlu0 %v7300, 64
    %v7325 = vpop.permute.xlu0 %7324
    %7328 = vrot.lane.b32.xlu0 %v7303, 80
    %v7329 = vpop.permute.xlu0 %7328
    %7332 = vrot.lane.b32.xlu0 %v7306, 96
    %v7333 = vpop.permute.xlu0 %7332
    %7336 = vrot.lane.b32.xlu0 %v7309, 112
    %v7337 = vpop.permute.xlu0 %7336
    %v7339 = vsel %vm434, %v7288, %v7313
    %v7340 = vsel %vm1422, %v7339, %v7317
    %v7341 = vsel %vm1424, %v7340, %v7321
    %v7342 = vsel %vm882, %v7341, %v7325
    %v7343 = vsel %vm1427, %v7342, %v7329
    %v7344 = vsel %vm1429, %v7343, %v7333
    %v7345 = vsel %vm1431, %v7344, %v7337
    %v7346 = vpack.c.bf16 %v7345, %v7345
    %s7347 = scalar_lea.vmem [#allocation20], 128
    %v7348 = vld [vmem:[%s7347] sm:$0xf]
    %v7349 = vld [vmem:[%s7347 + $0x4] sm:$0xf]
    %v7350 = vld [vmem:[%s7347 + $0x8] sm:$0xf]
    %v7351 = vld [vmem:[%s7347 + $0xc] sm:$0xf]
    %v7352 = vld [vmem:[%s7347 + $0x10] sm:$0xf]
    %v7353 = vld [vmem:[%s7347 + $0x14] sm:$0xf]
    %v7354 = vld [vmem:[%s7347 + $0x18] sm:$0xf]
    %v7355 = vld [vmem:[%s7347 + $0x1c] sm:$0xf]
    %v7356 = vld [vmem:[%s7347 + $0x20] sm:$0xf]
    %v7357 = vld [vmem:[%s7347 + $0x24] sm:$0xf]
    %v7358 = vld [vmem:[%s7347 + $0x28] sm:$0xf]
    %v7359 = vld [vmem:[%s7347 + $0x2c] sm:$0xf]
    %v7360 = vld [vmem:[%s7347 + $0x30] sm:$0xf]
    %v7361 = vld [vmem:[%s7347 + $0x34] sm:$0xf]
    %v7362 = vld [vmem:[%s7347 + $0x38] sm:$0xf]
    %v7363 = vld [vmem:[%s7347 + $0x3c] sm:$0xf]
    %s7364 = scalar_lea.vmem [#allocation22], 2
    %v7365 = vld [vmem:[%s7364] sm:$0x1]
    %v7367 = vperm.slane %v7365, 0
    %v7385 = vunpack.c.l.b16 %v7348
    %v7386 = vunpack.c.l.b16 %v7349
    %v7387 = vunpack.c.l.b16 %v7350
    %v7388 = vunpack.c.l.b16 %v7351
    %v7389 = vunpack.c.l.b16 %v7352
    %v7390 = vunpack.c.l.b16 %v7353
    %v7391 = vunpack.c.l.b16 %v7354
    %v7392 = vunpack.c.l.b16 %v7355
    %v7393 = vunpack.c.l.b16 %v7356
    %v7394 = vunpack.c.l.b16 %v7357
    %v7395 = vunpack.c.l.b16 %v7358
    %v7396 = vunpack.c.l.b16 %v7359
    %v7397 = vunpack.c.l.b16 %v7360
    %v7398 = vunpack.c.l.b16 %v7361
    %v7399 = vunpack.c.l.b16 %v7362
    %v7400 = vunpack.c.l.b16 %v7363
    %v7401 = vpack.c.b16 %v7386, %v7385
    %v7402 = vpack.c.b16 %v7388, %v7387
    %v7403 = vpack.c.b16 %v7390, %v7389
    %v7404 = vpack.c.b16 %v7392, %v7391
    %v7405 = vpack.c.b16 %v7394, %v7393
    %v7406 = vpack.c.b16 %v7396, %v7395
    %v7407 = vpack.c.b16 %v7398, %v7397
    %v7408 = vpack.c.b16 %v7400, %v7399
    %7417 = vmatpush.bf16.msra.mxu0 %v7408
    %7418 = vmatpush.bf16.msra.mxu0 %v7407
    %7419 = vmatpush.bf16.msra.mxu0 %v7406
    %7420 = vmatpush.bf16.msra.mxu0 %v7405
    %7421 = vmatpush.bf16.msra.mxu0 %v7404
    %7422 = vmatpush.bf16.msra.mxu0 %v7403
    %7423 = vmatpush.bf16.msra.mxu0 %v7402
    %7424 = vmatpush.bf16.msra.mxu0 %v7401
    %7425 = vmatmul.bf16.gmra.mxu0 %v7346
    %v7426 = vpop.f32.mrf.mxu0
    %v7427 = vadd.f32 %v7367, %v7426
    %v7428 = vpop.f32.mrf.mxu0
    %7429 = vdwg.mxu0
    %v7430 = vadd.f32 %v6822, %v7427
    %s7431 = scalar_lea.vmem [#allocation23], 2
    %v7432 = vld [vmem:[%s7431] sm:$0x1]
    %s7433 = scalar_lea.vmem [#allocation25], 2
    %v7434 = vld [vmem:[%s7433] sm:$0x1]
    %7435 = vadd.xlane.f32.xlu0 %v7430
    %v7436 = vpop.xlane.xlu0 %7435
    %v7437 = vmul.f32 %v7436, %v1526
    %v7438 = vsub.f32 %v7430, %v7437
    %v7439 = vmul.f32 %v7438, %v7438
    %7440 = vadd.xlane.f32.xlu0 %v7439
    %v7441 = vpop.xlane.xlu0 %7440
    %v7442 = vmul.f32 %v7441, %v1526
    %v7443 = vadd.f32 %v7442, 1e-05
    %v7444 = vrsqrt.pop %v7443
    %v7445 = vmul.f32 %v7444, %v7443
    %v7446 = vmul.f32 %v7445, %v7444
    %v7447 = vmul.f32 0.5, %v7446
    %v7448 = vsub.f32 1.5, %v7447
    %v7449 = vmul.f32 %v7444, %v7448
    %vm7450 = vweird.f32 %v7443
    %vm7451 = vweird.f32 %v7444
    %vm7452 = vmor %vm7450, %vm7451
    %v7453 = vsel %vm7452, %v7444, %v7449
    %v7454 = vmul.f32 %v7438, %v7453
    %v7456 = vperm.slane %v7432, 0
    %v7458 = vmul.f32 %v7454, %v7456
    %v7460 = vperm.slane %v7434, 0
    %v7462 = vadd.f32 %v7458, %v7460
    %v7463 = vpack.c.bf16 %v7462, %v7462
    %s7464 = scalar_lea.vmem [#allocation26], 2048
    %v7465 = vld [vmem:[%s7464] sm:$0xff]
    %v7466 = vld [vmem:[%s7464 + $0x8] sm:$0xff]
    %v7467 = vld [vmem:[%s7464 + $0x10] sm:$0xff]
    %v7468 = vld [vmem:[%s7464 + $0x18] sm:$0xff]
    %v7469 = vld [vmem:[%s7464 + $0x20] sm:$0xff]
    %v7470 = vld [vmem:[%s7464 + $0x28] sm:$0xff]
    %v7471 = vld [vmem:[%s7464 + $0x30] sm:$0xff]
    %v7472 = vld [vmem:[%s7464 + $0x38] sm:$0xff]
    %v7473 = vld [vmem:[%s7464 + $0x40] sm:$0xff]
    %v7474 = vld [vmem:[%s7464 + $0x48] sm:$0xff]
    %v7475 = vld [vmem:[%s7464 + $0x50] sm:$0xff]
    %v7476 = vld [vmem:[%s7464 + $0x58] sm:$0xff]
    %v7477 = vld [vmem:[%s7464 + $0x60] sm:$0xff]
    %v7478 = vld [vmem:[%s7464 + $0x68] sm:$0xff]
    %v7479 = vld [vmem:[%s7464 + $0x70] sm:$0xff]
    %v7480 = vld [vmem:[%s7464 + $0x78] sm:$0xff]
    %v7481 = vld [vmem:[%s7464 + $0x80] sm:$0xff]
    %v7482 = vld [vmem:[%s7464 + $0x88] sm:$0xff]
    %v7483 = vld [vmem:[%s7464 + $0x90] sm:$0xff]
    %v7484 = vld [vmem:[%s7464 + $0x98] sm:$0xff]
    %v7485 = vld [vmem:[%s7464 + $0xa0] sm:$0xff]
    %v7486 = vld [vmem:[%s7464 + $0xa8] sm:$0xff]
    %v7487 = vld [vmem:[%s7464 + $0xb0] sm:$0xff]
    %v7488 = vld [vmem:[%s7464 + $0xb8] sm:$0xff]
    %v7489 = vld [vmem:[%s7464 + $0xc0] sm:$0xff]
    %v7490 = vld [vmem:[%s7464 + $0xc8] sm:$0xff]
    %v7491 = vld [vmem:[%s7464 + $0xd0] sm:$0xff]
    %v7492 = vld [vmem:[%s7464 + $0xd8] sm:$0xff]
    %v7493 = vld [vmem:[%s7464 + $0xe0] sm:$0xff]
    %v7494 = vld [vmem:[%s7464 + $0xe8] sm:$0xff]
    %v7495 = vld [vmem:[%s7464 + $0xf0] sm:$0xff]
    %v7496 = vld [vmem:[%s7464 + $0xf8] sm:$0xff]
    %v7497 = vld [vmem:[%s7464 + $0x100] sm:$0xff]
    %v7498 = vld [vmem:[%s7464 + $0x108] sm:$0xff]
    %v7499 = vld [vmem:[%s7464 + $0x110] sm:$0xff]
    %v7500 = vld [vmem:[%s7464 + $0x118] sm:$0xff]
    %v7501 = vld [vmem:[%s7464 + $0x120] sm:$0xff]
    %v7502 = vld [vmem:[%s7464 + $0x128] sm:$0xff]
    %v7503 = vld [vmem:[%s7464 + $0x130] sm:$0xff]
    %v7504 = vld [vmem:[%s7464 + $0x138] sm:$0xff]
    %v7505 = vld [vmem:[%s7464 + $0x140] sm:$0xff]
    %v7506 = vld [vmem:[%s7464 + $0x148] sm:$0xff]
    %v7507 = vld [vmem:[%s7464 + $0x150] sm:$0xff]
    %v7508 = vld [vmem:[%s7464 + $0x158] sm:$0xff]
    %v7509 = vld [vmem:[%s7464 + $0x160] sm:$0xff]
    %v7510 = vld [vmem:[%s7464 + $0x168] sm:$0xff]
    %v7511 = vld [vmem:[%s7464 + $0x170] sm:$0xff]
    %v7512 = vld [vmem:[%s7464 + $0x178] sm:$0xff]
    %v7513 = vld [vmem:[%s7464 + $0x180] sm:$0xff]
    %v7514 = vld [vmem:[%s7464 + $0x188] sm:$0xff]
    %v7515 = vld [vmem:[%s7464 + $0x190] sm:$0xff]
    %v7516 = vld [vmem:[%s7464 + $0x198] sm:$0xff]
    %v7517 = vld [vmem:[%s7464 + $0x1a0] sm:$0xff]
    %v7518 = vld [vmem:[%s7464 + $0x1a8] sm:$0xff]
    %v7519 = vld [vmem:[%s7464 + $0x1b0] sm:$0xff]
    %v7520 = vld [vmem:[%s7464 + $0x1b8] sm:$0xff]
    %v7521 = vld [vmem:[%s7464 + $0x1c0] sm:$0xff]
    %v7522 = vld [vmem:[%s7464 + $0x1c8] sm:$0xff]
    %v7523 = vld [vmem:[%s7464 + $0x1d0] sm:$0xff]
    %v7524 = vld [vmem:[%s7464 + $0x1d8] sm:$0xff]
    %v7525 = vld [vmem:[%s7464 + $0x1e0] sm:$0xff]
    %v7526 = vld [vmem:[%s7464 + $0x1e8] sm:$0xff]
    %v7527 = vld [vmem:[%s7464 + $0x1f0] sm:$0xff]
    %v7528 = vld [vmem:[%s7464 + $0x1f8] sm:$0xff]
    %v7529 = vld [vmem:[%s7464 + $0x200] sm:$0xff]
    %v7530 = vld [vmem:[%s7464 + $0x208] sm:$0xff]
    %v7531 = vld [vmem:[%s7464 + $0x210] sm:$0xff]
    %v7532 = vld [vmem:[%s7464 + $0x218] sm:$0xff]
    %v7533 = vld [vmem:[%s7464 + $0x220] sm:$0xff]
    %v7534 = vld [vmem:[%s7464 + $0x228] sm:$0xff]
    %v7535 = vld [vmem:[%s7464 + $0x230] sm:$0xff]
    %v7536 = vld [vmem:[%s7464 + $0x238] sm:$0xff]
    %v7537 = vld [vmem:[%s7464 + $0x240] sm:$0xff]
    %v7538 = vld [vmem:[%s7464 + $0x248] sm:$0xff]
    %v7539 = vld [vmem:[%s7464 + $0x250] sm:$0xff]
    %v7540 = vld [vmem:[%s7464 + $0x258] sm:$0xff]
    %v7541 = vld [vmem:[%s7464 + $0x260] sm:$0xff]
    %v7542 = vld [vmem:[%s7464 + $0x268] sm:$0xff]
    %v7543 = vld [vmem:[%s7464 + $0x270] sm:$0xff]
    %v7544 = vld [vmem:[%s7464 + $0x278] sm:$0xff]
    %v7545 = vld [vmem:[%s7464 + $0x280] sm:$0xff]
    %v7546 = vld [vmem:[%s7464 + $0x288] sm:$0xff]
    %v7547 = vld [vmem:[%s7464 + $0x290] sm:$0xff]
    %v7548 = vld [vmem:[%s7464 + $0x298] sm:$0xff]
    %v7549 = vld [vmem:[%s7464 + $0x2a0] sm:$0xff]
    %v7550 = vld [vmem:[%s7464 + $0x2a8] sm:$0xff]
    %v7551 = vld [vmem:[%s7464 + $0x2b0] sm:$0xff]
    %v7552 = vld [vmem:[%s7464 + $0x2b8] sm:$0xff]
    %v7553 = vld [vmem:[%s7464 + $0x2c0] sm:$0xff]
    %v7554 = vld [vmem:[%s7464 + $0x2c8] sm:$0xff]
    %v7555 = vld [vmem:[%s7464 + $0x2d0] sm:$0xff]
    %v7556 = vld [vmem:[%s7464 + $0x2d8] sm:$0xff]
    %v7557 = vld [vmem:[%s7464 + $0x2e0] sm:$0xff]
    %v7558 = vld [vmem:[%s7464 + $0x2e8] sm:$0xff]
    %v7559 = vld [vmem:[%s7464 + $0x2f0] sm:$0xff]
    %v7560 = vld [vmem:[%s7464 + $0x2f8] sm:$0xff]
    %v7561 = vld [vmem:[%s7464 + $0x300] sm:$0xff]
    %v7562 = vld [vmem:[%s7464 + $0x308] sm:$0xff]
    %v7563 = vld [vmem:[%s7464 + $0x310] sm:$0xff]
    %v7564 = vld [vmem:[%s7464 + $0x318] sm:$0xff]
    %v7565 = vld [vmem:[%s7464 + $0x320] sm:$0xff]
    %v7566 = vld [vmem:[%s7464 + $0x328] sm:$0xff]
    %v7567 = vld [vmem:[%s7464 + $0x330] sm:$0xff]
    %v7568 = vld [vmem:[%s7464 + $0x338] sm:$0xff]
    %v7569 = vld [vmem:[%s7464 + $0x340] sm:$0xff]
    %v7570 = vld [vmem:[%s7464 + $0x348] sm:$0xff]
    %v7571 = vld [vmem:[%s7464 + $0x350] sm:$0xff]
    %v7572 = vld [vmem:[%s7464 + $0x358] sm:$0xff]
    %v7573 = vld [vmem:[%s7464 + $0x360] sm:$0xff]
    %v7574 = vld [vmem:[%s7464 + $0x368] sm:$0xff]
    %v7575 = vld [vmem:[%s7464 + $0x370] sm:$0xff]
    %v7576 = vld [vmem:[%s7464 + $0x378] sm:$0xff]
    %v7577 = vld [vmem:[%s7464 + $0x380] sm:$0xff]
    %v7578 = vld [vmem:[%s7464 + $0x388] sm:$0xff]
    %v7579 = vld [vmem:[%s7464 + $0x390] sm:$0xff]
    %v7580 = vld [vmem:[%s7464 + $0x398] sm:$0xff]
    %v7581 = vld [vmem:[%s7464 + $0x3a0] sm:$0xff]
    %v7582 = vld [vmem:[%s7464 + $0x3a8] sm:$0xff]
    %v7583 = vld [vmem:[%s7464 + $0x3b0] sm:$0xff]
    %v7584 = vld [vmem:[%s7464 + $0x3b8] sm:$0xff]
    %v7585 = vld [vmem:[%s7464 + $0x3c0] sm:$0xff]
    %v7586 = vld [vmem:[%s7464 + $0x3c8] sm:$0xff]
    %v7587 = vld [vmem:[%s7464 + $0x3d0] sm:$0xff]
    %v7588 = vld [vmem:[%s7464 + $0x3d8] sm:$0xff]
    %v7589 = vld [vmem:[%s7464 + $0x3e0] sm:$0xff]
    %v7590 = vld [vmem:[%s7464 + $0x3e8] sm:$0xff]
    %v7591 = vld [vmem:[%s7464 + $0x3f0] sm:$0xff]
    %v7592 = vld [vmem:[%s7464 + $0x3f8] sm:$0xff]
    %s7593 = scalar_lea.vmem [#allocation28], 32
    %v7594 = vld [vmem:[%s7593] sm:$0xff]
    %v7595 = vld [vmem:[%s7593 + $0x8] sm:$0xff]
    %v7598 = vperm.slane %v7594, 0
    %v7599 = vperm.slane %v7594, 1
    %v7600 = vperm.slane %v7594, 2
    %v7601 = vperm.slane %v7594, 3
    %v7602 = vperm.slane %v7594, 4
    %v7603 = vperm.slane %v7594, 5
    %v7604 = vperm.slane %v7594, 6
    %v7605 = vperm.slane %v7594, 7
    %v7606 = vperm.slane %v7595, 0
    %v7607 = vperm.slane %v7595, 1
    %v7608 = vperm.slane %v7595, 2
    %v7609 = vperm.slane %v7595, 3
    %v7610 = vperm.slane %v7595, 4
    %v7611 = vperm.slane %v7595, 5
    %v7612 = vperm.slane %v7595, 6
    %v7613 = vperm.slane %v7595, 7
    %v7758 = vunpack.c.l.b16 %v7465
    %v7759 = vunpack.c.h.b16 %v7465
    %v7760 = vunpack.c.l.b16 %v7466
    %v7761 = vunpack.c.h.b16 %v7466
    %v7762 = vunpack.c.l.b16 %v7467
    %v7763 = vunpack.c.h.b16 %v7467
    %v7764 = vunpack.c.l.b16 %v7468
    %v7765 = vunpack.c.h.b16 %v7468
    %v7766 = vunpack.c.l.b16 %v7469
    %v7767 = vunpack.c.h.b16 %v7469
    %v7768 = vunpack.c.l.b16 %v7470
    %v7769 = vunpack.c.h.b16 %v7470
    %v7770 = vunpack.c.l.b16 %v7471
    %v7771 = vunpack.c.h.b16 %v7471
    %v7772 = vunpack.c.l.b16 %v7472
    %v7773 = vunpack.c.h.b16 %v7472
    %v7774 = vunpack.c.l.b16 %v7473
    %v7775 = vunpack.c.h.b16 %v7473
    %v7776 = vunpack.c.l.b16 %v7474
    %v7777 = vunpack.c.h.b16 %v7474
    %v7778 = vunpack.c.l.b16 %v7475
    %v7779 = vunpack.c.h.b16 %v7475
    %v7780 = vunpack.c.l.b16 %v7476
    %v7781 = vunpack.c.h.b16 %v7476
    %v7782 = vunpack.c.l.b16 %v7477
    %v7783 = vunpack.c.h.b16 %v7477
    %v7784 = vunpack.c.l.b16 %v7478
    %v7785 = vunpack.c.h.b16 %v7478
    %v7786 = vunpack.c.l.b16 %v7479
    %v7787 = vunpack.c.h.b16 %v7479
    %v7788 = vunpack.c.l.b16 %v7480
    %v7789 = vunpack.c.h.b16 %v7480
    %v7790 = vunpack.c.l.b16 %v7481
    %v7791 = vunpack.c.h.b16 %v7481
    %v7792 = vunpack.c.l.b16 %v7482
    %v7793 = vunpack.c.h.b16 %v7482
    %v7794 = vunpack.c.l.b16 %v7483
    %v7795 = vunpack.c.h.b16 %v7483
    %v7796 = vunpack.c.l.b16 %v7484
    %v7797 = vunpack.c.h.b16 %v7484
    %v7798 = vunpack.c.l.b16 %v7485
    %v7799 = vunpack.c.h.b16 %v7485
    %v7800 = vunpack.c.l.b16 %v7486
    %v7801 = vunpack.c.h.b16 %v7486
    %v7802 = vunpack.c.l.b16 %v7487
    %v7803 = vunpack.c.h.b16 %v7487
    %v7804 = vunpack.c.l.b16 %v7488
    %v7805 = vunpack.c.h.b16 %v7488
    %v7806 = vunpack.c.l.b16 %v7489
    %v7807 = vunpack.c.h.b16 %v7489
    %v7808 = vunpack.c.l.b16 %v7490
    %v7809 = vunpack.c.h.b16 %v7490
    %v7810 = vunpack.c.l.b16 %v7491
    %v7811 = vunpack.c.h.b16 %v7491
    %v7812 = vunpack.c.l.b16 %v7492
    %v7813 = vunpack.c.h.b16 %v7492
    %v7814 = vunpack.c.l.b16 %v7493
    %v7815 = vunpack.c.h.b16 %v7493
    %v7816 = vunpack.c.l.b16 %v7494
    %v7817 = vunpack.c.h.b16 %v7494
    %v7818 = vunpack.c.l.b16 %v7495
    %v7819 = vunpack.c.h.b16 %v7495
    %v7820 = vunpack.c.l.b16 %v7496
    %v7821 = vunpack.c.h.b16 %v7496
    %v7822 = vunpack.c.l.b16 %v7497
    %v7823 = vunpack.c.h.b16 %v7497
    %v7824 = vunpack.c.l.b16 %v7498
    %v7825 = vunpack.c.h.b16 %v7498
    %v7826 = vunpack.c.l.b16 %v7499
    %v7827 = vunpack.c.h.b16 %v7499
    %v7828 = vunpack.c.l.b16 %v7500
    %v7829 = vunpack.c.h.b16 %v7500
    %v7830 = vunpack.c.l.b16 %v7501
    %v7831 = vunpack.c.h.b16 %v7501
    %v7832 = vunpack.c.l.b16 %v7502
    %v7833 = vunpack.c.h.b16 %v7502
    %v7834 = vunpack.c.l.b16 %v7503
    %v7835 = vunpack.c.h.b16 %v7503
    %v7836 = vunpack.c.l.b16 %v7504
    %v7837 = vunpack.c.h.b16 %v7504
    %v7838 = vunpack.c.l.b16 %v7505
    %v7839 = vunpack.c.h.b16 %v7505
    %v7840 = vunpack.c.l.b16 %v7506
    %v7841 = vunpack.c.h.b16 %v7506
    %v7842 = vunpack.c.l.b16 %v7507
    %v7843 = vunpack.c.h.b16 %v7507
    %v7844 = vunpack.c.l.b16 %v7508
    %v7845 = vunpack.c.h.b16 %v7508
    %v7846 = vunpack.c.l.b16 %v7509
    %v7847 = vunpack.c.h.b16 %v7509
    %v7848 = vunpack.c.l.b16 %v7510
    %v7849 = vunpack.c.h.b16 %v7510
    %v7850 = vunpack.c.l.b16 %v7511
    %v7851 = vunpack.c.h.b16 %v7511
    %v7852 = vunpack.c.l.b16 %v7512
    %v7853 = vunpack.c.h.b16 %v7512
    %v7854 = vunpack.c.l.b16 %v7513
    %v7855 = vunpack.c.h.b16 %v7513
    %v7856 = vunpack.c.l.b16 %v7514
    %v7857 = vunpack.c.h.b16 %v7514
    %v7858 = vunpack.c.l.b16 %v7515
    %v7859 = vunpack.c.h.b16 %v7515
    %v7860 = vunpack.c.l.b16 %v7516
    %v7861 = vunpack.c.h.b16 %v7516
    %v7862 = vunpack.c.l.b16 %v7517
    %v7863 = vunpack.c.h.b16 %v7517
    %v7864 = vunpack.c.l.b16 %v7518
    %v7865 = vunpack.c.h.b16 %v7518
    %v7866 = vunpack.c.l.b16 %v7519
    %v7867 = vunpack.c.h.b16 %v7519
    %v7868 = vunpack.c.l.b16 %v7520
    %v7869 = vunpack.c.h.b16 %v7520
    %v7870 = vunpack.c.l.b16 %v7521
    %v7871 = vunpack.c.h.b16 %v7521
    %v7872 = vunpack.c.l.b16 %v7522
    %v7873 = vunpack.c.h.b16 %v7522
    %v7874 = vunpack.c.l.b16 %v7523
    %v7875 = vunpack.c.h.b16 %v7523
    %v7876 = vunpack.c.l.b16 %v7524
    %v7877 = vunpack.c.h.b16 %v7524
    %v7878 = vunpack.c.l.b16 %v7525
    %v7879 = vunpack.c.h.b16 %v7525
    %v7880 = vunpack.c.l.b16 %v7526
    %v7881 = vunpack.c.h.b16 %v7526
    %v7882 = vunpack.c.l.b16 %v7527
    %v7883 = vunpack.c.h.b16 %v7527
    %v7884 = vunpack.c.l.b16 %v7528
    %v7885 = vunpack.c.h.b16 %v7528
    %v7886 = vunpack.c.l.b16 %v7529
    %v7887 = vunpack.c.h.b16 %v7529
    %v7888 = vunpack.c.l.b16 %v7530
    %v7889 = vunpack.c.h.b16 %v7530
    %v7890 = vunpack.c.l.b16 %v7531
    %v7891 = vunpack.c.h.b16 %v7531
    %v7892 = vunpack.c.l.b16 %v7532
    %v7893 = vunpack.c.h.b16 %v7532
    %v7894 = vunpack.c.l.b16 %v7533
    %v7895 = vunpack.c.h.b16 %v7533
    %v7896 = vunpack.c.l.b16 %v7534
    %v7897 = vunpack.c.h.b16 %v7534
    %v7898 = vunpack.c.l.b16 %v7535
    %v7899 = vunpack.c.h.b16 %v7535
    %v7900 = vunpack.c.l.b16 %v7536
    %v7901 = vunpack.c.h.b16 %v7536
    %v7902 = vunpack.c.l.b16 %v7537
    %v7903 = vunpack.c.h.b16 %v7537
    %v7904 = vunpack.c.l.b16 %v7538
    %v7905 = vunpack.c.h.b16 %v7538
    %v7906 = vunpack.c.l.b16 %v7539
    %v7907 = vunpack.c.h.b16 %v7539
    %v7908 = vunpack.c.l.b16 %v7540
    %v7909 = vunpack.c.h.b16 %v7540
    %v7910 = vunpack.c.l.b16 %v7541
    %v7911 = vunpack.c.h.b16 %v7541
    %v7912 = vunpack.c.l.b16 %v7542
    %v7913 = vunpack.c.h.b16 %v7542
    %v7914 = vunpack.c.l.b16 %v7543
    %v7915 = vunpack.c.h.b16 %v7543
    %v7916 = vunpack.c.l.b16 %v7544
    %v7917 = vunpack.c.h.b16 %v7544
    %v7918 = vunpack.c.l.b16 %v7545
    %v7919 = vunpack.c.h.b16 %v7545
    %v7920 = vunpack.c.l.b16 %v7546
    %v7921 = vunpack.c.h.b16 %v7546
    %v7922 = vunpack.c.l.b16 %v7547
    %v7923 = vunpack.c.h.b16 %v7547
    %v7924 = vunpack.c.l.b16 %v7548
    %v7925 = vunpack.c.h.b16 %v7548
    %v7926 = vunpack.c.l.b16 %v7549
    %v7927 = vunpack.c.h.b16 %v7549
    %v7928 = vunpack.c.l.b16 %v7550
    %v7929 = vunpack.c.h.b16 %v7550
    %v7930 = vunpack.c.l.b16 %v7551
    %v7931 = vunpack.c.h.b16 %v7551
    %v7932 = vunpack.c.l.b16 %v7552
    %v7933 = vunpack.c.h.b16 %v7552
    %v7934 = vunpack.c.l.b16 %v7553
    %v7935 = vunpack.c.h.b16 %v7553
    %v7936 = vunpack.c.l.b16 %v7554
    %v7937 = vunpack.c.h.b16 %v7554
    %v7938 = vunpack.c.l.b16 %v7555
    %v7939 = vunpack.c.h.b16 %v7555
    %v7940 = vunpack.c.l.b16 %v7556
    %v7941 = vunpack.c.h.b16 %v7556
    %v7942 = vunpack.c.l.b16 %v7557
    %v7943 = vunpack.c.h.b16 %v7557
    %v7944 = vunpack.c.l.b16 %v7558
    %v7945 = vunpack.c.h.b16 %v7558
    %v7946 = vunpack.c.l.b16 %v7559
    %v7947 = vunpack.c.h.b16 %v7559
    %v7948 = vunpack.c.l.b16 %v7560
    %v7949 = vunpack.c.h.b16 %v7560
    %v7950 = vunpack.c.l.b16 %v7561
    %v7951 = vunpack.c.h.b16 %v7561
    %v7952 = vunpack.c.l.b16 %v7562
    %v7953 = vunpack.c.h.b16 %v7562
    %v7954 = vunpack.c.l.b16 %v7563
    %v7955 = vunpack.c.h.b16 %v7563
    %v7956 = vunpack.c.l.b16 %v7564
    %v7957 = vunpack.c.h.b16 %v7564
    %v7958 = vunpack.c.l.b16 %v7565
    %v7959 = vunpack.c.h.b16 %v7565
    %v7960 = vunpack.c.l.b16 %v7566
    %v7961 = vunpack.c.h.b16 %v7566
    %v7962 = vunpack.c.l.b16 %v7567
    %v7963 = vunpack.c.h.b16 %v7567
    %v7964 = vunpack.c.l.b16 %v7568
    %v7965 = vunpack.c.h.b16 %v7568
    %v7966 = vunpack.c.l.b16 %v7569
    %v7967 = vunpack.c.h.b16 %v7569
    %v7968 = vunpack.c.l.b16 %v7570
    %v7969 = vunpack.c.h.b16 %v7570
    %v7970 = vunpack.c.l.b16 %v7571
    %v7971 = vunpack.c.h.b16 %v7571
    %v7972 = vunpack.c.l.b16 %v7572
    %v7973 = vunpack.c.h.b16 %v7572
    %v7974 = vunpack.c.l.b16 %v7573
    %v7975 = vunpack.c.h.b16 %v7573
    %v7976 = vunpack.c.l.b16 %v7574
    %v7977 = vunpack.c.h.b16 %v7574
    %v7978 = vunpack.c.l.b16 %v7575
    %v7979 = vunpack.c.h.b16 %v7575
    %v7980 = vunpack.c.l.b16 %v7576
    %v7981 = vunpack.c.h.b16 %v7576
    %v7982 = vunpack.c.l.b16 %v7577
    %v7983 = vunpack.c.h.b16 %v7577
    %v7984 = vunpack.c.l.b16 %v7578
    %v7985 = vunpack.c.h.b16 %v7578
    %v7986 = vunpack.c.l.b16 %v7579
    %v7987 = vunpack.c.h.b16 %v7579
    %v7988 = vunpack.c.l.b16 %v7580
    %v7989 = vunpack.c.h.b16 %v7580
    %v7990 = vunpack.c.l.b16 %v7581
    %v7991 = vunpack.c.h.b16 %v7581
    %v7992 = vunpack.c.l.b16 %v7582
    %v7993 = vunpack.c.h.b16 %v7582
    %v7994 = vunpack.c.l.b16 %v7583
    %v7995 = vunpack.c.h.b16 %v7583
    %v7996 = vunpack.c.l.b16 %v7584
    %v7997 = vunpack.c.h.b16 %v7584
    %v7998 = vunpack.c.l.b16 %v7585
    %v7999 = vunpack.c.h.b16 %v7585
    %v8000 = vunpack.c.l.b16 %v7586
    %v8001 = vunpack.c.h.b16 %v7586
    %v8002 = vunpack.c.l.b16 %v7587
    %v8003 = vunpack.c.h.b16 %v7587
    %v8004 = vunpack.c.l.b16 %v7588
    %v8005 = vunpack.c.h.b16 %v7588
    %v8006 = vunpack.c.l.b16 %v7589
    %v8007 = vunpack.c.h.b16 %v7589
    %v8008 = vunpack.c.l.b16 %v7590
    %v8009 = vunpack.c.h.b16 %v7590
    %v8010 = vunpack.c.l.b16 %v7591
    %v8011 = vunpack.c.h.b16 %v7591
    %v8012 = vunpack.c.l.b16 %v7592
    %v8013 = vunpack.c.h.b16 %v7592
    %v8014 = vpack.c.b16 %v7774, %v7758
    %v8015 = vpack.c.b16 %v7775, %v7759
    %v8016 = vpack.c.b16 %v7776, %v7760
    %v8017 = vpack.c.b16 %v7777, %v7761
    %v8018 = vpack.c.b16 %v7778, %v7762
    %v8019 = vpack.c.b16 %v7779, %v7763
    %v8020 = vpack.c.b16 %v7780, %v7764
    %v8021 = vpack.c.b16 %v7781, %v7765
    %v8022 = vpack.c.b16 %v7782, %v7766
    %v8023 = vpack.c.b16 %v7783, %v7767
    %v8024 = vpack.c.b16 %v7784, %v7768
    %v8025 = vpack.c.b16 %v7785, %v7769
    %v8026 = vpack.c.b16 %v7786, %v7770
    %v8027 = vpack.c.b16 %v7787, %v7771
    %v8028 = vpack.c.b16 %v7788, %v7772
    %v8029 = vpack.c.b16 %v7789, %v7773
    %v8030 = vpack.c.b16 %v7806, %v7790
    %v8031 = vpack.c.b16 %v7807, %v7791
    %v8032 = vpack.c.b16 %v7808, %v7792
    %v8033 = vpack.c.b16 %v7809, %v7793
    %v8034 = vpack.c.b16 %v7810, %v7794
    %v8035 = vpack.c.b16 %v7811, %v7795
    %v8036 = vpack.c.b16 %v7812, %v7796
    %v8037 = vpack.c.b16 %v7813, %v7797
    %v8038 = vpack.c.b16 %v7814, %v7798
    %v8039 = vpack.c.b16 %v7815, %v7799
    %v8040 = vpack.c.b16 %v7816, %v7800
    %v8041 = vpack.c.b16 %v7817, %v7801
    %v8042 = vpack.c.b16 %v7818, %v7802
    %v8043 = vpack.c.b16 %v7819, %v7803
    %v8044 = vpack.c.b16 %v7820, %v7804
    %v8045 = vpack.c.b16 %v7821, %v7805
    %v8046 = vpack.c.b16 %v7838, %v7822
    %v8047 = vpack.c.b16 %v7839, %v7823
    %v8048 = vpack.c.b16 %v7840, %v7824
    %v8049 = vpack.c.b16 %v7841, %v7825
    %v8050 = vpack.c.b16 %v7842, %v7826
    %v8051 = vpack.c.b16 %v7843, %v7827
    %v8052 = vpack.c.b16 %v7844, %v7828
    %v8053 = vpack.c.b16 %v7845, %v7829
    %v8054 = vpack.c.b16 %v7846, %v7830
    %v8055 = vpack.c.b16 %v7847, %v7831
    %v8056 = vpack.c.b16 %v7848, %v7832
    %v8057 = vpack.c.b16 %v7849, %v7833
    %v8058 = vpack.c.b16 %v7850, %v7834
    %v8059 = vpack.c.b16 %v7851, %v7835
    %v8060 = vpack.c.b16 %v7852, %v7836
    %v8061 = vpack.c.b16 %v7853, %v7837
    %v8062 = vpack.c.b16 %v7870, %v7854
    %v8063 = vpack.c.b16 %v7871, %v7855
    %v8064 = vpack.c.b16 %v7872, %v7856
    %v8065 = vpack.c.b16 %v7873, %v7857
    %v8066 = vpack.c.b16 %v7874, %v7858
    %v8067 = vpack.c.b16 %v7875, %v7859
    %v8068 = vpack.c.b16 %v7876, %v7860
    %v8069 = vpack.c.b16 %v7877, %v7861
    %v8070 = vpack.c.b16 %v7878, %v7862
    %v8071 = vpack.c.b16 %v7879, %v7863
    %v8072 = vpack.c.b16 %v7880, %v7864
    %v8073 = vpack.c.b16 %v7881, %v7865
    %v8074 = vpack.c.b16 %v7882, %v7866
    %v8075 = vpack.c.b16 %v7883, %v7867
    %v8076 = vpack.c.b16 %v7884, %v7868
    %v8077 = vpack.c.b16 %v7885, %v7869
    %v8078 = vpack.c.b16 %v7902, %v7886
    %v8079 = vpack.c.b16 %v7903, %v7887
    %v8080 = vpack.c.b16 %v7904, %v7888
    %v8081 = vpack.c.b16 %v7905, %v7889
    %v8082 = vpack.c.b16 %v7906, %v7890
    %v8083 = vpack.c.b16 %v7907, %v7891
    %v8084 = vpack.c.b16 %v7908, %v7892
    %v8085 = vpack.c.b16 %v7909, %v7893
    %v8086 = vpack.c.b16 %v7910, %v7894
    %v8087 = vpack.c.b16 %v7911, %v7895
    %v8088 = vpack.c.b16 %v7912, %v7896
    %v8089 = vpack.c.b16 %v7913, %v7897
    %v8090 = vpack.c.b16 %v7914, %v7898
    %v8091 = vpack.c.b16 %v7915, %v7899
    %v8092 = vpack.c.b16 %v7916, %v7900
    %v8093 = vpack.c.b16 %v7917, %v7901
    %v8094 = vpack.c.b16 %v7934, %v7918
    %v8095 = vpack.c.b16 %v7935, %v7919
    %v8096 = vpack.c.b16 %v7936, %v7920
    %v8097 = vpack.c.b16 %v7937, %v7921
    %v8098 = vpack.c.b16 %v7938, %v7922
    %v8099 = vpack.c.b16 %v7939, %v7923
    %v8100 = vpack.c.b16 %v7940, %v7924
    %v8101 = vpack.c.b16 %v7941, %v7925
    %v8102 = vpack.c.b16 %v7942, %v7926
    %v8103 = vpack.c.b16 %v7943, %v7927
    %v8104 = vpack.c.b16 %v7944, %v7928
    %v8105 = vpack.c.b16 %v7945, %v7929
    %v8106 = vpack.c.b16 %v7946, %v7930
    %v8107 = vpack.c.b16 %v7947, %v7931
    %v8108 = vpack.c.b16 %v7948, %v7932
    %v8109 = vpack.c.b16 %v7949, %v7933
    %v8110 = vpack.c.b16 %v7966, %v7950
    %v8111 = vpack.c.b16 %v7967, %v7951
    %v8112 = vpack.c.b16 %v7968, %v7952
    %v8113 = vpack.c.b16 %v7969, %v7953
    %v8114 = vpack.c.b16 %v7970, %v7954
    %v8115 = vpack.c.b16 %v7971, %v7955
    %v8116 = vpack.c.b16 %v7972, %v7956
    %v8117 = vpack.c.b16 %v7973, %v7957
    %v8118 = vpack.c.b16 %v7974, %v7958
    %v8119 = vpack.c.b16 %v7975, %v7959
    %v8120 = vpack.c.b16 %v7976, %v7960
    %v8121 = vpack.c.b16 %v7977, %v7961
    %v8122 = vpack.c.b16 %v7978, %v7962
    %v8123 = vpack.c.b16 %v7979, %v7963
    %v8124 = vpack.c.b16 %v7980, %v7964
    %v8125 = vpack.c.b16 %v7981, %v7965
    %v8126 = vpack.c.b16 %v7998, %v7982
    %v8127 = vpack.c.b16 %v7999, %v7983
    %v8128 = vpack.c.b16 %v8000, %v7984
    %v8129 = vpack.c.b16 %v8001, %v7985
    %v8130 = vpack.c.b16 %v8002, %v7986
    %v8131 = vpack.c.b16 %v8003, %v7987
    %v8132 = vpack.c.b16 %v8004, %v7988
    %v8133 = vpack.c.b16 %v8005, %v7989
    %v8134 = vpack.c.b16 %v8006, %v7990
    %v8135 = vpack.c.b16 %v8007, %v7991
    %v8136 = vpack.c.b16 %v8008, %v7992
    %v8137 = vpack.c.b16 %v8009, %v7993
    %v8138 = vpack.c.b16 %v8010, %v7994
    %v8139 = vpack.c.b16 %v8011, %v7995
    %v8140 = vpack.c.b16 %v8012, %v7996
    %v8141 = vpack.c.b16 %v8013, %v7997
    %8270 = vmatpush.bf16.msra.mxu0 %v8126
    %8271 = vmatpush.bf16.msra.mxu0 %v8110
    %8272 = vmatpush.bf16.msra.mxu0 %v8094
    %8273 = vmatpush.bf16.msra.mxu0 %v8078
    %8274 = vmatpush.bf16.msra.mxu0 %v8062
    %8275 = vmatpush.bf16.msra.mxu0 %v8046
    %8276 = vmatpush.bf16.msra.mxu0 %v8030
    %8277 = vmatpush.bf16.msra.mxu0 %v8014
    %8278 = vmatmul.bf16.gmra.mxu0 %v7463
    %v8279 = vpop.f32.mrf.mxu0
    %v8280 = vadd.f32 %v7598, %v8279
    %v8281 = vpop.f32.mrf.mxu0
    %8282 = vdwg.mxu0
    %8283 = vmatpush.bf16.msra.mxu0 %v8127
    %8284 = vmatpush.bf16.msra.mxu0 %v8111
    %8285 = vmatpush.bf16.msra.mxu0 %v8095
    %8286 = vmatpush.bf16.msra.mxu0 %v8079
    %8287 = vmatpush.bf16.msra.mxu0 %v8063
    %8288 = vmatpush.bf16.msra.mxu0 %v8047
    %8289 = vmatpush.bf16.msra.mxu0 %v8031
    %8290 = vmatpush.bf16.msra.mxu0 %v8015
    %8291 = vmatmul.bf16.gmra.mxu0 %v7463
    %v8292 = vpop.f32.mrf.mxu0
    %v8293 = vadd.f32 %v7599, %v8292
    %v8294 = vpop.f32.mrf.mxu0
    %8295 = vdwg.mxu0
    %8296 = vmatpush.bf16.msra.mxu0 %v8128
    %8297 = vmatpush.bf16.msra.mxu0 %v8112
    %8298 = vmatpush.bf16.msra.mxu0 %v8096
    %8299 = vmatpush.bf16.msra.mxu0 %v8080
    %8300 = vmatpush.bf16.msra.mxu0 %v8064
    %8301 = vmatpush.bf16.msra.mxu0 %v8048
    %8302 = vmatpush.bf16.msra.mxu0 %v8032
    %8303 = vmatpush.bf16.msra.mxu0 %v8016
    %8304 = vmatmul.bf16.gmra.mxu0 %v7463
    %v8305 = vpop.f32.mrf.mxu0
    %v8306 = vadd.f32 %v7600, %v8305
    %v8307 = vpop.f32.mrf.mxu0
    %8308 = vdwg.mxu0
    %8309 = vmatpush.bf16.msra.mxu0 %v8129
    %8310 = vmatpush.bf16.msra.mxu0 %v8113
    %8311 = vmatpush.bf16.msra.mxu0 %v8097
    %8312 = vmatpush.bf16.msra.mxu0 %v8081
    %8313 = vmatpush.bf16.msra.mxu0 %v8065
    %8314 = vmatpush.bf16.msra.mxu0 %v8049
    %8315 = vmatpush.bf16.msra.mxu0 %v8033
    %8316 = vmatpush.bf16.msra.mxu0 %v8017
    %8317 = vmatmul.bf16.gmra.mxu0 %v7463
    %v8318 = vpop.f32.mrf.mxu0
    %v8319 = vadd.f32 %v7601, %v8318
    %v8320 = vpop.f32.mrf.mxu0
    %8321 = vdwg.mxu0
    %8322 = vmatpush.bf16.msra.mxu0 %v8130
    %8323 = vmatpush.bf16.msra.mxu0 %v8114
    %8324 = vmatpush.bf16.msra.mxu0 %v8098
    %8325 = vmatpush.bf16.msra.mxu0 %v8082
    %8326 = vmatpush.bf16.msra.mxu0 %v8066
    %8327 = vmatpush.bf16.msra.mxu0 %v8050
    %8328 = vmatpush.bf16.msra.mxu0 %v8034
    %8329 = vmatpush.bf16.msra.mxu0 %v8018
    %8330 = vmatmul.bf16.gmra.mxu0 %v7463
    %v8331 = vpop.f32.mrf.mxu0
    %v8332 = vadd.f32 %v7602, %v8331
    %v8333 = vpop.f32.mrf.mxu0
    %8334 = vdwg.mxu0
    %8335 = vmatpush.bf16.msra.mxu0 %v8131
    %8336 = vmatpush.bf16.msra.mxu0 %v8115
    %8337 = vmatpush.bf16.msra.mxu0 %v8099
    %8338 = vmatpush.bf16.msra.mxu0 %v8083
    %8339 = vmatpush.bf16.msra.mxu0 %v8067
    %8340 = vmatpush.bf16.msra.mxu0 %v8051
    %8341 = vmatpush.bf16.msra.mxu0 %v8035
    %8342 = vmatpush.bf16.msra.mxu0 %v8019
    %8343 = vmatmul.bf16.gmra.mxu0 %v7463
    %v8344 = vpop.f32.mrf.mxu0
    %v8345 = vadd.f32 %v7603, %v8344
    %v8346 = vpop.f32.mrf.mxu0
    %8347 = vdwg.mxu0
    %8348 = vmatpush.bf16.msra.mxu0 %v8132
    %8349 = vmatpush.bf16.msra.mxu0 %v8116
    %8350 = vmatpush.bf16.msra.mxu0 %v8100
    %8351 = vmatpush.bf16.msra.mxu0 %v8084
    %8352 = vmatpush.bf16.msra.mxu0 %v8068
    %8353 = vmatpush.bf16.msra.mxu0 %v8052
    %8354 = vmatpush.bf16.msra.mxu0 %v8036
    %8355 = vmatpush.bf16.msra.mxu0 %v8020
    %8356 = vmatmul.bf16.gmra.mxu0 %v7463
    %v8357 = vpop.f32.mrf.mxu0
    %v8358 = vadd.f32 %v7604, %v8357
    %v8359 = vpop.f32.mrf.mxu0
    %8360 = vdwg.mxu0
    %8361 = vmatpush.bf16.msra.mxu0 %v8133
    %8362 = vmatpush.bf16.msra.mxu0 %v8117
    %8363 = vmatpush.bf16.msra.mxu0 %v8101
    %8364 = vmatpush.bf16.msra.mxu0 %v8085
    %8365 = vmatpush.bf16.msra.mxu0 %v8069
    %8366 = vmatpush.bf16.msra.mxu0 %v8053
    %8367 = vmatpush.bf16.msra.mxu0 %v8037
    %8368 = vmatpush.bf16.msra.mxu0 %v8021
    %8369 = vmatmul.bf16.gmra.mxu0 %v7463
    %v8370 = vpop.f32.mrf.mxu0
    %v8371 = vadd.f32 %v7605, %v8370
    %v8372 = vpop.f32.mrf.mxu0
    %8373 = vdwg.mxu0
    %8374 = vmatpush.bf16.msra.mxu0 %v8134
    %8375 = vmatpush.bf16.msra.mxu0 %v8118
    %8376 = vmatpush.bf16.msra.mxu0 %v8102
    %8377 = vmatpush.bf16.msra.mxu0 %v8086
    %8378 = vmatpush.bf16.msra.mxu0 %v8070
    %8379 = vmatpush.bf16.msra.mxu0 %v8054
    %8380 = vmatpush.bf16.msra.mxu0 %v8038
    %8381 = vmatpush.bf16.msra.mxu0 %v8022
    %8382 = vmatmul.bf16.gmra.mxu0 %v7463
    %v8383 = vpop.f32.mrf.mxu0
    %v8384 = vadd.f32 %v7606, %v8383
    %v8385 = vpop.f32.mrf.mxu0
    %8386 = vdwg.mxu0
    %8387 = vmatpush.bf16.msra.mxu0 %v8135
    %8388 = vmatpush.bf16.msra.mxu0 %v8119
    %8389 = vmatpush.bf16.msra.mxu0 %v8103
    %8390 = vmatpush.bf16.msra.mxu0 %v8087
    %8391 = vmatpush.bf16.msra.mxu0 %v8071
    %8392 = vmatpush.bf16.msra.mxu0 %v8055
    %8393 = vmatpush.bf16.msra.mxu0 %v8039
    %8394 = vmatpush.bf16.msra.mxu0 %v8023
    %8395 = vmatmul.bf16.gmra.mxu0 %v7463
    %v8396 = vpop.f32.mrf.mxu0
    %v8397 = vadd.f32 %v7607, %v8396
    %v8398 = vpop.f32.mrf.mxu0
    %8399 = vdwg.mxu0
    %8400 = vmatpush.bf16.msra.mxu0 %v8136
    %8401 = vmatpush.bf16.msra.mxu0 %v8120
    %8402 = vmatpush.bf16.msra.mxu0 %v8104
    %8403 = vmatpush.bf16.msra.mxu0 %v8088
    %8404 = vmatpush.bf16.msra.mxu0 %v8072
    %8405 = vmatpush.bf16.msra.mxu0 %v8056
    %8406 = vmatpush.bf16.msra.mxu0 %v8040
    %8407 = vmatpush.bf16.msra.mxu0 %v8024
    %8408 = vmatmul.bf16.gmra.mxu0 %v7463
    %v8409 = vpop.f32.mrf.mxu0
    %v8410 = vadd.f32 %v7608, %v8409
    %v8411 = vpop.f32.mrf.mxu0
    %8412 = vdwg.mxu0
    %8413 = vmatpush.bf16.msra.mxu0 %v8137
    %8414 = vmatpush.bf16.msra.mxu0 %v8121
    %8415 = vmatpush.bf16.msra.mxu0 %v8105
    %8416 = vmatpush.bf16.msra.mxu0 %v8089
    %8417 = vmatpush.bf16.msra.mxu0 %v8073
    %8418 = vmatpush.bf16.msra.mxu0 %v8057
    %8419 = vmatpush.bf16.msra.mxu0 %v8041
    %8420 = vmatpush.bf16.msra.mxu0 %v8025
    %8421 = vmatmul.bf16.gmra.mxu0 %v7463
    %v8422 = vpop.f32.mrf.mxu0
    %v8423 = vadd.f32 %v7609, %v8422
    %v8424 = vpop.f32.mrf.mxu0
    %8425 = vdwg.mxu0
    %8426 = vmatpush.bf16.msra.mxu0 %v8138
    %8427 = vmatpush.bf16.msra.mxu0 %v8122
    %8428 = vmatpush.bf16.msra.mxu0 %v8106
    %8429 = vmatpush.bf16.msra.mxu0 %v8090
    %8430 = vmatpush.bf16.msra.mxu0 %v8074
    %8431 = vmatpush.bf16.msra.mxu0 %v8058
    %8432 = vmatpush.bf16.msra.mxu0 %v8042
    %8433 = vmatpush.bf16.msra.mxu0 %v8026
    %8434 = vmatmul.bf16.gmra.mxu0 %v7463
    %v8435 = vpop.f32.mrf.mxu0
    %v8436 = vadd.f32 %v7610, %v8435
    %v8437 = vpop.f32.mrf.mxu0
    %8438 = vdwg.mxu0
    %8439 = vmatpush.bf16.msra.mxu0 %v8139
    %8440 = vmatpush.bf16.msra.mxu0 %v8123
    %8441 = vmatpush.bf16.msra.mxu0 %v8107
    %8442 = vmatpush.bf16.msra.mxu0 %v8091
    %8443 = vmatpush.bf16.msra.mxu0 %v8075
    %8444 = vmatpush.bf16.msra.mxu0 %v8059
    %8445 = vmatpush.bf16.msra.mxu0 %v8043
    %8446 = vmatpush.bf16.msra.mxu0 %v8027
    %8447 = vmatmul.bf16.gmra.mxu0 %v7463
    %v8448 = vpop.f32.mrf.mxu0
    %v8449 = vadd.f32 %v7611, %v8448
    %v8450 = vpop.f32.mrf.mxu0
    %8451 = vdwg.mxu0
    %8452 = vmatpush.bf16.msra.mxu0 %v8140
    %8453 = vmatpush.bf16.msra.mxu0 %v8124
    %8454 = vmatpush.bf16.msra.mxu0 %v8108
    %8455 = vmatpush.bf16.msra.mxu0 %v8092
    %8456 = vmatpush.bf16.msra.mxu0 %v8076
    %8457 = vmatpush.bf16.msra.mxu0 %v8060
    %8458 = vmatpush.bf16.msra.mxu0 %v8044
    %8459 = vmatpush.bf16.msra.mxu0 %v8028
    %8460 = vmatmul.bf16.gmra.mxu0 %v7463
    %v8461 = vpop.f32.mrf.mxu0
    %v8462 = vadd.f32 %v7612, %v8461
    %v8463 = vpop.f32.mrf.mxu0
    %8464 = vdwg.mxu0
    %8465 = vmatpush.bf16.msra.mxu0 %v8141
    %8466 = vmatpush.bf16.msra.mxu0 %v8125
    %8467 = vmatpush.bf16.msra.mxu0 %v8109
    %8468 = vmatpush.bf16.msra.mxu0 %v8093
    %8469 = vmatpush.bf16.msra.mxu0 %v8077
    %8470 = vmatpush.bf16.msra.mxu0 %v8061
    %8471 = vmatpush.bf16.msra.mxu0 %v8045
    %8472 = vmatpush.bf16.msra.mxu0 %v8029
    %8473 = vmatmul.bf16.gmra.mxu0 %v7463
    %v8474 = vpop.f32.mrf.mxu0
    %v8475 = vadd.f32 %v7613, %v8474
    %v8476 = vpop.f32.mrf.mxu0
    %8477 = vdwg.mxu0
    %v8478 = vmax.f32 %v8280, 0.0
    %v8479 = vmax.f32 %v8293, 0.0
    %v8480 = vmax.f32 %v8306, 0.0
    %v8481 = vmax.f32 %v8319, 0.0
    %v8482 = vmax.f32 %v8332, 0.0
    %v8483 = vmax.f32 %v8345, 0.0
    %v8484 = vmax.f32 %v8358, 0.0
    %v8485 = vmax.f32 %v8371, 0.0
    %v8486 = vmax.f32 %v8384, 0.0
    %v8487 = vmax.f32 %v8397, 0.0
    %v8488 = vmax.f32 %v8410, 0.0
    %v8489 = vmax.f32 %v8423, 0.0
    %v8490 = vmax.f32 %v8436, 0.0
    %v8491 = vmax.f32 %v8449, 0.0
    %v8492 = vmax.f32 %v8462, 0.0
    %v8493 = vmax.f32 %v8475, 0.0
    %v8494 = vpack.c.bf16 %v8478, %v8478
    %v8495 = vpack.c.bf16 %v8479, %v8479
    %v8496 = vpack.c.bf16 %v8480, %v8480
    %v8497 = vpack.c.bf16 %v8481, %v8481
    %v8498 = vpack.c.bf16 %v8482, %v8482
    %v8499 = vpack.c.bf16 %v8483, %v8483
    %v8500 = vpack.c.bf16 %v8484, %v8484
    %v8501 = vpack.c.bf16 %v8485, %v8485
    %v8502 = vpack.c.bf16 %v8486, %v8486
    %v8503 = vpack.c.bf16 %v8487, %v8487
    %v8504 = vpack.c.bf16 %v8488, %v8488
    %v8505 = vpack.c.bf16 %v8489, %v8489
    %v8506 = vpack.c.bf16 %v8490, %v8490
    %v8507 = vpack.c.bf16 %v8491, %v8491
    %v8508 = vpack.c.bf16 %v8492, %v8492
    %v8509 = vpack.c.bf16 %v8493, %v8493
    %s8510 = scalar_lea.vmem [#allocation29], 2048
    %v8511 = vld [vmem:[%s8510] sm:$0xf]
    %v8512 = vld [vmem:[%s8510 + $0x4] sm:$0xf]
    %v8513 = vld [vmem:[%s8510 + $0x8] sm:$0xf]
    %v8514 = vld [vmem:[%s8510 + $0xc] sm:$0xf]
    %v8515 = vld [vmem:[%s8510 + $0x10] sm:$0xf]
    %v8516 = vld [vmem:[%s8510 + $0x14] sm:$0xf]
    %v8517 = vld [vmem:[%s8510 + $0x18] sm:$0xf]
    %v8518 = vld [vmem:[%s8510 + $0x1c] sm:$0xf]
    %v8519 = vld [vmem:[%s8510 + $0x20] sm:$0xf]
    %v8520 = vld [vmem:[%s8510 + $0x24] sm:$0xf]
    %v8521 = vld [vmem:[%s8510 + $0x28] sm:$0xf]
    %v8522 = vld [vmem:[%s8510 + $0x2c] sm:$0xf]
    %v8523 = vld [vmem:[%s8510 + $0x30] sm:$0xf]
    %v8524 = vld [vmem:[%s8510 + $0x34] sm:$0xf]
    %v8525 = vld [vmem:[%s8510 + $0x38] sm:$0xf]
    %v8526 = vld [vmem:[%s8510 + $0x3c] sm:$0xf]
    %v8527 = vld [vmem:[%s8510 + $0x40] sm:$0xf]
    %v8528 = vld [vmem:[%s8510 + $0x44] sm:$0xf]
    %v8529 = vld [vmem:[%s8510 + $0x48] sm:$0xf]
    %v8530 = vld [vmem:[%s8510 + $0x4c] sm:$0xf]
    %v8531 = vld [vmem:[%s8510 + $0x50] sm:$0xf]
    %v8532 = vld [vmem:[%s8510 + $0x54] sm:$0xf]
    %v8533 = vld [vmem:[%s8510 + $0x58] sm:$0xf]
    %v8534 = vld [vmem:[%s8510 + $0x5c] sm:$0xf]
    %v8535 = vld [vmem:[%s8510 + $0x60] sm:$0xf]
    %v8536 = vld [vmem:[%s8510 + $0x64] sm:$0xf]
    %v8537 = vld [vmem:[%s8510 + $0x68] sm:$0xf]
    %v8538 = vld [vmem:[%s8510 + $0x6c] sm:$0xf]
    %v8539 = vld [vmem:[%s8510 + $0x70] sm:$0xf]
    %v8540 = vld [vmem:[%s8510 + $0x74] sm:$0xf]
    %v8541 = vld [vmem:[%s8510 + $0x78] sm:$0xf]
    %v8542 = vld [vmem:[%s8510 + $0x7c] sm:$0xf]
    %v8543 = vld [vmem:[%s8510 + $0x80] sm:$0xf]
    %v8544 = vld [vmem:[%s8510 + $0x84] sm:$0xf]
    %v8545 = vld [vmem:[%s8510 + $0x88] sm:$0xf]
    %v8546 = vld [vmem:[%s8510 + $0x8c] sm:$0xf]
    %v8547 = vld [vmem:[%s8510 + $0x90] sm:$0xf]
    %v8548 = vld [vmem:[%s8510 + $0x94] sm:$0xf]
    %v8549 = vld [vmem:[%s8510 + $0x98] sm:$0xf]
    %v8550 = vld [vmem:[%s8510 + $0x9c] sm:$0xf]
    %v8551 = vld [vmem:[%s8510 + $0xa0] sm:$0xf]
    %v8552 = vld [vmem:[%s8510 + $0xa4] sm:$0xf]
    %v8553 = vld [vmem:[%s8510 + $0xa8] sm:$0xf]
    %v8554 = vld [vmem:[%s8510 + $0xac] sm:$0xf]
    %v8555 = vld [vmem:[%s8510 + $0xb0] sm:$0xf]
    %v8556 = vld [vmem:[%s8510 + $0xb4] sm:$0xf]
    %v8557 = vld [vmem:[%s8510 + $0xb8] sm:$0xf]
    %v8558 = vld [vmem:[%s8510 + $0xbc] sm:$0xf]
    %v8559 = vld [vmem:[%s8510 + $0xc0] sm:$0xf]
    %v8560 = vld [vmem:[%s8510 + $0xc4] sm:$0xf]
    %v8561 = vld [vmem:[%s8510 + $0xc8] sm:$0xf]
    %v8562 = vld [vmem:[%s8510 + $0xcc] sm:$0xf]
    %v8563 = vld [vmem:[%s8510 + $0xd0] sm:$0xf]
    %v8564 = vld [vmem:[%s8510 + $0xd4] sm:$0xf]
    %v8565 = vld [vmem:[%s8510 + $0xd8] sm:$0xf]
    %v8566 = vld [vmem:[%s8510 + $0xdc] sm:$0xf]
    %v8567 = vld [vmem:[%s8510 + $0xe0] sm:$0xf]
    %v8568 = vld [vmem:[%s8510 + $0xe4] sm:$0xf]
    %v8569 = vld [vmem:[%s8510 + $0xe8] sm:$0xf]
    %v8570 = vld [vmem:[%s8510 + $0xec] sm:$0xf]
    %v8571 = vld [vmem:[%s8510 + $0xf0] sm:$0xf]
    %v8572 = vld [vmem:[%s8510 + $0xf4] sm:$0xf]
    %v8573 = vld [vmem:[%s8510 + $0xf8] sm:$0xf]
    %v8574 = vld [vmem:[%s8510 + $0xfc] sm:$0xf]
    %v8575 = vld [vmem:[%s8510 + $0x100] sm:$0xf]
    %v8576 = vld [vmem:[%s8510 + $0x104] sm:$0xf]
    %v8577 = vld [vmem:[%s8510 + $0x108] sm:$0xf]
    %v8578 = vld [vmem:[%s8510 + $0x10c] sm:$0xf]
    %v8579 = vld [vmem:[%s8510 + $0x110] sm:$0xf]
    %v8580 = vld [vmem:[%s8510 + $0x114] sm:$0xf]
    %v8581 = vld [vmem:[%s8510 + $0x118] sm:$0xf]
    %v8582 = vld [vmem:[%s8510 + $0x11c] sm:$0xf]
    %v8583 = vld [vmem:[%s8510 + $0x120] sm:$0xf]
    %v8584 = vld [vmem:[%s8510 + $0x124] sm:$0xf]
    %v8585 = vld [vmem:[%s8510 + $0x128] sm:$0xf]
    %v8586 = vld [vmem:[%s8510 + $0x12c] sm:$0xf]
    %v8587 = vld [vmem:[%s8510 + $0x130] sm:$0xf]
    %v8588 = vld [vmem:[%s8510 + $0x134] sm:$0xf]
    %v8589 = vld [vmem:[%s8510 + $0x138] sm:$0xf]
    %v8590 = vld [vmem:[%s8510 + $0x13c] sm:$0xf]
    %v8591 = vld [vmem:[%s8510 + $0x140] sm:$0xf]
    %v8592 = vld [vmem:[%s8510 + $0x144] sm:$0xf]
    %v8593 = vld [vmem:[%s8510 + $0x148] sm:$0xf]
    %v8594 = vld [vmem:[%s8510 + $0x14c] sm:$0xf]
    %v8595 = vld [vmem:[%s8510 + $0x150] sm:$0xf]
    %v8596 = vld [vmem:[%s8510 + $0x154] sm:$0xf]
    %v8597 = vld [vmem:[%s8510 + $0x158] sm:$0xf]
    %v8598 = vld [vmem:[%s8510 + $0x15c] sm:$0xf]
    %v8599 = vld [vmem:[%s8510 + $0x160] sm:$0xf]
    %v8600 = vld [vmem:[%s8510 + $0x164] sm:$0xf]
    %v8601 = vld [vmem:[%s8510 + $0x168] sm:$0xf]
    %v8602 = vld [vmem:[%s8510 + $0x16c] sm:$0xf]
    %v8603 = vld [vmem:[%s8510 + $0x170] sm:$0xf]
    %v8604 = vld [vmem:[%s8510 + $0x174] sm:$0xf]
    %v8605 = vld [vmem:[%s8510 + $0x178] sm:$0xf]
    %v8606 = vld [vmem:[%s8510 + $0x17c] sm:$0xf]
    %v8607 = vld [vmem:[%s8510 + $0x180] sm:$0xf]
    %v8608 = vld [vmem:[%s8510 + $0x184] sm:$0xf]
    %v8609 = vld [vmem:[%s8510 + $0x188] sm:$0xf]
    %v8610 = vld [vmem:[%s8510 + $0x18c] sm:$0xf]
    %v8611 = vld [vmem:[%s8510 + $0x190] sm:$0xf]
    %v8612 = vld [vmem:[%s8510 + $0x194] sm:$0xf]
    %v8613 = vld [vmem:[%s8510 + $0x198] sm:$0xf]
    %v8614 = vld [vmem:[%s8510 + $0x19c] sm:$0xf]
    %v8615 = vld [vmem:[%s8510 + $0x1a0] sm:$0xf]
    %v8616 = vld [vmem:[%s8510 + $0x1a4] sm:$0xf]
    %v8617 = vld [vmem:[%s8510 + $0x1a8] sm:$0xf]
    %v8618 = vld [vmem:[%s8510 + $0x1ac] sm:$0xf]
    %v8619 = vld [vmem:[%s8510 + $0x1b0] sm:$0xf]
    %v8620 = vld [vmem:[%s8510 + $0x1b4] sm:$0xf]
    %v8621 = vld [vmem:[%s8510 + $0x1b8] sm:$0xf]
    %v8622 = vld [vmem:[%s8510 + $0x1bc] sm:$0xf]
    %v8623 = vld [vmem:[%s8510 + $0x1c0] sm:$0xf]
    %v8624 = vld [vmem:[%s8510 + $0x1c4] sm:$0xf]
    %v8625 = vld [vmem:[%s8510 + $0x1c8] sm:$0xf]
    %v8626 = vld [vmem:[%s8510 + $0x1cc] sm:$0xf]
    %v8627 = vld [vmem:[%s8510 + $0x1d0] sm:$0xf]
    %v8628 = vld [vmem:[%s8510 + $0x1d4] sm:$0xf]
    %v8629 = vld [vmem:[%s8510 + $0x1d8] sm:$0xf]
    %v8630 = vld [vmem:[%s8510 + $0x1dc] sm:$0xf]
    %v8631 = vld [vmem:[%s8510 + $0x1e0] sm:$0xf]
    %v8632 = vld [vmem:[%s8510 + $0x1e4] sm:$0xf]
    %v8633 = vld [vmem:[%s8510 + $0x1e8] sm:$0xf]
    %v8634 = vld [vmem:[%s8510 + $0x1ec] sm:$0xf]
    %v8635 = vld [vmem:[%s8510 + $0x1f0] sm:$0xf]
    %v8636 = vld [vmem:[%s8510 + $0x1f4] sm:$0xf]
    %v8637 = vld [vmem:[%s8510 + $0x1f8] sm:$0xf]
    %v8638 = vld [vmem:[%s8510 + $0x1fc] sm:$0xf]
    %v8639 = vld [vmem:[%s8510 + $0x200] sm:$0xf]
    %v8640 = vld [vmem:[%s8510 + $0x204] sm:$0xf]
    %v8641 = vld [vmem:[%s8510 + $0x208] sm:$0xf]
    %v8642 = vld [vmem:[%s8510 + $0x20c] sm:$0xf]
    %v8643 = vld [vmem:[%s8510 + $0x210] sm:$0xf]
    %v8644 = vld [vmem:[%s8510 + $0x214] sm:$0xf]
    %v8645 = vld [vmem:[%s8510 + $0x218] sm:$0xf]
    %v8646 = vld [vmem:[%s8510 + $0x21c] sm:$0xf]
    %v8647 = vld [vmem:[%s8510 + $0x220] sm:$0xf]
    %v8648 = vld [vmem:[%s8510 + $0x224] sm:$0xf]
    %v8649 = vld [vmem:[%s8510 + $0x228] sm:$0xf]
    %v8650 = vld [vmem:[%s8510 + $0x22c] sm:$0xf]
    %v8651 = vld [vmem:[%s8510 + $0x230] sm:$0xf]
    %v8652 = vld [vmem:[%s8510 + $0x234] sm:$0xf]
    %v8653 = vld [vmem:[%s8510 + $0x238] sm:$0xf]
    %v8654 = vld [vmem:[%s8510 + $0x23c] sm:$0xf]
    %v8655 = vld [vmem:[%s8510 + $0x240] sm:$0xf]
    %v8656 = vld [vmem:[%s8510 + $0x244] sm:$0xf]
    %v8657 = vld [vmem:[%s8510 + $0x248] sm:$0xf]
    %v8658 = vld [vmem:[%s8510 + $0x24c] sm:$0xf]
    %v8659 = vld [vmem:[%s8510 + $0x250] sm:$0xf]
    %v8660 = vld [vmem:[%s8510 + $0x254] sm:$0xf]
    %v8661 = vld [vmem:[%s8510 + $0x258] sm:$0xf]
    %v8662 = vld [vmem:[%s8510 + $0x25c] sm:$0xf]
    %v8663 = vld [vmem:[%s8510 + $0x260] sm:$0xf]
    %v8664 = vld [vmem:[%s8510 + $0x264] sm:$0xf]
    %v8665 = vld [vmem:[%s8510 + $0x268] sm:$0xf]
    %v8666 = vld [vmem:[%s8510 + $0x26c] sm:$0xf]
    %v8667 = vld [vmem:[%s8510 + $0x270] sm:$0xf]
    %v8668 = vld [vmem:[%s8510 + $0x274] sm:$0xf]
    %v8669 = vld [vmem:[%s8510 + $0x278] sm:$0xf]
    %v8670 = vld [vmem:[%s8510 + $0x27c] sm:$0xf]
    %v8671 = vld [vmem:[%s8510 + $0x280] sm:$0xf]
    %v8672 = vld [vmem:[%s8510 + $0x284] sm:$0xf]
    %v8673 = vld [vmem:[%s8510 + $0x288] sm:$0xf]
    %v8674 = vld [vmem:[%s8510 + $0x28c] sm:$0xf]
    %v8675 = vld [vmem:[%s8510 + $0x290] sm:$0xf]
    %v8676 = vld [vmem:[%s8510 + $0x294] sm:$0xf]
    %v8677 = vld [vmem:[%s8510 + $0x298] sm:$0xf]
    %v8678 = vld [vmem:[%s8510 + $0x29c] sm:$0xf]
    %v8679 = vld [vmem:[%s8510 + $0x2a0] sm:$0xf]
    %v8680 = vld [vmem:[%s8510 + $0x2a4] sm:$0xf]
    %v8681 = vld [vmem:[%s8510 + $0x2a8] sm:$0xf]
    %v8682 = vld [vmem:[%s8510 + $0x2ac] sm:$0xf]
    %v8683 = vld [vmem:[%s8510 + $0x2b0] sm:$0xf]
    %v8684 = vld [vmem:[%s8510 + $0x2b4] sm:$0xf]
    %v8685 = vld [vmem:[%s8510 + $0x2b8] sm:$0xf]
    %v8686 = vld [vmem:[%s8510 + $0x2bc] sm:$0xf]
    %v8687 = vld [vmem:[%s8510 + $0x2c0] sm:$0xf]
    %v8688 = vld [vmem:[%s8510 + $0x2c4] sm:$0xf]
    %v8689 = vld [vmem:[%s8510 + $0x2c8] sm:$0xf]
    %v8690 = vld [vmem:[%s8510 + $0x2cc] sm:$0xf]
    %v8691 = vld [vmem:[%s8510 + $0x2d0] sm:$0xf]
    %v8692 = vld [vmem:[%s8510 + $0x2d4] sm:$0xf]
    %v8693 = vld [vmem:[%s8510 + $0x2d8] sm:$0xf]
    %v8694 = vld [vmem:[%s8510 + $0x2dc] sm:$0xf]
    %v8695 = vld [vmem:[%s8510 + $0x2e0] sm:$0xf]
    %v8696 = vld [vmem:[%s8510 + $0x2e4] sm:$0xf]
    %v8697 = vld [vmem:[%s8510 + $0x2e8] sm:$0xf]
    %v8698 = vld [vmem:[%s8510 + $0x2ec] sm:$0xf]
    %v8699 = vld [vmem:[%s8510 + $0x2f0] sm:$0xf]
    %v8700 = vld [vmem:[%s8510 + $0x2f4] sm:$0xf]
    %v8701 = vld [vmem:[%s8510 + $0x2f8] sm:$0xf]
    %v8702 = vld [vmem:[%s8510 + $0x2fc] sm:$0xf]
    %v8703 = vld [vmem:[%s8510 + $0x300] sm:$0xf]
    %v8704 = vld [vmem:[%s8510 + $0x304] sm:$0xf]
    %v8705 = vld [vmem:[%s8510 + $0x308] sm:$0xf]
    %v8706 = vld [vmem:[%s8510 + $0x30c] sm:$0xf]
    %v8707 = vld [vmem:[%s8510 + $0x310] sm:$0xf]
    %v8708 = vld [vmem:[%s8510 + $0x314] sm:$0xf]
    %v8709 = vld [vmem:[%s8510 + $0x318] sm:$0xf]
    %v8710 = vld [vmem:[%s8510 + $0x31c] sm:$0xf]
    %v8711 = vld [vmem:[%s8510 + $0x320] sm:$0xf]
    %v8712 = vld [vmem:[%s8510 + $0x324] sm:$0xf]
    %v8713 = vld [vmem:[%s8510 + $0x328] sm:$0xf]
    %v8714 = vld [vmem:[%s8510 + $0x32c] sm:$0xf]
    %v8715 = vld [vmem:[%s8510 + $0x330] sm:$0xf]
    %v8716 = vld [vmem:[%s8510 + $0x334] sm:$0xf]
    %v8717 = vld [vmem:[%s8510 + $0x338] sm:$0xf]
    %v8718 = vld [vmem:[%s8510 + $0x33c] sm:$0xf]
    %v8719 = vld [vmem:[%s8510 + $0x340] sm:$0xf]
    %v8720 = vld [vmem:[%s8510 + $0x344] sm:$0xf]
    %v8721 = vld [vmem:[%s8510 + $0x348] sm:$0xf]
    %v8722 = vld [vmem:[%s8510 + $0x34c] sm:$0xf]
    %v8723 = vld [vmem:[%s8510 + $0x350] sm:$0xf]
    %v8724 = vld [vmem:[%s8510 + $0x354] sm:$0xf]
    %v8725 = vld [vmem:[%s8510 + $0x358] sm:$0xf]
    %v8726 = vld [vmem:[%s8510 + $0x35c] sm:$0xf]
    %v8727 = vld [vmem:[%s8510 + $0x360] sm:$0xf]
    %v8728 = vld [vmem:[%s8510 + $0x364] sm:$0xf]
    %v8729 = vld [vmem:[%s8510 + $0x368] sm:$0xf]
    %v8730 = vld [vmem:[%s8510 + $0x36c] sm:$0xf]
    %v8731 = vld [vmem:[%s8510 + $0x370] sm:$0xf]
    %v8732 = vld [vmem:[%s8510 + $0x374] sm:$0xf]
    %v8733 = vld [vmem:[%s8510 + $0x378] sm:$0xf]
    %v8734 = vld [vmem:[%s8510 + $0x37c] sm:$0xf]
    %v8735 = vld [vmem:[%s8510 + $0x380] sm:$0xf]
    %v8736 = vld [vmem:[%s8510 + $0x384] sm:$0xf]
    %v8737 = vld [vmem:[%s8510 + $0x388] sm:$0xf]
    %v8738 = vld [vmem:[%s8510 + $0x38c] sm:$0xf]
    %v8739 = vld [vmem:[%s8510 + $0x390] sm:$0xf]
    %v8740 = vld [vmem:[%s8510 + $0x394] sm:$0xf]
    %v8741 = vld [vmem:[%s8510 + $0x398] sm:$0xf]
    %v8742 = vld [vmem:[%s8510 + $0x39c] sm:$0xf]
    %v8743 = vld [vmem:[%s8510 + $0x3a0] sm:$0xf]
    %v8744 = vld [vmem:[%s8510 + $0x3a4] sm:$0xf]
    %v8745 = vld [vmem:[%s8510 + $0x3a8] sm:$0xf]
    %v8746 = vld [vmem:[%s8510 + $0x3ac] sm:$0xf]
    %v8747 = vld [vmem:[%s8510 + $0x3b0] sm:$0xf]
    %v8748 = vld [vmem:[%s8510 + $0x3b4] sm:$0xf]
    %v8749 = vld [vmem:[%s8510 + $0x3b8] sm:$0xf]
    %v8750 = vld [vmem:[%s8510 + $0x3bc] sm:$0xf]
    %v8751 = vld [vmem:[%s8510 + $0x3c0] sm:$0xf]
    %v8752 = vld [vmem:[%s8510 + $0x3c4] sm:$0xf]
    %v8753 = vld [vmem:[%s8510 + $0x3c8] sm:$0xf]
    %v8754 = vld [vmem:[%s8510 + $0x3cc] sm:$0xf]
    %v8755 = vld [vmem:[%s8510 + $0x3d0] sm:$0xf]
    %v8756 = vld [vmem:[%s8510 + $0x3d4] sm:$0xf]
    %v8757 = vld [vmem:[%s8510 + $0x3d8] sm:$0xf]
    %v8758 = vld [vmem:[%s8510 + $0x3dc] sm:$0xf]
    %v8759 = vld [vmem:[%s8510 + $0x3e0] sm:$0xf]
    %v8760 = vld [vmem:[%s8510 + $0x3e4] sm:$0xf]
    %v8761 = vld [vmem:[%s8510 + $0x3e8] sm:$0xf]
    %v8762 = vld [vmem:[%s8510 + $0x3ec] sm:$0xf]
    %v8763 = vld [vmem:[%s8510 + $0x3f0] sm:$0xf]
    %v8764 = vld [vmem:[%s8510 + $0x3f4] sm:$0xf]
    %v8765 = vld [vmem:[%s8510 + $0x3f8] sm:$0xf]
    %v8766 = vld [vmem:[%s8510 + $0x3fc] sm:$0xf]
    %s8767 = scalar_lea.vmem [#allocation31], 2
    %v8768 = vld [vmem:[%s8767] sm:$0x1]
    %v8770 = vperm.slane %v8768, 0
    %v9028 = vunpack.c.l.b16 %v8511
    %v9029 = vunpack.c.l.b16 %v8512
    %v9030 = vunpack.c.l.b16 %v8513
    %v9031 = vunpack.c.l.b16 %v8514
    %v9032 = vunpack.c.l.b16 %v8515
    %v9033 = vunpack.c.l.b16 %v8516
    %v9034 = vunpack.c.l.b16 %v8517
    %v9035 = vunpack.c.l.b16 %v8518
    %v9036 = vunpack.c.l.b16 %v8519
    %v9037 = vunpack.c.l.b16 %v8520
    %v9038 = vunpack.c.l.b16 %v8521
    %v9039 = vunpack.c.l.b16 %v8522
    %v9040 = vunpack.c.l.b16 %v8523
    %v9041 = vunpack.c.l.b16 %v8524
    %v9042 = vunpack.c.l.b16 %v8525
    %v9043 = vunpack.c.l.b16 %v8526
    %v9044 = vunpack.c.l.b16 %v8527
    %v9045 = vunpack.c.l.b16 %v8528
    %v9046 = vunpack.c.l.b16 %v8529
    %v9047 = vunpack.c.l.b16 %v8530
    %v9048 = vunpack.c.l.b16 %v8531
    %v9049 = vunpack.c.l.b16 %v8532
    %v9050 = vunpack.c.l.b16 %v8533
    %v9051 = vunpack.c.l.b16 %v8534
    %v9052 = vunpack.c.l.b16 %v8535
    %v9053 = vunpack.c.l.b16 %v8536
    %v9054 = vunpack.c.l.b16 %v8537
    %v9055 = vunpack.c.l.b16 %v8538
    %v9056 = vunpack.c.l.b16 %v8539
    %v9057 = vunpack.c.l.b16 %v8540
    %v9058 = vunpack.c.l.b16 %v8541
    %v9059 = vunpack.c.l.b16 %v8542
    %v9060 = vunpack.c.l.b16 %v8543
    %v9061 = vunpack.c.l.b16 %v8544
    %v9062 = vunpack.c.l.b16 %v8545
    %v9063 = vunpack.c.l.b16 %v8546
    %v9064 = vunpack.c.l.b16 %v8547
    %v9065 = vunpack.c.l.b16 %v8548
    %v9066 = vunpack.c.l.b16 %v8549
    %v9067 = vunpack.c.l.b16 %v8550
    %v9068 = vunpack.c.l.b16 %v8551
    %v9069 = vunpack.c.l.b16 %v8552
    %v9070 = vunpack.c.l.b16 %v8553
    %v9071 = vunpack.c.l.b16 %v8554
    %v9072 = vunpack.c.l.b16 %v8555
    %v9073 = vunpack.c.l.b16 %v8556
    %v9074 = vunpack.c.l.b16 %v8557
    %v9075 = vunpack.c.l.b16 %v8558
    %v9076 = vunpack.c.l.b16 %v8559
    %v9077 = vunpack.c.l.b16 %v8560
    %v9078 = vunpack.c.l.b16 %v8561
    %v9079 = vunpack.c.l.b16 %v8562
    %v9080 = vunpack.c.l.b16 %v8563
    %v9081 = vunpack.c.l.b16 %v8564
    %v9082 = vunpack.c.l.b16 %v8565
    %v9083 = vunpack.c.l.b16 %v8566
    %v9084 = vunpack.c.l.b16 %v8567
    %v9085 = vunpack.c.l.b16 %v8568
    %v9086 = vunpack.c.l.b16 %v8569
    %v9087 = vunpack.c.l.b16 %v8570
    %v9088 = vunpack.c.l.b16 %v8571
    %v9089 = vunpack.c.l.b16 %v8572
    %v9090 = vunpack.c.l.b16 %v8573
    %v9091 = vunpack.c.l.b16 %v8574
    %v9092 = vunpack.c.l.b16 %v8575
    %v9093 = vunpack.c.l.b16 %v8576
    %v9094 = vunpack.c.l.b16 %v8577
    %v9095 = vunpack.c.l.b16 %v8578
    %v9096 = vunpack.c.l.b16 %v8579
    %v9097 = vunpack.c.l.b16 %v8580
    %v9098 = vunpack.c.l.b16 %v8581
    %v9099 = vunpack.c.l.b16 %v8582
    %v9100 = vunpack.c.l.b16 %v8583
    %v9101 = vunpack.c.l.b16 %v8584
    %v9102 = vunpack.c.l.b16 %v8585
    %v9103 = vunpack.c.l.b16 %v8586
    %v9104 = vunpack.c.l.b16 %v8587
    %v9105 = vunpack.c.l.b16 %v8588
    %v9106 = vunpack.c.l.b16 %v8589
    %v9107 = vunpack.c.l.b16 %v8590
    %v9108 = vunpack.c.l.b16 %v8591
    %v9109 = vunpack.c.l.b16 %v8592
    %v9110 = vunpack.c.l.b16 %v8593
    %v9111 = vunpack.c.l.b16 %v8594
    %v9112 = vunpack.c.l.b16 %v8595
    %v9113 = vunpack.c.l.b16 %v8596
    %v9114 = vunpack.c.l.b16 %v8597
    %v9115 = vunpack.c.l.b16 %v8598
    %v9116 = vunpack.c.l.b16 %v8599
    %v9117 = vunpack.c.l.b16 %v8600
    %v9118 = vunpack.c.l.b16 %v8601
    %v9119 = vunpack.c.l.b16 %v8602
    %v9120 = vunpack.c.l.b16 %v8603
    %v9121 = vunpack.c.l.b16 %v8604
    %v9122 = vunpack.c.l.b16 %v8605
    %v9123 = vunpack.c.l.b16 %v8606
    %v9124 = vunpack.c.l.b16 %v8607
    %v9125 = vunpack.c.l.b16 %v8608
    %v9126 = vunpack.c.l.b16 %v8609
    %v9127 = vunpack.c.l.b16 %v8610
    %v9128 = vunpack.c.l.b16 %v8611
    %v9129 = vunpack.c.l.b16 %v8612
    %v9130 = vunpack.c.l.b16 %v8613
    %v9131 = vunpack.c.l.b16 %v8614
    %v9132 = vunpack.c.l.b16 %v8615
    %v9133 = vunpack.c.l.b16 %v8616
    %v9134 = vunpack.c.l.b16 %v8617
    %v9135 = vunpack.c.l.b16 %v8618
    %v9136 = vunpack.c.l.b16 %v8619
    %v9137 = vunpack.c.l.b16 %v8620
    %v9138 = vunpack.c.l.b16 %v8621
    %v9139 = vunpack.c.l.b16 %v8622
    %v9140 = vunpack.c.l.b16 %v8623
    %v9141 = vunpack.c.l.b16 %v8624
    %v9142 = vunpack.c.l.b16 %v8625
    %v9143 = vunpack.c.l.b16 %v8626
    %v9144 = vunpack.c.l.b16 %v8627
    %v9145 = vunpack.c.l.b16 %v8628
    %v9146 = vunpack.c.l.b16 %v8629
    %v9147 = vunpack.c.l.b16 %v8630
    %v9148 = vunpack.c.l.b16 %v8631
    %v9149 = vunpack.c.l.b16 %v8632
    %v9150 = vunpack.c.l.b16 %v8633
    %v9151 = vunpack.c.l.b16 %v8634
    %v9152 = vunpack.c.l.b16 %v8635
    %v9153 = vunpack.c.l.b16 %v8636
    %v9154 = vunpack.c.l.b16 %v8637
    %v9155 = vunpack.c.l.b16 %v8638
    %v9156 = vunpack.c.l.b16 %v8639
    %v9157 = vunpack.c.l.b16 %v8640
    %v9158 = vunpack.c.l.b16 %v8641
    %v9159 = vunpack.c.l.b16 %v8642
    %v9160 = vunpack.c.l.b16 %v8643
    %v9161 = vunpack.c.l.b16 %v8644
    %v9162 = vunpack.c.l.b16 %v8645
    %v9163 = vunpack.c.l.b16 %v8646
    %v9164 = vunpack.c.l.b16 %v8647
    %v9165 = vunpack.c.l.b16 %v8648
    %v9166 = vunpack.c.l.b16 %v8649
    %v9167 = vunpack.c.l.b16 %v8650
    %v9168 = vunpack.c.l.b16 %v8651
    %v9169 = vunpack.c.l.b16 %v8652
    %v9170 = vunpack.c.l.b16 %v8653
    %v9171 = vunpack.c.l.b16 %v8654
    %v9172 = vunpack.c.l.b16 %v8655
    %v9173 = vunpack.c.l.b16 %v8656
    %v9174 = vunpack.c.l.b16 %v8657
    %v9175 = vunpack.c.l.b16 %v8658
    %v9176 = vunpack.c.l.b16 %v8659
    %v9177 = vunpack.c.l.b16 %v8660
    %v9178 = vunpack.c.l.b16 %v8661
    %v9179 = vunpack.c.l.b16 %v8662
    %v9180 = vunpack.c.l.b16 %v8663
    %v9181 = vunpack.c.l.b16 %v8664
    %v9182 = vunpack.c.l.b16 %v8665
    %v9183 = vunpack.c.l.b16 %v8666
    %v9184 = vunpack.c.l.b16 %v8667
    %v9185 = vunpack.c.l.b16 %v8668
    %v9186 = vunpack.c.l.b16 %v8669
    %v9187 = vunpack.c.l.b16 %v8670
    %v9188 = vunpack.c.l.b16 %v8671
    %v9189 = vunpack.c.l.b16 %v8672
    %v9190 = vunpack.c.l.b16 %v8673
    %v9191 = vunpack.c.l.b16 %v8674
    %v9192 = vunpack.c.l.b16 %v8675
    %v9193 = vunpack.c.l.b16 %v8676
    %v9194 = vunpack.c.l.b16 %v8677
    %v9195 = vunpack.c.l.b16 %v8678
    %v9196 = vunpack.c.l.b16 %v8679
    %v9197 = vunpack.c.l.b16 %v8680
    %v9198 = vunpack.c.l.b16 %v8681
    %v9199 = vunpack.c.l.b16 %v8682
    %v9200 = vunpack.c.l.b16 %v8683
    %v9201 = vunpack.c.l.b16 %v8684
    %v9202 = vunpack.c.l.b16 %v8685
    %v9203 = vunpack.c.l.b16 %v8686
    %v9204 = vunpack.c.l.b16 %v8687
    %v9205 = vunpack.c.l.b16 %v8688
    %v9206 = vunpack.c.l.b16 %v8689
    %v9207 = vunpack.c.l.b16 %v8690
    %v9208 = vunpack.c.l.b16 %v8691
    %v9209 = vunpack.c.l.b16 %v8692
    %v9210 = vunpack.c.l.b16 %v8693
    %v9211 = vunpack.c.l.b16 %v8694
    %v9212 = vunpack.c.l.b16 %v8695
    %v9213 = vunpack.c.l.b16 %v8696
    %v9214 = vunpack.c.l.b16 %v8697
    %v9215 = vunpack.c.l.b16 %v8698
    %v9216 = vunpack.c.l.b16 %v8699
    %v9217 = vunpack.c.l.b16 %v8700
    %v9218 = vunpack.c.l.b16 %v8701
    %v9219 = vunpack.c.l.b16 %v8702
    %v9220 = vunpack.c.l.b16 %v8703
    %v9221 = vunpack.c.l.b16 %v8704
    %v9222 = vunpack.c.l.b16 %v8705
    %v9223 = vunpack.c.l.b16 %v8706
    %v9224 = vunpack.c.l.b16 %v8707
    %v9225 = vunpack.c.l.b16 %v8708
    %v9226 = vunpack.c.l.b16 %v8709
    %v9227 = vunpack.c.l.b16 %v8710
    %v9228 = vunpack.c.l.b16 %v8711
    %v9229 = vunpack.c.l.b16 %v8712
    %v9230 = vunpack.c.l.b16 %v8713
    %v9231 = vunpack.c.l.b16 %v8714
    %v9232 = vunpack.c.l.b16 %v8715
    %v9233 = vunpack.c.l.b16 %v8716
    %v9234 = vunpack.c.l.b16 %v8717
    %v9235 = vunpack.c.l.b16 %v8718
    %v9236 = vunpack.c.l.b16 %v8719
    %v9237 = vunpack.c.l.b16 %v8720
    %v9238 = vunpack.c.l.b16 %v8721
    %v9239 = vunpack.c.l.b16 %v8722
    %v9240 = vunpack.c.l.b16 %v8723
    %v9241 = vunpack.c.l.b16 %v8724
    %v9242 = vunpack.c.l.b16 %v8725
    %v9243 = vunpack.c.l.b16 %v8726
    %v9244 = vunpack.c.l.b16 %v8727
    %v9245 = vunpack.c.l.b16 %v8728
    %v9246 = vunpack.c.l.b16 %v8729
    %v9247 = vunpack.c.l.b16 %v8730
    %v9248 = vunpack.c.l.b16 %v8731
    %v9249 = vunpack.c.l.b16 %v8732
    %v9250 = vunpack.c.l.b16 %v8733
    %v9251 = vunpack.c.l.b16 %v8734
    %v9252 = vunpack.c.l.b16 %v8735
    %v9253 = vunpack.c.l.b16 %v8736
    %v9254 = vunpack.c.l.b16 %v8737
    %v9255 = vunpack.c.l.b16 %v8738
    %v9256 = vunpack.c.l.b16 %v8739
    %v9257 = vunpack.c.l.b16 %v8740
    %v9258 = vunpack.c.l.b16 %v8741
    %v9259 = vunpack.c.l.b16 %v8742
    %v9260 = vunpack.c.l.b16 %v8743
    %v9261 = vunpack.c.l.b16 %v8744
    %v9262 = vunpack.c.l.b16 %v8745
    %v9263 = vunpack.c.l.b16 %v8746
    %v9264 = vunpack.c.l.b16 %v8747
    %v9265 = vunpack.c.l.b16 %v8748
    %v9266 = vunpack.c.l.b16 %v8749
    %v9267 = vunpack.c.l.b16 %v8750
    %v9268 = vunpack.c.l.b16 %v8751
    %v9269 = vunpack.c.l.b16 %v8752
    %v9270 = vunpack.c.l.b16 %v8753
    %v9271 = vunpack.c.l.b16 %v8754
    %v9272 = vunpack.c.l.b16 %v8755
    %v9273 = vunpack.c.l.b16 %v8756
    %v9274 = vunpack.c.l.b16 %v8757
    %v9275 = vunpack.c.l.b16 %v8758
    %v9276 = vunpack.c.l.b16 %v8759
    %v9277 = vunpack.c.l.b16 %v8760
    %v9278 = vunpack.c.l.b16 %v8761
    %v9279 = vunpack.c.l.b16 %v8762
    %v9280 = vunpack.c.l.b16 %v8763
    %v9281 = vunpack.c.l.b16 %v8764
    %v9282 = vunpack.c.l.b16 %v8765
    %v9283 = vunpack.c.l.b16 %v8766
    %v9284 = vpack.c.b16 %v9029, %v9028
    %v9285 = vpack.c.b16 %v9031, %v9030
    %v9286 = vpack.c.b16 %v9033, %v9032
    %v9287 = vpack.c.b16 %v9035, %v9034
    %v9288 = vpack.c.b16 %v9037, %v9036
    %v9289 = vpack.c.b16 %v9039, %v9038
    %v9290 = vpack.c.b16 %v9041, %v9040
    %v9291 = vpack.c.b16 %v9043, %v9042
    %v9292 = vpack.c.b16 %v9045, %v9044
    %v9293 = vpack.c.b16 %v9047, %v9046
    %v9294 = vpack.c.b16 %v9049, %v9048
    %v9295 = vpack.c.b16 %v9051, %v9050
    %v9296 = vpack.c.b16 %v9053, %v9052
    %v9297 = vpack.c.b16 %v9055, %v9054
    %v9298 = vpack.c.b16 %v9057, %v9056
    %v9299 = vpack.c.b16 %v9059, %v9058
    %v9300 = vpack.c.b16 %v9061, %v9060
    %v9301 = vpack.c.b16 %v9063, %v9062
    %v9302 = vpack.c.b16 %v9065, %v9064
    %v9303 = vpack.c.b16 %v9067, %v9066
    %v9304 = vpack.c.b16 %v9069, %v9068
    %v9305 = vpack.c.b16 %v9071, %v9070
    %v9306 = vpack.c.b16 %v9073, %v9072
    %v9307 = vpack.c.b16 %v9075, %v9074
    %v9308 = vpack.c.b16 %v9077, %v9076
    %v9309 = vpack.c.b16 %v9079, %v9078
    %v9310 = vpack.c.b16 %v9081, %v9080
    %v9311 = vpack.c.b16 %v9083, %v9082
    %v9312 = vpack.c.b16 %v9085, %v9084
    %v9313 = vpack.c.b16 %v9087, %v9086
    %v9314 = vpack.c.b16 %v9089, %v9088
    %v9315 = vpack.c.b16 %v9091, %v9090
    %v9316 = vpack.c.b16 %v9093, %v9092
    %v9317 = vpack.c.b16 %v9095, %v9094
    %v9318 = vpack.c.b16 %v9097, %v9096
    %v9319 = vpack.c.b16 %v9099, %v9098
    %v9320 = vpack.c.b16 %v9101, %v9100
    %v9321 = vpack.c.b16 %v9103, %v9102
    %v9322 = vpack.c.b16 %v9105, %v9104
    %v9323 = vpack.c.b16 %v9107, %v9106
    %v9324 = vpack.c.b16 %v9109, %v9108
    %v9325 = vpack.c.b16 %v9111, %v9110
    %v9326 = vpack.c.b16 %v9113, %v9112
    %v9327 = vpack.c.b16 %v9115, %v9114
    %v9328 = vpack.c.b16 %v9117, %v9116
    %v9329 = vpack.c.b16 %v9119, %v9118
    %v9330 = vpack.c.b16 %v9121, %v9120
    %v9331 = vpack.c.b16 %v9123, %v9122
    %v9332 = vpack.c.b16 %v9125, %v9124
    %v9333 = vpack.c.b16 %v9127, %v9126
    %v9334 = vpack.c.b16 %v9129, %v9128
    %v9335 = vpack.c.b16 %v9131, %v9130
    %v9336 = vpack.c.b16 %v9133, %v9132
    %v9337 = vpack.c.b16 %v9135, %v9134
    %v9338 = vpack.c.b16 %v9137, %v9136
    %v9339 = vpack.c.b16 %v9139, %v9138
    %v9340 = vpack.c.b16 %v9141, %v9140
    %v9341 = vpack.c.b16 %v9143, %v9142
    %v9342 = vpack.c.b16 %v9145, %v9144
    %v9343 = vpack.c.b16 %v9147, %v9146
    %v9344 = vpack.c.b16 %v9149, %v9148
    %v9345 = vpack.c.b16 %v9151, %v9150
    %v9346 = vpack.c.b16 %v9153, %v9152
    %v9347 = vpack.c.b16 %v9155, %v9154
    %v9348 = vpack.c.b16 %v9157, %v9156
    %v9349 = vpack.c.b16 %v9159, %v9158
    %v9350 = vpack.c.b16 %v9161, %v9160
    %v9351 = vpack.c.b16 %v9163, %v9162
    %v9352 = vpack.c.b16 %v9165, %v9164
    %v9353 = vpack.c.b16 %v9167, %v9166
    %v9354 = vpack.c.b16 %v9169, %v9168
    %v9355 = vpack.c.b16 %v9171, %v9170
    %v9356 = vpack.c.b16 %v9173, %v9172
    %v9357 = vpack.c.b16 %v9175, %v9174
    %v9358 = vpack.c.b16 %v9177, %v9176
    %v9359 = vpack.c.b16 %v9179, %v9178
    %v9360 = vpack.c.b16 %v9181, %v9180
    %v9361 = vpack.c.b16 %v9183, %v9182
    %v9362 = vpack.c.b16 %v9185, %v9184
    %v9363 = vpack.c.b16 %v9187, %v9186
    %v9364 = vpack.c.b16 %v9189, %v9188
    %v9365 = vpack.c.b16 %v9191, %v9190
    %v9366 = vpack.c.b16 %v9193, %v9192
    %v9367 = vpack.c.b16 %v9195, %v9194
    %v9368 = vpack.c.b16 %v9197, %v9196
    %v9369 = vpack.c.b16 %v9199, %v9198
    %v9370 = vpack.c.b16 %v9201, %v9200
    %v9371 = vpack.c.b16 %v9203, %v9202
    %v9372 = vpack.c.b16 %v9205, %v9204
    %v9373 = vpack.c.b16 %v9207, %v9206
    %v9374 = vpack.c.b16 %v9209, %v9208
    %v9375 = vpack.c.b16 %v9211, %v9210
    %v9376 = vpack.c.b16 %v9213, %v9212
    %v9377 = vpack.c.b16 %v9215, %v9214
    %v9378 = vpack.c.b16 %v9217, %v9216
    %v9379 = vpack.c.b16 %v9219, %v9218
    %v9380 = vpack.c.b16 %v9221, %v9220
    %v9381 = vpack.c.b16 %v9223, %v9222
    %v9382 = vpack.c.b16 %v9225, %v9224
    %v9383 = vpack.c.b16 %v9227, %v9226
    %v9384 = vpack.c.b16 %v9229, %v9228
    %v9385 = vpack.c.b16 %v9231, %v9230
    %v9386 = vpack.c.b16 %v9233, %v9232
    %v9387 = vpack.c.b16 %v9235, %v9234
    %v9388 = vpack.c.b16 %v9237, %v9236
    %v9389 = vpack.c.b16 %v9239, %v9238
    %v9390 = vpack.c.b16 %v9241, %v9240
    %v9391 = vpack.c.b16 %v9243, %v9242
    %v9392 = vpack.c.b16 %v9245, %v9244
    %v9393 = vpack.c.b16 %v9247, %v9246
    %v9394 = vpack.c.b16 %v9249, %v9248
    %v9395 = vpack.c.b16 %v9251, %v9250
    %v9396 = vpack.c.b16 %v9253, %v9252
    %v9397 = vpack.c.b16 %v9255, %v9254
    %v9398 = vpack.c.b16 %v9257, %v9256
    %v9399 = vpack.c.b16 %v9259, %v9258
    %v9400 = vpack.c.b16 %v9261, %v9260
    %v9401 = vpack.c.b16 %v9263, %v9262
    %v9402 = vpack.c.b16 %v9265, %v9264
    %v9403 = vpack.c.b16 %v9267, %v9266
    %v9404 = vpack.c.b16 %v9269, %v9268
    %v9405 = vpack.c.b16 %v9271, %v9270
    %v9406 = vpack.c.b16 %v9273, %v9272
    %v9407 = vpack.c.b16 %v9275, %v9274
    %v9408 = vpack.c.b16 %v9277, %v9276
    %v9409 = vpack.c.b16 %v9279, %v9278
    %v9410 = vpack.c.b16 %v9281, %v9280
    %v9411 = vpack.c.b16 %v9283, %v9282
    %9540 = vmatpush.bf16.msra.mxu0 %v9291
    %9541 = vmatpush.bf16.msra.mxu0 %v9290
    %9542 = vmatpush.bf16.msra.mxu0 %v9289
    %9543 = vmatpush.bf16.msra.mxu0 %v9288
    %9544 = vmatpush.bf16.msra.mxu0 %v9287
    %9545 = vmatpush.bf16.msra.mxu0 %v9286
    %9546 = vmatpush.bf16.msra.mxu0 %v9285
    %9547 = vmatpush.bf16.msra.mxu0 %v9284
    %9548 = vmatmul.bf16.gmra.mxu0 %v8494
    %v9549 = vpop.f32.mrf.mxu0
    %v9550 = vadd.f32 %v8770, %v9549
    %v9551 = vpop.f32.mrf.mxu0
    %9552 = vdwg.mxu0
    %9553 = vmatpush.bf16.msra.mxu0 %v9299
    %9554 = vmatpush.bf16.msra.mxu0 %v9298
    %9555 = vmatpush.bf16.msra.mxu0 %v9297
    %9556 = vmatpush.bf16.msra.mxu0 %v9296
    %9557 = vmatpush.bf16.msra.mxu0 %v9295
    %9558 = vmatpush.bf16.msra.mxu0 %v9294
    %9559 = vmatpush.bf16.msra.mxu0 %v9293
    %9560 = vmatpush.bf16.msra.mxu0 %v9292
    %9561 = vmatmul.bf16.gmra.mxu0 %v8495
    %v9562 = vpop.f32.mrf.mxu0
    %v9563 = vadd.f32 %v9550, %v9562
    %v9564 = vpop.f32.mrf.mxu0
    %9565 = vdwg.mxu0
    %9566 = vmatpush.bf16.msra.mxu0 %v9307
    %9567 = vmatpush.bf16.msra.mxu0 %v9306
    %9568 = vmatpush.bf16.msra.mxu0 %v9305
    %9569 = vmatpush.bf16.msra.mxu0 %v9304
    %9570 = vmatpush.bf16.msra.mxu0 %v9303
    %9571 = vmatpush.bf16.msra.mxu0 %v9302
    %9572 = vmatpush.bf16.msra.mxu0 %v9301
    %9573 = vmatpush.bf16.msra.mxu0 %v9300
    %9574 = vmatmul.bf16.gmra.mxu0 %v8496
    %v9575 = vpop.f32.mrf.mxu0
    %v9576 = vadd.f32 %v9563, %v9575
    %v9577 = vpop.f32.mrf.mxu0
    %9578 = vdwg.mxu0
    %9579 = vmatpush.bf16.msra.mxu0 %v9315
    %9580 = vmatpush.bf16.msra.mxu0 %v9314
    %9581 = vmatpush.bf16.msra.mxu0 %v9313
    %9582 = vmatpush.bf16.msra.mxu0 %v9312
    %9583 = vmatpush.bf16.msra.mxu0 %v9311
    %9584 = vmatpush.bf16.msra.mxu0 %v9310
    %9585 = vmatpush.bf16.msra.mxu0 %v9309
    %9586 = vmatpush.bf16.msra.mxu0 %v9308
    %9587 = vmatmul.bf16.gmra.mxu0 %v8497
    %v9588 = vpop.f32.mrf.mxu0
    %v9589 = vadd.f32 %v9576, %v9588
    %v9590 = vpop.f32.mrf.mxu0
    %9591 = vdwg.mxu0
    %9592 = vmatpush.bf16.msra.mxu0 %v9323
    %9593 = vmatpush.bf16.msra.mxu0 %v9322
    %9594 = vmatpush.bf16.msra.mxu0 %v9321
    %9595 = vmatpush.bf16.msra.mxu0 %v9320
    %9596 = vmatpush.bf16.msra.mxu0 %v9319
    %9597 = vmatpush.bf16.msra.mxu0 %v9318
    %9598 = vmatpush.bf16.msra.mxu0 %v9317
    %9599 = vmatpush.bf16.msra.mxu0 %v9316
    %9600 = vmatmul.bf16.gmra.mxu0 %v8498
    %v9601 = vpop.f32.mrf.mxu0
    %v9602 = vadd.f32 %v9589, %v9601
    %v9603 = vpop.f32.mrf.mxu0
    %9604 = vdwg.mxu0
    %9605 = vmatpush.bf16.msra.mxu0 %v9331
    %9606 = vmatpush.bf16.msra.mxu0 %v9330
    %9607 = vmatpush.bf16.msra.mxu0 %v9329
    %9608 = vmatpush.bf16.msra.mxu0 %v9328
    %9609 = vmatpush.bf16.msra.mxu0 %v9327
    %9610 = vmatpush.bf16.msra.mxu0 %v9326
    %9611 = vmatpush.bf16.msra.mxu0 %v9325
    %9612 = vmatpush.bf16.msra.mxu0 %v9324
    %9613 = vmatmul.bf16.gmra.mxu0 %v8499
    %v9614 = vpop.f32.mrf.mxu0
    %v9615 = vadd.f32 %v9602, %v9614
    %v9616 = vpop.f32.mrf.mxu0
    %9617 = vdwg.mxu0
    %9618 = vmatpush.bf16.msra.mxu0 %v9339
    %9619 = vmatpush.bf16.msra.mxu0 %v9338
    %9620 = vmatpush.bf16.msra.mxu0 %v9337
    %9621 = vmatpush.bf16.msra.mxu0 %v9336
    %9622 = vmatpush.bf16.msra.mxu0 %v9335
    %9623 = vmatpush.bf16.msra.mxu0 %v9334
    %9624 = vmatpush.bf16.msra.mxu0 %v9333
    %9625 = vmatpush.bf16.msra.mxu0 %v9332
    %9626 = vmatmul.bf16.gmra.mxu0 %v8500
    %v9627 = vpop.f32.mrf.mxu0
    %v9628 = vadd.f32 %v9615, %v9627
    %v9629 = vpop.f32.mrf.mxu0
    %9630 = vdwg.mxu0
    %9631 = vmatpush.bf16.msra.mxu0 %v9347
    %9632 = vmatpush.bf16.msra.mxu0 %v9346
    %9633 = vmatpush.bf16.msra.mxu0 %v9345
    %9634 = vmatpush.bf16.msra.mxu0 %v9344
    %9635 = vmatpush.bf16.msra.mxu0 %v9343
    %9636 = vmatpush.bf16.msra.mxu0 %v9342
    %9637 = vmatpush.bf16.msra.mxu0 %v9341
    %9638 = vmatpush.bf16.msra.mxu0 %v9340
    %9639 = vmatmul.bf16.gmra.mxu0 %v8501
    %v9640 = vpop.f32.mrf.mxu0
    %v9641 = vadd.f32 %v9628, %v9640
    %v9642 = vpop.f32.mrf.mxu0
    %9643 = vdwg.mxu0
    %9644 = vmatpush.bf16.msra.mxu0 %v9355
    %9645 = vmatpush.bf16.msra.mxu0 %v9354
    %9646 = vmatpush.bf16.msra.mxu0 %v9353
    %9647 = vmatpush.bf16.msra.mxu0 %v9352
    %9648 = vmatpush.bf16.msra.mxu0 %v9351
    %9649 = vmatpush.bf16.msra.mxu0 %v9350
    %9650 = vmatpush.bf16.msra.mxu0 %v9349
    %9651 = vmatpush.bf16.msra.mxu0 %v9348
    %9652 = vmatmul.bf16.gmra.mxu0 %v8502
    %v9653 = vpop.f32.mrf.mxu0
    %v9654 = vadd.f32 %v9641, %v9653
    %v9655 = vpop.f32.mrf.mxu0
    %9656 = vdwg.mxu0
    %9657 = vmatpush.bf16.msra.mxu0 %v9363
    %9658 = vmatpush.bf16.msra.mxu0 %v9362
    %9659 = vmatpush.bf16.msra.mxu0 %v9361
    %9660 = vmatpush.bf16.msra.mxu0 %v9360
    %9661 = vmatpush.bf16.msra.mxu0 %v9359
    %9662 = vmatpush.bf16.msra.mxu0 %v9358
    %9663 = vmatpush.bf16.msra.mxu0 %v9357
    %9664 = vmatpush.bf16.msra.mxu0 %v9356
    %9665 = vmatmul.bf16.gmra.mxu0 %v8503
    %v9666 = vpop.f32.mrf.mxu0
    %v9667 = vadd.f32 %v9654, %v9666
    %v9668 = vpop.f32.mrf.mxu0
    %9669 = vdwg.mxu0
    %9670 = vmatpush.bf16.msra.mxu0 %v9371
    %9671 = vmatpush.bf16.msra.mxu0 %v9370
    %9672 = vmatpush.bf16.msra.mxu0 %v9369
    %9673 = vmatpush.bf16.msra.mxu0 %v9368
    %9674 = vmatpush.bf16.msra.mxu0 %v9367
    %9675 = vmatpush.bf16.msra.mxu0 %v9366
    %9676 = vmatpush.bf16.msra.mxu0 %v9365
    %9677 = vmatpush.bf16.msra.mxu0 %v9364
    %9678 = vmatmul.bf16.gmra.mxu0 %v8504
    %v9679 = vpop.f32.mrf.mxu0
    %v9680 = vadd.f32 %v9667, %v9679
    %v9681 = vpop.f32.mrf.mxu0
    %9682 = vdwg.mxu0
    %9683 = vmatpush.bf16.msra.mxu0 %v9379
    %9684 = vmatpush.bf16.msra.mxu0 %v9378
    %9685 = vmatpush.bf16.msra.mxu0 %v9377
    %9686 = vmatpush.bf16.msra.mxu0 %v9376
    %9687 = vmatpush.bf16.msra.mxu0 %v9375
    %9688 = vmatpush.bf16.msra.mxu0 %v9374
    %9689 = vmatpush.bf16.msra.mxu0 %v9373
    %9690 = vmatpush.bf16.msra.mxu0 %v9372
    %9691 = vmatmul.bf16.gmra.mxu0 %v8505
    %v9692 = vpop.f32.mrf.mxu0
    %v9693 = vadd.f32 %v9680, %v9692
    %v9694 = vpop.f32.mrf.mxu0
    %9695 = vdwg.mxu0
    %9696 = vmatpush.bf16.msra.mxu0 %v9387
    %9697 = vmatpush.bf16.msra.mxu0 %v9386
    %9698 = vmatpush.bf16.msra.mxu0 %v9385
    %9699 = vmatpush.bf16.msra.mxu0 %v9384
    %9700 = vmatpush.bf16.msra.mxu0 %v9383
    %9701 = vmatpush.bf16.msra.mxu0 %v9382
    %9702 = vmatpush.bf16.msra.mxu0 %v9381
    %9703 = vmatpush.bf16.msra.mxu0 %v9380
    %9704 = vmatmul.bf16.gmra.mxu0 %v8506
    %v9705 = vpop.f32.mrf.mxu0
    %v9706 = vadd.f32 %v9693, %v9705
    %v9707 = vpop.f32.mrf.mxu0
    %9708 = vdwg.mxu0
    %9709 = vmatpush.bf16.msra.mxu0 %v9395
    %9710 = vmatpush.bf16.msra.mxu0 %v9394
    %9711 = vmatpush.bf16.msra.mxu0 %v9393
    %9712 = vmatpush.bf16.msra.mxu0 %v9392
    %9713 = vmatpush.bf16.msra.mxu0 %v9391
    %9714 = vmatpush.bf16.msra.mxu0 %v9390
    %9715 = vmatpush.bf16.msra.mxu0 %v9389
    %9716 = vmatpush.bf16.msra.mxu0 %v9388
    %9717 = vmatmul.bf16.gmra.mxu0 %v8507
    %v9718 = vpop.f32.mrf.mxu0
    %v9719 = vadd.f32 %v9706, %v9718
    %v9720 = vpop.f32.mrf.mxu0
    %9721 = vdwg.mxu0
    %9722 = vmatpush.bf16.msra.mxu0 %v9403
    %9723 = vmatpush.bf16.msra.mxu0 %v9402
    %9724 = vmatpush.bf16.msra.mxu0 %v9401
    %9725 = vmatpush.bf16.msra.mxu0 %v9400
    %9726 = vmatpush.bf16.msra.mxu0 %v9399
    %9727 = vmatpush.bf16.msra.mxu0 %v9398
    %9728 = vmatpush.bf16.msra.mxu0 %v9397
    %9729 = vmatpush.bf16.msra.mxu0 %v9396
    %9730 = vmatmul.bf16.gmra.mxu0 %v8508
    %v9731 = vpop.f32.mrf.mxu0
    %v9732 = vadd.f32 %v9719, %v9731
    %v9733 = vpop.f32.mrf.mxu0
    %9734 = vdwg.mxu0
    %9735 = vmatpush.bf16.msra.mxu0 %v9411
    %9736 = vmatpush.bf16.msra.mxu0 %v9410
    %9737 = vmatpush.bf16.msra.mxu0 %v9409
    %9738 = vmatpush.bf16.msra.mxu0 %v9408
    %9739 = vmatpush.bf16.msra.mxu0 %v9407
    %9740 = vmatpush.bf16.msra.mxu0 %v9406
    %9741 = vmatpush.bf16.msra.mxu0 %v9405
    %9742 = vmatpush.bf16.msra.mxu0 %v9404
    %9743 = vmatmul.bf16.gmra.mxu0 %v8509
    %v9744 = vpop.f32.mrf.mxu0
    %v9745 = vadd.f32 %v9732, %v9744
    %v9746 = vpop.f32.mrf.mxu0
    %9747 = vdwg.mxu0
    %v9748 = vadd.f32 %v7462, %v9745
    %s9749 = scalar_lea.vmem [#allocation32], 2
    %v9750 = vld [vmem:[%s9749] sm:$0x1]
    %s9751 = scalar_lea.vmem [#allocation34], 2
    %v9752 = vld [vmem:[%s9751] sm:$0x1]
    %9753 = vadd.xlane.f32.xlu0 %v9748
    %v9754 = vpop.xlane.xlu0 %9753
    %v9755 = vmul.f32 %v9754, %v1526
    %v9756 = vsub.f32 %v9748, %v9755
    %v9757 = vmul.f32 %v9756, %v9756
    %9758 = vadd.xlane.f32.xlu0 %v9757
    %v9759 = vpop.xlane.xlu0 %9758
    %v9760 = vmul.f32 %v9759, %v1526
    %v9761 = vadd.f32 %v9760, 1e-05
    %v9762 = vrsqrt.pop %v9761
    %v9763 = vmul.f32 %v9762, %v9761
    %v9764 = vmul.f32 %v9763, %v9762
    %v9765 = vmul.f32 0.5, %v9764
    %v9766 = vsub.f32 1.5, %v9765
    %v9767 = vmul.f32 %v9762, %v9766
    %vm9768 = vweird.f32 %v9761
    %vm9769 = vweird.f32 %v9762
    %vm9770 = vmor %vm9768, %vm9769
    %v9771 = vsel %vm9770, %v9762, %v9767
    %v9772 = vmul.f32 %v9756, %v9771
    %v9774 = vperm.slane %v9750, 0
    %v9776 = vmul.f32 %v9772, %v9774
    %v9778 = vperm.slane %v9752, 0
    %v9780 = vadd.f32 %v9776, %v9778
    %v9781 = vld [vmem:[#allocation16] sm:$0x3]
    %vm9782 = vcmask 64512
    %v9784 = vsel %vm9782, %v9781, 0
    %9786 = vmatpush.msra.mxu0 0.0
    %9787 = vmatpush.msra.mxu0 0.0
    %9788 = vmatpush.msra.mxu0 0.0
    %9789 = vmatpush.msra.mxu0 0.0
    %9790 = vmatpush.msra.mxu0 0.0
    %9791 = vmatpush.msra.mxu0 0.0
    %9792 = vmatpush.msra.mxu0 0.0
    %9793 = vmatpush.msra.mxu0 0.0
    %9794 = vmatpush.msra.mxu0 0.0
    %9795 = vmatpush.msra.mxu0 0.0
    %9796 = vmatpush.msra.mxu0 0.0
    %9797 = vmatpush.msra.mxu0 0.0
    %9798 = vmatpush.msra.mxu0 0.0
    %9799 = vmatpush.msra.mxu0 0.0
    %9800 = vmatpush.msra.mxu0 0.0
    %9801 = vmatpush.msra.mxu0 %v9780
    %9802 = vmatmul.f32.gmra.mxu0 %v9784
    %v9803 = vpop.f32.mrf.mxu0
    %v9804 = vadd.f32 0.0, %v9803
    %9805 = vdwg.mxu0
    %v9806 = vld [vmem:[%s21] sm:$0xff]
    %v9807 = vld [vmem:[%s21 + $0x8] sm:$0xff]
    %v9808 = vld [vmem:[%s21 + $0x10] sm:$0xff]
    %v9809 = vld [vmem:[%s21 + $0x18] sm:$0xff]
    %v9810 = vld [vmem:[%s21 + $0x20] sm:$0xff]
    %v9811 = vld [vmem:[%s21 + $0x28] sm:$0xff]
    %v9812 = vld [vmem:[%s21 + $0x30] sm:$0xff]
    %v9813 = vld [vmem:[%s21 + $0x38] sm:$0xff]
    %v9814 = vld [vmem:[%s21 + $0x40] sm:$0xff]
    %v9815 = vld [vmem:[%s21 + $0x48] sm:$0xff]
    %v9816 = vld [vmem:[%s21 + $0x50] sm:$0xff]
    %v9817 = vld [vmem:[%s21 + $0x58] sm:$0xff]
    %v9818 = vld [vmem:[%s21 + $0x60] sm:$0xff]
    %v9819 = vld [vmem:[%s21 + $0x68] sm:$0xff]
    %v9820 = vld [vmem:[%s21 + $0x70] sm:$0xff]
    %v9821 = vld [vmem:[%s21 + $0x78] sm:$0xff]
    %v9822 = vld [vmem:[#allocation35] sm:$0x1]
    %v9824 = vperm.slane %v9822, 0
    %9826 = vmatpush.msra.mxu0 %v9821
    %9827 = vmatpush.msra.mxu0 %v9820
    %9828 = vmatpush.msra.mxu0 %v9819
    %9829 = vmatpush.msra.mxu0 %v9818
    %9830 = vmatpush.msra.mxu0 %v9817
    %9831 = vmatpush.msra.mxu0 %v9816
    %9832 = vmatpush.msra.mxu0 %v9815
    %9833 = vmatpush.msra.mxu0 %v9814
    %9834 = vmatpush.msra.mxu0 %v9813
    %9835 = vmatpush.msra.mxu0 %v9812
    %9836 = vmatpush.msra.mxu0 %v9811
    %9837 = vmatpush.msra.mxu0 %v9810
    %9838 = vmatpush.msra.mxu0 %v9809
    %9839 = vmatpush.msra.mxu0 %v9808
    %9840 = vmatpush.msra.mxu0 %v9807
    %9841 = vmatpush.msra.mxu0 %v9806
    %9842 = vmatmul.f32.gmra.mxu0 %v9804
    %v9843 = vpop.f32.mrf.mxu0
    %v9844 = vadd.f32 %v9824, %v9843
    %9845 = vdwg.mxu0
    %v9846 = vmax.f32 %v9844, 0.0
    %v9847 = vld [vmem:[%s23] sm:$0xff]
    %v9848 = vld [vmem:[%s23 + $0x8] sm:$0xff]
    %v9849 = vld [vmem:[%s23 + $0x10] sm:$0xff]
    %v9850 = vld [vmem:[%s23 + $0x18] sm:$0xff]
    %v9851 = vld [vmem:[%s23 + $0x20] sm:$0xff]
    %v9852 = vld [vmem:[%s23 + $0x28] sm:$0xff]
    %v9853 = vld [vmem:[%s23 + $0x30] sm:$0xff]
    %v9854 = vld [vmem:[%s23 + $0x38] sm:$0xff]
    %v9855 = vld [vmem:[#allocation37] sm:$0x1]
    %v9857 = vperm.slane %v9855, 0
    %v9860 = vsel %vm882, %v9846, 0
    %9862 = vmatpush.msra.mxu0 0.0
    %9863 = vmatpush.msra.mxu0 0.0
    %9864 = vmatpush.msra.mxu0 0.0
    %9865 = vmatpush.msra.mxu0 0.0
    %9866 = vmatpush.msra.mxu0 0.0
    %9867 = vmatpush.msra.mxu0 0.0
    %9868 = vmatpush.msra.mxu0 0.0
    %9869 = vmatpush.msra.mxu0 0.0
    %9870 = vmatpush.msra.mxu0 %v9854
    %9871 = vmatpush.msra.mxu0 %v9853
    %9872 = vmatpush.msra.mxu0 %v9852
    %9873 = vmatpush.msra.mxu0 %v9851
    %9874 = vmatpush.msra.mxu0 %v9850
    %9875 = vmatpush.msra.mxu0 %v9849
    %9876 = vmatpush.msra.mxu0 %v9848
    %9877 = vmatpush.msra.mxu0 %v9847
    %9878 = vmatmul.f32.gmra.mxu0 %v9860
    %v9879 = vpop.f32.mrf.mxu0
    %v9880 = vadd.f32 %v9857, %v9879
    %9881 = vdwg.mxu0
    %vm9882 = vcmask 17408
    %9883 = vst.msk [vmem:[#allocation38] sm:$0x3] %vm9882, %v9880
    // Predicated region
    $region194: #{spectral_classifier_forward.1} parent=1 // pred_check
      _
    $region195: #{spectral_classifier_forward.1} parent=1 // pred_check_branch
      %9885 = sbr.rel (0) target = $region197
    $region196: #{spectral_classifier_forward.1} parent=1 // pred_region
      %9887 = vsyncadd [#allocation4], 0
      %s9889 = sshll.u32 [#allocation38], 4
      %s9890 = int_to_ptr.vmem [resolvable:$true] %s9889
      %s9891 = sshll.u32 %s25, 4
      %s9892 = int_to_ptr.hbm [resolvable:$true] %s9891
      %9894 = dma.vmem_to_hbm [thread:$0]  %s9890, 32, %s9892, [#allocation4]
    $region197: #{spectral_classifier_forward.1} parent=1 // pred_fallthru
      _
    // Predicated region
    $region198: #{spectral_classifier_forward.1} parent=1 // pred_check
      _
    $region199: #{spectral_classifier_forward.1} parent=1 // pred_check_branch
      %9896 = sbr.rel (0) target = $region201
    $region200: #{spectral_classifier_forward.1} parent=1 // pred_region
      %9898 = dma.done [#allocation4], 32
    $region201: #{spectral_classifier_forward.1} parent=1 // pred_fallthru
      _
    %9899 = vsyncpa [#allocation3], 1
    %9900 = vsyncpa [#allocation6], 1
    %9901 = vsyncpa [#allocation9], 1
    %9902 = vsyncpa [#allocation12], 1
    %9903 = vsyncpa [#allocation15], 1
    %9904 = vsyncpa [#allocation18], 1
    %9905 = vsyncpa [#allocation21], 1
    %9906 = vsyncpa [#allocation24], 1
    %9907 = vsyncpa [#allocation27], 1
    %9908 = vsyncpa [#allocation30], 1
    %9909 = vsyncpa [#allocation33], 1
    %9910 = vsyncpa [#allocation36], 1
    %9911 = vsyncpa [#allocation4], 1

</llo_original>
